<compile_context>
chip_gen: v7x
topology: tpu7x:2x2x1
jax: 0.10.0
libtpu: 0.0.40
codegen_flags: <defaults>
</compile_context>

<pallas_src>
import functools

import jax
import jax.numpy as jnp
from jax.experimental import pallas as pl
from jax.experimental.pallas import tpu as pltpu


# ----------------------------------------------------------------------------
# Fused Conv3x3 (padding=1) + folded BatchNorm + ReLU + MaxPool2x2 (stride 2)
# ----------------------------------------------------------------------------
def conv_bn_relu_pool_kernel(p_ref, w_ref, scale_ref, shift_ref, o_ref, *, N, M):
    # p_ref:     (N*4*M, K)  bf16 im2col patches, rows grouped batch-major by
    #                        2x2 pooling-window parity (4 groups of M rows/image)
    # w_ref:     (K, Cp)     bf16 3x3 weights flattened to K = 9*Cin
    # scale_ref: (1, Cp), shift_ref: (1, Cp)   folded BN affine (fp32)
    # o_ref:     (N*M, Cp)   pooled bf16 output, M = (H/2)*(W/2) rows per image
    y = jnp.dot(p_ref[...], w_ref[...], preferred_element_type=jnp.float32)
    y = jnp.maximum(y * scale_ref[...] + shift_ref[...], 0.0)      # (N*4*M, Cp)
    # fused 2x2 maxpool: max over the four parity groups (8-aligned slices).
    for n in range(N):
        base = n * 4 * M
        p00 = y[base + 0 * M: base + 1 * M]
        p01 = y[base + 1 * M: base + 2 * M]
        p10 = y[base + 2 * M: base + 3 * M]
        p11 = y[base + 3 * M: base + 4 * M]
        o_ref[n * M:(n + 1) * M] = jnp.maximum(
            jnp.maximum(p00, p01), jnp.maximum(p10, p11)).astype(o_ref.dtype)


def conv_bn_relu_pool(x_nhwc, w, scale, shift):
    """x_nhwc: (N,H,W,Cin); w: (3,3,Cin,Cout). Returns (N,H/2,W/2,Cout) bf16."""
    N, H, W_, Cin = x_nhwc.shape
    Cout = w.shape[-1]
    Hh, Wh = H // 2, W_ // 2
    M = Hh * Wh
    K = 9 * Cin

    # Pad Cout up to a lane-dense multiple of 128 (zero channels stay exactly 0
    # through scale=0/shift=0 + ReLU); sliced back off after the kernel.
    Cp = ((Cout + 127) // 128) * 128
    if Cp != Cout:
        w = jnp.pad(w, ((0, 0), (0, 0), (0, 0), (0, Cp - Cout)))
        scale = jnp.pad(scale, (0, Cp - Cout))
        shift = jnp.pad(shift, (0, Cp - Cout))

    # im2col in the wrapper (cheap XLA data movement; all heavy math in Pallas).
    xp = jnp.pad(x_nhwc, ((0, 0), (1, 1), (1, 1), (0, 0)))          # padding=1
    cols = [xp[:, dy:dy + H, dx:dx + W_, :] for dy in range(3) for dx in range(3)]
    patches = jnp.concatenate(cols, axis=-1)                        # (N,H,W,9*Cin)
    # group rows by pooling-window parity: group g = (h%2)*2 + (w%2),
    # within-group row index = hh*Wh + wh; batch-major.
    patches = patches.reshape(N, Hh, 2, Wh, 2, K)
    patches = jnp.transpose(patches, (0, 2, 4, 1, 3, 5)).reshape(N * 4 * M, K)
    patches = patches.astype(jnp.bfloat16)                          # bf16 HBM traffic

    w2 = w.reshape(K, Cp).astype(jnp.bfloat16)   # (dy,dx,cin) flattening matches patches
    scale2 = scale.reshape(1, Cp).astype(jnp.float32)
    shift2 = shift.reshape(1, Cp).astype(jnp.float32)

    out = pl.pallas_call(
        functools.partial(conv_bn_relu_pool_kernel, N=N, M=M),
        out_shape=jax.ShapeDtypeStruct((N * M, Cp), jnp.bfloat16),
        grid_spec=pltpu.PrefetchScalarGridSpec(
            num_scalar_prefetch=0,
            grid=(1,),                               # whole batch in one step
            in_specs=[
                pl.BlockSpec((N * 4 * M, K), lambda i: (0, 0)),
                pl.BlockSpec((K, Cp), lambda i: (0, 0)),
                pl.BlockSpec((1, Cp), lambda i: (0, 0)),
                pl.BlockSpec((1, Cp), lambda i: (0, 0)),
            ],
            out_specs=pl.BlockSpec((N * M, Cp), lambda i: (0, 0)),
        ),
        compiler_params=pltpu.CompilerParams(
            dimension_semantics=("arbitrary",)),
    )(patches, w2, scale2, shift2)

    out = out.reshape(N, Hh, Wh, Cp)
    if Cp != Cout:
        out = out[..., :Cout]
    return out


# ----------------------------------------------------------------------------
# Linear (+ optional ReLU): full-K weight tile per step, Dout tiled (parallel).
# Weights int8 (per-column fp32 scales) or bf16; bf16 activations; fp32 acc.
# ----------------------------------------------------------------------------
def linear_kernel(x_ref, w_ref, s_ref, b_ref, o_ref, *, relu):
    # int8 integers are exactly representable in bf16; the per-column scale is
    # applied post-matmul, so dequant is just a VPU cast (no-op for bf16 weights).
    w = w_ref[...].astype(jnp.bfloat16)
    y = jnp.dot(x_ref[...], w, preferred_element_type=jnp.float32)
    y = y * s_ref[...] + b_ref[...]
    if relu:
        y = jnp.maximum(y, 0.0)
    o_ref[...] = y.astype(o_ref.dtype)


def linear(x, w, col_scale, bias, *, relu, out_dtype, tn=256):
    Nb, K = x.shape
    Dout = w.shape[1]
    if Dout % tn != 0:
        tn = Dout
    x = x.astype(jnp.bfloat16)
    return pl.pallas_call(
        functools.partial(linear_kernel, relu=relu),
        out_shape=jax.ShapeDtypeStruct((Nb, Dout), out_dtype),
        grid_spec=pltpu.PrefetchScalarGridSpec(
            num_scalar_prefetch=0,
            grid=(Dout // tn,),                      # Dout tiles (parallel)
            in_specs=[
                pl.BlockSpec((Nb, K), lambda j: (0, 0)),
                pl.BlockSpec((K, tn), lambda j: (0, j)),
                pl.BlockSpec((1, tn), lambda j: (0, j)),
                pl.BlockSpec((1, tn), lambda j: (0, j)),
            ],
            out_specs=pl.BlockSpec((Nb, tn), lambda j: (0, j)),
        ),
        compiler_params=pltpu.CompilerParams(
            dimension_semantics=("parallel",)),
    )(x, w, col_scale, bias)


def quantize_int8_per_col(w):
    maxabs = jnp.max(jnp.abs(w), axis=0, keepdims=True)          # (1, Dout)
    scale = jnp.maximum(maxabs, 1e-8) / 127.0
    q = jnp.clip(jnp.round(w / scale), -127, 127).astype(jnp.int8)
    return q, scale.astype(jnp.float32)


# ----------------------------------------------------------------------------
# Parameter init (deterministic, synthetic) — shapes follow vgg('05')
# ----------------------------------------------------------------------------
def init_params(key, *, in_ch=3, spatial=32):
    cfg_conv = [64, 'M', 128, 'M']           # cfg_dict_conv['05']
    cfg_lin = [8192, 512, 512, 10]           # cfg_dict_linear['05']
    eps = 1e-5

    keys = list(jax.random.split(key, 64))
    ki = iter(keys)

    features = []                            # list of (w, scale, shift); pool is fused
    ch, sp = in_ch, spatial
    for v in cfg_conv:
        if v == 'M':
            sp //= 2
            continue
        k1, k2, k3, k4, k5 = (next(ki) for _ in range(5))
        n = 3 * 3 * v
        w = jax.random.normal(k1, (3, 3, ch, v), jnp.float32) * jnp.sqrt(2.0 / n)
        bias = jnp.zeros((v,), jnp.float32)                 # conv bias zeroed in __init__
        gamma = 1.0 + 0.1 * jax.random.normal(k2, (v,), jnp.float32)
        beta = 0.1 * jax.random.normal(k3, (v,), jnp.float32)
        rmean = 0.1 * jax.random.normal(k4, (v,), jnp.float32)
        rvar = 1.0 + 0.1 * jax.random.uniform(k5, (v,), jnp.float32)
        scale = gamma / jnp.sqrt(rvar + eps)                # fold BN (eval) + conv bias
        shift = beta + scale * (bias - rmean)
        features.append((w, scale, shift))
        ch = v

    Cf, Hf, Wf = ch, sp, sp                  # final feature map (128, 8, 8)

    classifier = []                          # list of (w[int8|bf16], col_scale, bias)
    for i in range(len(cfg_lin) - 1):
        kw, kb = next(ki), next(ki)
        fan_in = cfg_lin[i]
        bound = 1.0 / float(fan_in) ** 0.5
        w = jax.random.uniform(kw, (cfg_lin[i], cfg_lin[i + 1]), jnp.float32,
                               -bound, bound)
        b = jax.random.uniform(kb, (cfg_lin[i + 1],), jnp.float32, -bound, bound)
        if i == 0:
            # Fold the NCHW-flatten permutation (PyTorch x.view(N,-1)) into
            # fc1's rows so the classifier consumes the NHWC-flattened features
            # directly (no transpose between features and classifier).
            w = (w.reshape(Cf, Hf, Wf, cfg_lin[i + 1])
                   .transpose(1, 2, 0, 3)
                   .reshape(Cf * Hf * Wf, cfg_lin[i + 1]))
        if i < len(cfg_lin) - 2:
            wq, cs = quantize_int8_per_col(w)               # int8 weight streaming
        else:
            wq = w.astype(jnp.bfloat16)                     # tiny final layer
            cs = jnp.ones((1, cfg_lin[i + 1]), jnp.float32)
        classifier.append((wq, cs, b.reshape(1, -1).astype(jnp.float32)))
    return features, classifier


# ----------------------------------------------------------------------------
# Forward pass (mirrors vgg.forward: features -> flatten -> classifier)
# ----------------------------------------------------------------------------
def vgg_forward(x_nchw, features, classifier):
    x = jnp.transpose(x_nchw, (0, 2, 3, 1)).astype(jnp.bfloat16)  # NCHW -> NHWC, bf16
    for (w, scale, shift) in features:        # cfg '05': every conv is followed by 'M'
        x = conv_bn_relu_pool(x, w, scale, shift)
    # NHWC flatten; fc1's rows were pre-permuted at init to match PyTorch's
    # NCHW x.view(N, -1) ordering.
    x = x.reshape(x.shape[0], -1)
    n = len(classifier)
    for i, (w, cs, b) in enumerate(classifier):
        last = (i == n - 1)
        x = linear(x, w, cs, b, relu=not last,
                   out_dtype=jnp.float32 if last else jnp.bfloat16)
    return x


if __name__ == "__main__":
    key = jax.random.PRNGKey(0)
    pkey, xkey = jax.random.split(key)
    features, classifier = init_params(pkey)

    # CIFAR-like input so the '05' classifier dim (128*8*8 = 8192) matches.
    x = jax.random.normal(xkey, (2, 3, 32, 32), dtype=jnp.float32)

    fwd = jax.jit(vgg_forward)
    out = jax.block_until_ready(fwd(x, features, classifier))
    assert out.shape == (2, 10), out.shape
    assert bool(jnp.all(jnp.isfinite(out)))
    print("KERNEL_OK")
</pallas_src>

<mosaic_0001>
module attributes {stable_mosaic.version = 11 : i64} {
  func.func @conv_bn_relu_pool_kernel(%arg0: i32, %arg1: memref<2048x27xbf16, #tpu.memory_space<vmem>>, %arg2: memref<27x128xbf16, #tpu.memory_space<vmem>>, %arg3: memref<1x128xf32, #tpu.memory_space<vmem>>, %arg4: memref<1x128xf32, #tpu.memory_space<vmem>>, %arg5: memref<512x128xbf16, #tpu.memory_space<vmem>>) attributes {dimension_semantics = [#tpu.dimension_semantics<arbitrary>], iteration_bounds = array<i64: 1>, scalar_prefetch = 0 : i64, scratch_operands = 0 : i64, tpu.core_type = #tpu.core_type<tc>, window_params = [{pipeline_mode = #tpu.pipeline_mode<synchronous>, transform_indices = @transform_0, window_bounds = array<i64: 2048, 27>}, {pipeline_mode = #tpu.pipeline_mode<synchronous>, transform_indices = @transform_1, window_bounds = array<i64: 27, 128>}, {pipeline_mode = #tpu.pipeline_mode<synchronous>, transform_indices = @transform_2, window_bounds = array<i64: 1, 128>}, {pipeline_mode = #tpu.pipeline_mode<synchronous>, transform_indices = @transform_3, window_bounds = array<i64: 1, 128>}, {pipeline_mode = #tpu.pipeline_mode<synchronous>, transform_indices = @transform_4, window_bounds = array<i64: 512, 128>}]} {
    %c0 = arith.constant 0 : index
    %c0_0 = arith.constant 0 : index
    %0 = vector.load %arg1[%c0, %c0_0] : memref<2048x27xbf16, #tpu.memory_space<vmem>>, vector<2048x27xbf16>
    %c0_1 = arith.constant 0 : index
    %c0_2 = arith.constant 0 : index
    %1 = vector.load %arg2[%c0_1, %c0_2] : memref<27x128xbf16, #tpu.memory_space<vmem>>, vector<27x128xbf16>
    %cst = arith.constant dense<0.000000e+00> : vector<2048x128xf32>
    %2 = tpu.matmul %0, %1, %cst {dimension_numbers = #tpu.dot_dimension_numbers<[1], [0], [0], [1], [0, 0, 1, 1], [], []>} : vector<2048x27xbf16>, vector<27x128xbf16>, vector<2048x128xf32> -> vector<2048x128xf32>
    %c0_3 = arith.constant 0 : index
    %c0_4 = arith.constant 0 : index
    %3 = vector.load %arg3[%c0_3, %c0_4] : memref<1x128xf32, #tpu.memory_space<vmem>>, vector<1x128xf32>
    %4 = vector.broadcast %3 : vector<1x128xf32> to vector<2048x128xf32>
    %5 = arith.mulf %2, %4 : vector<2048x128xf32>
    %c0_5 = arith.constant 0 : index
    %c0_6 = arith.constant 0 : index
    %6 = vector.load %arg4[%c0_5, %c0_6] : memref<1x128xf32, #tpu.memory_space<vmem>>, vector<1x128xf32>
    %7 = vector.broadcast %6 : vector<1x128xf32> to vector<2048x128xf32>
    %8 = arith.addf %5, %7 : vector<2048x128xf32>
    %cst_7 = arith.constant 0.000000e+00 : f32
    %9 = vector.broadcast %cst_7 : f32 to vector<2048x128xf32>
    %10 = arith.maximumf %8, %9 : vector<2048x128xf32>
    %11 = vector.extract_strided_slice %10 {offsets = [0, 0], sizes = [256, 128], strides = [1, 1]} : vector<2048x128xf32> to vector<256x128xf32>
    %12 = vector.extract_strided_slice %10 {offsets = [256, 0], sizes = [256, 128], strides = [1, 1]} : vector<2048x128xf32> to vector<256x128xf32>
    %13 = vector.extract_strided_slice %10 {offsets = [512, 0], sizes = [256, 128], strides = [1, 1]} : vector<2048x128xf32> to vector<256x128xf32>
    %14 = vector.extract_strided_slice %10 {offsets = [768, 0], sizes = [256, 128], strides = [1, 1]} : vector<2048x128xf32> to vector<256x128xf32>
    %15 = arith.maximumf %11, %12 : vector<256x128xf32>
    %16 = arith.maximumf %13, %14 : vector<256x128xf32>
    %17 = arith.maximumf %15, %16 : vector<256x128xf32>
    %18 = arith.truncf %17 : vector<256x128xf32> to vector<256x128xbf16>
    %c0_8 = arith.constant 0 : index
    %c0_9 = arith.constant 0 : index
    %19 = vector.load %arg5[%c0_8, %c0_9] : memref<512x128xbf16, #tpu.memory_space<vmem>>, vector<256x128xbf16>
    tpu.vector_store %arg5[%c0_8, %c0_9], %18 {strides = array<i32>} : memref<512x128xbf16, #tpu.memory_space<vmem>>, vector<256x128xbf16>,
    %20 = vector.extract_strided_slice %10 {offsets = [1024, 0], sizes = [256, 128], strides = [1, 1]} : vector<2048x128xf32> to vector<256x128xf32>
    %21 = vector.extract_strided_slice %10 {offsets = [1280, 0], sizes = [256, 128], strides = [1, 1]} : vector<2048x128xf32> to vector<256x128xf32>
    %22 = vector.extract_strided_slice %10 {offsets = [1536, 0], sizes = [256, 128], strides = [1, 1]} : vector<2048x128xf32> to vector<256x128xf32>
    %23 = vector.extract_strided_slice %10 {offsets = [1792, 0], sizes = [256, 128], strides = [1, 1]} : vector<2048x128xf32> to vector<256x128xf32>
    %24 = arith.maximumf %20, %21 : vector<256x128xf32>
    %25 = arith.maximumf %22, %23 : vector<256x128xf32>
    %26 = arith.maximumf %24, %25 : vector<256x128xf32>
    %27 = arith.truncf %26 : vector<256x128xf32> to vector<256x128xbf16>
    %c256 = arith.constant 256 : index
    %c0_10 = arith.constant 0 : index
    %28 = vector.load %arg5[%c256, %c0_10] : memref<512x128xbf16, #tpu.memory_space<vmem>>, vector<256x128xbf16>
    tpu.vector_store %arg5[%c256, %c0_10], %27 {strides = array<i32>} : memref<512x128xbf16, #tpu.memory_space<vmem>>, vector<256x128xbf16>,
    return
  }
  func.func @transform_0(%arg0: i32) -> (i32, i32) {
    %c0_i32 = arith.constant 0 : i32
    %c0_i32_0 = arith.constant 0 : i32
    %c0_i32_1 = arith.constant 0 : i32
    return %c0_i32, %c0_i32_0 : i32, i32
  }
  func.func @transform_1(%arg0: i32) -> (i32, i32) {
    %c0_i32 = arith.constant 0 : i32
    %c0_i32_0 = arith.constant 0 : i32
    %c0_i32_1 = arith.constant 0 : i32
    return %c0_i32, %c0_i32_0 : i32, i32
  }
  func.func @transform_2(%arg0: i32) -> (i32, i32) {
    %c0_i32 = arith.constant 0 : i32
    %c0_i32_0 = arith.constant 0 : i32
    %c0_i32_1 = arith.constant 0 : i32
    return %c0_i32, %c0_i32_0 : i32, i32
  }
  func.func @transform_3(%arg0: i32) -> (i32, i32) {
    %c0_i32 = arith.constant 0 : i32
    %c0_i32_0 = arith.constant 0 : i32
    %c0_i32_1 = arith.constant 0 : i32
    return %c0_i32, %c0_i32_0 : i32, i32
  }
  func.func @transform_4(%arg0: i32) -> (i32, i32) {
    %c0_i32 = arith.constant 0 : i32
    %c0_i32_0 = arith.constant 0 : i32
    %c0_i32_1 = arith.constant 0 : i32
    return %c0_i32, %c0_i32_0 : i32, i32
  }
}

module attributes {stable_mosaic.version = 11 : i64} {
  func.func @conv_bn_relu_pool_kernel(%arg0: i32, %arg1: memref<512x576xbf16, #tpu.memory_space<vmem>>, %arg2: memref<576x128xbf16, #tpu.memory_space<vmem>>, %arg3: memref<1x128xf32, #tpu.memory_space<vmem>>, %arg4: memref<1x128xf32, #tpu.memory_space<vmem>>, %arg5: memref<128x128xbf16, #tpu.memory_space<vmem>>) attributes {dimension_semantics = [#tpu.dimension_semantics<arbitrary>], iteration_bounds = array<i64: 1>, scalar_prefetch = 0 : i64, scratch_operands = 0 : i64, tpu.core_type = #tpu.core_type<tc>, window_params = [{pipeline_mode = #tpu.pipeline_mode<synchronous>, transform_indices = @transform_0, window_bounds = array<i64: 512, 576>}, {pipeline_mode = #tpu.pipeline_mode<synchronous>, transform_indices = @transform_1, window_bounds = array<i64: 576, 128>}, {pipeline_mode = #tpu.pipeline_mode<synchronous>, transform_indices = @transform_2, window_bounds = array<i64: 1, 128>}, {pipeline_mode = #tpu.pipeline_mode<synchronous>, transform_indices = @transform_3, window_bounds = array<i64: 1, 128>}, {pipeline_mode = #tpu.pipeline_mode<synchronous>, transform_indices = @transform_4, window_bounds = array<i64: 128, 128>}]} {
    %c0 = arith.constant 0 : index
    %c0_0 = arith.constant 0 : index
    %0 = vector.load %arg1[%c0, %c0_0] : memref<512x576xbf16, #tpu.memory_space<vmem>>, vector<512x576xbf16>
    %c0_1 = arith.constant 0 : index
    %c0_2 = arith.constant 0 : index
    %1 = vector.load %arg2[%c0_1, %c0_2] : memref<576x128xbf16, #tpu.memory_space<vmem>>, vector<576x128xbf16>
    %cst = arith.constant dense<0.000000e+00> : vector<512x128xf32>
    %2 = tpu.matmul %0, %1, %cst {dimension_numbers = #tpu.dot_dimension_numbers<[1], [0], [0], [1], [0, 0, 1, 1], [], []>} : vector<512x576xbf16>, vector<576x128xbf16>, vector<512x128xf32> -> vector<512x128xf32>
    %c0_3 = arith.constant 0 : index
    %c0_4 = arith.constant 0 : index
    %3 = vector.load %arg3[%c0_3, %c0_4] : memref<1x128xf32, #tpu.memory_space<vmem>>, vector<1x128xf32>
    %4 = vector.broadcast %3 : vector<1x128xf32> to vector<512x128xf32>
    %5 = arith.mulf %2, %4 : vector<512x128xf32>
    %c0_5 = arith.constant 0 : index
    %c0_6 = arith.constant 0 : index
    %6 = vector.load %arg4[%c0_5, %c0_6] : memref<1x128xf32, #tpu.memory_space<vmem>>, vector<1x128xf32>
    %7 = vector.broadcast %6 : vector<1x128xf32> to vector<512x128xf32>
    %8 = arith.addf %5, %7 : vector<512x128xf32>
    %cst_7 = arith.constant 0.000000e+00 : f32
    %9 = vector.broadcast %cst_7 : f32 to vector<512x128xf32>
    %10 = arith.maximumf %8, %9 : vector<512x128xf32>
    %11 = vector.extract_strided_slice %10 {offsets = [0, 0], sizes = [64, 128], strides = [1, 1]} : vector<512x128xf32> to vector<64x128xf32>
    %12 = vector.extract_strided_slice %10 {offsets = [64, 0], sizes = [64, 128], strides = [1, 1]} : vector<512x128xf32> to vector<64x128xf32>
    %13 = vector.extract_strided_slice %10 {offsets = [128, 0], sizes = [64, 128], strides = [1, 1]} : vector<512x128xf32> to vector<64x128xf32>
    %14 = vector.extract_strided_slice %10 {offsets = [192, 0], sizes = [64, 128], strides = [1, 1]} : vector<512x128xf32> to vector<64x128xf32>
    %15 = arith.maximumf %11, %12 : vector<64x128xf32>
    %16 = arith.maximumf %13, %14 : vector<64x128xf32>
    %17 = arith.maximumf %15, %16 : vector<64x128xf32>
    %18 = arith.truncf %17 : vector<64x128xf32> to vector<64x128xbf16>
    %c0_8 = arith.constant 0 : index
    %c0_9 = arith.constant 0 : index
    %19 = vector.load %arg5[%c0_8, %c0_9] : memref<128x128xbf16, #tpu.memory_space<vmem>>, vector<64x128xbf16>
    tpu.vector_store %arg5[%c0_8, %c0_9], %18 {strides = array<i32>} : memref<128x128xbf16, #tpu.memory_space<vmem>>, vector<64x128xbf16>,
    %20 = vector.extract_strided_slice %10 {offsets = [256, 0], sizes = [64, 128], strides = [1, 1]} : vector<512x128xf32> to vector<64x128xf32>
    %21 = vector.extract_strided_slice %10 {offsets = [320, 0], sizes = [64, 128], strides = [1, 1]} : vector<512x128xf32> to vector<64x128xf32>
    %22 = vector.extract_strided_slice %10 {offsets = [384, 0], sizes = [64, 128], strides = [1, 1]} : vector<512x128xf32> to vector<64x128xf32>
    %23 = vector.extract_strided_slice %10 {offsets = [448, 0], sizes = [64, 128], strides = [1, 1]} : vector<512x128xf32> to vector<64x128xf32>
    %24 = arith.maximumf %20, %21 : vector<64x128xf32>
    %25 = arith.maximumf %22, %23 : vector<64x128xf32>
    %26 = arith.maximumf %24, %25 : vector<64x128xf32>
    %27 = arith.truncf %26 : vector<64x128xf32> to vector<64x128xbf16>
    %c64 = arith.constant 64 : index
    %c0_10 = arith.constant 0 : index
    %28 = vector.load %arg5[%c64, %c0_10] : memref<128x128xbf16, #tpu.memory_space<vmem>>, vector<64x128xbf16>
    tpu.vector_store %arg5[%c64, %c0_10], %27 {strides = array<i32>} : memref<128x128xbf16, #tpu.memory_space<vmem>>, vector<64x128xbf16>,
    return
  }
  func.func @transform_0(%arg0: i32) -> (i32, i32) {
    %c0_i32 = arith.constant 0 : i32
    %c0_i32_0 = arith.constant 0 : i32
    %c0_i32_1 = arith.constant 0 : i32
    return %c0_i32, %c0_i32_0 : i32, i32
  }
  func.func @transform_1(%arg0: i32) -> (i32, i32) {
    %c0_i32 = arith.constant 0 : i32
    %c0_i32_0 = arith.constant 0 : i32
    %c0_i32_1 = arith.constant 0 : i32
    return %c0_i32, %c0_i32_0 : i32, i32
  }
  func.func @transform_2(%arg0: i32) -> (i32, i32) {
    %c0_i32 = arith.constant 0 : i32
    %c0_i32_0 = arith.constant 0 : i32
    %c0_i32_1 = arith.constant 0 : i32
    return %c0_i32, %c0_i32_0 : i32, i32
  }
  func.func @transform_3(%arg0: i32) -> (i32, i32) {
    %c0_i32 = arith.constant 0 : i32
    %c0_i32_0 = arith.constant 0 : i32
    %c0_i32_1 = arith.constant 0 : i32
    return %c0_i32, %c0_i32_0 : i32, i32
  }
  func.func @transform_4(%arg0: i32) -> (i32, i32) {
    %c0_i32 = arith.constant 0 : i32
    %c0_i32_0 = arith.constant 0 : i32
    %c0_i32_1 = arith.constant 0 : i32
    return %c0_i32, %c0_i32_0 : i32, i32
  }
}

module attributes {stable_mosaic.version = 11 : i64} {
  func.func @linear_kernel(%arg0: i32, %arg1: memref<2x8192xbf16, #tpu.memory_space<vmem>>, %arg2: memref<8192x256xi8, #tpu.memory_space<vmem>>, %arg3: memref<1x256xf32, #tpu.memory_space<vmem>>, %arg4: memref<1x256xf32, #tpu.memory_space<vmem>>, %arg5: memref<2x256xbf16, #tpu.memory_space<vmem>>) attributes {dimension_semantics = [#tpu.dimension_semantics<parallel>], iteration_bounds = array<i64: 2>, scalar_prefetch = 0 : i64, scratch_operands = 0 : i64, tpu.core_type = #tpu.core_type<tc>, window_params = [{pipeline_mode = #tpu.pipeline_mode<synchronous>, transform_indices = @transform_0, window_bounds = array<i64: 2, 8192>}, {transform_indices = @transform_1, window_bounds = array<i64: 8192, 256>}, {transform_indices = @transform_2, window_bounds = array<i64: 1, 256>}, {transform_indices = @transform_3, window_bounds = array<i64: 1, 256>}, {transform_indices = @transform_4, window_bounds = array<i64: 2, 256>}]} {
    %c0 = arith.constant 0 : index
    %c0_0 = arith.constant 0 : index
    %0 = vector.load %arg2[%c0, %c0_0] : memref<8192x256xi8, #tpu.memory_space<vmem>>, vector<8192x256xi8>
    %1 = arith.sitofp %0 : vector<8192x256xi8> to vector<8192x256xbf16>
    %c0_1 = arith.constant 0 : index
    %c0_2 = arith.constant 0 : index
    %2 = vector.load %arg1[%c0_1, %c0_2] : memref<2x8192xbf16, #tpu.memory_space<vmem>>, vector<2x8192xbf16>
    %cst = arith.constant dense<0.000000e+00> : vector<2x256xf32>
    %3 = tpu.matmul %2, %1, %cst {dimension_numbers = #tpu.dot_dimension_numbers<[1], [0], [0], [1], [0, 0, 1, 1], [], []>} : vector<2x8192xbf16>, vector<8192x256xbf16>, vector<2x256xf32> -> vector<2x256xf32>
    %c0_3 = arith.constant 0 : index
    %c0_4 = arith.constant 0 : index
    %4 = vector.load %arg3[%c0_3, %c0_4] : memref<1x256xf32, #tpu.memory_space<vmem>>, vector<1x256xf32>
    %5 = vector.broadcast %4 : vector<1x256xf32> to vector<2x256xf32>
    %6 = arith.mulf %3, %5 : vector<2x256xf32>
    %c0_5 = arith.constant 0 : index
    %c0_6 = arith.constant 0 : index
    %7 = vector.load %arg4[%c0_5, %c0_6] : memref<1x256xf32, #tpu.memory_space<vmem>>, vector<1x256xf32>
    %8 = vector.broadcast %7 : vector<1x256xf32> to vector<2x256xf32>
    %9 = arith.addf %6, %8 : vector<2x256xf32>
    %cst_7 = arith.constant 0.000000e+00 : f32
    %10 = vector.broadcast %cst_7 : f32 to vector<2x256xf32>
    %11 = arith.maximumf %9, %10 : vector<2x256xf32>
    %12 = arith.truncf %11 : vector<2x256xf32> to vector<2x256xbf16>
    %c0_8 = arith.constant 0 : index
    %c0_9 = arith.constant 0 : index
    %13 = vector.load %arg5[%c0_8, %c0_9] : memref<2x256xbf16, #tpu.memory_space<vmem>>, vector<2x256xbf16>
    tpu.vector_store %arg5[%c0_8, %c0_9], %12 {strides = array<i32>} : memref<2x256xbf16, #tpu.memory_space<vmem>>, vector<2x256xbf16>,
    return
  }
  func.func @transform_0(%arg0: i32) -> (i32, i32) {
    %c0_i32 = arith.constant 0 : i32
    %c0_i32_0 = arith.constant 0 : i32
    %c0_i32_1 = arith.constant 0 : i32
    return %c0_i32, %c0_i32_0 : i32, i32
  }
  func.func @transform_1(%arg0: i32) -> (i32, i32) {
    %c0_i32 = arith.constant 0 : i32
    %c0_i32_0 = arith.constant 0 : i32
    return %c0_i32, %arg0 : i32, i32
  }
  func.func @transform_2(%arg0: i32) -> (i32, i32) {
    %c0_i32 = arith.constant 0 : i32
    %c0_i32_0 = arith.constant 0 : i32
    return %c0_i32, %arg0 : i32, i32
  }
  func.func @transform_3(%arg0: i32) -> (i32, i32) {
    %c0_i32 = arith.constant 0 : i32
    %c0_i32_0 = arith.constant 0 : i32
    return %c0_i32, %arg0 : i32, i32
  }
  func.func @transform_4(%arg0: i32) -> (i32, i32) {
    %c0_i32 = arith.constant 0 : i32
    %c0_i32_0 = arith.constant 0 : i32
    return %c0_i32, %arg0 : i32, i32
  }
}

module attributes {stable_mosaic.version = 11 : i64} {
  func.func @linear_kernel(%arg0: i32, %arg1: memref<2x512xbf16, #tpu.memory_space<vmem>>, %arg2: memref<512x256xi8, #tpu.memory_space<vmem>>, %arg3: memref<1x256xf32, #tpu.memory_space<vmem>>, %arg4: memref<1x256xf32, #tpu.memory_space<vmem>>, %arg5: memref<2x256xbf16, #tpu.memory_space<vmem>>) attributes {dimension_semantics = [#tpu.dimension_semantics<parallel>], iteration_bounds = array<i64: 2>, scalar_prefetch = 0 : i64, scratch_operands = 0 : i64, tpu.core_type = #tpu.core_type<tc>, window_params = [{pipeline_mode = #tpu.pipeline_mode<synchronous>, transform_indices = @transform_0, window_bounds = array<i64: 2, 512>}, {transform_indices = @transform_1, window_bounds = array<i64: 512, 256>}, {transform_indices = @transform_2, window_bounds = array<i64: 1, 256>}, {transform_indices = @transform_3, window_bounds = array<i64: 1, 256>}, {transform_indices = @transform_4, window_bounds = array<i64: 2, 256>}]} {
    %c0 = arith.constant 0 : index
    %c0_0 = arith.constant 0 : index
    %0 = vector.load %arg2[%c0, %c0_0] : memref<512x256xi8, #tpu.memory_space<vmem>>, vector<512x256xi8>
    %1 = arith.sitofp %0 : vector<512x256xi8> to vector<512x256xbf16>
    %c0_1 = arith.constant 0 : index
    %c0_2 = arith.constant 0 : index
    %2 = vector.load %arg1[%c0_1, %c0_2] : memref<2x512xbf16, #tpu.memory_space<vmem>>, vector<2x512xbf16>
    %cst = arith.constant dense<0.000000e+00> : vector<2x256xf32>
    %3 = tpu.matmul %2, %1, %cst {dimension_numbers = #tpu.dot_dimension_numbers<[1], [0], [0], [1], [0, 0, 1, 1], [], []>} : vector<2x512xbf16>, vector<512x256xbf16>, vector<2x256xf32> -> vector<2x256xf32>
    %c0_3 = arith.constant 0 : index
    %c0_4 = arith.constant 0 : index
    %4 = vector.load %arg3[%c0_3, %c0_4] : memref<1x256xf32, #tpu.memory_space<vmem>>, vector<1x256xf32>
    %5 = vector.broadcast %4 : vector<1x256xf32> to vector<2x256xf32>
    %6 = arith.mulf %3, %5 : vector<2x256xf32>
    %c0_5 = arith.constant 0 : index
    %c0_6 = arith.constant 0 : index
    %7 = vector.load %arg4[%c0_5, %c0_6] : memref<1x256xf32, #tpu.memory_space<vmem>>, vector<1x256xf32>
    %8 = vector.broadcast %7 : vector<1x256xf32> to vector<2x256xf32>
    %9 = arith.addf %6, %8 : vector<2x256xf32>
    %cst_7 = arith.constant 0.000000e+00 : f32
    %10 = vector.broadcast %cst_7 : f32 to vector<2x256xf32>
    %11 = arith.maximumf %9, %10 : vector<2x256xf32>
    %12 = arith.truncf %11 : vector<2x256xf32> to vector<2x256xbf16>
    %c0_8 = arith.constant 0 : index
    %c0_9 = arith.constant 0 : index
    %13 = vector.load %arg5[%c0_8, %c0_9] : memref<2x256xbf16, #tpu.memory_space<vmem>>, vector<2x256xbf16>
    tpu.vector_store %arg5[%c0_8, %c0_9], %12 {strides = array<i32>} : memref<2x256xbf16, #tpu.memory_space<vmem>>, vector<2x256xbf16>,
    return
  }
  func.func @transform_0(%arg0: i32) -> (i32, i32) {
    %c0_i32 = arith.constant 0 : i32
    %c0_i32_0 = arith.constant 0 : i32
    %c0_i32_1 = arith.constant 0 : i32
    return %c0_i32, %c0_i32_0 : i32, i32
  }
  func.func @transform_1(%arg0: i32) -> (i32, i32) {
    %c0_i32 = arith.constant 0 : i32
    %c0_i32_0 = arith.constant 0 : i32
    return %c0_i32, %arg0 : i32, i32
  }
  func.func @transform_2(%arg0: i32) -> (i32, i32) {
    %c0_i32 = arith.constant 0 : i32
    %c0_i32_0 = arith.constant 0 : i32
    return %c0_i32, %arg0 : i32, i32
  }
  func.func @transform_3(%arg0: i32) -> (i32, i32) {
    %c0_i32 = arith.constant 0 : i32
    %c0_i32_0 = arith.constant 0 : i32
    return %c0_i32, %arg0 : i32, i32
  }
  func.func @transform_4(%arg0: i32) -> (i32, i32) {
    %c0_i32 = arith.constant 0 : i32
    %c0_i32_0 = arith.constant 0 : i32
    return %c0_i32, %arg0 : i32, i32
  }
}

module attributes {stable_mosaic.version = 11 : i64} {
  func.func @linear_kernel(%arg0: i32, %arg1: memref<2x512xbf16, #tpu.memory_space<vmem>>, %arg2: memref<512x10xbf16, #tpu.memory_space<vmem>>, %arg3: memref<1x10xf32, #tpu.memory_space<vmem>>, %arg4: memref<1x10xf32, #tpu.memory_space<vmem>>, %arg5: memref<2x10xf32, #tpu.memory_space<vmem>>) attributes {dimension_semantics = [#tpu.dimension_semantics<parallel>], iteration_bounds = array<i64: 1>, scalar_prefetch = 0 : i64, scratch_operands = 0 : i64, tpu.core_type = #tpu.core_type<tc>, window_params = [{pipeline_mode = #tpu.pipeline_mode<synchronous>, transform_indices = @transform_0, window_bounds = array<i64: 2, 512>}, {transform_indices = @transform_1, window_bounds = array<i64: 512, 10>}, {transform_indices = @transform_2, window_bounds = array<i64: 1, 10>}, {transform_indices = @transform_3, window_bounds = array<i64: 1, 10>}, {transform_indices = @transform_4, window_bounds = array<i64: 2, 10>}]} {
    %c0 = arith.constant 0 : index
    %c0_0 = arith.constant 0 : index
    %0 = vector.load %arg2[%c0, %c0_0] : memref<512x10xbf16, #tpu.memory_space<vmem>>, vector<512x10xbf16>
    %c0_1 = arith.constant 0 : index
    %c0_2 = arith.constant 0 : index
    %1 = vector.load %arg1[%c0_1, %c0_2] : memref<2x512xbf16, #tpu.memory_space<vmem>>, vector<2x512xbf16>
    %cst = arith.constant dense<0.000000e+00> : vector<2x10xf32>
    %2 = tpu.matmul %1, %0, %cst {dimension_numbers = #tpu.dot_dimension_numbers<[1], [0], [0], [1], [0, 0, 1, 1], [], []>} : vector<2x512xbf16>, vector<512x10xbf16>, vector<2x10xf32> -> vector<2x10xf32>
    %c0_3 = arith.constant 0 : index
    %c0_4 = arith.constant 0 : index
    %3 = vector.load %arg3[%c0_3, %c0_4] : memref<1x10xf32, #tpu.memory_space<vmem>>, vector<1x10xf32>
    %4 = vector.broadcast %3 : vector<1x10xf32> to vector<2x10xf32>
    %5 = arith.mulf %2, %4 : vector<2x10xf32>
    %c0_5 = arith.constant 0 : index
    %c0_6 = arith.constant 0 : index
    %6 = vector.load %arg4[%c0_5, %c0_6] : memref<1x10xf32, #tpu.memory_space<vmem>>, vector<1x10xf32>
    %7 = vector.broadcast %6 : vector<1x10xf32> to vector<2x10xf32>
    %8 = arith.addf %5, %7 : vector<2x10xf32>
    %c0_7 = arith.constant 0 : index
    %c0_8 = arith.constant 0 : index
    %9 = vector.load %arg5[%c0_7, %c0_8] : memref<2x10xf32, #tpu.memory_space<vmem>>, vector<2x10xf32>
    tpu.vector_store %arg5[%c0_7, %c0_8], %8 {strides = array<i32>} : memref<2x10xf32, #tpu.memory_space<vmem>>, vector<2x10xf32>,
    return
  }
  func.func @transform_0(%arg0: i32) -> (i32, i32) {
    %c0_i32 = arith.constant 0 : i32
    %c0_i32_0 = arith.constant 0 : i32
    %c0_i32_1 = arith.constant 0 : i32
    return %c0_i32, %c0_i32_0 : i32, i32
  }
  func.func @transform_1(%arg0: i32) -> (i32, i32) {
    %c0_i32 = arith.constant 0 : i32
    %c0_i32_0 = arith.constant 0 : i32
    return %c0_i32, %arg0 : i32, i32
  }
  func.func @transform_2(%arg0: i32) -> (i32, i32) {
    %c0_i32 = arith.constant 0 : i32
    %c0_i32_0 = arith.constant 0 : i32
    return %c0_i32, %arg0 : i32, i32
  }
  func.func @transform_3(%arg0: i32) -> (i32, i32) {
    %c0_i32 = arith.constant 0 : i32
    %c0_i32_0 = arith.constant 0 : i32
    return %c0_i32, %arg0 : i32, i32
  }
  func.func @transform_4(%arg0: i32) -> (i32, i32) {
    %c0_i32 = arith.constant 0 : i32
    %c0_i32_0 = arith.constant 0 : i32
    return %c0_i32, %arg0 : i32, i32
  }
}

</mosaic_0001>

<llo_original>
// kernel: vgg_forward.5
$region0: #{vgg_forward.5}
  #allocation0 [shape = 'u32[]', space=smem, size = 0x4, offset = 0x4, fixed_abs, tag = 'smem constant byte address 0x4 - core index']
  #allocation1 [shape = 'u32[144,128]{1,0:T(1,128)}', space=vmem, size = 0x12000, scoped, tag = 'internal scratch']
  %s0 = inlined_call_operand.vmem [shape: bf16[2048,27], index: 0, kind: input, shape index: {}]
  %s1 = inlined_call_operand.vmem [shape: bf16[27,128], index: 1, kind: input, shape index: {}]
  %s2 = inlined_call_operand.vmem [shape: f32[1,128], index: 2, kind: input, shape index: {}]
  %s3 = inlined_call_operand.vmem [shape: f32[1,128], index: 3, kind: input, shape index: {}]
  %s4 = inlined_call_operand.vmem [shape: bf16[512,128], index: 4, kind: output, shape index: {}]
  %s5 = sld [smem:[#allocation0]]
  $region26: #{vgg_forward.5} parent=0
    _
  %s7 = ssub.s32 1, %s5
  %s8 = scalar_select 0, %s7, %s5
  // Predicated region
  $region2: #{vgg_forward.5} parent=0 // pred_check
    _
  $region3: #{vgg_forward.5} parent=0 // pred_check_branch
    %10 = sbr.rel (0) target = $region5
  $region4: #{vgg_forward.5} parent=0 // pred_region
    _
  $region5: #{vgg_forward.5} parent=0 // pred_fallthru
    _
  // Predicated region
  $region6: #{vgg_forward.5} parent=0 // pred_check
    _
  $region7: #{vgg_forward.5} parent=0 // pred_check_branch
    %12 = sbr.rel (0) target = $region9
  $region8: #{vgg_forward.5} parent=0 // pred_region
    _
  $region9: #{vgg_forward.5} parent=0 // pred_fallthru
    _
  // Predicated region
  $region10: #{vgg_forward.5} parent=0 // pred_check
    _
  $region11: #{vgg_forward.5} parent=0 // pred_check_branch
    %14 = sbr.rel (0) target = $region13
  $region12: #{vgg_forward.5} parent=0 // pred_region
    _
  $region13: #{vgg_forward.5} parent=0 // pred_fallthru
    _
  // Predicated region
  $region14: #{vgg_forward.5} parent=0 // pred_check
    _
  $region15: #{vgg_forward.5} parent=0 // pred_check_branch
    %16 = sbr.rel (0) target = $region17
  $region16: #{vgg_forward.5} parent=0 // pred_region
    _
  $region17: #{vgg_forward.5} parent=0 // pred_fallthru
    _
  %v18 = vld [vmem:[%s0] sm:$0xf]
  %v19 = vld [vmem:[%s0 + $0x4] sm:$0xf]
  %v20 = vld [vmem:[%s0 + $0x8] sm:$0xf]
  %v21 = vld [vmem:[%s0 + $0xc] sm:$0xf]
  %v22 = vld [vmem:[%s0 + $0x10] sm:$0xf]
  %v23 = vld [vmem:[%s0 + $0x14] sm:$0xf]
  %v24 = vld [vmem:[%s0 + $0x18] sm:$0xf]
  %v25 = vld [vmem:[%s0 + $0x1c] sm:$0xf]
  %v26 = vld [vmem:[%s0 + $0x20] sm:$0xf]
  %v27 = vld [vmem:[%s0 + $0x24] sm:$0xf]
  %v28 = vld [vmem:[%s0 + $0x28] sm:$0xf]
  %v29 = vld [vmem:[%s0 + $0x2c] sm:$0xf]
  %v30 = vld [vmem:[%s0 + $0x30] sm:$0xf]
  %v31 = vld [vmem:[%s0 + $0x34] sm:$0xf]
  %v32 = vld [vmem:[%s0 + $0x38] sm:$0xf]
  %v33 = vld [vmem:[%s0 + $0x3c] sm:$0xf]
  %v34 = vld [vmem:[%s0 + $0x40] sm:$0xf]
  %v35 = vld [vmem:[%s0 + $0x44] sm:$0xf]
  %v36 = vld [vmem:[%s0 + $0x48] sm:$0xf]
  %v37 = vld [vmem:[%s0 + $0x4c] sm:$0xf]
  %v38 = vld [vmem:[%s0 + $0x50] sm:$0xf]
  %v39 = vld [vmem:[%s0 + $0x54] sm:$0xf]
  %v40 = vld [vmem:[%s0 + $0x58] sm:$0xf]
  %v41 = vld [vmem:[%s0 + $0x5c] sm:$0xf]
  %v42 = vld [vmem:[%s0 + $0x60] sm:$0xf]
  %v43 = vld [vmem:[%s0 + $0x64] sm:$0xf]
  %v44 = vld [vmem:[%s0 + $0x68] sm:$0xf]
  %v45 = vld [vmem:[%s0 + $0x6c] sm:$0xf]
  %v46 = vld [vmem:[%s0 + $0x70] sm:$0xf]
  %v47 = vld [vmem:[%s0 + $0x74] sm:$0xf]
  %v48 = vld [vmem:[%s0 + $0x78] sm:$0xf]
  %v49 = vld [vmem:[%s0 + $0x7c] sm:$0xf]
  %v50 = vld [vmem:[%s0 + $0x80] sm:$0xf]
  %v51 = vld [vmem:[%s0 + $0x84] sm:$0xf]
  %v52 = vld [vmem:[%s0 + $0x88] sm:$0xf]
  %v53 = vld [vmem:[%s0 + $0x8c] sm:$0xf]
  %v54 = vld [vmem:[%s0 + $0x90] sm:$0xf]
  %v55 = vld [vmem:[%s0 + $0x94] sm:$0xf]
  %v56 = vld [vmem:[%s0 + $0x98] sm:$0xf]
  %v57 = vld [vmem:[%s0 + $0x9c] sm:$0xf]
  %v58 = vld [vmem:[%s0 + $0xa0] sm:$0xf]
  %v59 = vld [vmem:[%s0 + $0xa4] sm:$0xf]
  %v60 = vld [vmem:[%s0 + $0xa8] sm:$0xf]
  %v61 = vld [vmem:[%s0 + $0xac] sm:$0xf]
  %v62 = vld [vmem:[%s0 + $0xb0] sm:$0xf]
  %v63 = vld [vmem:[%s0 + $0xb4] sm:$0xf]
  %v64 = vld [vmem:[%s0 + $0xb8] sm:$0xf]
  %v65 = vld [vmem:[%s0 + $0xbc] sm:$0xf]
  %v66 = vld [vmem:[%s0 + $0xc0] sm:$0xf]
  %v67 = vld [vmem:[%s0 + $0xc4] sm:$0xf]
  %v68 = vld [vmem:[%s0 + $0xc8] sm:$0xf]
  %v69 = vld [vmem:[%s0 + $0xcc] sm:$0xf]
  %v70 = vld [vmem:[%s0 + $0xd0] sm:$0xf]
  %v71 = vld [vmem:[%s0 + $0xd4] sm:$0xf]
  %v72 = vld [vmem:[%s0 + $0xd8] sm:$0xf]
  %v73 = vld [vmem:[%s0 + $0xdc] sm:$0xf]
  %v74 = vld [vmem:[%s0 + $0xe0] sm:$0xf]
  %v75 = vld [vmem:[%s0 + $0xe4] sm:$0xf]
  %v76 = vld [vmem:[%s0 + $0xe8] sm:$0xf]
  %v77 = vld [vmem:[%s0 + $0xec] sm:$0xf]
  %v78 = vld [vmem:[%s0 + $0xf0] sm:$0xf]
  %v79 = vld [vmem:[%s0 + $0xf4] sm:$0xf]
  %v80 = vld [vmem:[%s0 + $0xf8] sm:$0xf]
  %v81 = vld [vmem:[%s0 + $0xfc] sm:$0xf]
  %v82 = vld [vmem:[%s0 + $0x100] sm:$0xf]
  %v83 = vld [vmem:[%s0 + $0x104] sm:$0xf]
  %v84 = vld [vmem:[%s0 + $0x108] sm:$0xf]
  %v85 = vld [vmem:[%s0 + $0x10c] sm:$0xf]
  %v86 = vld [vmem:[%s0 + $0x110] sm:$0xf]
  %v87 = vld [vmem:[%s0 + $0x114] sm:$0xf]
  %v88 = vld [vmem:[%s0 + $0x118] sm:$0xf]
  %v89 = vld [vmem:[%s0 + $0x11c] sm:$0xf]
  %v90 = vld [vmem:[%s0 + $0x120] sm:$0xf]
  %v91 = vld [vmem:[%s0 + $0x124] sm:$0xf]
  %v92 = vld [vmem:[%s0 + $0x128] sm:$0xf]
  %v93 = vld [vmem:[%s0 + $0x12c] sm:$0xf]
  %v94 = vld [vmem:[%s0 + $0x130] sm:$0xf]
  %v95 = vld [vmem:[%s0 + $0x134] sm:$0xf]
  %v96 = vld [vmem:[%s0 + $0x138] sm:$0xf]
  %v97 = vld [vmem:[%s0 + $0x13c] sm:$0xf]
  %v98 = vld [vmem:[%s0 + $0x140] sm:$0xf]
  %v99 = vld [vmem:[%s0 + $0x144] sm:$0xf]
  %v100 = vld [vmem:[%s0 + $0x148] sm:$0xf]
  %v101 = vld [vmem:[%s0 + $0x14c] sm:$0xf]
  %v102 = vld [vmem:[%s0 + $0x150] sm:$0xf]
  %v103 = vld [vmem:[%s0 + $0x154] sm:$0xf]
  %v104 = vld [vmem:[%s0 + $0x158] sm:$0xf]
  %v105 = vld [vmem:[%s0 + $0x15c] sm:$0xf]
  %v106 = vld [vmem:[%s0 + $0x160] sm:$0xf]
  %v107 = vld [vmem:[%s0 + $0x164] sm:$0xf]
  %v108 = vld [vmem:[%s0 + $0x168] sm:$0xf]
  %v109 = vld [vmem:[%s0 + $0x16c] sm:$0xf]
  %v110 = vld [vmem:[%s0 + $0x170] sm:$0xf]
  %v111 = vld [vmem:[%s0 + $0x174] sm:$0xf]
  %v112 = vld [vmem:[%s0 + $0x178] sm:$0xf]
  %v113 = vld [vmem:[%s0 + $0x17c] sm:$0xf]
  %v114 = vld [vmem:[%s0 + $0x180] sm:$0xf]
  %v115 = vld [vmem:[%s0 + $0x184] sm:$0xf]
  %v116 = vld [vmem:[%s0 + $0x188] sm:$0xf]
  %v117 = vld [vmem:[%s0 + $0x18c] sm:$0xf]
  %v118 = vld [vmem:[%s0 + $0x190] sm:$0xf]
  %v119 = vld [vmem:[%s0 + $0x194] sm:$0xf]
  %v120 = vld [vmem:[%s0 + $0x198] sm:$0xf]
  %v121 = vld [vmem:[%s0 + $0x19c] sm:$0xf]
  %v122 = vld [vmem:[%s0 + $0x1a0] sm:$0xf]
  %v123 = vld [vmem:[%s0 + $0x1a4] sm:$0xf]
  %v124 = vld [vmem:[%s0 + $0x1a8] sm:$0xf]
  %v125 = vld [vmem:[%s0 + $0x1ac] sm:$0xf]
  %v126 = vld [vmem:[%s0 + $0x1b0] sm:$0xf]
  %v127 = vld [vmem:[%s0 + $0x1b4] sm:$0xf]
  %v128 = vld [vmem:[%s0 + $0x1b8] sm:$0xf]
  %v129 = vld [vmem:[%s0 + $0x1bc] sm:$0xf]
  %v130 = vld [vmem:[%s0 + $0x1c0] sm:$0xf]
  %v131 = vld [vmem:[%s0 + $0x1c4] sm:$0xf]
  %v132 = vld [vmem:[%s0 + $0x1c8] sm:$0xf]
  %v133 = vld [vmem:[%s0 + $0x1cc] sm:$0xf]
  %v134 = vld [vmem:[%s0 + $0x1d0] sm:$0xf]
  %v135 = vld [vmem:[%s0 + $0x1d4] sm:$0xf]
  %v136 = vld [vmem:[%s0 + $0x1d8] sm:$0xf]
  %v137 = vld [vmem:[%s0 + $0x1dc] sm:$0xf]
  %v138 = vld [vmem:[%s0 + $0x1e0] sm:$0xf]
  %v139 = vld [vmem:[%s0 + $0x1e4] sm:$0xf]
  %v140 = vld [vmem:[%s0 + $0x1e8] sm:$0xf]
  %v141 = vld [vmem:[%s0 + $0x1ec] sm:$0xf]
  %v142 = vld [vmem:[%s0 + $0x1f0] sm:$0xf]
  %v143 = vld [vmem:[%s0 + $0x1f4] sm:$0xf]
  %v144 = vld [vmem:[%s0 + $0x1f8] sm:$0xf]
  %v145 = vld [vmem:[%s0 + $0x1fc] sm:$0xf]
  %v146 = vld [vmem:[%s0 + $0x200] sm:$0xf]
  %v147 = vld [vmem:[%s0 + $0x204] sm:$0xf]
  %v148 = vld [vmem:[%s0 + $0x208] sm:$0xf]
  %v149 = vld [vmem:[%s0 + $0x20c] sm:$0xf]
  %v150 = vld [vmem:[%s0 + $0x210] sm:$0xf]
  %v151 = vld [vmem:[%s0 + $0x214] sm:$0xf]
  %v152 = vld [vmem:[%s0 + $0x218] sm:$0xf]
  %v153 = vld [vmem:[%s0 + $0x21c] sm:$0xf]
  %v154 = vld [vmem:[%s0 + $0x220] sm:$0xf]
  %v155 = vld [vmem:[%s0 + $0x224] sm:$0xf]
  %v156 = vld [vmem:[%s0 + $0x228] sm:$0xf]
  %v157 = vld [vmem:[%s0 + $0x22c] sm:$0xf]
  %v158 = vld [vmem:[%s0 + $0x230] sm:$0xf]
  %v159 = vld [vmem:[%s0 + $0x234] sm:$0xf]
  %v160 = vld [vmem:[%s0 + $0x238] sm:$0xf]
  %v161 = vld [vmem:[%s0 + $0x23c] sm:$0xf]
  %v162 = vld [vmem:[%s0 + $0x240] sm:$0xf]
  %v163 = vld [vmem:[%s0 + $0x244] sm:$0xf]
  %v164 = vld [vmem:[%s0 + $0x248] sm:$0xf]
  %v165 = vld [vmem:[%s0 + $0x24c] sm:$0xf]
  %v166 = vld [vmem:[%s0 + $0x250] sm:$0xf]
  %v167 = vld [vmem:[%s0 + $0x254] sm:$0xf]
  %v168 = vld [vmem:[%s0 + $0x258] sm:$0xf]
  %v169 = vld [vmem:[%s0 + $0x25c] sm:$0xf]
  %v170 = vld [vmem:[%s0 + $0x260] sm:$0xf]
  %v171 = vld [vmem:[%s0 + $0x264] sm:$0xf]
  %v172 = vld [vmem:[%s0 + $0x268] sm:$0xf]
  %v173 = vld [vmem:[%s0 + $0x26c] sm:$0xf]
  %v174 = vld [vmem:[%s0 + $0x270] sm:$0xf]
  %v175 = vld [vmem:[%s0 + $0x274] sm:$0xf]
  %v176 = vld [vmem:[%s0 + $0x278] sm:$0xf]
  %v177 = vld [vmem:[%s0 + $0x27c] sm:$0xf]
  %v178 = vld [vmem:[%s0 + $0x280] sm:$0xf]
  %v179 = vld [vmem:[%s0 + $0x284] sm:$0xf]
  %v180 = vld [vmem:[%s0 + $0x288] sm:$0xf]
  %v181 = vld [vmem:[%s0 + $0x28c] sm:$0xf]
  %v182 = vld [vmem:[%s0 + $0x290] sm:$0xf]
  %v183 = vld [vmem:[%s0 + $0x294] sm:$0xf]
  %v184 = vld [vmem:[%s0 + $0x298] sm:$0xf]
  %v185 = vld [vmem:[%s0 + $0x29c] sm:$0xf]
  %v186 = vld [vmem:[%s0 + $0x2a0] sm:$0xf]
  %v187 = vld [vmem:[%s0 + $0x2a4] sm:$0xf]
  %v188 = vld [vmem:[%s0 + $0x2a8] sm:$0xf]
  %v189 = vld [vmem:[%s0 + $0x2ac] sm:$0xf]
  %v190 = vld [vmem:[%s0 + $0x2b0] sm:$0xf]
  %v191 = vld [vmem:[%s0 + $0x2b4] sm:$0xf]
  %v192 = vld [vmem:[%s0 + $0x2b8] sm:$0xf]
  %v193 = vld [vmem:[%s0 + $0x2bc] sm:$0xf]
  %v194 = vld [vmem:[%s0 + $0x2c0] sm:$0xf]
  %v195 = vld [vmem:[%s0 + $0x2c4] sm:$0xf]
  %v196 = vld [vmem:[%s0 + $0x2c8] sm:$0xf]
  %v197 = vld [vmem:[%s0 + $0x2cc] sm:$0xf]
  %v198 = vld [vmem:[%s0 + $0x2d0] sm:$0xf]
  %v199 = vld [vmem:[%s0 + $0x2d4] sm:$0xf]
  %v200 = vld [vmem:[%s0 + $0x2d8] sm:$0xf]
  %v201 = vld [vmem:[%s0 + $0x2dc] sm:$0xf]
  %v202 = vld [vmem:[%s0 + $0x2e0] sm:$0xf]
  %v203 = vld [vmem:[%s0 + $0x2e4] sm:$0xf]
  %v204 = vld [vmem:[%s0 + $0x2e8] sm:$0xf]
  %v205 = vld [vmem:[%s0 + $0x2ec] sm:$0xf]
  %v206 = vld [vmem:[%s0 + $0x2f0] sm:$0xf]
  %v207 = vld [vmem:[%s0 + $0x2f4] sm:$0xf]
  %v208 = vld [vmem:[%s0 + $0x2f8] sm:$0xf]
  %v209 = vld [vmem:[%s0 + $0x2fc] sm:$0xf]
  %v210 = vld [vmem:[%s0 + $0x300] sm:$0xf]
  %v211 = vld [vmem:[%s0 + $0x304] sm:$0xf]
  %v212 = vld [vmem:[%s0 + $0x308] sm:$0xf]
  %v213 = vld [vmem:[%s0 + $0x30c] sm:$0xf]
  %v214 = vld [vmem:[%s0 + $0x310] sm:$0xf]
  %v215 = vld [vmem:[%s0 + $0x314] sm:$0xf]
  %v216 = vld [vmem:[%s0 + $0x318] sm:$0xf]
  %v217 = vld [vmem:[%s0 + $0x31c] sm:$0xf]
  %v218 = vld [vmem:[%s0 + $0x320] sm:$0xf]
  %v219 = vld [vmem:[%s0 + $0x324] sm:$0xf]
  %v220 = vld [vmem:[%s0 + $0x328] sm:$0xf]
  %v221 = vld [vmem:[%s0 + $0x32c] sm:$0xf]
  %v222 = vld [vmem:[%s0 + $0x330] sm:$0xf]
  %v223 = vld [vmem:[%s0 + $0x334] sm:$0xf]
  %v224 = vld [vmem:[%s0 + $0x338] sm:$0xf]
  %v225 = vld [vmem:[%s0 + $0x33c] sm:$0xf]
  %v226 = vld [vmem:[%s0 + $0x340] sm:$0xf]
  %v227 = vld [vmem:[%s0 + $0x344] sm:$0xf]
  %v228 = vld [vmem:[%s0 + $0x348] sm:$0xf]
  %v229 = vld [vmem:[%s0 + $0x34c] sm:$0xf]
  %v230 = vld [vmem:[%s0 + $0x350] sm:$0xf]
  %v231 = vld [vmem:[%s0 + $0x354] sm:$0xf]
  %v232 = vld [vmem:[%s0 + $0x358] sm:$0xf]
  %v233 = vld [vmem:[%s0 + $0x35c] sm:$0xf]
  %v234 = vld [vmem:[%s0 + $0x360] sm:$0xf]
  %v235 = vld [vmem:[%s0 + $0x364] sm:$0xf]
  %v236 = vld [vmem:[%s0 + $0x368] sm:$0xf]
  %v237 = vld [vmem:[%s0 + $0x36c] sm:$0xf]
  %v238 = vld [vmem:[%s0 + $0x370] sm:$0xf]
  %v239 = vld [vmem:[%s0 + $0x374] sm:$0xf]
  %v240 = vld [vmem:[%s0 + $0x378] sm:$0xf]
  %v241 = vld [vmem:[%s0 + $0x37c] sm:$0xf]
  %v242 = vld [vmem:[%s0 + $0x380] sm:$0xf]
  %v243 = vld [vmem:[%s0 + $0x384] sm:$0xf]
  %v244 = vld [vmem:[%s0 + $0x388] sm:$0xf]
  %v245 = vld [vmem:[%s0 + $0x38c] sm:$0xf]
  %v246 = vld [vmem:[%s0 + $0x390] sm:$0xf]
  %v247 = vld [vmem:[%s0 + $0x394] sm:$0xf]
  %v248 = vld [vmem:[%s0 + $0x398] sm:$0xf]
  %v249 = vld [vmem:[%s0 + $0x39c] sm:$0xf]
  %v250 = vld [vmem:[%s0 + $0x3a0] sm:$0xf]
  %v251 = vld [vmem:[%s0 + $0x3a4] sm:$0xf]
  %v252 = vld [vmem:[%s0 + $0x3a8] sm:$0xf]
  %v253 = vld [vmem:[%s0 + $0x3ac] sm:$0xf]
  %v254 = vld [vmem:[%s0 + $0x3b0] sm:$0xf]
  %v255 = vld [vmem:[%s0 + $0x3b4] sm:$0xf]
  %v256 = vld [vmem:[%s0 + $0x3b8] sm:$0xf]
  %v257 = vld [vmem:[%s0 + $0x3bc] sm:$0xf]
  %v258 = vld [vmem:[%s0 + $0x3c0] sm:$0xf]
  %v259 = vld [vmem:[%s0 + $0x3c4] sm:$0xf]
  %v260 = vld [vmem:[%s0 + $0x3c8] sm:$0xf]
  %v261 = vld [vmem:[%s0 + $0x3cc] sm:$0xf]
  %v262 = vld [vmem:[%s0 + $0x3d0] sm:$0xf]
  %v263 = vld [vmem:[%s0 + $0x3d4] sm:$0xf]
  %v264 = vld [vmem:[%s0 + $0x3d8] sm:$0xf]
  %v265 = vld [vmem:[%s0 + $0x3dc] sm:$0xf]
  %v266 = vld [vmem:[%s0 + $0x3e0] sm:$0xf]
  %v267 = vld [vmem:[%s0 + $0x3e4] sm:$0xf]
  %v268 = vld [vmem:[%s0 + $0x3e8] sm:$0xf]
  %v269 = vld [vmem:[%s0 + $0x3ec] sm:$0xf]
  %v270 = vld [vmem:[%s0 + $0x3f0] sm:$0xf]
  %v271 = vld [vmem:[%s0 + $0x3f4] sm:$0xf]
  %v272 = vld [vmem:[%s0 + $0x3f8] sm:$0xf]
  %v273 = vld [vmem:[%s0 + $0x3fc] sm:$0xf]
  %v274 = vld [vmem:[%s1] sm:$0xf]
  %v275 = vld [vmem:[%s1 + $0x4] sm:$0xf]
  %v276 = vld [vmem:[%s1 + $0x8] sm:$0xf]
  %v277 = vld [vmem:[%s1 + $0xc] sm:$0x3]
  %v534 = vunpack.c.l.b16 %v18
  %v535 = vunpack.c.l.b16 %v19
  %v536 = vunpack.c.l.b16 %v20
  %v537 = vunpack.c.l.b16 %v21
  %v538 = vunpack.c.l.b16 %v22
  %v539 = vunpack.c.l.b16 %v23
  %v540 = vunpack.c.l.b16 %v24
  %v541 = vunpack.c.l.b16 %v25
  %v542 = vunpack.c.l.b16 %v26
  %v543 = vunpack.c.l.b16 %v27
  %v544 = vunpack.c.l.b16 %v28
  %v545 = vunpack.c.l.b16 %v29
  %v546 = vunpack.c.l.b16 %v30
  %v547 = vunpack.c.l.b16 %v31
  %v548 = vunpack.c.l.b16 %v32
  %v549 = vunpack.c.l.b16 %v33
  %v550 = vunpack.c.l.b16 %v34
  %v551 = vunpack.c.l.b16 %v35
  %v552 = vunpack.c.l.b16 %v36
  %v553 = vunpack.c.l.b16 %v37
  %v554 = vunpack.c.l.b16 %v38
  %v555 = vunpack.c.l.b16 %v39
  %v556 = vunpack.c.l.b16 %v40
  %v557 = vunpack.c.l.b16 %v41
  %v558 = vunpack.c.l.b16 %v42
  %v559 = vunpack.c.l.b16 %v43
  %v560 = vunpack.c.l.b16 %v44
  %v561 = vunpack.c.l.b16 %v45
  %v562 = vunpack.c.l.b16 %v46
  %v563 = vunpack.c.l.b16 %v47
  %v564 = vunpack.c.l.b16 %v48
  %v565 = vunpack.c.l.b16 %v49
  %v566 = vunpack.c.l.b16 %v50
  %v567 = vunpack.c.l.b16 %v51
  %v568 = vunpack.c.l.b16 %v52
  %v569 = vunpack.c.l.b16 %v53
  %v570 = vunpack.c.l.b16 %v54
  %v571 = vunpack.c.l.b16 %v55
  %v572 = vunpack.c.l.b16 %v56
  %v573 = vunpack.c.l.b16 %v57
  %v574 = vunpack.c.l.b16 %v58
  %v575 = vunpack.c.l.b16 %v59
  %v576 = vunpack.c.l.b16 %v60
  %v577 = vunpack.c.l.b16 %v61
  %v578 = vunpack.c.l.b16 %v62
  %v579 = vunpack.c.l.b16 %v63
  %v580 = vunpack.c.l.b16 %v64
  %v581 = vunpack.c.l.b16 %v65
  %v582 = vunpack.c.l.b16 %v66
  %v583 = vunpack.c.l.b16 %v67
  %v584 = vunpack.c.l.b16 %v68
  %v585 = vunpack.c.l.b16 %v69
  %v586 = vunpack.c.l.b16 %v70
  %v587 = vunpack.c.l.b16 %v71
  %v588 = vunpack.c.l.b16 %v72
  %v589 = vunpack.c.l.b16 %v73
  %v590 = vunpack.c.l.b16 %v74
  %v591 = vunpack.c.l.b16 %v75
  %v592 = vunpack.c.l.b16 %v76
  %v593 = vunpack.c.l.b16 %v77
  %v594 = vunpack.c.l.b16 %v78
  %v595 = vunpack.c.l.b16 %v79
  %v596 = vunpack.c.l.b16 %v80
  %v597 = vunpack.c.l.b16 %v81
  %v598 = vunpack.c.l.b16 %v82
  %v599 = vunpack.c.l.b16 %v83
  %v600 = vunpack.c.l.b16 %v84
  %v601 = vunpack.c.l.b16 %v85
  %v602 = vunpack.c.l.b16 %v86
  %v603 = vunpack.c.l.b16 %v87
  %v604 = vunpack.c.l.b16 %v88
  %v605 = vunpack.c.l.b16 %v89
  %v606 = vunpack.c.l.b16 %v90
  %v607 = vunpack.c.l.b16 %v91
  %v608 = vunpack.c.l.b16 %v92
  %v609 = vunpack.c.l.b16 %v93
  %v610 = vunpack.c.l.b16 %v94
  %v611 = vunpack.c.l.b16 %v95
  %v612 = vunpack.c.l.b16 %v96
  %v613 = vunpack.c.l.b16 %v97
  %v614 = vunpack.c.l.b16 %v98
  %v615 = vunpack.c.l.b16 %v99
  %v616 = vunpack.c.l.b16 %v100
  %v617 = vunpack.c.l.b16 %v101
  %v618 = vunpack.c.l.b16 %v102
  %v619 = vunpack.c.l.b16 %v103
  %v620 = vunpack.c.l.b16 %v104
  %v621 = vunpack.c.l.b16 %v105
  %v622 = vunpack.c.l.b16 %v106
  %v623 = vunpack.c.l.b16 %v107
  %v624 = vunpack.c.l.b16 %v108
  %v625 = vunpack.c.l.b16 %v109
  %v626 = vunpack.c.l.b16 %v110
  %v627 = vunpack.c.l.b16 %v111
  %v628 = vunpack.c.l.b16 %v112
  %v629 = vunpack.c.l.b16 %v113
  %v630 = vunpack.c.l.b16 %v114
  %v631 = vunpack.c.l.b16 %v115
  %v632 = vunpack.c.l.b16 %v116
  %v633 = vunpack.c.l.b16 %v117
  %v634 = vunpack.c.l.b16 %v118
  %v635 = vunpack.c.l.b16 %v119
  %v636 = vunpack.c.l.b16 %v120
  %v637 = vunpack.c.l.b16 %v121
  %v638 = vunpack.c.l.b16 %v122
  %v639 = vunpack.c.l.b16 %v123
  %v640 = vunpack.c.l.b16 %v124
  %v641 = vunpack.c.l.b16 %v125
  %v642 = vunpack.c.l.b16 %v126
  %v643 = vunpack.c.l.b16 %v127
  %v644 = vunpack.c.l.b16 %v128
  %v645 = vunpack.c.l.b16 %v129
  %v646 = vunpack.c.l.b16 %v130
  %v647 = vunpack.c.l.b16 %v131
  %v648 = vunpack.c.l.b16 %v132
  %v649 = vunpack.c.l.b16 %v133
  %v650 = vunpack.c.l.b16 %v134
  %v651 = vunpack.c.l.b16 %v135
  %v652 = vunpack.c.l.b16 %v136
  %v653 = vunpack.c.l.b16 %v137
  %v654 = vunpack.c.l.b16 %v138
  %v655 = vunpack.c.l.b16 %v139
  %v656 = vunpack.c.l.b16 %v140
  %v657 = vunpack.c.l.b16 %v141
  %v658 = vunpack.c.l.b16 %v142
  %v659 = vunpack.c.l.b16 %v143
  %v660 = vunpack.c.l.b16 %v144
  %v661 = vunpack.c.l.b16 %v145
  %v662 = vunpack.c.l.b16 %v146
  %v663 = vunpack.c.l.b16 %v147
  %v664 = vunpack.c.l.b16 %v148
  %v665 = vunpack.c.l.b16 %v149
  %v666 = vunpack.c.l.b16 %v150
  %v667 = vunpack.c.l.b16 %v151
  %v668 = vunpack.c.l.b16 %v152
  %v669 = vunpack.c.l.b16 %v153
  %v670 = vunpack.c.l.b16 %v154
  %v671 = vunpack.c.l.b16 %v155
  %v672 = vunpack.c.l.b16 %v156
  %v673 = vunpack.c.l.b16 %v157
  %v674 = vunpack.c.l.b16 %v158
  %v675 = vunpack.c.l.b16 %v159
  %v676 = vunpack.c.l.b16 %v160
  %v677 = vunpack.c.l.b16 %v161
  %v678 = vunpack.c.l.b16 %v162
  %v679 = vunpack.c.l.b16 %v163
  %v680 = vunpack.c.l.b16 %v164
  %v681 = vunpack.c.l.b16 %v165
  %v682 = vunpack.c.l.b16 %v166
  %v683 = vunpack.c.l.b16 %v167
  %v684 = vunpack.c.l.b16 %v168
  %v685 = vunpack.c.l.b16 %v169
  %v686 = vunpack.c.l.b16 %v170
  %v687 = vunpack.c.l.b16 %v171
  %v688 = vunpack.c.l.b16 %v172
  %v689 = vunpack.c.l.b16 %v173
  %v690 = vunpack.c.l.b16 %v174
  %v691 = vunpack.c.l.b16 %v175
  %v692 = vunpack.c.l.b16 %v176
  %v693 = vunpack.c.l.b16 %v177
  %v694 = vunpack.c.l.b16 %v178
  %v695 = vunpack.c.l.b16 %v179
  %v696 = vunpack.c.l.b16 %v180
  %v697 = vunpack.c.l.b16 %v181
  %v698 = vunpack.c.l.b16 %v182
  %v699 = vunpack.c.l.b16 %v183
  %v700 = vunpack.c.l.b16 %v184
  %v701 = vunpack.c.l.b16 %v185
  %v702 = vunpack.c.l.b16 %v186
  %v703 = vunpack.c.l.b16 %v187
  %v704 = vunpack.c.l.b16 %v188
  %v705 = vunpack.c.l.b16 %v189
  %v706 = vunpack.c.l.b16 %v190
  %v707 = vunpack.c.l.b16 %v191
  %v708 = vunpack.c.l.b16 %v192
  %v709 = vunpack.c.l.b16 %v193
  %v710 = vunpack.c.l.b16 %v194
  %v711 = vunpack.c.l.b16 %v195
  %v712 = vunpack.c.l.b16 %v196
  %v713 = vunpack.c.l.b16 %v197
  %v714 = vunpack.c.l.b16 %v198
  %v715 = vunpack.c.l.b16 %v199
  %v716 = vunpack.c.l.b16 %v200
  %v717 = vunpack.c.l.b16 %v201
  %v718 = vunpack.c.l.b16 %v202
  %v719 = vunpack.c.l.b16 %v203
  %v720 = vunpack.c.l.b16 %v204
  %v721 = vunpack.c.l.b16 %v205
  %v722 = vunpack.c.l.b16 %v206
  %v723 = vunpack.c.l.b16 %v207
  %v724 = vunpack.c.l.b16 %v208
  %v725 = vunpack.c.l.b16 %v209
  %v726 = vunpack.c.l.b16 %v210
  %v727 = vunpack.c.l.b16 %v211
  %v728 = vunpack.c.l.b16 %v212
  %v729 = vunpack.c.l.b16 %v213
  %v730 = vunpack.c.l.b16 %v214
  %v731 = vunpack.c.l.b16 %v215
  %v732 = vunpack.c.l.b16 %v216
  %v733 = vunpack.c.l.b16 %v217
  %v734 = vunpack.c.l.b16 %v218
  %v735 = vunpack.c.l.b16 %v219
  %v736 = vunpack.c.l.b16 %v220
  %v737 = vunpack.c.l.b16 %v221
  %v738 = vunpack.c.l.b16 %v222
  %v739 = vunpack.c.l.b16 %v223
  %v740 = vunpack.c.l.b16 %v224
  %v741 = vunpack.c.l.b16 %v225
  %v742 = vunpack.c.l.b16 %v226
  %v743 = vunpack.c.l.b16 %v227
  %v744 = vunpack.c.l.b16 %v228
  %v745 = vunpack.c.l.b16 %v229
  %v746 = vunpack.c.l.b16 %v230
  %v747 = vunpack.c.l.b16 %v231
  %v748 = vunpack.c.l.b16 %v232
  %v749 = vunpack.c.l.b16 %v233
  %v750 = vunpack.c.l.b16 %v234
  %v751 = vunpack.c.l.b16 %v235
  %v752 = vunpack.c.l.b16 %v236
  %v753 = vunpack.c.l.b16 %v237
  %v754 = vunpack.c.l.b16 %v238
  %v755 = vunpack.c.l.b16 %v239
  %v756 = vunpack.c.l.b16 %v240
  %v757 = vunpack.c.l.b16 %v241
  %v758 = vunpack.c.l.b16 %v242
  %v759 = vunpack.c.l.b16 %v243
  %v760 = vunpack.c.l.b16 %v244
  %v761 = vunpack.c.l.b16 %v245
  %v762 = vunpack.c.l.b16 %v246
  %v763 = vunpack.c.l.b16 %v247
  %v764 = vunpack.c.l.b16 %v248
  %v765 = vunpack.c.l.b16 %v249
  %v766 = vunpack.c.l.b16 %v250
  %v767 = vunpack.c.l.b16 %v251
  %v768 = vunpack.c.l.b16 %v252
  %v769 = vunpack.c.l.b16 %v253
  %v770 = vunpack.c.l.b16 %v254
  %v771 = vunpack.c.l.b16 %v255
  %v772 = vunpack.c.l.b16 %v256
  %v773 = vunpack.c.l.b16 %v257
  %v774 = vunpack.c.l.b16 %v258
  %v775 = vunpack.c.l.b16 %v259
  %v776 = vunpack.c.l.b16 %v260
  %v777 = vunpack.c.l.b16 %v261
  %v778 = vunpack.c.l.b16 %v262
  %v779 = vunpack.c.l.b16 %v263
  %v780 = vunpack.c.l.b16 %v264
  %v781 = vunpack.c.l.b16 %v265
  %v782 = vunpack.c.l.b16 %v266
  %v783 = vunpack.c.l.b16 %v267
  %v784 = vunpack.c.l.b16 %v268
  %v785 = vunpack.c.l.b16 %v269
  %v786 = vunpack.c.l.b16 %v270
  %v787 = vunpack.c.l.b16 %v271
  %v788 = vunpack.c.l.b16 %v272
  %v789 = vunpack.c.l.b16 %v273
  %v790 = vpack.c.b16 %v535, %v534
  %v791 = vpack.c.b16 %v537, %v536
  %v792 = vpack.c.b16 %v539, %v538
  %v793 = vpack.c.b16 %v541, %v540
  %v794 = vpack.c.b16 %v543, %v542
  %v795 = vpack.c.b16 %v545, %v544
  %v796 = vpack.c.b16 %v547, %v546
  %v797 = vpack.c.b16 %v549, %v548
  %v798 = vpack.c.b16 %v551, %v550
  %v799 = vpack.c.b16 %v553, %v552
  %v800 = vpack.c.b16 %v555, %v554
  %v801 = vpack.c.b16 %v557, %v556
  %v802 = vpack.c.b16 %v559, %v558
  %v803 = vpack.c.b16 %v561, %v560
  %v804 = vpack.c.b16 %v563, %v562
  %v805 = vpack.c.b16 %v565, %v564
  %v806 = vpack.c.b16 %v567, %v566
  %v807 = vpack.c.b16 %v569, %v568
  %v808 = vpack.c.b16 %v571, %v570
  %v809 = vpack.c.b16 %v573, %v572
  %v810 = vpack.c.b16 %v575, %v574
  %v811 = vpack.c.b16 %v577, %v576
  %v812 = vpack.c.b16 %v579, %v578
  %v813 = vpack.c.b16 %v581, %v580
  %v814 = vpack.c.b16 %v583, %v582
  %v815 = vpack.c.b16 %v585, %v584
  %v816 = vpack.c.b16 %v587, %v586
  %v817 = vpack.c.b16 %v589, %v588
  %v818 = vpack.c.b16 %v591, %v590
  %v819 = vpack.c.b16 %v593, %v592
  %v820 = vpack.c.b16 %v595, %v594
  %v821 = vpack.c.b16 %v597, %v596
  %v822 = vpack.c.b16 %v599, %v598
  %v823 = vpack.c.b16 %v601, %v600
  %v824 = vpack.c.b16 %v603, %v602
  %v825 = vpack.c.b16 %v605, %v604
  %v826 = vpack.c.b16 %v607, %v606
  %v827 = vpack.c.b16 %v609, %v608
  %v828 = vpack.c.b16 %v611, %v610
  %v829 = vpack.c.b16 %v613, %v612
  %v830 = vpack.c.b16 %v615, %v614
  %v831 = vpack.c.b16 %v617, %v616
  %v832 = vpack.c.b16 %v619, %v618
  %v833 = vpack.c.b16 %v621, %v620
  %v834 = vpack.c.b16 %v623, %v622
  %v835 = vpack.c.b16 %v625, %v624
  %v836 = vpack.c.b16 %v627, %v626
  %v837 = vpack.c.b16 %v629, %v628
  %v838 = vpack.c.b16 %v631, %v630
  %v839 = vpack.c.b16 %v633, %v632
  %v840 = vpack.c.b16 %v635, %v634
  %v841 = vpack.c.b16 %v637, %v636
  %v842 = vpack.c.b16 %v639, %v638
  %v843 = vpack.c.b16 %v641, %v640
  %v844 = vpack.c.b16 %v643, %v642
  %v845 = vpack.c.b16 %v645, %v644
  %v846 = vpack.c.b16 %v647, %v646
  %v847 = vpack.c.b16 %v649, %v648
  %v848 = vpack.c.b16 %v651, %v650
  %v849 = vpack.c.b16 %v653, %v652
  %v850 = vpack.c.b16 %v655, %v654
  %v851 = vpack.c.b16 %v657, %v656
  %v852 = vpack.c.b16 %v659, %v658
  %v853 = vpack.c.b16 %v661, %v660
  %v854 = vpack.c.b16 %v663, %v662
  %v855 = vpack.c.b16 %v665, %v664
  %v856 = vpack.c.b16 %v667, %v666
  %v857 = vpack.c.b16 %v669, %v668
  %v858 = vpack.c.b16 %v671, %v670
  %v859 = vpack.c.b16 %v673, %v672
  %v860 = vpack.c.b16 %v675, %v674
  %v861 = vpack.c.b16 %v677, %v676
  %v862 = vpack.c.b16 %v679, %v678
  %v863 = vpack.c.b16 %v681, %v680
  %v864 = vpack.c.b16 %v683, %v682
  %v865 = vpack.c.b16 %v685, %v684
  %v866 = vpack.c.b16 %v687, %v686
  %v867 = vpack.c.b16 %v689, %v688
  %v868 = vpack.c.b16 %v691, %v690
  %v869 = vpack.c.b16 %v693, %v692
  %v870 = vpack.c.b16 %v695, %v694
  %v871 = vpack.c.b16 %v697, %v696
  %v872 = vpack.c.b16 %v699, %v698
  %v873 = vpack.c.b16 %v701, %v700
  %v874 = vpack.c.b16 %v703, %v702
  %v875 = vpack.c.b16 %v705, %v704
  %v876 = vpack.c.b16 %v707, %v706
  %v877 = vpack.c.b16 %v709, %v708
  %v878 = vpack.c.b16 %v711, %v710
  %v879 = vpack.c.b16 %v713, %v712
  %v880 = vpack.c.b16 %v715, %v714
  %v881 = vpack.c.b16 %v717, %v716
  %v882 = vpack.c.b16 %v719, %v718
  %v883 = vpack.c.b16 %v721, %v720
  %v884 = vpack.c.b16 %v723, %v722
  %v885 = vpack.c.b16 %v725, %v724
  %v886 = vpack.c.b16 %v727, %v726
  %v887 = vpack.c.b16 %v729, %v728
  %v888 = vpack.c.b16 %v731, %v730
  %v889 = vpack.c.b16 %v733, %v732
  %v890 = vpack.c.b16 %v735, %v734
  %v891 = vpack.c.b16 %v737, %v736
  %v892 = vpack.c.b16 %v739, %v738
  %v893 = vpack.c.b16 %v741, %v740
  %v894 = vpack.c.b16 %v743, %v742
  %v895 = vpack.c.b16 %v745, %v744
  %v896 = vpack.c.b16 %v747, %v746
  %v897 = vpack.c.b16 %v749, %v748
  %v898 = vpack.c.b16 %v751, %v750
  %v899 = vpack.c.b16 %v753, %v752
  %v900 = vpack.c.b16 %v755, %v754
  %v901 = vpack.c.b16 %v757, %v756
  %v902 = vpack.c.b16 %v759, %v758
  %v903 = vpack.c.b16 %v761, %v760
  %v904 = vpack.c.b16 %v763, %v762
  %v905 = vpack.c.b16 %v765, %v764
  %v906 = vpack.c.b16 %v767, %v766
  %v907 = vpack.c.b16 %v769, %v768
  %v908 = vpack.c.b16 %v771, %v770
  %v909 = vpack.c.b16 %v773, %v772
  %v910 = vpack.c.b16 %v775, %v774
  %v911 = vpack.c.b16 %v777, %v776
  %v912 = vpack.c.b16 %v779, %v778
  %v913 = vpack.c.b16 %v781, %v780
  %v914 = vpack.c.b16 %v783, %v782
  %v915 = vpack.c.b16 %v785, %v784
  %v916 = vpack.c.b16 %v787, %v786
  %v917 = vpack.c.b16 %v789, %v788
  %v922 = vunpack.c.l.b16 %v274
  %v923 = vunpack.c.l.b16 %v275
  %v924 = vunpack.c.l.b16 %v276
  %v925 = vunpack.c.l.b16 %v277
  %v926 = vpack.c.b16 %v923, %v922
  %v927 = vpack.c.b16 %v925, %v924
  %vm929 = vcmask 220160
  %v931 = vsel %vm929, %v790, 0
  %v934 = vsel %vm929, %v791, 0
  %v937 = vsel %vm929, %v792, 0
  %v940 = vsel %vm929, %v793, 0
  %v943 = vsel %vm929, %v794, 0
  %v946 = vsel %vm929, %v795, 0
  %v949 = vsel %vm929, %v796, 0
  %v952 = vsel %vm929, %v797, 0
  %v955 = vsel %vm929, %v798, 0
  %v958 = vsel %vm929, %v799, 0
  %v961 = vsel %vm929, %v800, 0
  %v964 = vsel %vm929, %v801, 0
  %v967 = vsel %vm929, %v802, 0
  %v970 = vsel %vm929, %v803, 0
  %v973 = vsel %vm929, %v804, 0
  %v976 = vsel %vm929, %v805, 0
  %v979 = vsel %vm929, %v806, 0
  %v982 = vsel %vm929, %v807, 0
  %v985 = vsel %vm929, %v808, 0
  %v988 = vsel %vm929, %v809, 0
  %v991 = vsel %vm929, %v810, 0
  %v994 = vsel %vm929, %v811, 0
  %v997 = vsel %vm929, %v812, 0
  %v1000 = vsel %vm929, %v813, 0
  %v1003 = vsel %vm929, %v814, 0
  %v1006 = vsel %vm929, %v815, 0
  %v1009 = vsel %vm929, %v816, 0
  %v1012 = vsel %vm929, %v817, 0
  %v1015 = vsel %vm929, %v818, 0
  %v1018 = vsel %vm929, %v819, 0
  %v1021 = vsel %vm929, %v820, 0
  %v1024 = vsel %vm929, %v821, 0
  %v1027 = vsel %vm929, %v822, 0
  %v1030 = vsel %vm929, %v823, 0
  %v1033 = vsel %vm929, %v824, 0
  %v1036 = vsel %vm929, %v825, 0
  %v1039 = vsel %vm929, %v826, 0
  %v1042 = vsel %vm929, %v827, 0
  %v1045 = vsel %vm929, %v828, 0
  %v1048 = vsel %vm929, %v829, 0
  %v1051 = vsel %vm929, %v830, 0
  %v1054 = vsel %vm929, %v831, 0
  %v1057 = vsel %vm929, %v832, 0
  %v1060 = vsel %vm929, %v833, 0
  %v1063 = vsel %vm929, %v834, 0
  %v1066 = vsel %vm929, %v835, 0
  %v1069 = vsel %vm929, %v836, 0
  %v1072 = vsel %vm929, %v837, 0
  %v1075 = vsel %vm929, %v838, 0
  %v1078 = vsel %vm929, %v839, 0
  %v1081 = vsel %vm929, %v840, 0
  %v1084 = vsel %vm929, %v841, 0
  %v1087 = vsel %vm929, %v842, 0
  %v1090 = vsel %vm929, %v843, 0
  %v1093 = vsel %vm929, %v844, 0
  %v1096 = vsel %vm929, %v845, 0
  %v1099 = vsel %vm929, %v846, 0
  %v1102 = vsel %vm929, %v847, 0
  %v1105 = vsel %vm929, %v848, 0
  %v1108 = vsel %vm929, %v849, 0
  %v1111 = vsel %vm929, %v850, 0
  %v1114 = vsel %vm929, %v851, 0
  %v1117 = vsel %vm929, %v852, 0
  %v1120 = vsel %vm929, %v853, 0
  %v1123 = vsel %vm929, %v854, 0
  %v1126 = vsel %vm929, %v855, 0
  %v1129 = vsel %vm929, %v856, 0
  %v1132 = vsel %vm929, %v857, 0
  %v1135 = vsel %vm929, %v858, 0
  %v1138 = vsel %vm929, %v859, 0
  %v1141 = vsel %vm929, %v860, 0
  %v1144 = vsel %vm929, %v861, 0
  %v1147 = vsel %vm929, %v862, 0
  %v1150 = vsel %vm929, %v863, 0
  %v1153 = vsel %vm929, %v864, 0
  %v1156 = vsel %vm929, %v865, 0
  %v1159 = vsel %vm929, %v866, 0
  %v1162 = vsel %vm929, %v867, 0
  %v1165 = vsel %vm929, %v868, 0
  %v1168 = vsel %vm929, %v869, 0
  %v1171 = vsel %vm929, %v870, 0
  %v1174 = vsel %vm929, %v871, 0
  %v1177 = vsel %vm929, %v872, 0
  %v1180 = vsel %vm929, %v873, 0
  %v1183 = vsel %vm929, %v874, 0
  %v1186 = vsel %vm929, %v875, 0
  %v1189 = vsel %vm929, %v876, 0
  %v1192 = vsel %vm929, %v877, 0
  %v1195 = vsel %vm929, %v878, 0
  %v1198 = vsel %vm929, %v879, 0
  %v1201 = vsel %vm929, %v880, 0
  %v1204 = vsel %vm929, %v881, 0
  %v1207 = vsel %vm929, %v882, 0
  %v1210 = vsel %vm929, %v883, 0
  %v1213 = vsel %vm929, %v884, 0
  %v1216 = vsel %vm929, %v885, 0
  %v1219 = vsel %vm929, %v886, 0
  %v1222 = vsel %vm929, %v887, 0
  %v1225 = vsel %vm929, %v888, 0
  %v1228 = vsel %vm929, %v889, 0
  %v1231 = vsel %vm929, %v890, 0
  %v1234 = vsel %vm929, %v891, 0
  %v1237 = vsel %vm929, %v892, 0
  %v1240 = vsel %vm929, %v893, 0
  %v1243 = vsel %vm929, %v894, 0
  %v1246 = vsel %vm929, %v895, 0
  %v1249 = vsel %vm929, %v896, 0
  %v1252 = vsel %vm929, %v897, 0
  %v1255 = vsel %vm929, %v898, 0
  %v1258 = vsel %vm929, %v899, 0
  %v1261 = vsel %vm929, %v900, 0
  %v1264 = vsel %vm929, %v901, 0
  %v1267 = vsel %vm929, %v902, 0
  %v1270 = vsel %vm929, %v903, 0
  %v1273 = vsel %vm929, %v904, 0
  %v1276 = vsel %vm929, %v905, 0
  %v1279 = vsel %vm929, %v906, 0
  %v1282 = vsel %vm929, %v907, 0
  %v1285 = vsel %vm929, %v908, 0
  %v1288 = vsel %vm929, %v909, 0
  %v1291 = vsel %vm929, %v910, 0
  %v1294 = vsel %vm929, %v911, 0
  %v1297 = vsel %vm929, %v912, 0
  %v1300 = vsel %vm929, %v913, 0
  %v1303 = vsel %vm929, %v914, 0
  %v1306 = vsel %vm929, %v915, 0
  %v1309 = vsel %vm929, %v916, 0
  %v1312 = vsel %vm929, %v917, 0
  %vm1314 = vcmask 1044480
  %vm1315 = vcmask 1045504
  %v1316 = vsel %vm1314, 4294967295, 65535
  %v1317 = vsel %vm1315, %v1316, 0
  %v1319 = vand.u32 %v927, %v1317
  %1321 = vmatprep.subr.bf16.mxu0 0
  %1322 = vmatpush1.bf16.msra.mxu0 %v926
  %1323 = vmatprep.subr.bf16.mxu0 0
  %1324 = vmatpush1.bf16.msra.mxu0 %v1319
  %1325 = vmatprep.subr.bf16.mxu0 0
  %1326 = vmatpush1.bf16.msra.mxu0 0
  %1327 = vmatprep.subr.bf16.mxu0 0
  %1328 = vmatpush1.bf16.msra.mxu0 0
  %1329 = vmatprep.subr.bf16.mxu0 0
  %1330 = vmatpush1.bf16.msra.mxu0 0
  %1331 = vmatprep.subr.bf16.mxu0 0
  %1332 = vmatpush1.bf16.msra.mxu0 0
  %1333 = vmatprep.subr.bf16.mxu0 0
  %1334 = vmatpush1.bf16.msra.mxu0 0
  %1335 = vmatprep.subr.bf16.mxu0 0
  %1336 = vmatpush1.bf16.msra.mxu0 0
  %1337 = vmatprep.subr.bf16.mxu0 0
  %1338 = vmatpush1.bf16.msra.mxu0 0
  %1339 = vmatprep.subr.bf16.mxu0 0
  %1340 = vmatpush1.bf16.msra.mxu0 0
  %1341 = vmatprep.subr.bf16.mxu0 0
  %1342 = vmatpush1.bf16.msra.mxu0 0
  %1343 = vmatprep.subr.bf16.mxu0 0
  %1344 = vmatpush1.bf16.msra.mxu0 0
  %1345 = vmatprep.subr.bf16.mxu0 0
  %1346 = vmatpush1.bf16.msra.mxu0 0
  %1347 = vmatprep.subr.bf16.mxu0 0
  %1348 = vmatpush1.bf16.msra.mxu0 0
  %1349 = vmatprep.subr.bf16.mxu0 0
  %1350 = vmatpush1.bf16.msra.mxu0 0
  %1351 = vmatprep.subr.bf16.mxu0 0
  %1352 = vmatpush1.bf16.msra.mxu0 0
  %1353 = vmatprep.mubr.bf16.mxu0 0
  %1354 = vmatmul.mubr.bf16.gmra.mrb[0].mxu0 %v931
  %v1355 = vpop.f32.mrb[0].mxu0
  %v1356 = vadd.f32 0.0, %v1355
  %v1357 = vpop.f32.mrb[0].mxu0
  %v1358 = vpop.f32.mrb[0].mxu0
  %v1359 = vadd.f32 0.0, %v1358
  %v1360 = vpop.f32.mrb[0].mxu0
  %1361 = vmatprep.mubr.bf16.mxu0 0
  %1362 = vmatmul.mubr.bf16.gmra.mrb[0].mxu0 %v934
  %v1363 = vpop.f32.mrb[0].mxu0
  %v1364 = vadd.f32 0.0, %v1363
  %v1365 = vpop.f32.mrb[0].mxu0
  %v1366 = vpop.f32.mrb[0].mxu0
  %v1367 = vadd.f32 0.0, %v1366
  %v1368 = vpop.f32.mrb[0].mxu0
  %1369 = vmatprep.mubr.bf16.mxu0 0
  %1370 = vmatmul.mubr.bf16.gmra.mrb[0].mxu0 %v937
  %v1371 = vpop.f32.mrb[0].mxu0
  %v1372 = vadd.f32 0.0, %v1371
  %v1373 = vpop.f32.mrb[0].mxu0
  %v1374 = vpop.f32.mrb[0].mxu0
  %v1375 = vadd.f32 0.0, %v1374
  %v1376 = vpop.f32.mrb[0].mxu0
  %1377 = vmatprep.mubr.bf16.mxu0 0
  %1378 = vmatmul.mubr.bf16.gmra.mrb[0].mxu0 %v940
  %v1379 = vpop.f32.mrb[0].mxu0
  %v1380 = vadd.f32 0.0, %v1379
  %v1381 = vpop.f32.mrb[0].mxu0
  %v1382 = vpop.f32.mrb[0].mxu0
  %v1383 = vadd.f32 0.0, %v1382
  %v1384 = vpop.f32.mrb[0].mxu0
  %1385 = vmatprep.mubr.bf16.mxu0 0
  %1386 = vmatmul.mubr.bf16.gmra.mrb[0].mxu0 %v943
  %v1387 = vpop.f32.mrb[0].mxu0
  %v1388 = vadd.f32 0.0, %v1387
  %v1389 = vpop.f32.mrb[0].mxu0
  %v1390 = vpop.f32.mrb[0].mxu0
  %v1391 = vadd.f32 0.0, %v1390
  %v1392 = vpop.f32.mrb[0].mxu0
  %1393 = vmatprep.mubr.bf16.mxu0 0
  %1394 = vmatmul.mubr.bf16.gmra.mrb[0].mxu0 %v946
  %v1395 = vpop.f32.mrb[0].mxu0
  %v1396 = vadd.f32 0.0, %v1395
  %v1397 = vpop.f32.mrb[0].mxu0
  %v1398 = vpop.f32.mrb[0].mxu0
  %v1399 = vadd.f32 0.0, %v1398
  %v1400 = vpop.f32.mrb[0].mxu0
  %1401 = vmatprep.mubr.bf16.mxu0 0
  %1402 = vmatmul.mubr.bf16.gmra.mrb[0].mxu0 %v949
  %v1403 = vpop.f32.mrb[0].mxu0
  %v1404 = vadd.f32 0.0, %v1403
  %v1405 = vpop.f32.mrb[0].mxu0
  %v1406 = vpop.f32.mrb[0].mxu0
  %v1407 = vadd.f32 0.0, %v1406
  %v1408 = vpop.f32.mrb[0].mxu0
  %1409 = vmatprep.mubr.bf16.mxu0 0
  %1410 = vmatmul.mubr.bf16.gmra.mrb[0].mxu0 %v952
  %v1411 = vpop.f32.mrb[0].mxu0
  %v1412 = vadd.f32 0.0, %v1411
  %v1413 = vpop.f32.mrb[0].mxu0
  %v1414 = vpop.f32.mrb[0].mxu0
  %v1415 = vadd.f32 0.0, %v1414
  %v1416 = vpop.f32.mrb[0].mxu0
  %1417 = vmatprep.mubr.bf16.mxu0 0
  %1418 = vmatmul.mubr.bf16.gmra.mrb[0].mxu0 %v955
  %v1419 = vpop.f32.mrb[0].mxu0
  %v1420 = vadd.f32 0.0, %v1419
  %v1421 = vpop.f32.mrb[0].mxu0
  %v1422 = vpop.f32.mrb[0].mxu0
  %v1423 = vadd.f32 0.0, %v1422
  %v1424 = vpop.f32.mrb[0].mxu0
  %1425 = vmatprep.mubr.bf16.mxu0 0
  %1426 = vmatmul.mubr.bf16.gmra.mrb[0].mxu0 %v958
  %v1427 = vpop.f32.mrb[0].mxu0
  %v1428 = vadd.f32 0.0, %v1427
  %v1429 = vpop.f32.mrb[0].mxu0
  %v1430 = vpop.f32.mrb[0].mxu0
  %v1431 = vadd.f32 0.0, %v1430
  %v1432 = vpop.f32.mrb[0].mxu0
  %1433 = vmatprep.mubr.bf16.mxu0 0
  %1434 = vmatmul.mubr.bf16.gmra.mrb[0].mxu0 %v961
  %v1435 = vpop.f32.mrb[0].mxu0
  %v1436 = vadd.f32 0.0, %v1435
  %v1437 = vpop.f32.mrb[0].mxu0
  %v1438 = vpop.f32.mrb[0].mxu0
  %v1439 = vadd.f32 0.0, %v1438
  %v1440 = vpop.f32.mrb[0].mxu0
  %1441 = vmatprep.mubr.bf16.mxu0 0
  %1442 = vmatmul.mubr.bf16.gmra.mrb[0].mxu0 %v964
  %v1443 = vpop.f32.mrb[0].mxu0
  %v1444 = vadd.f32 0.0, %v1443
  %v1445 = vpop.f32.mrb[0].mxu0
  %v1446 = vpop.f32.mrb[0].mxu0
  %v1447 = vadd.f32 0.0, %v1446
  %v1448 = vpop.f32.mrb[0].mxu0
  %1449 = vmatprep.mubr.bf16.mxu0 0
  %1450 = vmatmul.mubr.bf16.gmra.mrb[0].mxu0 %v967
  %v1451 = vpop.f32.mrb[0].mxu0
  %v1452 = vadd.f32 0.0, %v1451
  %v1453 = vpop.f32.mrb[0].mxu0
  %v1454 = vpop.f32.mrb[0].mxu0
  %v1455 = vadd.f32 0.0, %v1454
  %v1456 = vpop.f32.mrb[0].mxu0
  %1457 = vmatprep.mubr.bf16.mxu0 0
  %1458 = vmatmul.mubr.bf16.gmra.mrb[0].mxu0 %v970
  %v1459 = vpop.f32.mrb[0].mxu0
  %v1460 = vadd.f32 0.0, %v1459
  %v1461 = vpop.f32.mrb[0].mxu0
  %v1462 = vpop.f32.mrb[0].mxu0
  %v1463 = vadd.f32 0.0, %v1462
  %v1464 = vpop.f32.mrb[0].mxu0
  %1465 = vmatprep.mubr.bf16.mxu0 0
  %1466 = vmatmul.mubr.bf16.gmra.mrb[0].mxu0 %v973
  %v1467 = vpop.f32.mrb[0].mxu0
  %v1468 = vadd.f32 0.0, %v1467
  %v1469 = vpop.f32.mrb[0].mxu0
  %v1470 = vpop.f32.mrb[0].mxu0
  %v1471 = vadd.f32 0.0, %v1470
  %v1472 = vpop.f32.mrb[0].mxu0
  %1473 = vmatprep.mubr.bf16.mxu0 0
  %1474 = vmatmul.mubr.bf16.gmra.mrb[0].mxu0 %v976
  %v1475 = vpop.f32.mrb[0].mxu0
  %v1476 = vadd.f32 0.0, %v1475
  %v1477 = vpop.f32.mrb[0].mxu0
  %v1478 = vpop.f32.mrb[0].mxu0
  %v1479 = vadd.f32 0.0, %v1478
  %v1480 = vpop.f32.mrb[0].mxu0
  %1481 = vmatprep.mubr.bf16.mxu0 0
  %1482 = vmatmul.mubr.bf16.gmra.mrb[0].mxu0 %v979
  %v1483 = vpop.f32.mrb[0].mxu0
  %v1484 = vadd.f32 0.0, %v1483
  %v1485 = vpop.f32.mrb[0].mxu0
  %v1486 = vpop.f32.mrb[0].mxu0
  %v1487 = vadd.f32 0.0, %v1486
  %v1488 = vpop.f32.mrb[0].mxu0
  %1489 = vmatprep.mubr.bf16.mxu0 0
  %1490 = vmatmul.mubr.bf16.gmra.mrb[0].mxu0 %v982
  %v1491 = vpop.f32.mrb[0].mxu0
  %v1492 = vadd.f32 0.0, %v1491
  %v1493 = vpop.f32.mrb[0].mxu0
  %v1494 = vpop.f32.mrb[0].mxu0
  %v1495 = vadd.f32 0.0, %v1494
  %v1496 = vpop.f32.mrb[0].mxu0
  %1497 = vmatprep.mubr.bf16.mxu0 0
  %1498 = vmatmul.mubr.bf16.gmra.mrb[0].mxu0 %v985
  %v1499 = vpop.f32.mrb[0].mxu0
  %v1500 = vadd.f32 0.0, %v1499
  %v1501 = vpop.f32.mrb[0].mxu0
  %v1502 = vpop.f32.mrb[0].mxu0
  %v1503 = vadd.f32 0.0, %v1502
  %v1504 = vpop.f32.mrb[0].mxu0
  %1505 = vmatprep.mubr.bf16.mxu0 0
  %1506 = vmatmul.mubr.bf16.gmra.mrb[0].mxu0 %v988
  %v1507 = vpop.f32.mrb[0].mxu0
  %v1508 = vadd.f32 0.0, %v1507
  %v1509 = vpop.f32.mrb[0].mxu0
  %v1510 = vpop.f32.mrb[0].mxu0
  %v1511 = vadd.f32 0.0, %v1510
  %v1512 = vpop.f32.mrb[0].mxu0
  %1513 = vmatprep.mubr.bf16.mxu0 0
  %1514 = vmatmul.mubr.bf16.gmra.mrb[0].mxu0 %v991
  %v1515 = vpop.f32.mrb[0].mxu0
  %v1516 = vadd.f32 0.0, %v1515
  %v1517 = vpop.f32.mrb[0].mxu0
  %v1518 = vpop.f32.mrb[0].mxu0
  %v1519 = vadd.f32 0.0, %v1518
  %v1520 = vpop.f32.mrb[0].mxu0
  %1521 = vmatprep.mubr.bf16.mxu0 0
  %1522 = vmatmul.mubr.bf16.gmra.mrb[0].mxu0 %v994
  %v1523 = vpop.f32.mrb[0].mxu0
  %v1524 = vadd.f32 0.0, %v1523
  %v1525 = vpop.f32.mrb[0].mxu0
  %v1526 = vpop.f32.mrb[0].mxu0
  %v1527 = vadd.f32 0.0, %v1526
  %v1528 = vpop.f32.mrb[0].mxu0
  %1529 = vmatprep.mubr.bf16.mxu0 0
  %1530 = vmatmul.mubr.bf16.gmra.mrb[0].mxu0 %v997
  %v1531 = vpop.f32.mrb[0].mxu0
  %v1532 = vadd.f32 0.0, %v1531
  %v1533 = vpop.f32.mrb[0].mxu0
  %v1534 = vpop.f32.mrb[0].mxu0
  %v1535 = vadd.f32 0.0, %v1534
  %v1536 = vpop.f32.mrb[0].mxu0
  %1537 = vmatprep.mubr.bf16.mxu0 0
  %1538 = vmatmul.mubr.bf16.gmra.mrb[0].mxu0 %v1000
  %v1539 = vpop.f32.mrb[0].mxu0
  %v1540 = vadd.f32 0.0, %v1539
  %v1541 = vpop.f32.mrb[0].mxu0
  %v1542 = vpop.f32.mrb[0].mxu0
  %v1543 = vadd.f32 0.0, %v1542
  %v1544 = vpop.f32.mrb[0].mxu0
  %1545 = vmatprep.mubr.bf16.mxu0 0
  %1546 = vmatmul.mubr.bf16.gmra.mrb[0].mxu0 %v1003
  %v1547 = vpop.f32.mrb[0].mxu0
  %v1548 = vadd.f32 0.0, %v1547
  %v1549 = vpop.f32.mrb[0].mxu0
  %v1550 = vpop.f32.mrb[0].mxu0
  %v1551 = vadd.f32 0.0, %v1550
  %v1552 = vpop.f32.mrb[0].mxu0
  %1553 = vmatprep.mubr.bf16.mxu0 0
  %1554 = vmatmul.mubr.bf16.gmra.mrb[0].mxu0 %v1006
  %v1555 = vpop.f32.mrb[0].mxu0
  %v1556 = vadd.f32 0.0, %v1555
  %v1557 = vpop.f32.mrb[0].mxu0
  %v1558 = vpop.f32.mrb[0].mxu0
  %v1559 = vadd.f32 0.0, %v1558
  %v1560 = vpop.f32.mrb[0].mxu0
  %1561 = vmatprep.mubr.bf16.mxu0 0
  %1562 = vmatmul.mubr.bf16.gmra.mrb[0].mxu0 %v1009
  %v1563 = vpop.f32.mrb[0].mxu0
  %v1564 = vadd.f32 0.0, %v1563
  %v1565 = vpop.f32.mrb[0].mxu0
  %v1566 = vpop.f32.mrb[0].mxu0
  %v1567 = vadd.f32 0.0, %v1566
  %v1568 = vpop.f32.mrb[0].mxu0
  %1569 = vmatprep.mubr.bf16.mxu0 0
  %1570 = vmatmul.mubr.bf16.gmra.mrb[0].mxu0 %v1012
  %v1571 = vpop.f32.mrb[0].mxu0
  %v1572 = vadd.f32 0.0, %v1571
  %v1573 = vpop.f32.mrb[0].mxu0
  %v1574 = vpop.f32.mrb[0].mxu0
  %v1575 = vadd.f32 0.0, %v1574
  %v1576 = vpop.f32.mrb[0].mxu0
  %1577 = vmatprep.mubr.bf16.mxu0 0
  %1578 = vmatmul.mubr.bf16.gmra.mrb[0].mxu0 %v1015
  %v1579 = vpop.f32.mrb[0].mxu0
  %v1580 = vadd.f32 0.0, %v1579
  %v1581 = vpop.f32.mrb[0].mxu0
  %v1582 = vpop.f32.mrb[0].mxu0
  %v1583 = vadd.f32 0.0, %v1582
  %v1584 = vpop.f32.mrb[0].mxu0
  %1585 = vmatprep.mubr.bf16.mxu0 0
  %1586 = vmatmul.mubr.bf16.gmra.mrb[0].mxu0 %v1018
  %v1587 = vpop.f32.mrb[0].mxu0
  %v1588 = vadd.f32 0.0, %v1587
  %v1589 = vpop.f32.mrb[0].mxu0
  %v1590 = vpop.f32.mrb[0].mxu0
  %v1591 = vadd.f32 0.0, %v1590
  %v1592 = vpop.f32.mrb[0].mxu0
  %1593 = vmatprep.mubr.bf16.mxu0 0
  %1594 = vmatmul.mubr.bf16.gmra.mrb[0].mxu0 %v1021
  %v1595 = vpop.f32.mrb[0].mxu0
  %v1596 = vadd.f32 0.0, %v1595
  %v1597 = vpop.f32.mrb[0].mxu0
  %v1598 = vpop.f32.mrb[0].mxu0
  %v1599 = vadd.f32 0.0, %v1598
  %v1600 = vpop.f32.mrb[0].mxu0
  %1601 = vmatprep.mubr.bf16.mxu0 0
  %1602 = vmatmul.mubr.bf16.gmra.mrb[0].mxu0 %v1024
  %v1603 = vpop.f32.mrb[0].mxu0
  %v1604 = vadd.f32 0.0, %v1603
  %v1605 = vpop.f32.mrb[0].mxu0
  %v1606 = vpop.f32.mrb[0].mxu0
  %v1607 = vadd.f32 0.0, %v1606
  %v1608 = vpop.f32.mrb[0].mxu0
  %1609 = vmatprep.mubr.bf16.mxu0 0
  %1610 = vmatmul.mubr.bf16.gmra.mrb[0].mxu0 %v1027
  %v1611 = vpop.f32.mrb[0].mxu0
  %v1612 = vadd.f32 0.0, %v1611
  %v1613 = vpop.f32.mrb[0].mxu0
  %v1614 = vpop.f32.mrb[0].mxu0
  %v1615 = vadd.f32 0.0, %v1614
  %v1616 = vpop.f32.mrb[0].mxu0
  %1617 = vmatprep.mubr.bf16.mxu0 0
  %1618 = vmatmul.mubr.bf16.gmra.mrb[0].mxu0 %v1030
  %v1619 = vpop.f32.mrb[0].mxu0
  %v1620 = vadd.f32 0.0, %v1619
  %v1621 = vpop.f32.mrb[0].mxu0
  %v1622 = vpop.f32.mrb[0].mxu0
  %v1623 = vadd.f32 0.0, %v1622
  %v1624 = vpop.f32.mrb[0].mxu0
  %1625 = vmatprep.mubr.bf16.mxu0 0
  %1626 = vmatmul.mubr.bf16.gmra.mrb[0].mxu0 %v1033
  %v1627 = vpop.f32.mrb[0].mxu0
  %v1628 = vadd.f32 0.0, %v1627
  %v1629 = vpop.f32.mrb[0].mxu0
  %v1630 = vpop.f32.mrb[0].mxu0
  %v1631 = vadd.f32 0.0, %v1630
  %v1632 = vpop.f32.mrb[0].mxu0
  %1633 = vmatprep.mubr.bf16.mxu0 0
  %1634 = vmatmul.mubr.bf16.gmra.mrb[0].mxu0 %v1036
  %v1635 = vpop.f32.mrb[0].mxu0
  %v1636 = vadd.f32 0.0, %v1635
  %v1637 = vpop.f32.mrb[0].mxu0
  %v1638 = vpop.f32.mrb[0].mxu0
  %v1639 = vadd.f32 0.0, %v1638
  %v1640 = vpop.f32.mrb[0].mxu0
  %1641 = vmatprep.mubr.bf16.mxu0 0
  %1642 = vmatmul.mubr.bf16.gmra.mrb[0].mxu0 %v1039
  %v1643 = vpop.f32.mrb[0].mxu0
  %v1644 = vadd.f32 0.0, %v1643
  %v1645 = vpop.f32.mrb[0].mxu0
  %v1646 = vpop.f32.mrb[0].mxu0
  %v1647 = vadd.f32 0.0, %v1646
  %v1648 = vpop.f32.mrb[0].mxu0
  %1649 = vmatprep.mubr.bf16.mxu0 0
  %1650 = vmatmul.mubr.bf16.gmra.mrb[0].mxu0 %v1042
  %v1651 = vpop.f32.mrb[0].mxu0
  %v1652 = vadd.f32 0.0, %v1651
  %v1653 = vpop.f32.mrb[0].mxu0
  %v1654 = vpop.f32.mrb[0].mxu0
  %v1655 = vadd.f32 0.0, %v1654
  %v1656 = vpop.f32.mrb[0].mxu0
  %1657 = vmatprep.mubr.bf16.mxu0 0
  %1658 = vmatmul.mubr.bf16.gmra.mrb[0].mxu0 %v1045
  %v1659 = vpop.f32.mrb[0].mxu0
  %v1660 = vadd.f32 0.0, %v1659
  %v1661 = vpop.f32.mrb[0].mxu0
  %v1662 = vpop.f32.mrb[0].mxu0
  %v1663 = vadd.f32 0.0, %v1662
  %v1664 = vpop.f32.mrb[0].mxu0
  %1665 = vmatprep.mubr.bf16.mxu0 0
  %1666 = vmatmul.mubr.bf16.gmra.mrb[0].mxu0 %v1048
  %v1667 = vpop.f32.mrb[0].mxu0
  %v1668 = vadd.f32 0.0, %v1667
  %v1669 = vpop.f32.mrb[0].mxu0
  %v1670 = vpop.f32.mrb[0].mxu0
  %v1671 = vadd.f32 0.0, %v1670
  %v1672 = vpop.f32.mrb[0].mxu0
  %1673 = vmatprep.mubr.bf16.mxu0 0
  %1674 = vmatmul.mubr.bf16.gmra.mrb[0].mxu0 %v1051
  %v1675 = vpop.f32.mrb[0].mxu0
  %v1676 = vadd.f32 0.0, %v1675
  %v1677 = vpop.f32.mrb[0].mxu0
  %v1678 = vpop.f32.mrb[0].mxu0
  %v1679 = vadd.f32 0.0, %v1678
  %v1680 = vpop.f32.mrb[0].mxu0
  %1681 = vmatprep.mubr.bf16.mxu0 0
  %1682 = vmatmul.mubr.bf16.gmra.mrb[0].mxu0 %v1054
  %v1683 = vpop.f32.mrb[0].mxu0
  %v1684 = vadd.f32 0.0, %v1683
  %v1685 = vpop.f32.mrb[0].mxu0
  %v1686 = vpop.f32.mrb[0].mxu0
  %v1687 = vadd.f32 0.0, %v1686
  %v1688 = vpop.f32.mrb[0].mxu0
  %1689 = vmatprep.mubr.bf16.mxu0 0
  %1690 = vmatmul.mubr.bf16.gmra.mrb[0].mxu0 %v1057
  %v1691 = vpop.f32.mrb[0].mxu0
  %v1692 = vadd.f32 0.0, %v1691
  %v1693 = vpop.f32.mrb[0].mxu0
  %v1694 = vpop.f32.mrb[0].mxu0
  %v1695 = vadd.f32 0.0, %v1694
  %v1696 = vpop.f32.mrb[0].mxu0
  %1697 = vmatprep.mubr.bf16.mxu0 0
  %1698 = vmatmul.mubr.bf16.gmra.mrb[0].mxu0 %v1060
  %v1699 = vpop.f32.mrb[0].mxu0
  %v1700 = vadd.f32 0.0, %v1699
  %v1701 = vpop.f32.mrb[0].mxu0
  %v1702 = vpop.f32.mrb[0].mxu0
  %v1703 = vadd.f32 0.0, %v1702
  %v1704 = vpop.f32.mrb[0].mxu0
  %1705 = vmatprep.mubr.bf16.mxu0 0
  %1706 = vmatmul.mubr.bf16.gmra.mrb[0].mxu0 %v1063
  %v1707 = vpop.f32.mrb[0].mxu0
  %v1708 = vadd.f32 0.0, %v1707
  %v1709 = vpop.f32.mrb[0].mxu0
  %v1710 = vpop.f32.mrb[0].mxu0
  %v1711 = vadd.f32 0.0, %v1710
  %v1712 = vpop.f32.mrb[0].mxu0
  %1713 = vmatprep.mubr.bf16.mxu0 0
  %1714 = vmatmul.mubr.bf16.gmra.mrb[0].mxu0 %v1066
  %v1715 = vpop.f32.mrb[0].mxu0
  %v1716 = vadd.f32 0.0, %v1715
  %v1717 = vpop.f32.mrb[0].mxu0
  %v1718 = vpop.f32.mrb[0].mxu0
  %v1719 = vadd.f32 0.0, %v1718
  %v1720 = vpop.f32.mrb[0].mxu0
  %1721 = vmatprep.mubr.bf16.mxu0 0
  %1722 = vmatmul.mubr.bf16.gmra.mrb[0].mxu0 %v1069
  %v1723 = vpop.f32.mrb[0].mxu0
  %v1724 = vadd.f32 0.0, %v1723
  %v1725 = vpop.f32.mrb[0].mxu0
  %v1726 = vpop.f32.mrb[0].mxu0
  %v1727 = vadd.f32 0.0, %v1726
  %v1728 = vpop.f32.mrb[0].mxu0
  %1729 = vmatprep.mubr.bf16.mxu0 0
  %1730 = vmatmul.mubr.bf16.gmra.mrb[0].mxu0 %v1072
  %v1731 = vpop.f32.mrb[0].mxu0
  %v1732 = vadd.f32 0.0, %v1731
  %v1733 = vpop.f32.mrb[0].mxu0
  %v1734 = vpop.f32.mrb[0].mxu0
  %v1735 = vadd.f32 0.0, %v1734
  %v1736 = vpop.f32.mrb[0].mxu0
  %1737 = vmatprep.mubr.bf16.mxu0 0
  %1738 = vmatmul.mubr.bf16.gmra.mrb[0].mxu0 %v1075
  %v1739 = vpop.f32.mrb[0].mxu0
  %v1740 = vadd.f32 0.0, %v1739
  %v1741 = vpop.f32.mrb[0].mxu0
  %v1742 = vpop.f32.mrb[0].mxu0
  %v1743 = vadd.f32 0.0, %v1742
  %v1744 = vpop.f32.mrb[0].mxu0
  %1745 = vmatprep.mubr.bf16.mxu0 0
  %1746 = vmatmul.mubr.bf16.gmra.mrb[0].mxu0 %v1078
  %v1747 = vpop.f32.mrb[0].mxu0
  %v1748 = vadd.f32 0.0, %v1747
  %v1749 = vpop.f32.mrb[0].mxu0
  %v1750 = vpop.f32.mrb[0].mxu0
  %v1751 = vadd.f32 0.0, %v1750
  %v1752 = vpop.f32.mrb[0].mxu0
  %1753 = vmatprep.mubr.bf16.mxu0 0
  %1754 = vmatmul.mubr.bf16.gmra.mrb[0].mxu0 %v1081
  %v1755 = vpop.f32.mrb[0].mxu0
  %v1756 = vadd.f32 0.0, %v1755
  %v1757 = vpop.f32.mrb[0].mxu0
  %v1758 = vpop.f32.mrb[0].mxu0
  %v1759 = vadd.f32 0.0, %v1758
  %v1760 = vpop.f32.mrb[0].mxu0
  %1761 = vmatprep.mubr.bf16.mxu0 0
  %1762 = vmatmul.mubr.bf16.gmra.mrb[0].mxu0 %v1084
  %v1763 = vpop.f32.mrb[0].mxu0
  %v1764 = vadd.f32 0.0, %v1763
  %v1765 = vpop.f32.mrb[0].mxu0
  %v1766 = vpop.f32.mrb[0].mxu0
  %v1767 = vadd.f32 0.0, %v1766
  %v1768 = vpop.f32.mrb[0].mxu0
  %1769 = vmatprep.mubr.bf16.mxu0 0
  %1770 = vmatmul.mubr.bf16.gmra.mrb[0].mxu0 %v1087
  %v1771 = vpop.f32.mrb[0].mxu0
  %v1772 = vadd.f32 0.0, %v1771
  %v1773 = vpop.f32.mrb[0].mxu0
  %v1774 = vpop.f32.mrb[0].mxu0
  %v1775 = vadd.f32 0.0, %v1774
  %v1776 = vpop.f32.mrb[0].mxu0
  %1777 = vmatprep.mubr.bf16.mxu0 0
  %1778 = vmatmul.mubr.bf16.gmra.mrb[0].mxu0 %v1090
  %v1779 = vpop.f32.mrb[0].mxu0
  %v1780 = vadd.f32 0.0, %v1779
  %v1781 = vpop.f32.mrb[0].mxu0
  %v1782 = vpop.f32.mrb[0].mxu0
  %v1783 = vadd.f32 0.0, %v1782
  %v1784 = vpop.f32.mrb[0].mxu0
  %1785 = vmatprep.mubr.bf16.mxu0 0
  %1786 = vmatmul.mubr.bf16.gmra.mrb[0].mxu0 %v1093
  %v1787 = vpop.f32.mrb[0].mxu0
  %v1788 = vadd.f32 0.0, %v1787
  %v1789 = vpop.f32.mrb[0].mxu0
  %v1790 = vpop.f32.mrb[0].mxu0
  %v1791 = vadd.f32 0.0, %v1790
  %v1792 = vpop.f32.mrb[0].mxu0
  %1793 = vmatprep.mubr.bf16.mxu0 0
  %1794 = vmatmul.mubr.bf16.gmra.mrb[0].mxu0 %v1096
  %v1795 = vpop.f32.mrb[0].mxu0
  %v1796 = vadd.f32 0.0, %v1795
  %v1797 = vpop.f32.mrb[0].mxu0
  %v1798 = vpop.f32.mrb[0].mxu0
  %v1799 = vadd.f32 0.0, %v1798
  %v1800 = vpop.f32.mrb[0].mxu0
  %1801 = vmatprep.mubr.bf16.mxu0 0
  %1802 = vmatmul.mubr.bf16.gmra.mrb[0].mxu0 %v1099
  %v1803 = vpop.f32.mrb[0].mxu0
  %v1804 = vadd.f32 0.0, %v1803
  %v1805 = vpop.f32.mrb[0].mxu0
  %v1806 = vpop.f32.mrb[0].mxu0
  %v1807 = vadd.f32 0.0, %v1806
  %v1808 = vpop.f32.mrb[0].mxu0
  %1809 = vmatprep.mubr.bf16.mxu0 0
  %1810 = vmatmul.mubr.bf16.gmra.mrb[0].mxu0 %v1102
  %v1811 = vpop.f32.mrb[0].mxu0
  %v1812 = vadd.f32 0.0, %v1811
  %v1813 = vpop.f32.mrb[0].mxu0
  %v1814 = vpop.f32.mrb[0].mxu0
  %v1815 = vadd.f32 0.0, %v1814
  %v1816 = vpop.f32.mrb[0].mxu0
  %1817 = vmatprep.mubr.bf16.mxu0 0
  %1818 = vmatmul.mubr.bf16.gmra.mrb[0].mxu0 %v1105
  %v1819 = vpop.f32.mrb[0].mxu0
  %v1820 = vadd.f32 0.0, %v1819
  %v1821 = vpop.f32.mrb[0].mxu0
  %v1822 = vpop.f32.mrb[0].mxu0
  %v1823 = vadd.f32 0.0, %v1822
  %v1824 = vpop.f32.mrb[0].mxu0
  %1825 = vmatprep.mubr.bf16.mxu0 0
  %1826 = vmatmul.mubr.bf16.gmra.mrb[0].mxu0 %v1108
  %v1827 = vpop.f32.mrb[0].mxu0
  %v1828 = vadd.f32 0.0, %v1827
  %v1829 = vpop.f32.mrb[0].mxu0
  %v1830 = vpop.f32.mrb[0].mxu0
  %v1831 = vadd.f32 0.0, %v1830
  %v1832 = vpop.f32.mrb[0].mxu0
  %1833 = vmatprep.mubr.bf16.mxu0 0
  %1834 = vmatmul.mubr.bf16.gmra.mrb[0].mxu0 %v1111
  %v1835 = vpop.f32.mrb[0].mxu0
  %v1836 = vadd.f32 0.0, %v1835
  %v1837 = vpop.f32.mrb[0].mxu0
  %v1838 = vpop.f32.mrb[0].mxu0
  %v1839 = vadd.f32 0.0, %v1838
  %v1840 = vpop.f32.mrb[0].mxu0
  %1841 = vmatprep.mubr.bf16.mxu0 0
  %1842 = vmatmul.mubr.bf16.gmra.mrb[0].mxu0 %v1114
  %v1843 = vpop.f32.mrb[0].mxu0
  %v1844 = vadd.f32 0.0, %v1843
  %v1845 = vpop.f32.mrb[0].mxu0
  %v1846 = vpop.f32.mrb[0].mxu0
  %v1847 = vadd.f32 0.0, %v1846
  %v1848 = vpop.f32.mrb[0].mxu0
  %1849 = vmatprep.mubr.bf16.mxu0 0
  %1850 = vmatmul.mubr.bf16.gmra.mrb[0].mxu0 %v1117
  %v1851 = vpop.f32.mrb[0].mxu0
  %v1852 = vadd.f32 0.0, %v1851
  %v1853 = vpop.f32.mrb[0].mxu0
  %v1854 = vpop.f32.mrb[0].mxu0
  %v1855 = vadd.f32 0.0, %v1854
  %v1856 = vpop.f32.mrb[0].mxu0
  %1857 = vmatprep.mubr.bf16.mxu0 0
  %1858 = vmatmul.mubr.bf16.gmra.mrb[0].mxu0 %v1120
  %v1859 = vpop.f32.mrb[0].mxu0
  %v1860 = vadd.f32 0.0, %v1859
  %v1861 = vpop.f32.mrb[0].mxu0
  %v1862 = vpop.f32.mrb[0].mxu0
  %v1863 = vadd.f32 0.0, %v1862
  %v1864 = vpop.f32.mrb[0].mxu0
  %1865 = vmatprep.mubr.bf16.mxu0 0
  %1866 = vmatmul.mubr.bf16.gmra.mrb[0].mxu0 %v1123
  %v1867 = vpop.f32.mrb[0].mxu0
  %v1868 = vadd.f32 0.0, %v1867
  %v1869 = vpop.f32.mrb[0].mxu0
  %v1870 = vpop.f32.mrb[0].mxu0
  %v1871 = vadd.f32 0.0, %v1870
  %v1872 = vpop.f32.mrb[0].mxu0
  %1873 = vmatprep.mubr.bf16.mxu0 0
  %1874 = vmatmul.mubr.bf16.gmra.mrb[0].mxu0 %v1126
  %v1875 = vpop.f32.mrb[0].mxu0
  %v1876 = vadd.f32 0.0, %v1875
  %v1877 = vpop.f32.mrb[0].mxu0
  %v1878 = vpop.f32.mrb[0].mxu0
  %v1879 = vadd.f32 0.0, %v1878
  %v1880 = vpop.f32.mrb[0].mxu0
  %1881 = vmatprep.mubr.bf16.mxu0 0
  %1882 = vmatmul.mubr.bf16.gmra.mrb[0].mxu0 %v1129
  %v1883 = vpop.f32.mrb[0].mxu0
  %v1884 = vadd.f32 0.0, %v1883
  %v1885 = vpop.f32.mrb[0].mxu0
  %v1886 = vpop.f32.mrb[0].mxu0
  %v1887 = vadd.f32 0.0, %v1886
  %v1888 = vpop.f32.mrb[0].mxu0
  %1889 = vmatprep.mubr.bf16.mxu0 0
  %1890 = vmatmul.mubr.bf16.gmra.mrb[0].mxu0 %v1132
  %v1891 = vpop.f32.mrb[0].mxu0
  %v1892 = vadd.f32 0.0, %v1891
  %v1893 = vpop.f32.mrb[0].mxu0
  %v1894 = vpop.f32.mrb[0].mxu0
  %v1895 = vadd.f32 0.0, %v1894
  %v1896 = vpop.f32.mrb[0].mxu0
  %1897 = vmatprep.mubr.bf16.mxu0 0
  %1898 = vmatmul.mubr.bf16.gmra.mrb[0].mxu0 %v1135
  %v1899 = vpop.f32.mrb[0].mxu0
  %v1900 = vadd.f32 0.0, %v1899
  %v1901 = vpop.f32.mrb[0].mxu0
  %v1902 = vpop.f32.mrb[0].mxu0
  %v1903 = vadd.f32 0.0, %v1902
  %v1904 = vpop.f32.mrb[0].mxu0
  %1905 = vmatprep.mubr.bf16.mxu0 0
  %1906 = vmatmul.mubr.bf16.gmra.mrb[0].mxu0 %v1138
  %v1907 = vpop.f32.mrb[0].mxu0
  %v1908 = vadd.f32 0.0, %v1907
  %v1909 = vpop.f32.mrb[0].mxu0
  %v1910 = vpop.f32.mrb[0].mxu0
  %v1911 = vadd.f32 0.0, %v1910
  %v1912 = vpop.f32.mrb[0].mxu0
  %1913 = vmatprep.mubr.bf16.mxu0 0
  %1914 = vmatmul.mubr.bf16.gmra.mrb[0].mxu0 %v1141
  %v1915 = vpop.f32.mrb[0].mxu0
  %v1916 = vadd.f32 0.0, %v1915
  %v1917 = vpop.f32.mrb[0].mxu0
  %v1918 = vpop.f32.mrb[0].mxu0
  %v1919 = vadd.f32 0.0, %v1918
  %v1920 = vpop.f32.mrb[0].mxu0
  %1921 = vmatprep.mubr.bf16.mxu0 0
  %1922 = vmatmul.mubr.bf16.gmra.mrb[0].mxu0 %v1144
  %v1923 = vpop.f32.mrb[0].mxu0
  %v1924 = vadd.f32 0.0, %v1923
  %v1925 = vpop.f32.mrb[0].mxu0
  %v1926 = vpop.f32.mrb[0].mxu0
  %v1927 = vadd.f32 0.0, %v1926
  %v1928 = vpop.f32.mrb[0].mxu0
  %1929 = vmatprep.mubr.bf16.mxu0 0
  %1930 = vmatmul.mubr.bf16.gmra.mrb[0].mxu0 %v1147
  %v1931 = vpop.f32.mrb[0].mxu0
  %v1932 = vadd.f32 0.0, %v1931
  %v1933 = vpop.f32.mrb[0].mxu0
  %v1934 = vpop.f32.mrb[0].mxu0
  %v1935 = vadd.f32 0.0, %v1934
  %v1936 = vpop.f32.mrb[0].mxu0
  %1937 = vmatprep.mubr.bf16.mxu0 0
  %1938 = vmatmul.mubr.bf16.gmra.mrb[0].mxu0 %v1150
  %v1939 = vpop.f32.mrb[0].mxu0
  %v1940 = vadd.f32 0.0, %v1939
  %v1941 = vpop.f32.mrb[0].mxu0
  %v1942 = vpop.f32.mrb[0].mxu0
  %v1943 = vadd.f32 0.0, %v1942
  %v1944 = vpop.f32.mrb[0].mxu0
  %1945 = vmatprep.mubr.bf16.mxu0 0
  %1946 = vmatmul.mubr.bf16.gmra.mrb[0].mxu0 %v1153
  %v1947 = vpop.f32.mrb[0].mxu0
  %v1948 = vadd.f32 0.0, %v1947
  %v1949 = vpop.f32.mrb[0].mxu0
  %v1950 = vpop.f32.mrb[0].mxu0
  %v1951 = vadd.f32 0.0, %v1950
  %v1952 = vpop.f32.mrb[0].mxu0
  %1953 = vmatprep.mubr.bf16.mxu0 0
  %1954 = vmatmul.mubr.bf16.gmra.mrb[0].mxu0 %v1156
  %v1955 = vpop.f32.mrb[0].mxu0
  %v1956 = vadd.f32 0.0, %v1955
  %v1957 = vpop.f32.mrb[0].mxu0
  %v1958 = vpop.f32.mrb[0].mxu0
  %v1959 = vadd.f32 0.0, %v1958
  %v1960 = vpop.f32.mrb[0].mxu0
  %1961 = vmatprep.mubr.bf16.mxu0 0
  %1962 = vmatmul.mubr.bf16.gmra.mrb[0].mxu0 %v1159
  %v1963 = vpop.f32.mrb[0].mxu0
  %v1964 = vadd.f32 0.0, %v1963
  %v1965 = vpop.f32.mrb[0].mxu0
  %v1966 = vpop.f32.mrb[0].mxu0
  %v1967 = vadd.f32 0.0, %v1966
  %v1968 = vpop.f32.mrb[0].mxu0
  %1969 = vmatprep.mubr.bf16.mxu0 0
  %1970 = vmatmul.mubr.bf16.gmra.mrb[0].mxu0 %v1162
  %v1971 = vpop.f32.mrb[0].mxu0
  %v1972 = vadd.f32 0.0, %v1971
  %v1973 = vpop.f32.mrb[0].mxu0
  %v1974 = vpop.f32.mrb[0].mxu0
  %v1975 = vadd.f32 0.0, %v1974
  %v1976 = vpop.f32.mrb[0].mxu0
  %1977 = vmatprep.mubr.bf16.mxu0 0
  %1978 = vmatmul.mubr.bf16.gmra.mrb[0].mxu0 %v1165
  %v1979 = vpop.f32.mrb[0].mxu0
  %v1980 = vadd.f32 0.0, %v1979
  %v1981 = vpop.f32.mrb[0].mxu0
  %v1982 = vpop.f32.mrb[0].mxu0
  %v1983 = vadd.f32 0.0, %v1982
  %v1984 = vpop.f32.mrb[0].mxu0
  %1985 = vmatprep.mubr.bf16.mxu0 0
  %1986 = vmatmul.mubr.bf16.gmra.mrb[0].mxu0 %v1168
  %v1987 = vpop.f32.mrb[0].mxu0
  %v1988 = vadd.f32 0.0, %v1987
  %v1989 = vpop.f32.mrb[0].mxu0
  %v1990 = vpop.f32.mrb[0].mxu0
  %v1991 = vadd.f32 0.0, %v1990
  %v1992 = vpop.f32.mrb[0].mxu0
  %1993 = vmatprep.mubr.bf16.mxu0 0
  %1994 = vmatmul.mubr.bf16.gmra.mrb[0].mxu0 %v1171
  %v1995 = vpop.f32.mrb[0].mxu0
  %v1996 = vadd.f32 0.0, %v1995
  %v1997 = vpop.f32.mrb[0].mxu0
  %v1998 = vpop.f32.mrb[0].mxu0
  %v1999 = vadd.f32 0.0, %v1998
  %v2000 = vpop.f32.mrb[0].mxu0
  %2001 = vmatprep.mubr.bf16.mxu0 0
  %2002 = vmatmul.mubr.bf16.gmra.mrb[0].mxu0 %v1174
  %v2003 = vpop.f32.mrb[0].mxu0
  %v2004 = vadd.f32 0.0, %v2003
  %v2005 = vpop.f32.mrb[0].mxu0
  %v2006 = vpop.f32.mrb[0].mxu0
  %v2007 = vadd.f32 0.0, %v2006
  %v2008 = vpop.f32.mrb[0].mxu0
  %2009 = vmatprep.mubr.bf16.mxu0 0
  %2010 = vmatmul.mubr.bf16.gmra.mrb[0].mxu0 %v1177
  %v2011 = vpop.f32.mrb[0].mxu0
  %v2012 = vadd.f32 0.0, %v2011
  %v2013 = vpop.f32.mrb[0].mxu0
  %v2014 = vpop.f32.mrb[0].mxu0
  %v2015 = vadd.f32 0.0, %v2014
  %v2016 = vpop.f32.mrb[0].mxu0
  %2017 = vmatprep.mubr.bf16.mxu0 0
  %2018 = vmatmul.mubr.bf16.gmra.mrb[0].mxu0 %v1180
  %v2019 = vpop.f32.mrb[0].mxu0
  %v2020 = vadd.f32 0.0, %v2019
  %v2021 = vpop.f32.mrb[0].mxu0
  %v2022 = vpop.f32.mrb[0].mxu0
  %v2023 = vadd.f32 0.0, %v2022
  %v2024 = vpop.f32.mrb[0].mxu0
  %2025 = vmatprep.mubr.bf16.mxu0 0
  %2026 = vmatmul.mubr.bf16.gmra.mrb[0].mxu0 %v1183
  %v2027 = vpop.f32.mrb[0].mxu0
  %v2028 = vadd.f32 0.0, %v2027
  %v2029 = vpop.f32.mrb[0].mxu0
  %v2030 = vpop.f32.mrb[0].mxu0
  %v2031 = vadd.f32 0.0, %v2030
  %v2032 = vpop.f32.mrb[0].mxu0
  %2033 = vmatprep.mubr.bf16.mxu0 0
  %2034 = vmatmul.mubr.bf16.gmra.mrb[0].mxu0 %v1186
  %v2035 = vpop.f32.mrb[0].mxu0
  %v2036 = vadd.f32 0.0, %v2035
  %v2037 = vpop.f32.mrb[0].mxu0
  %v2038 = vpop.f32.mrb[0].mxu0
  %v2039 = vadd.f32 0.0, %v2038
  %v2040 = vpop.f32.mrb[0].mxu0
  %2041 = vmatprep.mubr.bf16.mxu0 0
  %2042 = vmatmul.mubr.bf16.gmra.mrb[0].mxu0 %v1189
  %v2043 = vpop.f32.mrb[0].mxu0
  %v2044 = vadd.f32 0.0, %v2043
  %v2045 = vpop.f32.mrb[0].mxu0
  %v2046 = vpop.f32.mrb[0].mxu0
  %v2047 = vadd.f32 0.0, %v2046
  %v2048 = vpop.f32.mrb[0].mxu0
  %2049 = vmatprep.mubr.bf16.mxu0 0
  %2050 = vmatmul.mubr.bf16.gmra.mrb[0].mxu0 %v1192
  %v2051 = vpop.f32.mrb[0].mxu0
  %v2052 = vadd.f32 0.0, %v2051
  %v2053 = vpop.f32.mrb[0].mxu0
  %v2054 = vpop.f32.mrb[0].mxu0
  %v2055 = vadd.f32 0.0, %v2054
  %v2056 = vpop.f32.mrb[0].mxu0
  %2057 = vmatprep.mubr.bf16.mxu0 0
  %2058 = vmatmul.mubr.bf16.gmra.mrb[0].mxu0 %v1195
  %v2059 = vpop.f32.mrb[0].mxu0
  %v2060 = vadd.f32 0.0, %v2059
  %v2061 = vpop.f32.mrb[0].mxu0
  %v2062 = vpop.f32.mrb[0].mxu0
  %v2063 = vadd.f32 0.0, %v2062
  %v2064 = vpop.f32.mrb[0].mxu0
  %2065 = vmatprep.mubr.bf16.mxu0 0
  %2066 = vmatmul.mubr.bf16.gmra.mrb[0].mxu0 %v1198
  %v2067 = vpop.f32.mrb[0].mxu0
  %v2068 = vadd.f32 0.0, %v2067
  %v2069 = vpop.f32.mrb[0].mxu0
  %v2070 = vpop.f32.mrb[0].mxu0
  %v2071 = vadd.f32 0.0, %v2070
  %v2072 = vpop.f32.mrb[0].mxu0
  %2073 = vmatprep.mubr.bf16.mxu0 0
  %2074 = vmatmul.mubr.bf16.gmra.mrb[0].mxu0 %v1201
  %v2075 = vpop.f32.mrb[0].mxu0
  %v2076 = vadd.f32 0.0, %v2075
  %v2077 = vpop.f32.mrb[0].mxu0
  %v2078 = vpop.f32.mrb[0].mxu0
  %v2079 = vadd.f32 0.0, %v2078
  %v2080 = vpop.f32.mrb[0].mxu0
  %2081 = vmatprep.mubr.bf16.mxu0 0
  %2082 = vmatmul.mubr.bf16.gmra.mrb[0].mxu0 %v1204
  %v2083 = vpop.f32.mrb[0].mxu0
  %v2084 = vadd.f32 0.0, %v2083
  %v2085 = vpop.f32.mrb[0].mxu0
  %v2086 = vpop.f32.mrb[0].mxu0
  %v2087 = vadd.f32 0.0, %v2086
  %v2088 = vpop.f32.mrb[0].mxu0
  %2089 = vmatprep.mubr.bf16.mxu0 0
  %2090 = vmatmul.mubr.bf16.gmra.mrb[0].mxu0 %v1207
  %v2091 = vpop.f32.mrb[0].mxu0
  %v2092 = vadd.f32 0.0, %v2091
  %v2093 = vpop.f32.mrb[0].mxu0
  %v2094 = vpop.f32.mrb[0].mxu0
  %v2095 = vadd.f32 0.0, %v2094
  %v2096 = vpop.f32.mrb[0].mxu0
  %2097 = vmatprep.mubr.bf16.mxu0 0
  %2098 = vmatmul.mubr.bf16.gmra.mrb[0].mxu0 %v1210
  %v2099 = vpop.f32.mrb[0].mxu0
  %v2100 = vadd.f32 0.0, %v2099
  %v2101 = vpop.f32.mrb[0].mxu0
  %v2102 = vpop.f32.mrb[0].mxu0
  %v2103 = vadd.f32 0.0, %v2102
  %v2104 = vpop.f32.mrb[0].mxu0
  %2105 = vmatprep.mubr.bf16.mxu0 0
  %2106 = vmatmul.mubr.bf16.gmra.mrb[0].mxu0 %v1213
  %v2107 = vpop.f32.mrb[0].mxu0
  %v2108 = vadd.f32 0.0, %v2107
  %v2109 = vpop.f32.mrb[0].mxu0
  %v2110 = vpop.f32.mrb[0].mxu0
  %v2111 = vadd.f32 0.0, %v2110
  %v2112 = vpop.f32.mrb[0].mxu0
  %2113 = vmatprep.mubr.bf16.mxu0 0
  %2114 = vmatmul.mubr.bf16.gmra.mrb[0].mxu0 %v1216
  %v2115 = vpop.f32.mrb[0].mxu0
  %v2116 = vadd.f32 0.0, %v2115
  %v2117 = vpop.f32.mrb[0].mxu0
  %v2118 = vpop.f32.mrb[0].mxu0
  %v2119 = vadd.f32 0.0, %v2118
  %v2120 = vpop.f32.mrb[0].mxu0
  %2121 = vmatprep.mubr.bf16.mxu0 0
  %2122 = vmatmul.mubr.bf16.gmra.mrb[0].mxu0 %v1219
  %v2123 = vpop.f32.mrb[0].mxu0
  %v2124 = vadd.f32 0.0, %v2123
  %v2125 = vpop.f32.mrb[0].mxu0
  %v2126 = vpop.f32.mrb[0].mxu0
  %v2127 = vadd.f32 0.0, %v2126
  %v2128 = vpop.f32.mrb[0].mxu0
  %2129 = vmatprep.mubr.bf16.mxu0 0
  %2130 = vmatmul.mubr.bf16.gmra.mrb[0].mxu0 %v1222
  %v2131 = vpop.f32.mrb[0].mxu0
  %v2132 = vadd.f32 0.0, %v2131
  %v2133 = vpop.f32.mrb[0].mxu0
  %v2134 = vpop.f32.mrb[0].mxu0
  %v2135 = vadd.f32 0.0, %v2134
  %v2136 = vpop.f32.mrb[0].mxu0
  %2137 = vmatprep.mubr.bf16.mxu0 0
  %2138 = vmatmul.mubr.bf16.gmra.mrb[0].mxu0 %v1225
  %v2139 = vpop.f32.mrb[0].mxu0
  %v2140 = vadd.f32 0.0, %v2139
  %v2141 = vpop.f32.mrb[0].mxu0
  %v2142 = vpop.f32.mrb[0].mxu0
  %v2143 = vadd.f32 0.0, %v2142
  %v2144 = vpop.f32.mrb[0].mxu0
  %2145 = vmatprep.mubr.bf16.mxu0 0
  %2146 = vmatmul.mubr.bf16.gmra.mrb[0].mxu0 %v1228
  %v2147 = vpop.f32.mrb[0].mxu0
  %v2148 = vadd.f32 0.0, %v2147
  %v2149 = vpop.f32.mrb[0].mxu0
  %v2150 = vpop.f32.mrb[0].mxu0
  %v2151 = vadd.f32 0.0, %v2150
  %v2152 = vpop.f32.mrb[0].mxu0
  %2153 = vmatprep.mubr.bf16.mxu0 0
  %2154 = vmatmul.mubr.bf16.gmra.mrb[0].mxu0 %v1231
  %v2155 = vpop.f32.mrb[0].mxu0
  %v2156 = vadd.f32 0.0, %v2155
  %v2157 = vpop.f32.mrb[0].mxu0
  %v2158 = vpop.f32.mrb[0].mxu0
  %v2159 = vadd.f32 0.0, %v2158
  %v2160 = vpop.f32.mrb[0].mxu0
  %2161 = vmatprep.mubr.bf16.mxu0 0
  %2162 = vmatmul.mubr.bf16.gmra.mrb[0].mxu0 %v1234
  %v2163 = vpop.f32.mrb[0].mxu0
  %v2164 = vadd.f32 0.0, %v2163
  %v2165 = vpop.f32.mrb[0].mxu0
  %v2166 = vpop.f32.mrb[0].mxu0
  %v2167 = vadd.f32 0.0, %v2166
  %v2168 = vpop.f32.mrb[0].mxu0
  %2169 = vmatprep.mubr.bf16.mxu0 0
  %2170 = vmatmul.mubr.bf16.gmra.mrb[0].mxu0 %v1237
  %v2171 = vpop.f32.mrb[0].mxu0
  %v2172 = vadd.f32 0.0, %v2171
  %v2173 = vpop.f32.mrb[0].mxu0
  %v2174 = vpop.f32.mrb[0].mxu0
  %v2175 = vadd.f32 0.0, %v2174
  %v2176 = vpop.f32.mrb[0].mxu0
  %2177 = vmatprep.mubr.bf16.mxu0 0
  %2178 = vmatmul.mubr.bf16.gmra.mrb[0].mxu0 %v1240
  %v2179 = vpop.f32.mrb[0].mxu0
  %v2180 = vadd.f32 0.0, %v2179
  %v2181 = vpop.f32.mrb[0].mxu0
  %v2182 = vpop.f32.mrb[0].mxu0
  %v2183 = vadd.f32 0.0, %v2182
  %v2184 = vpop.f32.mrb[0].mxu0
  %2185 = vmatprep.mubr.bf16.mxu0 0
  %2186 = vmatmul.mubr.bf16.gmra.mrb[0].mxu0 %v1243
  %v2187 = vpop.f32.mrb[0].mxu0
  %v2188 = vadd.f32 0.0, %v2187
  %v2189 = vpop.f32.mrb[0].mxu0
  %v2190 = vpop.f32.mrb[0].mxu0
  %v2191 = vadd.f32 0.0, %v2190
  %v2192 = vpop.f32.mrb[0].mxu0
  %2193 = vmatprep.mubr.bf16.mxu0 0
  %2194 = vmatmul.mubr.bf16.gmra.mrb[0].mxu0 %v1246
  %v2195 = vpop.f32.mrb[0].mxu0
  %v2196 = vadd.f32 0.0, %v2195
  %v2197 = vpop.f32.mrb[0].mxu0
  %v2198 = vpop.f32.mrb[0].mxu0
  %v2199 = vadd.f32 0.0, %v2198
  %v2200 = vpop.f32.mrb[0].mxu0
  %2201 = vmatprep.mubr.bf16.mxu0 0
  %2202 = vmatmul.mubr.bf16.gmra.mrb[0].mxu0 %v1249
  %v2203 = vpop.f32.mrb[0].mxu0
  %v2204 = vadd.f32 0.0, %v2203
  %v2205 = vpop.f32.mrb[0].mxu0
  %v2206 = vpop.f32.mrb[0].mxu0
  %v2207 = vadd.f32 0.0, %v2206
  %v2208 = vpop.f32.mrb[0].mxu0
  %2209 = vmatprep.mubr.bf16.mxu0 0
  %2210 = vmatmul.mubr.bf16.gmra.mrb[0].mxu0 %v1252
  %v2211 = vpop.f32.mrb[0].mxu0
  %v2212 = vadd.f32 0.0, %v2211
  %v2213 = vpop.f32.mrb[0].mxu0
  %v2214 = vpop.f32.mrb[0].mxu0
  %v2215 = vadd.f32 0.0, %v2214
  %v2216 = vpop.f32.mrb[0].mxu0
  %2217 = vmatprep.mubr.bf16.mxu0 0
  %2218 = vmatmul.mubr.bf16.gmra.mrb[0].mxu0 %v1255
  %v2219 = vpop.f32.mrb[0].mxu0
  %v2220 = vadd.f32 0.0, %v2219
  %v2221 = vpop.f32.mrb[0].mxu0
  %v2222 = vpop.f32.mrb[0].mxu0
  %v2223 = vadd.f32 0.0, %v2222
  %v2224 = vpop.f32.mrb[0].mxu0
  %2225 = vmatprep.mubr.bf16.mxu0 0
  %2226 = vmatmul.mubr.bf16.gmra.mrb[0].mxu0 %v1258
  %v2227 = vpop.f32.mrb[0].mxu0
  %v2228 = vadd.f32 0.0, %v2227
  %v2229 = vpop.f32.mrb[0].mxu0
  %v2230 = vpop.f32.mrb[0].mxu0
  %v2231 = vadd.f32 0.0, %v2230
  %v2232 = vpop.f32.mrb[0].mxu0
  %2233 = vmatprep.mubr.bf16.mxu0 0
  %2234 = vmatmul.mubr.bf16.gmra.mrb[0].mxu0 %v1261
  %v2235 = vpop.f32.mrb[0].mxu0
  %v2236 = vadd.f32 0.0, %v2235
  %v2237 = vpop.f32.mrb[0].mxu0
  %v2238 = vpop.f32.mrb[0].mxu0
  %v2239 = vadd.f32 0.0, %v2238
  %v2240 = vpop.f32.mrb[0].mxu0
  %2241 = vmatprep.mubr.bf16.mxu0 0
  %2242 = vmatmul.mubr.bf16.gmra.mrb[0].mxu0 %v1264
  %v2243 = vpop.f32.mrb[0].mxu0
  %v2244 = vadd.f32 0.0, %v2243
  %v2245 = vpop.f32.mrb[0].mxu0
  %v2246 = vpop.f32.mrb[0].mxu0
  %v2247 = vadd.f32 0.0, %v2246
  %v2248 = vpop.f32.mrb[0].mxu0
  %2249 = vmatprep.mubr.bf16.mxu0 0
  %2250 = vmatmul.mubr.bf16.gmra.mrb[0].mxu0 %v1267
  %v2251 = vpop.f32.mrb[0].mxu0
  %v2252 = vadd.f32 0.0, %v2251
  %v2253 = vpop.f32.mrb[0].mxu0
  %v2254 = vpop.f32.mrb[0].mxu0
  %v2255 = vadd.f32 0.0, %v2254
  %v2256 = vpop.f32.mrb[0].mxu0
  %2257 = vmatprep.mubr.bf16.mxu0 0
  %2258 = vmatmul.mubr.bf16.gmra.mrb[0].mxu0 %v1270
  %v2259 = vpop.f32.mrb[0].mxu0
  %v2260 = vadd.f32 0.0, %v2259
  %v2261 = vpop.f32.mrb[0].mxu0
  %v2262 = vpop.f32.mrb[0].mxu0
  %v2263 = vadd.f32 0.0, %v2262
  %v2264 = vpop.f32.mrb[0].mxu0
  %2265 = vmatprep.mubr.bf16.mxu0 0
  %2266 = vmatmul.mubr.bf16.gmra.mrb[0].mxu0 %v1273
  %v2267 = vpop.f32.mrb[0].mxu0
  %v2268 = vadd.f32 0.0, %v2267
  %v2269 = vpop.f32.mrb[0].mxu0
  %v2270 = vpop.f32.mrb[0].mxu0
  %v2271 = vadd.f32 0.0, %v2270
  %v2272 = vpop.f32.mrb[0].mxu0
  %2273 = vmatprep.mubr.bf16.mxu0 0
  %2274 = vmatmul.mubr.bf16.gmra.mrb[0].mxu0 %v1276
  %v2275 = vpop.f32.mrb[0].mxu0
  %v2276 = vadd.f32 0.0, %v2275
  %v2277 = vpop.f32.mrb[0].mxu0
  %v2278 = vpop.f32.mrb[0].mxu0
  %v2279 = vadd.f32 0.0, %v2278
  %v2280 = vpop.f32.mrb[0].mxu0
  %2281 = vmatprep.mubr.bf16.mxu0 0
  %2282 = vmatmul.mubr.bf16.gmra.mrb[0].mxu0 %v1279
  %v2283 = vpop.f32.mrb[0].mxu0
  %v2284 = vadd.f32 0.0, %v2283
  %v2285 = vpop.f32.mrb[0].mxu0
  %v2286 = vpop.f32.mrb[0].mxu0
  %v2287 = vadd.f32 0.0, %v2286
  %v2288 = vpop.f32.mrb[0].mxu0
  %2289 = vmatprep.mubr.bf16.mxu0 0
  %2290 = vmatmul.mubr.bf16.gmra.mrb[0].mxu0 %v1282
  %v2291 = vpop.f32.mrb[0].mxu0
  %v2292 = vadd.f32 0.0, %v2291
  %v2293 = vpop.f32.mrb[0].mxu0
  %v2294 = vpop.f32.mrb[0].mxu0
  %v2295 = vadd.f32 0.0, %v2294
  %v2296 = vpop.f32.mrb[0].mxu0
  %2297 = vmatprep.mubr.bf16.mxu0 0
  %2298 = vmatmul.mubr.bf16.gmra.mrb[0].mxu0 %v1285
  %v2299 = vpop.f32.mrb[0].mxu0
  %v2300 = vadd.f32 0.0, %v2299
  %v2301 = vpop.f32.mrb[0].mxu0
  %v2302 = vpop.f32.mrb[0].mxu0
  %v2303 = vadd.f32 0.0, %v2302
  %v2304 = vpop.f32.mrb[0].mxu0
  %2305 = vmatprep.mubr.bf16.mxu0 0
  %2306 = vmatmul.mubr.bf16.gmra.mrb[0].mxu0 %v1288
  %v2307 = vpop.f32.mrb[0].mxu0
  %v2308 = vadd.f32 0.0, %v2307
  %v2309 = vpop.f32.mrb[0].mxu0
  %v2310 = vpop.f32.mrb[0].mxu0
  %v2311 = vadd.f32 0.0, %v2310
  %v2312 = vpop.f32.mrb[0].mxu0
  %2313 = vmatprep.mubr.bf16.mxu0 0
  %2314 = vmatmul.mubr.bf16.gmra.mrb[0].mxu0 %v1291
  %v2315 = vpop.f32.mrb[0].mxu0
  %v2316 = vadd.f32 0.0, %v2315
  %v2317 = vpop.f32.mrb[0].mxu0
  %v2318 = vpop.f32.mrb[0].mxu0
  %v2319 = vadd.f32 0.0, %v2318
  %v2320 = vpop.f32.mrb[0].mxu0
  %2321 = vmatprep.mubr.bf16.mxu0 0
  %2322 = vmatmul.mubr.bf16.gmra.mrb[0].mxu0 %v1294
  %v2323 = vpop.f32.mrb[0].mxu0
  %v2324 = vadd.f32 0.0, %v2323
  %v2325 = vpop.f32.mrb[0].mxu0
  %v2326 = vpop.f32.mrb[0].mxu0
  %v2327 = vadd.f32 0.0, %v2326
  %v2328 = vpop.f32.mrb[0].mxu0
  %2329 = vmatprep.mubr.bf16.mxu0 0
  %2330 = vmatmul.mubr.bf16.gmra.mrb[0].mxu0 %v1297
  %v2331 = vpop.f32.mrb[0].mxu0
  %v2332 = vadd.f32 0.0, %v2331
  %v2333 = vpop.f32.mrb[0].mxu0
  %v2334 = vpop.f32.mrb[0].mxu0
  %v2335 = vadd.f32 0.0, %v2334
  %v2336 = vpop.f32.mrb[0].mxu0
  %2337 = vmatprep.mubr.bf16.mxu0 0
  %2338 = vmatmul.mubr.bf16.gmra.mrb[0].mxu0 %v1300
  %v2339 = vpop.f32.mrb[0].mxu0
  %v2340 = vadd.f32 0.0, %v2339
  %v2341 = vpop.f32.mrb[0].mxu0
  %v2342 = vpop.f32.mrb[0].mxu0
  %v2343 = vadd.f32 0.0, %v2342
  %v2344 = vpop.f32.mrb[0].mxu0
  %2345 = vmatprep.mubr.bf16.mxu0 0
  %2346 = vmatmul.mubr.bf16.gmra.mrb[0].mxu0 %v1303
  %v2347 = vpop.f32.mrb[0].mxu0
  %v2348 = vadd.f32 0.0, %v2347
  %v2349 = vpop.f32.mrb[0].mxu0
  %v2350 = vpop.f32.mrb[0].mxu0
  %v2351 = vadd.f32 0.0, %v2350
  %v2352 = vpop.f32.mrb[0].mxu0
  %2353 = vmatprep.mubr.bf16.mxu0 0
  %2354 = vmatmul.mubr.bf16.gmra.mrb[0].mxu0 %v1306
  %v2355 = vpop.f32.mrb[0].mxu0
  %v2356 = vadd.f32 0.0, %v2355
  %v2357 = vpop.f32.mrb[0].mxu0
  %v2358 = vpop.f32.mrb[0].mxu0
  %v2359 = vadd.f32 0.0, %v2358
  %v2360 = vpop.f32.mrb[0].mxu0
  %2361 = vmatprep.mubr.bf16.mxu0 0
  %2362 = vmatmul.mubr.bf16.gmra.mrb[0].mxu0 %v1309
  %v2363 = vpop.f32.mrb[0].mxu0
  %v2364 = vadd.f32 0.0, %v2363
  %v2365 = vpop.f32.mrb[0].mxu0
  %v2366 = vpop.f32.mrb[0].mxu0
  %v2367 = vadd.f32 0.0, %v2366
  %v2368 = vpop.f32.mrb[0].mxu0
  %2369 = vmatprep.mubr.bf16.mxu0 0
  %2370 = vmatmul.mubr.bf16.gmra.mrb[0].mxu0 %v1312
  %v2371 = vpop.f32.mrb[0].mxu0
  %v2372 = vadd.f32 0.0, %v2371
  %v2373 = vpop.f32.mrb[0].mxu0
  %v2374 = vpop.f32.mrb[0].mxu0
  %v2375 = vadd.f32 0.0, %v2374
  %v2376 = vpop.f32.mrb[0].mxu0
  %2377 = vdwg.mxu0
  %v2378 = vld [vmem:[%s2] sm:$0x1]
  %v2380 = vlaneseq
  %v2381 = vshrl.u32 %v2380, 7
  %v2382 = vsub.s32 0, %v2381
  %v2383 = vrot.slane %v2378, %v2382
  %v2385 = vmul.f32 %v1356, %v2383
  %v2386 = vmul.f32 %v1359, %v2383
  %v2387 = vmul.f32 %v1364, %v2383
  %v2388 = vmul.f32 %v1367, %v2383
  %v2389 = vmul.f32 %v1372, %v2383
  %v2390 = vmul.f32 %v1375, %v2383
  %v2391 = vmul.f32 %v1380, %v2383
  %v2392 = vmul.f32 %v1383, %v2383
  %v2393 = vmul.f32 %v1388, %v2383
  %v2394 = vmul.f32 %v1391, %v2383
  %v2395 = vmul.f32 %v1396, %v2383
  %v2396 = vmul.f32 %v1399, %v2383
  %v2397 = vmul.f32 %v1404, %v2383
  %v2398 = vmul.f32 %v1407, %v2383
  %v2399 = vmul.f32 %v1412, %v2383
  %v2400 = vmul.f32 %v1415, %v2383
  %v2401 = vmul.f32 %v1420, %v2383
  %v2402 = vmul.f32 %v1423, %v2383
  %v2403 = vmul.f32 %v1428, %v2383
  %v2404 = vmul.f32 %v1431, %v2383
  %v2405 = vmul.f32 %v1436, %v2383
  %v2406 = vmul.f32 %v1439, %v2383
  %v2407 = vmul.f32 %v1444, %v2383
  %v2408 = vmul.f32 %v1447, %v2383
  %v2409 = vmul.f32 %v1452, %v2383
  %v2410 = vmul.f32 %v1455, %v2383
  %v2411 = vmul.f32 %v1460, %v2383
  %v2412 = vmul.f32 %v1463, %v2383
  %v2413 = vmul.f32 %v1468, %v2383
  %v2414 = vmul.f32 %v1471, %v2383
  %v2415 = vmul.f32 %v1476, %v2383
  %v2416 = vmul.f32 %v1479, %v2383
  %v2417 = vmul.f32 %v1484, %v2383
  %v2418 = vmul.f32 %v1487, %v2383
  %v2419 = vmul.f32 %v1492, %v2383
  %v2420 = vmul.f32 %v1495, %v2383
  %v2421 = vmul.f32 %v1500, %v2383
  %v2422 = vmul.f32 %v1503, %v2383
  %v2423 = vmul.f32 %v1508, %v2383
  %v2424 = vmul.f32 %v1511, %v2383
  %v2425 = vmul.f32 %v1516, %v2383
  %v2426 = vmul.f32 %v1519, %v2383
  %v2427 = vmul.f32 %v1524, %v2383
  %v2428 = vmul.f32 %v1527, %v2383
  %v2429 = vmul.f32 %v1532, %v2383
  %v2430 = vmul.f32 %v1535, %v2383
  %v2431 = vmul.f32 %v1540, %v2383
  %v2432 = vmul.f32 %v1543, %v2383
  %v2433 = vmul.f32 %v1548, %v2383
  %v2434 = vmul.f32 %v1551, %v2383
  %v2435 = vmul.f32 %v1556, %v2383
  %v2436 = vmul.f32 %v1559, %v2383
  %v2437 = vmul.f32 %v1564, %v2383
  %v2438 = vmul.f32 %v1567, %v2383
  %v2439 = vmul.f32 %v1572, %v2383
  %v2440 = vmul.f32 %v1575, %v2383
  %v2441 = vmul.f32 %v1580, %v2383
  %v2442 = vmul.f32 %v1583, %v2383
  %v2443 = vmul.f32 %v1588, %v2383
  %v2444 = vmul.f32 %v1591, %v2383
  %v2445 = vmul.f32 %v1596, %v2383
  %v2446 = vmul.f32 %v1599, %v2383
  %v2447 = vmul.f32 %v1604, %v2383
  %v2448 = vmul.f32 %v1607, %v2383
  %v2449 = vmul.f32 %v1612, %v2383
  %v2450 = vmul.f32 %v1615, %v2383
  %v2451 = vmul.f32 %v1620, %v2383
  %v2452 = vmul.f32 %v1623, %v2383
  %v2453 = vmul.f32 %v1628, %v2383
  %v2454 = vmul.f32 %v1631, %v2383
  %v2455 = vmul.f32 %v1636, %v2383
  %v2456 = vmul.f32 %v1639, %v2383
  %v2457 = vmul.f32 %v1644, %v2383
  %v2458 = vmul.f32 %v1647, %v2383
  %v2459 = vmul.f32 %v1652, %v2383
  %v2460 = vmul.f32 %v1655, %v2383
  %v2461 = vmul.f32 %v1660, %v2383
  %v2462 = vmul.f32 %v1663, %v2383
  %v2463 = vmul.f32 %v1668, %v2383
  %v2464 = vmul.f32 %v1671, %v2383
  %v2465 = vmul.f32 %v1676, %v2383
  %v2466 = vmul.f32 %v1679, %v2383
  %v2467 = vmul.f32 %v1684, %v2383
  %v2468 = vmul.f32 %v1687, %v2383
  %v2469 = vmul.f32 %v1692, %v2383
  %v2470 = vmul.f32 %v1695, %v2383
  %v2471 = vmul.f32 %v1700, %v2383
  %v2472 = vmul.f32 %v1703, %v2383
  %v2473 = vmul.f32 %v1708, %v2383
  %v2474 = vmul.f32 %v1711, %v2383
  %v2475 = vmul.f32 %v1716, %v2383
  %v2476 = vmul.f32 %v1719, %v2383
  %v2477 = vmul.f32 %v1724, %v2383
  %v2478 = vmul.f32 %v1727, %v2383
  %v2479 = vmul.f32 %v1732, %v2383
  %v2480 = vmul.f32 %v1735, %v2383
  %v2481 = vmul.f32 %v1740, %v2383
  %v2482 = vmul.f32 %v1743, %v2383
  %v2483 = vmul.f32 %v1748, %v2383
  %v2484 = vmul.f32 %v1751, %v2383
  %v2485 = vmul.f32 %v1756, %v2383
  %v2486 = vmul.f32 %v1759, %v2383
  %v2487 = vmul.f32 %v1764, %v2383
  %v2488 = vmul.f32 %v1767, %v2383
  %v2489 = vmul.f32 %v1772, %v2383
  %v2490 = vmul.f32 %v1775, %v2383
  %v2491 = vmul.f32 %v1780, %v2383
  %v2492 = vmul.f32 %v1783, %v2383
  %v2493 = vmul.f32 %v1788, %v2383
  %v2494 = vmul.f32 %v1791, %v2383
  %v2495 = vmul.f32 %v1796, %v2383
  %v2496 = vmul.f32 %v1799, %v2383
  %v2497 = vmul.f32 %v1804, %v2383
  %v2498 = vmul.f32 %v1807, %v2383
  %v2499 = vmul.f32 %v1812, %v2383
  %v2500 = vmul.f32 %v1815, %v2383
  %v2501 = vmul.f32 %v1820, %v2383
  %v2502 = vmul.f32 %v1823, %v2383
  %v2503 = vmul.f32 %v1828, %v2383
  %v2504 = vmul.f32 %v1831, %v2383
  %v2505 = vmul.f32 %v1836, %v2383
  %v2506 = vmul.f32 %v1839, %v2383
  %v2507 = vmul.f32 %v1844, %v2383
  %v2508 = vmul.f32 %v1847, %v2383
  %v2509 = vmul.f32 %v1852, %v2383
  %v2510 = vmul.f32 %v1855, %v2383
  %v2511 = vmul.f32 %v1860, %v2383
  %v2512 = vmul.f32 %v1863, %v2383
  %v2513 = vmul.f32 %v1868, %v2383
  %v2514 = vmul.f32 %v1871, %v2383
  %v2515 = vmul.f32 %v1876, %v2383
  %v2516 = vmul.f32 %v1879, %v2383
  %v2517 = vmul.f32 %v1884, %v2383
  %v2518 = vmul.f32 %v1887, %v2383
  %v2519 = vmul.f32 %v1892, %v2383
  %v2520 = vmul.f32 %v1895, %v2383
  %v2521 = vmul.f32 %v1900, %v2383
  %v2522 = vmul.f32 %v1903, %v2383
  %v2523 = vmul.f32 %v1908, %v2383
  %v2524 = vmul.f32 %v1911, %v2383
  %v2525 = vmul.f32 %v1916, %v2383
  %v2526 = vmul.f32 %v1919, %v2383
  %v2527 = vmul.f32 %v1924, %v2383
  %v2528 = vmul.f32 %v1927, %v2383
  %v2529 = vmul.f32 %v1932, %v2383
  %v2530 = vmul.f32 %v1935, %v2383
  %v2531 = vmul.f32 %v1940, %v2383
  %v2532 = vmul.f32 %v1943, %v2383
  %v2533 = vmul.f32 %v1948, %v2383
  %v2534 = vmul.f32 %v1951, %v2383
  %v2535 = vmul.f32 %v1956, %v2383
  %v2536 = vmul.f32 %v1959, %v2383
  %v2537 = vmul.f32 %v1964, %v2383
  %v2538 = vmul.f32 %v1967, %v2383
  %v2539 = vmul.f32 %v1972, %v2383
  %v2540 = vmul.f32 %v1975, %v2383
  %v2541 = vmul.f32 %v1980, %v2383
  %v2542 = vmul.f32 %v1983, %v2383
  %v2543 = vmul.f32 %v1988, %v2383
  %v2544 = vmul.f32 %v1991, %v2383
  %v2545 = vmul.f32 %v1996, %v2383
  %v2546 = vmul.f32 %v1999, %v2383
  %v2547 = vmul.f32 %v2004, %v2383
  %v2548 = vmul.f32 %v2007, %v2383
  %v2549 = vmul.f32 %v2012, %v2383
  %v2550 = vmul.f32 %v2015, %v2383
  %v2551 = vmul.f32 %v2020, %v2383
  %v2552 = vmul.f32 %v2023, %v2383
  %v2553 = vmul.f32 %v2028, %v2383
  %v2554 = vmul.f32 %v2031, %v2383
  %v2555 = vmul.f32 %v2036, %v2383
  %v2556 = vmul.f32 %v2039, %v2383
  %v2557 = vmul.f32 %v2044, %v2383
  %v2558 = vmul.f32 %v2047, %v2383
  %v2559 = vmul.f32 %v2052, %v2383
  %v2560 = vmul.f32 %v2055, %v2383
  %v2561 = vmul.f32 %v2060, %v2383
  %v2562 = vmul.f32 %v2063, %v2383
  %v2563 = vmul.f32 %v2068, %v2383
  %v2564 = vmul.f32 %v2071, %v2383
  %v2565 = vmul.f32 %v2076, %v2383
  %v2566 = vmul.f32 %v2079, %v2383
  %v2567 = vmul.f32 %v2084, %v2383
  %v2568 = vmul.f32 %v2087, %v2383
  %v2569 = vmul.f32 %v2092, %v2383
  %v2570 = vmul.f32 %v2095, %v2383
  %v2571 = vmul.f32 %v2100, %v2383
  %v2572 = vmul.f32 %v2103, %v2383
  %v2573 = vmul.f32 %v2108, %v2383
  %v2574 = vmul.f32 %v2111, %v2383
  %v2575 = vmul.f32 %v2116, %v2383
  %v2576 = vmul.f32 %v2119, %v2383
  %v2577 = vmul.f32 %v2124, %v2383
  %v2578 = vmul.f32 %v2127, %v2383
  %v2579 = vmul.f32 %v2132, %v2383
  %v2580 = vmul.f32 %v2135, %v2383
  %v2581 = vmul.f32 %v2140, %v2383
  %v2582 = vmul.f32 %v2143, %v2383
  %v2583 = vmul.f32 %v2148, %v2383
  %v2584 = vmul.f32 %v2151, %v2383
  %v2585 = vmul.f32 %v2156, %v2383
  %v2586 = vmul.f32 %v2159, %v2383
  %v2587 = vmul.f32 %v2164, %v2383
  %v2588 = vmul.f32 %v2167, %v2383
  %v2589 = vmul.f32 %v2172, %v2383
  %v2590 = vmul.f32 %v2175, %v2383
  %v2591 = vmul.f32 %v2180, %v2383
  %v2592 = vmul.f32 %v2183, %v2383
  %v2593 = vmul.f32 %v2188, %v2383
  %v2594 = vmul.f32 %v2191, %v2383
  %v2595 = vmul.f32 %v2196, %v2383
  %v2596 = vmul.f32 %v2199, %v2383
  %v2597 = vmul.f32 %v2204, %v2383
  %v2598 = vmul.f32 %v2207, %v2383
  %v2599 = vmul.f32 %v2212, %v2383
  %v2600 = vmul.f32 %v2215, %v2383
  %v2601 = vmul.f32 %v2220, %v2383
  %v2602 = vmul.f32 %v2223, %v2383
  %v2603 = vmul.f32 %v2228, %v2383
  %v2604 = vmul.f32 %v2231, %v2383
  %v2605 = vmul.f32 %v2236, %v2383
  %v2606 = vmul.f32 %v2239, %v2383
  %v2607 = vmul.f32 %v2244, %v2383
  %v2608 = vmul.f32 %v2247, %v2383
  %v2609 = vmul.f32 %v2252, %v2383
  %v2610 = vmul.f32 %v2255, %v2383
  %v2611 = vmul.f32 %v2260, %v2383
  %v2612 = vmul.f32 %v2263, %v2383
  %v2613 = vmul.f32 %v2268, %v2383
  %v2614 = vmul.f32 %v2271, %v2383
  %v2615 = vmul.f32 %v2276, %v2383
  %v2616 = vmul.f32 %v2279, %v2383
  %v2617 = vmul.f32 %v2284, %v2383
  %v2618 = vmul.f32 %v2287, %v2383
  %v2619 = vmul.f32 %v2292, %v2383
  %v2620 = vmul.f32 %v2295, %v2383
  %v2621 = vmul.f32 %v2300, %v2383
  %v2622 = vmul.f32 %v2303, %v2383
  %v2623 = vmul.f32 %v2308, %v2383
  %v2624 = vmul.f32 %v2311, %v2383
  %v2625 = vmul.f32 %v2316, %v2383
  %v2626 = vmul.f32 %v2319, %v2383
  %v2627 = vmul.f32 %v2324, %v2383
  %v2628 = vmul.f32 %v2327, %v2383
  %v2629 = vmul.f32 %v2332, %v2383
  %v2630 = vmul.f32 %v2335, %v2383
  %v2631 = vmul.f32 %v2340, %v2383
  %v2632 = vmul.f32 %v2343, %v2383
  %v2633 = vmul.f32 %v2348, %v2383
  %v2634 = vmul.f32 %v2351, %v2383
  %v2635 = vmul.f32 %v2356, %v2383
  %v2636 = vmul.f32 %v2359, %v2383
  %v2637 = vmul.f32 %v2364, %v2383
  %v2638 = vmul.f32 %v2367, %v2383
  %v2639 = vmul.f32 %v2372, %v2383
  %v2640 = vmul.f32 %v2375, %v2383
  %v2641 = vld [vmem:[%s3] sm:$0x1]
  %v2643 = vlaneseq
  %v2644 = vshrl.u32 %v2643, 7
  %v2645 = vsub.s32 0, %v2644
  %v2646 = vrot.slane %v2641, %v2645
  %v2648 = vadd.f32 %v2385, %v2646
  %v2649 = vadd.f32 %v2386, %v2646
  %v2650 = vadd.f32 %v2387, %v2646
  %v2651 = vadd.f32 %v2388, %v2646
  %v2652 = vadd.f32 %v2389, %v2646
  %v2653 = vadd.f32 %v2390, %v2646
  %v2654 = vadd.f32 %v2391, %v2646
  %v2655 = vadd.f32 %v2392, %v2646
  %v2656 = vadd.f32 %v2393, %v2646
  %v2657 = vadd.f32 %v2394, %v2646
  %v2658 = vadd.f32 %v2395, %v2646
  %v2659 = vadd.f32 %v2396, %v2646
  %v2660 = vadd.f32 %v2397, %v2646
  %v2661 = vadd.f32 %v2398, %v2646
  %v2662 = vadd.f32 %v2399, %v2646
  %v2663 = vadd.f32 %v2400, %v2646
  %v2664 = vadd.f32 %v2401, %v2646
  %v2665 = vadd.f32 %v2402, %v2646
  %v2666 = vadd.f32 %v2403, %v2646
  %v2667 = vadd.f32 %v2404, %v2646
  %v2668 = vadd.f32 %v2405, %v2646
  %v2669 = vadd.f32 %v2406, %v2646
  %v2670 = vadd.f32 %v2407, %v2646
  %v2671 = vadd.f32 %v2408, %v2646
  %v2672 = vadd.f32 %v2409, %v2646
  %v2673 = vadd.f32 %v2410, %v2646
  %v2674 = vadd.f32 %v2411, %v2646
  %v2675 = vadd.f32 %v2412, %v2646
  %v2676 = vadd.f32 %v2413, %v2646
  %v2677 = vadd.f32 %v2414, %v2646
  %v2678 = vadd.f32 %v2415, %v2646
  %v2679 = vadd.f32 %v2416, %v2646
  %v2680 = vadd.f32 %v2417, %v2646
  %v2681 = vadd.f32 %v2418, %v2646
  %v2682 = vadd.f32 %v2419, %v2646
  %v2683 = vadd.f32 %v2420, %v2646
  %v2684 = vadd.f32 %v2421, %v2646
  %v2685 = vadd.f32 %v2422, %v2646
  %v2686 = vadd.f32 %v2423, %v2646
  %v2687 = vadd.f32 %v2424, %v2646
  %v2688 = vadd.f32 %v2425, %v2646
  %v2689 = vadd.f32 %v2426, %v2646
  %v2690 = vadd.f32 %v2427, %v2646
  %v2691 = vadd.f32 %v2428, %v2646
  %v2692 = vadd.f32 %v2429, %v2646
  %v2693 = vadd.f32 %v2430, %v2646
  %v2694 = vadd.f32 %v2431, %v2646
  %v2695 = vadd.f32 %v2432, %v2646
  %v2696 = vadd.f32 %v2433, %v2646
  %v2697 = vadd.f32 %v2434, %v2646
  %v2698 = vadd.f32 %v2435, %v2646
  %v2699 = vadd.f32 %v2436, %v2646
  %v2700 = vadd.f32 %v2437, %v2646
  %v2701 = vadd.f32 %v2438, %v2646
  %v2702 = vadd.f32 %v2439, %v2646
  %v2703 = vadd.f32 %v2440, %v2646
  %v2704 = vadd.f32 %v2441, %v2646
  %v2705 = vadd.f32 %v2442, %v2646
  %v2706 = vadd.f32 %v2443, %v2646
  %v2707 = vadd.f32 %v2444, %v2646
  %v2708 = vadd.f32 %v2445, %v2646
  %v2709 = vadd.f32 %v2446, %v2646
  %v2710 = vadd.f32 %v2447, %v2646
  %v2711 = vadd.f32 %v2448, %v2646
  %v2712 = vadd.f32 %v2449, %v2646
  %v2713 = vadd.f32 %v2450, %v2646
  %v2714 = vadd.f32 %v2451, %v2646
  %v2715 = vadd.f32 %v2452, %v2646
  %v2716 = vadd.f32 %v2453, %v2646
  %v2717 = vadd.f32 %v2454, %v2646
  %v2718 = vadd.f32 %v2455, %v2646
  %v2719 = vadd.f32 %v2456, %v2646
  %v2720 = vadd.f32 %v2457, %v2646
  %v2721 = vadd.f32 %v2458, %v2646
  %v2722 = vadd.f32 %v2459, %v2646
  %v2723 = vadd.f32 %v2460, %v2646
  %v2724 = vadd.f32 %v2461, %v2646
  %v2725 = vadd.f32 %v2462, %v2646
  %v2726 = vadd.f32 %v2463, %v2646
  %v2727 = vadd.f32 %v2464, %v2646
  %v2728 = vadd.f32 %v2465, %v2646
  %v2729 = vadd.f32 %v2466, %v2646
  %v2730 = vadd.f32 %v2467, %v2646
  %v2731 = vadd.f32 %v2468, %v2646
  %v2732 = vadd.f32 %v2469, %v2646
  %v2733 = vadd.f32 %v2470, %v2646
  %v2734 = vadd.f32 %v2471, %v2646
  %v2735 = vadd.f32 %v2472, %v2646
  %v2736 = vadd.f32 %v2473, %v2646
  %v2737 = vadd.f32 %v2474, %v2646
  %v2738 = vadd.f32 %v2475, %v2646
  %v2739 = vadd.f32 %v2476, %v2646
  %v2740 = vadd.f32 %v2477, %v2646
  %v2741 = vadd.f32 %v2478, %v2646
  %v2742 = vadd.f32 %v2479, %v2646
  %v2743 = vadd.f32 %v2480, %v2646
  %v2744 = vadd.f32 %v2481, %v2646
  %v2745 = vadd.f32 %v2482, %v2646
  %v2746 = vadd.f32 %v2483, %v2646
  %v2747 = vadd.f32 %v2484, %v2646
  %v2748 = vadd.f32 %v2485, %v2646
  %v2749 = vadd.f32 %v2486, %v2646
  %v2750 = vadd.f32 %v2487, %v2646
  %v2751 = vadd.f32 %v2488, %v2646
  %v2752 = vadd.f32 %v2489, %v2646
  %v2753 = vadd.f32 %v2490, %v2646
  %v2754 = vadd.f32 %v2491, %v2646
  %v2755 = vadd.f32 %v2492, %v2646
  %v2756 = vadd.f32 %v2493, %v2646
  %v2757 = vadd.f32 %v2494, %v2646
  %v2758 = vadd.f32 %v2495, %v2646
  %v2759 = vadd.f32 %v2496, %v2646
  %v2760 = vadd.f32 %v2497, %v2646
  %v2761 = vadd.f32 %v2498, %v2646
  %v2762 = vadd.f32 %v2499, %v2646
  %v2763 = vadd.f32 %v2500, %v2646
  %v2764 = vadd.f32 %v2501, %v2646
  %v2765 = vadd.f32 %v2502, %v2646
  %v2766 = vadd.f32 %v2503, %v2646
  %v2767 = vadd.f32 %v2504, %v2646
  %v2768 = vadd.f32 %v2505, %v2646
  %v2769 = vadd.f32 %v2506, %v2646
  %v2770 = vadd.f32 %v2507, %v2646
  %v2771 = vadd.f32 %v2508, %v2646
  %v2772 = vadd.f32 %v2509, %v2646
  %v2773 = vadd.f32 %v2510, %v2646
  %v2774 = vadd.f32 %v2511, %v2646
  %v2775 = vadd.f32 %v2512, %v2646
  %v2776 = vadd.f32 %v2513, %v2646
  %v2777 = vadd.f32 %v2514, %v2646
  %v2778 = vadd.f32 %v2515, %v2646
  %v2779 = vadd.f32 %v2516, %v2646
  %v2780 = vadd.f32 %v2517, %v2646
  %v2781 = vadd.f32 %v2518, %v2646
  %v2782 = vadd.f32 %v2519, %v2646
  %v2783 = vadd.f32 %v2520, %v2646
  %v2784 = vadd.f32 %v2521, %v2646
  %v2785 = vadd.f32 %v2522, %v2646
  %v2786 = vadd.f32 %v2523, %v2646
  %v2787 = vadd.f32 %v2524, %v2646
  %v2788 = vadd.f32 %v2525, %v2646
  %v2789 = vadd.f32 %v2526, %v2646
  %v2790 = vadd.f32 %v2527, %v2646
  %v2791 = vadd.f32 %v2528, %v2646
  %v2792 = vadd.f32 %v2529, %v2646
  %v2793 = vadd.f32 %v2530, %v2646
  %v2794 = vadd.f32 %v2531, %v2646
  %v2795 = vadd.f32 %v2532, %v2646
  %v2796 = vadd.f32 %v2533, %v2646
  %v2797 = vadd.f32 %v2534, %v2646
  %v2798 = vadd.f32 %v2535, %v2646
  %v2799 = vadd.f32 %v2536, %v2646
  %v2800 = vadd.f32 %v2537, %v2646
  %v2801 = vadd.f32 %v2538, %v2646
  %v2802 = vadd.f32 %v2539, %v2646
  %v2803 = vadd.f32 %v2540, %v2646
  %v2804 = vadd.f32 %v2541, %v2646
  %v2805 = vadd.f32 %v2542, %v2646
  %v2806 = vadd.f32 %v2543, %v2646
  %v2807 = vadd.f32 %v2544, %v2646
  %v2808 = vadd.f32 %v2545, %v2646
  %v2809 = vadd.f32 %v2546, %v2646
  %v2810 = vadd.f32 %v2547, %v2646
  %v2811 = vadd.f32 %v2548, %v2646
  %v2812 = vadd.f32 %v2549, %v2646
  %v2813 = vadd.f32 %v2550, %v2646
  %v2814 = vadd.f32 %v2551, %v2646
  %v2815 = vadd.f32 %v2552, %v2646
  %v2816 = vadd.f32 %v2553, %v2646
  %v2817 = vadd.f32 %v2554, %v2646
  %v2818 = vadd.f32 %v2555, %v2646
  %v2819 = vadd.f32 %v2556, %v2646
  %v2820 = vadd.f32 %v2557, %v2646
  %v2821 = vadd.f32 %v2558, %v2646
  %v2822 = vadd.f32 %v2559, %v2646
  %v2823 = vadd.f32 %v2560, %v2646
  %v2824 = vadd.f32 %v2561, %v2646
  %v2825 = vadd.f32 %v2562, %v2646
  %v2826 = vadd.f32 %v2563, %v2646
  %v2827 = vadd.f32 %v2564, %v2646
  %v2828 = vadd.f32 %v2565, %v2646
  %v2829 = vadd.f32 %v2566, %v2646
  %v2830 = vadd.f32 %v2567, %v2646
  %v2831 = vadd.f32 %v2568, %v2646
  %v2832 = vadd.f32 %v2569, %v2646
  %v2833 = vadd.f32 %v2570, %v2646
  %v2834 = vadd.f32 %v2571, %v2646
  %v2835 = vadd.f32 %v2572, %v2646
  %v2836 = vadd.f32 %v2573, %v2646
  %v2837 = vadd.f32 %v2574, %v2646
  %v2838 = vadd.f32 %v2575, %v2646
  %v2839 = vadd.f32 %v2576, %v2646
  %v2840 = vadd.f32 %v2577, %v2646
  %v2841 = vadd.f32 %v2578, %v2646
  %v2842 = vadd.f32 %v2579, %v2646
  %v2843 = vadd.f32 %v2580, %v2646
  %v2844 = vadd.f32 %v2581, %v2646
  %v2845 = vadd.f32 %v2582, %v2646
  %v2846 = vadd.f32 %v2583, %v2646
  %v2847 = vadd.f32 %v2584, %v2646
  %v2848 = vadd.f32 %v2585, %v2646
  %v2849 = vadd.f32 %v2586, %v2646
  %v2850 = vadd.f32 %v2587, %v2646
  %v2851 = vadd.f32 %v2588, %v2646
  %v2852 = vadd.f32 %v2589, %v2646
  %v2853 = vadd.f32 %v2590, %v2646
  %v2854 = vadd.f32 %v2591, %v2646
  %v2855 = vadd.f32 %v2592, %v2646
  %v2856 = vadd.f32 %v2593, %v2646
  %v2857 = vadd.f32 %v2594, %v2646
  %v2858 = vadd.f32 %v2595, %v2646
  %v2859 = vadd.f32 %v2596, %v2646
  %v2860 = vadd.f32 %v2597, %v2646
  %v2861 = vadd.f32 %v2598, %v2646
  %v2862 = vadd.f32 %v2599, %v2646
  %v2863 = vadd.f32 %v2600, %v2646
  %v2864 = vadd.f32 %v2601, %v2646
  %v2865 = vadd.f32 %v2602, %v2646
  %v2866 = vadd.f32 %v2603, %v2646
  %v2867 = vadd.f32 %v2604, %v2646
  %v2868 = vadd.f32 %v2605, %v2646
  %v2869 = vadd.f32 %v2606, %v2646
  %v2870 = vadd.f32 %v2607, %v2646
  %v2871 = vadd.f32 %v2608, %v2646
  %v2872 = vadd.f32 %v2609, %v2646
  %v2873 = vadd.f32 %v2610, %v2646
  %v2874 = vadd.f32 %v2611, %v2646
  %v2875 = vadd.f32 %v2612, %v2646
  %v2876 = vadd.f32 %v2613, %v2646
  %v2877 = vadd.f32 %v2614, %v2646
  %v2878 = vadd.f32 %v2615, %v2646
  %v2879 = vadd.f32 %v2616, %v2646
  %v2880 = vadd.f32 %v2617, %v2646
  %v2881 = vadd.f32 %v2618, %v2646
  %v2882 = vadd.f32 %v2619, %v2646
  %v2883 = vadd.f32 %v2620, %v2646
  %v2884 = vadd.f32 %v2621, %v2646
  %v2885 = vadd.f32 %v2622, %v2646
  %v2886 = vadd.f32 %v2623, %v2646
  %v2887 = vadd.f32 %v2624, %v2646
  %v2888 = vadd.f32 %v2625, %v2646
  %v2889 = vadd.f32 %v2626, %v2646
  %v2890 = vadd.f32 %v2627, %v2646
  %v2891 = vadd.f32 %v2628, %v2646
  %v2892 = vadd.f32 %v2629, %v2646
  %v2893 = vadd.f32 %v2630, %v2646
  %v2894 = vadd.f32 %v2631, %v2646
  %v2895 = vadd.f32 %v2632, %v2646
  %v2896 = vadd.f32 %v2633, %v2646
  %v2897 = vadd.f32 %v2634, %v2646
  %v2898 = vadd.f32 %v2635, %v2646
  %v2899 = vadd.f32 %v2636, %v2646
  %v2900 = vadd.f32 %v2637, %v2646
  %v2901 = vadd.f32 %v2638, %v2646
  %v2902 = vadd.f32 %v2639, %v2646
  %v2903 = vadd.f32 %v2640, %v2646
  %v2904 = vmax.f32 %v2648, 0.0
  %v2905 = vmax.f32 %v2649, 0.0
  %v2906 = vmax.f32 %v2650, 0.0
  %v2907 = vmax.f32 %v2651, 0.0
  %v2908 = vmax.f32 %v2652, 0.0
  %v2909 = vmax.f32 %v2653, 0.0
  %v2910 = vmax.f32 %v2654, 0.0
  %v2911 = vmax.f32 %v2655, 0.0
  %v2912 = vmax.f32 %v2656, 0.0
  %v2913 = vmax.f32 %v2657, 0.0
  %v2914 = vmax.f32 %v2658, 0.0
  %v2915 = vmax.f32 %v2659, 0.0
  %v2916 = vmax.f32 %v2660, 0.0
  %v2917 = vmax.f32 %v2661, 0.0
  %v2918 = vmax.f32 %v2662, 0.0
  %v2919 = vmax.f32 %v2663, 0.0
  %v2920 = vmax.f32 %v2664, 0.0
  %v2921 = vmax.f32 %v2665, 0.0
  %v2922 = vmax.f32 %v2666, 0.0
  %v2923 = vmax.f32 %v2667, 0.0
  %v2924 = vmax.f32 %v2668, 0.0
  %v2925 = vmax.f32 %v2669, 0.0
  %v2926 = vmax.f32 %v2670, 0.0
  %v2927 = vmax.f32 %v2671, 0.0
  %v2928 = vmax.f32 %v2672, 0.0
  %v2929 = vmax.f32 %v2673, 0.0
  %v2930 = vmax.f32 %v2674, 0.0
  %v2931 = vmax.f32 %v2675, 0.0
  %v2932 = vmax.f32 %v2676, 0.0
  %v2933 = vmax.f32 %v2677, 0.0
  %v2934 = vmax.f32 %v2678, 0.0
  %v2935 = vmax.f32 %v2679, 0.0
  %v2936 = vmax.f32 %v2680, 0.0
  %v2937 = vmax.f32 %v2681, 0.0
  %v2938 = vmax.f32 %v2682, 0.0
  %v2939 = vmax.f32 %v2683, 0.0
  %v2940 = vmax.f32 %v2684, 0.0
  %v2941 = vmax.f32 %v2685, 0.0
  %v2942 = vmax.f32 %v2686, 0.0
  %v2943 = vmax.f32 %v2687, 0.0
  %v2944 = vmax.f32 %v2688, 0.0
  %v2945 = vmax.f32 %v2689, 0.0
  %v2946 = vmax.f32 %v2690, 0.0
  %v2947 = vmax.f32 %v2691, 0.0
  %v2948 = vmax.f32 %v2692, 0.0
  %v2949 = vmax.f32 %v2693, 0.0
  %v2950 = vmax.f32 %v2694, 0.0
  %v2951 = vmax.f32 %v2695, 0.0
  %v2952 = vmax.f32 %v2696, 0.0
  %v2953 = vmax.f32 %v2697, 0.0
  %v2954 = vmax.f32 %v2698, 0.0
  %v2955 = vmax.f32 %v2699, 0.0
  %v2956 = vmax.f32 %v2700, 0.0
  %v2957 = vmax.f32 %v2701, 0.0
  %v2958 = vmax.f32 %v2702, 0.0
  %v2959 = vmax.f32 %v2703, 0.0
  %v2960 = vmax.f32 %v2704, 0.0
  %v2961 = vmax.f32 %v2705, 0.0
  %v2962 = vmax.f32 %v2706, 0.0
  %v2963 = vmax.f32 %v2707, 0.0
  %v2964 = vmax.f32 %v2708, 0.0
  %v2965 = vmax.f32 %v2709, 0.0
  %v2966 = vmax.f32 %v2710, 0.0
  %v2967 = vmax.f32 %v2711, 0.0
  %v2968 = vmax.f32 %v2712, 0.0
  %v2969 = vmax.f32 %v2713, 0.0
  %v2970 = vmax.f32 %v2714, 0.0
  %v2971 = vmax.f32 %v2715, 0.0
  %v2972 = vmax.f32 %v2716, 0.0
  %v2973 = vmax.f32 %v2717, 0.0
  %v2974 = vmax.f32 %v2718, 0.0
  %v2975 = vmax.f32 %v2719, 0.0
  %v2976 = vmax.f32 %v2720, 0.0
  %v2977 = vmax.f32 %v2721, 0.0
  %v2978 = vmax.f32 %v2722, 0.0
  %v2979 = vmax.f32 %v2723, 0.0
  %v2980 = vmax.f32 %v2724, 0.0
  %v2981 = vmax.f32 %v2725, 0.0
  %v2982 = vmax.f32 %v2726, 0.0
  %v2983 = vmax.f32 %v2727, 0.0
  %v2984 = vmax.f32 %v2728, 0.0
  %v2985 = vmax.f32 %v2729, 0.0
  %v2986 = vmax.f32 %v2730, 0.0
  %v2987 = vmax.f32 %v2731, 0.0
  %v2988 = vmax.f32 %v2732, 0.0
  %v2989 = vmax.f32 %v2733, 0.0
  %v2990 = vmax.f32 %v2734, 0.0
  %v2991 = vmax.f32 %v2735, 0.0
  %v2992 = vmax.f32 %v2736, 0.0
  %v2993 = vmax.f32 %v2737, 0.0
  %v2994 = vmax.f32 %v2738, 0.0
  %v2995 = vmax.f32 %v2739, 0.0
  %v2996 = vmax.f32 %v2740, 0.0
  %v2997 = vmax.f32 %v2741, 0.0
  %v2998 = vmax.f32 %v2742, 0.0
  %v2999 = vmax.f32 %v2743, 0.0
  %v3000 = vmax.f32 %v2744, 0.0
  %v3001 = vmax.f32 %v2745, 0.0
  %v3002 = vmax.f32 %v2746, 0.0
  %v3003 = vmax.f32 %v2747, 0.0
  %v3004 = vmax.f32 %v2748, 0.0
  %v3005 = vmax.f32 %v2749, 0.0
  %v3006 = vmax.f32 %v2750, 0.0
  %v3007 = vmax.f32 %v2751, 0.0
  %v3008 = vmax.f32 %v2752, 0.0
  %v3009 = vmax.f32 %v2753, 0.0
  %v3010 = vmax.f32 %v2754, 0.0
  %v3011 = vmax.f32 %v2755, 0.0
  %v3012 = vmax.f32 %v2756, 0.0
  %v3013 = vmax.f32 %v2757, 0.0
  %v3014 = vmax.f32 %v2758, 0.0
  %v3015 = vmax.f32 %v2759, 0.0
  %v3016 = vmax.f32 %v2760, 0.0
  %v3017 = vmax.f32 %v2761, 0.0
  %v3018 = vmax.f32 %v2762, 0.0
  %v3019 = vmax.f32 %v2763, 0.0
  %v3020 = vmax.f32 %v2764, 0.0
  %v3021 = vmax.f32 %v2765, 0.0
  %v3022 = vmax.f32 %v2766, 0.0
  %v3023 = vmax.f32 %v2767, 0.0
  %v3024 = vmax.f32 %v2768, 0.0
  %v3025 = vmax.f32 %v2769, 0.0
  %v3026 = vmax.f32 %v2770, 0.0
  %v3027 = vmax.f32 %v2771, 0.0
  %v3028 = vmax.f32 %v2772, 0.0
  %v3029 = vmax.f32 %v2773, 0.0
  %v3030 = vmax.f32 %v2774, 0.0
  %v3031 = vmax.f32 %v2775, 0.0
  %v3032 = vmax.f32 %v2776, 0.0
  %v3033 = vmax.f32 %v2777, 0.0
  %v3034 = vmax.f32 %v2778, 0.0
  %v3035 = vmax.f32 %v2779, 0.0
  %v3036 = vmax.f32 %v2780, 0.0
  %v3037 = vmax.f32 %v2781, 0.0
  %v3038 = vmax.f32 %v2782, 0.0
  %v3039 = vmax.f32 %v2783, 0.0
  %v3040 = vmax.f32 %v2784, 0.0
  %v3041 = vmax.f32 %v2785, 0.0
  %v3042 = vmax.f32 %v2786, 0.0
  %v3043 = vmax.f32 %v2787, 0.0
  %v3044 = vmax.f32 %v2788, 0.0
  %v3045 = vmax.f32 %v2789, 0.0
  %v3046 = vmax.f32 %v2790, 0.0
  %v3047 = vmax.f32 %v2791, 0.0
  %v3048 = vmax.f32 %v2792, 0.0
  %v3049 = vmax.f32 %v2793, 0.0
  %v3050 = vmax.f32 %v2794, 0.0
  %v3051 = vmax.f32 %v2795, 0.0
  %v3052 = vmax.f32 %v2796, 0.0
  %v3053 = vmax.f32 %v2797, 0.0
  %v3054 = vmax.f32 %v2798, 0.0
  %v3055 = vmax.f32 %v2799, 0.0
  %v3056 = vmax.f32 %v2800, 0.0
  %v3057 = vmax.f32 %v2801, 0.0
  %v3058 = vmax.f32 %v2802, 0.0
  %v3059 = vmax.f32 %v2803, 0.0
  %v3060 = vmax.f32 %v2804, 0.0
  %v3061 = vmax.f32 %v2805, 0.0
  %v3062 = vmax.f32 %v2806, 0.0
  %v3063 = vmax.f32 %v2807, 0.0
  %v3064 = vmax.f32 %v2808, 0.0
  %v3065 = vmax.f32 %v2809, 0.0
  %v3066 = vmax.f32 %v2810, 0.0
  %v3067 = vmax.f32 %v2811, 0.0
  %v3068 = vmax.f32 %v2812, 0.0
  %v3069 = vmax.f32 %v2813, 0.0
  %v3070 = vmax.f32 %v2814, 0.0
  %v3071 = vmax.f32 %v2815, 0.0
  %v3072 = vmax.f32 %v2816, 0.0
  %v3073 = vmax.f32 %v2817, 0.0
  %v3074 = vmax.f32 %v2818, 0.0
  %v3075 = vmax.f32 %v2819, 0.0
  %v3076 = vmax.f32 %v2820, 0.0
  %v3077 = vmax.f32 %v2821, 0.0
  %v3078 = vmax.f32 %v2822, 0.0
  %v3079 = vmax.f32 %v2823, 0.0
  %v3080 = vmax.f32 %v2824, 0.0
  %v3081 = vmax.f32 %v2825, 0.0
  %v3082 = vmax.f32 %v2826, 0.0
  %v3083 = vmax.f32 %v2827, 0.0
  %v3084 = vmax.f32 %v2828, 0.0
  %v3085 = vmax.f32 %v2829, 0.0
  %v3086 = vmax.f32 %v2830, 0.0
  %v3087 = vmax.f32 %v2831, 0.0
  %v3088 = vmax.f32 %v2832, 0.0
  %v3089 = vmax.f32 %v2833, 0.0
  %v3090 = vmax.f32 %v2834, 0.0
  %v3091 = vmax.f32 %v2835, 0.0
  %v3092 = vmax.f32 %v2836, 0.0
  %v3093 = vmax.f32 %v2837, 0.0
  %v3094 = vmax.f32 %v2838, 0.0
  %v3095 = vmax.f32 %v2839, 0.0
  %v3096 = vmax.f32 %v2840, 0.0
  %v3097 = vmax.f32 %v2841, 0.0
  %v3098 = vmax.f32 %v2842, 0.0
  %v3099 = vmax.f32 %v2843, 0.0
  %v3100 = vmax.f32 %v2844, 0.0
  %v3101 = vmax.f32 %v2845, 0.0
  %v3102 = vmax.f32 %v2846, 0.0
  %v3103 = vmax.f32 %v2847, 0.0
  %v3104 = vmax.f32 %v2848, 0.0
  %v3105 = vmax.f32 %v2849, 0.0
  %v3106 = vmax.f32 %v2850, 0.0
  %v3107 = vmax.f32 %v2851, 0.0
  %v3108 = vmax.f32 %v2852, 0.0
  %v3109 = vmax.f32 %v2853, 0.0
  %v3110 = vmax.f32 %v2854, 0.0
  %v3111 = vmax.f32 %v2855, 0.0
  %v3112 = vmax.f32 %v2856, 0.0
  %v3113 = vmax.f32 %v2857, 0.0
  %v3114 = vmax.f32 %v2858, 0.0
  %v3115 = vmax.f32 %v2859, 0.0
  %v3116 = vmax.f32 %v2860, 0.0
  %v3117 = vmax.f32 %v2861, 0.0
  %v3118 = vmax.f32 %v2862, 0.0
  %v3119 = vmax.f32 %v2863, 0.0
  %v3120 = vmax.f32 %v2864, 0.0
  %v3121 = vmax.f32 %v2865, 0.0
  %v3122 = vmax.f32 %v2866, 0.0
  %v3123 = vmax.f32 %v2867, 0.0
  %v3124 = vmax.f32 %v2868, 0.0
  %v3125 = vmax.f32 %v2869, 0.0
  %v3126 = vmax.f32 %v2870, 0.0
  %v3127 = vmax.f32 %v2871, 0.0
  %v3128 = vmax.f32 %v2872, 0.0
  %v3129 = vmax.f32 %v2873, 0.0
  %v3130 = vmax.f32 %v2874, 0.0
  %v3131 = vmax.f32 %v2875, 0.0
  %v3132 = vmax.f32 %v2876, 0.0
  %v3133 = vmax.f32 %v2877, 0.0
  %v3134 = vmax.f32 %v2878, 0.0
  %v3135 = vmax.f32 %v2879, 0.0
  %v3136 = vmax.f32 %v2880, 0.0
  %v3137 = vmax.f32 %v2881, 0.0
  %v3138 = vmax.f32 %v2882, 0.0
  %v3139 = vmax.f32 %v2883, 0.0
  %v3140 = vmax.f32 %v2884, 0.0
  %v3141 = vmax.f32 %v2885, 0.0
  %v3142 = vmax.f32 %v2886, 0.0
  %v3143 = vmax.f32 %v2887, 0.0
  %v3144 = vmax.f32 %v2888, 0.0
  %v3145 = vmax.f32 %v2889, 0.0
  %v3146 = vmax.f32 %v2890, 0.0
  %v3147 = vmax.f32 %v2891, 0.0
  %v3148 = vmax.f32 %v2892, 0.0
  %v3149 = vmax.f32 %v2893, 0.0
  %v3150 = vmax.f32 %v2894, 0.0
  %v3151 = vmax.f32 %v2895, 0.0
  %v3152 = vmax.f32 %v2896, 0.0
  %v3153 = vmax.f32 %v2897, 0.0
  %v3154 = vmax.f32 %v2898, 0.0
  %v3155 = vmax.f32 %v2899, 0.0
  %v3156 = vmax.f32 %v2900, 0.0
  %v3157 = vmax.f32 %v2901, 0.0
  %v3158 = vmax.f32 %v2902, 0.0
  %v3159 = vmax.f32 %v2903, 0.0
  %v3160 = vmax.f32 %v2904, %v2936
  %v3161 = vmax.f32 %v2905, %v2937
  %v3162 = vmax.f32 %v2906, %v2938
  %v3163 = vmax.f32 %v2907, %v2939
  %v3164 = vmax.f32 %v2908, %v2940
  %v3165 = vmax.f32 %v2909, %v2941
  %v3166 = vmax.f32 %v2910, %v2942
  %v3167 = vmax.f32 %v2911, %v2943
  %v3168 = vmax.f32 %v2912, %v2944
  %v3169 = vmax.f32 %v2913, %v2945
  %v3170 = vmax.f32 %v2914, %v2946
  %v3171 = vmax.f32 %v2915, %v2947
  %v3172 = vmax.f32 %v2916, %v2948
  %v3173 = vmax.f32 %v2917, %v2949
  %v3174 = vmax.f32 %v2918, %v2950
  %v3175 = vmax.f32 %v2919, %v2951
  %v3176 = vmax.f32 %v2920, %v2952
  %v3177 = vmax.f32 %v2921, %v2953
  %v3178 = vmax.f32 %v2922, %v2954
  %v3179 = vmax.f32 %v2923, %v2955
  %v3180 = vmax.f32 %v2924, %v2956
  %v3181 = vmax.f32 %v2925, %v2957
  %v3182 = vmax.f32 %v2926, %v2958
  %v3183 = vmax.f32 %v2927, %v2959
  %v3184 = vmax.f32 %v2928, %v2960
  %v3185 = vmax.f32 %v2929, %v2961
  %v3186 = vmax.f32 %v2930, %v2962
  %v3187 = vmax.f32 %v2931, %v2963
  %v3188 = vmax.f32 %v2932, %v2964
  %v3189 = vmax.f32 %v2933, %v2965
  %v3190 = vmax.f32 %v2934, %v2966
  %v3191 = vmax.f32 %v2935, %v2967
  %v3192 = vmax.f32 %v2968, %v3000
  %v3193 = vmax.f32 %v2969, %v3001
  %v3194 = vmax.f32 %v2970, %v3002
  %v3195 = vmax.f32 %v2971, %v3003
  %v3196 = vmax.f32 %v2972, %v3004
  %v3197 = vmax.f32 %v2973, %v3005
  %v3198 = vmax.f32 %v2974, %v3006
  %v3199 = vmax.f32 %v2975, %v3007
  %v3200 = vmax.f32 %v2976, %v3008
  %v3201 = vmax.f32 %v2977, %v3009
  %v3202 = vmax.f32 %v2978, %v3010
  %v3203 = vmax.f32 %v2979, %v3011
  %v3204 = vmax.f32 %v2980, %v3012
  %v3205 = vmax.f32 %v2981, %v3013
  %v3206 = vmax.f32 %v2982, %v3014
  %v3207 = vmax.f32 %v2983, %v3015
  %v3208 = vmax.f32 %v2984, %v3016
  %v3209 = vmax.f32 %v2985, %v3017
  %v3210 = vmax.f32 %v2986, %v3018
  %v3211 = vmax.f32 %v2987, %v3019
  %v3212 = vmax.f32 %v2988, %v3020
  %v3213 = vmax.f32 %v2989, %v3021
  %v3214 = vmax.f32 %v2990, %v3022
  %v3215 = vmax.f32 %v2991, %v3023
  %v3216 = vmax.f32 %v2992, %v3024
  %v3217 = vmax.f32 %v2993, %v3025
  %v3218 = vmax.f32 %v2994, %v3026
  %v3219 = vmax.f32 %v2995, %v3027
  %v3220 = vmax.f32 %v2996, %v3028
  %v3221 = vmax.f32 %v2997, %v3029
  %v3222 = vmax.f32 %v2998, %v3030
  %v3223 = vmax.f32 %v2999, %v3031
  %v3224 = vmax.f32 %v3160, %v3192
  %v3225 = vmax.f32 %v3161, %v3193
  %v3226 = vmax.f32 %v3162, %v3194
  %v3227 = vmax.f32 %v3163, %v3195
  %v3228 = vmax.f32 %v3164, %v3196
  %v3229 = vmax.f32 %v3165, %v3197
  %v3230 = vmax.f32 %v3166, %v3198
  %v3231 = vmax.f32 %v3167, %v3199
  %v3232 = vmax.f32 %v3168, %v3200
  %v3233 = vmax.f32 %v3169, %v3201
  %v3234 = vmax.f32 %v3170, %v3202
  %v3235 = vmax.f32 %v3171, %v3203
  %v3236 = vmax.f32 %v3172, %v3204
  %v3237 = vmax.f32 %v3173, %v3205
  %v3238 = vmax.f32 %v3174, %v3206
  %v3239 = vmax.f32 %v3175, %v3207
  %v3240 = vmax.f32 %v3176, %v3208
  %v3241 = vmax.f32 %v3177, %v3209
  %v3242 = vmax.f32 %v3178, %v3210
  %v3243 = vmax.f32 %v3179, %v3211
  %v3244 = vmax.f32 %v3180, %v3212
  %v3245 = vmax.f32 %v3181, %v3213
  %v3246 = vmax.f32 %v3182, %v3214
  %v3247 = vmax.f32 %v3183, %v3215
  %v3248 = vmax.f32 %v3184, %v3216
  %v3249 = vmax.f32 %v3185, %v3217
  %v3250 = vmax.f32 %v3186, %v3218
  %v3251 = vmax.f32 %v3187, %v3219
  %v3252 = vmax.f32 %v3188, %v3220
  %v3253 = vmax.f32 %v3189, %v3221
  %v3254 = vmax.f32 %v3190, %v3222
  %v3255 = vmax.f32 %v3191, %v3223
  %v3256 = vpack.c.bf16 %v3225, %v3224
  %v3257 = vpack.c.bf16 %v3227, %v3226
  %v3258 = vpack.c.bf16 %v3229, %v3228
  %v3259 = vpack.c.bf16 %v3231, %v3230
  %v3260 = vpack.c.bf16 %v3233, %v3232
  %v3261 = vpack.c.bf16 %v3235, %v3234
  %v3262 = vpack.c.bf16 %v3237, %v3236
  %v3263 = vpack.c.bf16 %v3239, %v3238
  %v3264 = vpack.c.bf16 %v3241, %v3240
  %v3265 = vpack.c.bf16 %v3243, %v3242
  %v3266 = vpack.c.bf16 %v3245, %v3244
  %v3267 = vpack.c.bf16 %v3247, %v3246
  %v3268 = vpack.c.bf16 %v3249, %v3248
  %v3269 = vpack.c.bf16 %v3251, %v3250
  %v3270 = vpack.c.bf16 %v3253, %v3252
  %v3271 = vpack.c.bf16 %v3255, %v3254
  %v3288 = vunpack.c.l.b16 %v3256
  %v3289 = vunpack.c.h.b16 %v3256
  %v3290 = vunpack.c.l.b16 %v3257
  %v3291 = vunpack.c.h.b16 %v3257
  %v3292 = vunpack.c.l.b16 %v3258
  %v3293 = vunpack.c.h.b16 %v3258
  %v3294 = vunpack.c.l.b16 %v3259
  %v3295 = vunpack.c.h.b16 %v3259
  %v3296 = vunpack.c.l.b16 %v3260
  %v3297 = vunpack.c.h.b16 %v3260
  %v3298 = vunpack.c.l.b16 %v3261
  %v3299 = vunpack.c.h.b16 %v3261
  %v3300 = vunpack.c.l.b16 %v3262
  %v3301 = vunpack.c.h.b16 %v3262
  %v3302 = vunpack.c.l.b16 %v3263
  %v3303 = vunpack.c.h.b16 %v3263
  %v3304 = vunpack.c.l.b16 %v3264
  %v3305 = vunpack.c.h.b16 %v3264
  %v3306 = vunpack.c.l.b16 %v3265
  %v3307 = vunpack.c.h.b16 %v3265
  %v3308 = vunpack.c.l.b16 %v3266
  %v3309 = vunpack.c.h.b16 %v3266
  %v3310 = vunpack.c.l.b16 %v3267
  %v3311 = vunpack.c.h.b16 %v3267
  %v3312 = vunpack.c.l.b16 %v3268
  %v3313 = vunpack.c.h.b16 %v3268
  %v3314 = vunpack.c.l.b16 %v3269
  %v3315 = vunpack.c.h.b16 %v3269
  %v3316 = vunpack.c.l.b16 %v3270
  %v3317 = vunpack.c.h.b16 %v3270
  %v3318 = vunpack.c.l.b16 %v3271
  %v3319 = vunpack.c.h.b16 %v3271
  %v3320 = vpack.c.b16 %v3288, %v3288
  %v3321 = vpack.c.b16 %v3289, %v3289
  %v3322 = vpack.c.b16 %v3290, %v3290
  %v3323 = vpack.c.b16 %v3291, %v3291
  %v3324 = vpack.c.b16 %v3292, %v3292
  %v3325 = vpack.c.b16 %v3293, %v3293
  %v3326 = vpack.c.b16 %v3294, %v3294
  %v3327 = vpack.c.b16 %v3295, %v3295
  %v3328 = vpack.c.b16 %v3296, %v3296
  %v3329 = vpack.c.b16 %v3297, %v3297
  %v3330 = vpack.c.b16 %v3298, %v3298
  %v3331 = vpack.c.b16 %v3299, %v3299
  %v3332 = vpack.c.b16 %v3300, %v3300
  %v3333 = vpack.c.b16 %v3301, %v3301
  %v3334 = vpack.c.b16 %v3302, %v3302
  %v3335 = vpack.c.b16 %v3303, %v3303
  %v3336 = vpack.c.b16 %v3304, %v3304
  %v3337 = vpack.c.b16 %v3305, %v3305
  %v3338 = vpack.c.b16 %v3306, %v3306
  %v3339 = vpack.c.b16 %v3307, %v3307
  %v3340 = vpack.c.b16 %v3308, %v3308
  %v3341 = vpack.c.b16 %v3309, %v3309
  %v3342 = vpack.c.b16 %v3310, %v3310
  %v3343 = vpack.c.b16 %v3311, %v3311
  %v3344 = vpack.c.b16 %v3312, %v3312
  %v3345 = vpack.c.b16 %v3313, %v3313
  %v3346 = vpack.c.b16 %v3314, %v3314
  %v3347 = vpack.c.b16 %v3315, %v3315
  %v3348 = vpack.c.b16 %v3316, %v3316
  %v3349 = vpack.c.b16 %v3317, %v3317
  %v3350 = vpack.c.b16 %v3318, %v3318
  %v3351 = vpack.c.b16 %v3319, %v3319
  %3384 = vst [vmem:[%s4] sm:$0xf] %v3320
  %3385 = vst [vmem:[%s4 + $0x4] sm:$0xf] %v3321
  %3386 = vst [vmem:[%s4 + $0x8] sm:$0xf] %v3322
  %3387 = vst [vmem:[%s4 + $0xc] sm:$0xf] %v3323
  %3388 = vst [vmem:[%s4 + $0x10] sm:$0xf] %v3324
  %3389 = vst [vmem:[%s4 + $0x14] sm:$0xf] %v3325
  %3390 = vst [vmem:[%s4 + $0x18] sm:$0xf] %v3326
  %3391 = vst [vmem:[%s4 + $0x1c] sm:$0xf] %v3327
  %3392 = vst [vmem:[%s4 + $0x20] sm:$0xf] %v3328
  %3393 = vst [vmem:[%s4 + $0x24] sm:$0xf] %v3329
  %3394 = vst [vmem:[%s4 + $0x28] sm:$0xf] %v3330
  %3395 = vst [vmem:[%s4 + $0x2c] sm:$0xf] %v3331
  %3396 = vst [vmem:[%s4 + $0x30] sm:$0xf] %v3332
  %3397 = vst [vmem:[%s4 + $0x34] sm:$0xf] %v3333
  %3398 = vst [vmem:[%s4 + $0x38] sm:$0xf] %v3334
  %3399 = vst [vmem:[%s4 + $0x3c] sm:$0xf] %v3335
  %3400 = vst [vmem:[%s4 + $0x40] sm:$0xf] %v3336
  %3401 = vst [vmem:[%s4 + $0x44] sm:$0xf] %v3337
  %3402 = vst [vmem:[%s4 + $0x48] sm:$0xf] %v3338
  %3403 = vst [vmem:[%s4 + $0x4c] sm:$0xf] %v3339
  %3404 = vst [vmem:[%s4 + $0x50] sm:$0xf] %v3340
  %3405 = vst [vmem:[%s4 + $0x54] sm:$0xf] %v3341
  %3406 = vst [vmem:[%s4 + $0x58] sm:$0xf] %v3342
  %3407 = vst [vmem:[%s4 + $0x5c] sm:$0xf] %v3343
  %3408 = vst [vmem:[%s4 + $0x60] sm:$0xf] %v3344
  %3409 = vst [vmem:[%s4 + $0x64] sm:$0xf] %v3345
  %3410 = vst [vmem:[%s4 + $0x68] sm:$0xf] %v3346
  %3411 = vst [vmem:[%s4 + $0x6c] sm:$0xf] %v3347
  %3412 = vst [vmem:[%s4 + $0x70] sm:$0xf] %v3348
  %3413 = vst [vmem:[%s4 + $0x74] sm:$0xf] %v3349
  %3414 = vst [vmem:[%s4 + $0x78] sm:$0xf] %v3350
  %3415 = vst [vmem:[%s4 + $0x7c] sm:$0xf] %v3351
  %v3416 = vmax.f32 %v3032, %v3064
  %v3417 = vmax.f32 %v3033, %v3065
  %v3418 = vmax.f32 %v3034, %v3066
  %v3419 = vmax.f32 %v3035, %v3067
  %v3420 = vmax.f32 %v3036, %v3068
  %v3421 = vmax.f32 %v3037, %v3069
  %v3422 = vmax.f32 %v3038, %v3070
  %v3423 = vmax.f32 %v3039, %v3071
  %v3424 = vmax.f32 %v3040, %v3072
  %v3425 = vmax.f32 %v3041, %v3073
  %v3426 = vmax.f32 %v3042, %v3074
  %v3427 = vmax.f32 %v3043, %v3075
  %v3428 = vmax.f32 %v3044, %v3076
  %v3429 = vmax.f32 %v3045, %v3077
  %v3430 = vmax.f32 %v3046, %v3078
  %v3431 = vmax.f32 %v3047, %v3079
  %v3432 = vmax.f32 %v3048, %v3080
  %v3433 = vmax.f32 %v3049, %v3081
  %v3434 = vmax.f32 %v3050, %v3082
  %v3435 = vmax.f32 %v3051, %v3083
  %v3436 = vmax.f32 %v3052, %v3084
  %v3437 = vmax.f32 %v3053, %v3085
  %v3438 = vmax.f32 %v3054, %v3086
  %v3439 = vmax.f32 %v3055, %v3087
  %v3440 = vmax.f32 %v3056, %v3088
  %v3441 = vmax.f32 %v3057, %v3089
  %v3442 = vmax.f32 %v3058, %v3090
  %v3443 = vmax.f32 %v3059, %v3091
  %v3444 = vmax.f32 %v3060, %v3092
  %v3445 = vmax.f32 %v3061, %v3093
  %v3446 = vmax.f32 %v3062, %v3094
  %v3447 = vmax.f32 %v3063, %v3095
  %v3448 = vmax.f32 %v3096, %v3128
  %v3449 = vmax.f32 %v3097, %v3129
  %v3450 = vmax.f32 %v3098, %v3130
  %v3451 = vmax.f32 %v3099, %v3131
  %v3452 = vmax.f32 %v3100, %v3132
  %v3453 = vmax.f32 %v3101, %v3133
  %v3454 = vmax.f32 %v3102, %v3134
  %v3455 = vmax.f32 %v3103, %v3135
  %v3456 = vmax.f32 %v3104, %v3136
  %v3457 = vmax.f32 %v3105, %v3137
  %v3458 = vmax.f32 %v3106, %v3138
  %v3459 = vmax.f32 %v3107, %v3139
  %v3460 = vmax.f32 %v3108, %v3140
  %v3461 = vmax.f32 %v3109, %v3141
  %v3462 = vmax.f32 %v3110, %v3142
  %v3463 = vmax.f32 %v3111, %v3143
  %v3464 = vmax.f32 %v3112, %v3144
  %v3465 = vmax.f32 %v3113, %v3145
  %v3466 = vmax.f32 %v3114, %v3146
  %v3467 = vmax.f32 %v3115, %v3147
  %v3468 = vmax.f32 %v3116, %v3148
  %v3469 = vmax.f32 %v3117, %v3149
  %v3470 = vmax.f32 %v3118, %v3150
  %v3471 = vmax.f32 %v3119, %v3151
  %v3472 = vmax.f32 %v3120, %v3152
  %v3473 = vmax.f32 %v3121, %v3153
  %v3474 = vmax.f32 %v3122, %v3154
  %v3475 = vmax.f32 %v3123, %v3155
  %v3476 = vmax.f32 %v3124, %v3156
  %v3477 = vmax.f32 %v3125, %v3157
  %v3478 = vmax.f32 %v3126, %v3158
  %v3479 = vmax.f32 %v3127, %v3159
  %v3480 = vmax.f32 %v3416, %v3448
  %v3481 = vmax.f32 %v3417, %v3449
  %v3482 = vmax.f32 %v3418, %v3450
  %v3483 = vmax.f32 %v3419, %v3451
  %v3484 = vmax.f32 %v3420, %v3452
  %v3485 = vmax.f32 %v3421, %v3453
  %v3486 = vmax.f32 %v3422, %v3454
  %v3487 = vmax.f32 %v3423, %v3455
  %v3488 = vmax.f32 %v3424, %v3456
  %v3489 = vmax.f32 %v3425, %v3457
  %v3490 = vmax.f32 %v3426, %v3458
  %v3491 = vmax.f32 %v3427, %v3459
  %v3492 = vmax.f32 %v3428, %v3460
  %v3493 = vmax.f32 %v3429, %v3461
  %v3494 = vmax.f32 %v3430, %v3462
  %v3495 = vmax.f32 %v3431, %v3463
  %v3496 = vmax.f32 %v3432, %v3464
  %v3497 = vmax.f32 %v3433, %v3465
  %v3498 = vmax.f32 %v3434, %v3466
  %v3499 = vmax.f32 %v3435, %v3467
  %v3500 = vmax.f32 %v3436, %v3468
  %v3501 = vmax.f32 %v3437, %v3469
  %v3502 = vmax.f32 %v3438, %v3470
  %v3503 = vmax.f32 %v3439, %v3471
  %v3504 = vmax.f32 %v3440, %v3472
  %v3505 = vmax.f32 %v3441, %v3473
  %v3506 = vmax.f32 %v3442, %v3474
  %v3507 = vmax.f32 %v3443, %v3475
  %v3508 = vmax.f32 %v3444, %v3476
  %v3509 = vmax.f32 %v3445, %v3477
  %v3510 = vmax.f32 %v3446, %v3478
  %v3511 = vmax.f32 %v3447, %v3479
  %v3512 = vpack.c.bf16 %v3481, %v3480
  %v3513 = vpack.c.bf16 %v3483, %v3482
  %v3514 = vpack.c.bf16 %v3485, %v3484
  %v3515 = vpack.c.bf16 %v3487, %v3486
  %v3516 = vpack.c.bf16 %v3489, %v3488
  %v3517 = vpack.c.bf16 %v3491, %v3490
  %v3518 = vpack.c.bf16 %v3493, %v3492
  %v3519 = vpack.c.bf16 %v3495, %v3494
  %v3520 = vpack.c.bf16 %v3497, %v3496
  %v3521 = vpack.c.bf16 %v3499, %v3498
  %v3522 = vpack.c.bf16 %v3501, %v3500
  %v3523 = vpack.c.bf16 %v3503, %v3502
  %v3524 = vpack.c.bf16 %v3505, %v3504
  %v3525 = vpack.c.bf16 %v3507, %v3506
  %v3526 = vpack.c.bf16 %v3509, %v3508
  %v3527 = vpack.c.bf16 %v3511, %v3510
  %v3544 = vunpack.c.l.b16 %v3512
  %v3545 = vunpack.c.h.b16 %v3512
  %v3546 = vunpack.c.l.b16 %v3513
  %v3547 = vunpack.c.h.b16 %v3513
  %v3548 = vunpack.c.l.b16 %v3514
  %v3549 = vunpack.c.h.b16 %v3514
  %v3550 = vunpack.c.l.b16 %v3515
  %v3551 = vunpack.c.h.b16 %v3515
  %v3552 = vunpack.c.l.b16 %v3516
  %v3553 = vunpack.c.h.b16 %v3516
  %v3554 = vunpack.c.l.b16 %v3517
  %v3555 = vunpack.c.h.b16 %v3517
  %v3556 = vunpack.c.l.b16 %v3518
  %v3557 = vunpack.c.h.b16 %v3518
  %v3558 = vunpack.c.l.b16 %v3519
  %v3559 = vunpack.c.h.b16 %v3519
  %v3560 = vunpack.c.l.b16 %v3520
  %v3561 = vunpack.c.h.b16 %v3520
  %v3562 = vunpack.c.l.b16 %v3521
  %v3563 = vunpack.c.h.b16 %v3521
  %v3564 = vunpack.c.l.b16 %v3522
  %v3565 = vunpack.c.h.b16 %v3522
  %v3566 = vunpack.c.l.b16 %v3523
  %v3567 = vunpack.c.h.b16 %v3523
  %v3568 = vunpack.c.l.b16 %v3524
  %v3569 = vunpack.c.h.b16 %v3524
  %v3570 = vunpack.c.l.b16 %v3525
  %v3571 = vunpack.c.h.b16 %v3525
  %v3572 = vunpack.c.l.b16 %v3526
  %v3573 = vunpack.c.h.b16 %v3526
  %v3574 = vunpack.c.l.b16 %v3527
  %v3575 = vunpack.c.h.b16 %v3527
  %v3576 = vpack.c.b16 %v3544, %v3544
  %v3577 = vpack.c.b16 %v3545, %v3545
  %v3578 = vpack.c.b16 %v3546, %v3546
  %v3579 = vpack.c.b16 %v3547, %v3547
  %v3580 = vpack.c.b16 %v3548, %v3548
  %v3581 = vpack.c.b16 %v3549, %v3549
  %v3582 = vpack.c.b16 %v3550, %v3550
  %v3583 = vpack.c.b16 %v3551, %v3551
  %v3584 = vpack.c.b16 %v3552, %v3552
  %v3585 = vpack.c.b16 %v3553, %v3553
  %v3586 = vpack.c.b16 %v3554, %v3554
  %v3587 = vpack.c.b16 %v3555, %v3555
  %v3588 = vpack.c.b16 %v3556, %v3556
  %v3589 = vpack.c.b16 %v3557, %v3557
  %v3590 = vpack.c.b16 %v3558, %v3558
  %v3591 = vpack.c.b16 %v3559, %v3559
  %v3592 = vpack.c.b16 %v3560, %v3560
  %v3593 = vpack.c.b16 %v3561, %v3561
  %v3594 = vpack.c.b16 %v3562, %v3562
  %v3595 = vpack.c.b16 %v3563, %v3563
  %v3596 = vpack.c.b16 %v3564, %v3564
  %v3597 = vpack.c.b16 %v3565, %v3565
  %v3598 = vpack.c.b16 %v3566, %v3566
  %v3599 = vpack.c.b16 %v3567, %v3567
  %v3600 = vpack.c.b16 %v3568, %v3568
  %v3601 = vpack.c.b16 %v3569, %v3569
  %v3602 = vpack.c.b16 %v3570, %v3570
  %v3603 = vpack.c.b16 %v3571, %v3571
  %v3604 = vpack.c.b16 %v3572, %v3572
  %v3605 = vpack.c.b16 %v3573, %v3573
  %v3606 = vpack.c.b16 %v3574, %v3574
  %v3607 = vpack.c.b16 %v3575, %v3575
  %3640 = vst [vmem:[%s4 + $0x80] sm:$0xf] %v3576
  %3641 = vst [vmem:[%s4 + $0x84] sm:$0xf] %v3577
  %3642 = vst [vmem:[%s4 + $0x88] sm:$0xf] %v3578
  %3643 = vst [vmem:[%s4 + $0x8c] sm:$0xf] %v3579
  %3644 = vst [vmem:[%s4 + $0x90] sm:$0xf] %v3580
  %3645 = vst [vmem:[%s4 + $0x94] sm:$0xf] %v3581
  %3646 = vst [vmem:[%s4 + $0x98] sm:$0xf] %v3582
  %3647 = vst [vmem:[%s4 + $0x9c] sm:$0xf] %v3583
  %3648 = vst [vmem:[%s4 + $0xa0] sm:$0xf] %v3584
  %3649 = vst [vmem:[%s4 + $0xa4] sm:$0xf] %v3585
  %3650 = vst [vmem:[%s4 + $0xa8] sm:$0xf] %v3586
  %3651 = vst [vmem:[%s4 + $0xac] sm:$0xf] %v3587
  %3652 = vst [vmem:[%s4 + $0xb0] sm:$0xf] %v3588
  %3653 = vst [vmem:[%s4 + $0xb4] sm:$0xf] %v3589
  %3654 = vst [vmem:[%s4 + $0xb8] sm:$0xf] %v3590
  %3655 = vst [vmem:[%s4 + $0xbc] sm:$0xf] %v3591
  %3656 = vst [vmem:[%s4 + $0xc0] sm:$0xf] %v3592
  %3657 = vst [vmem:[%s4 + $0xc4] sm:$0xf] %v3593
  %3658 = vst [vmem:[%s4 + $0xc8] sm:$0xf] %v3594
  %3659 = vst [vmem:[%s4 + $0xcc] sm:$0xf] %v3595
  %3660 = vst [vmem:[%s4 + $0xd0] sm:$0xf] %v3596
  %3661 = vst [vmem:[%s4 + $0xd4] sm:$0xf] %v3597
  %3662 = vst [vmem:[%s4 + $0xd8] sm:$0xf] %v3598
  %3663 = vst [vmem:[%s4 + $0xdc] sm:$0xf] %v3599
  %3664 = vst [vmem:[%s4 + $0xe0] sm:$0xf] %v3600
  %3665 = vst [vmem:[%s4 + $0xe4] sm:$0xf] %v3601
  %3666 = vst [vmem:[%s4 + $0xe8] sm:$0xf] %v3602
  %3667 = vst [vmem:[%s4 + $0xec] sm:$0xf] %v3603
  %3668 = vst [vmem:[%s4 + $0xf0] sm:$0xf] %v3604
  %3669 = vst [vmem:[%s4 + $0xf4] sm:$0xf] %v3605
  %3670 = vst [vmem:[%s4 + $0xf8] sm:$0xf] %v3606
  %3671 = vst [vmem:[%s4 + $0xfc] sm:$0xf] %v3607
  // Predicated region
  $region18: #{vgg_forward.5} parent=0 // pred_check
    _
  $region19: #{vgg_forward.5} parent=0 // pred_check_branch
    %3673 = sbr.rel (0) target = $region21
  $region20: #{vgg_forward.5} parent=0 // pred_region
    _
  $region21: #{vgg_forward.5} parent=0 // pred_fallthru
    _
  // Predicated region
  $region22: #{vgg_forward.5} parent=0 // pred_check
    _
  $region23: #{vgg_forward.5} parent=0 // pred_check_branch
    %3675 = sbr.rel (0) target = $region25
  $region24: #{vgg_forward.5} parent=0 // pred_region
    _
  $region25: #{vgg_forward.5} parent=0 // pred_fallthru
    _

// kernel: vgg_forward.6
$region0: #{vgg_forward.6}
  #allocation0 [shape = 'u32[]', space=smem, size = 0x4, offset = 0x4, fixed_abs, tag = 'smem constant byte address 0x4 - core index']
  #allocation1 [shape = 'u32[144,128]{1,0:T(1,128)}', space=vmem, size = 0x12000, scoped, tag = 'internal scratch']
  %s0 = inlined_call_operand.vmem [shape: bf16[512,576], index: 0, kind: input, shape index: {}]
  %s1 = inlined_call_operand.vmem [shape: bf16[576,128], index: 1, kind: input, shape index: {}]
  %s2 = inlined_call_operand.vmem [shape: f32[1,128], index: 2, kind: input, shape index: {}]
  %s3 = inlined_call_operand.vmem [shape: f32[1,128], index: 3, kind: input, shape index: {}]
  %s4 = inlined_call_operand.vmem [shape: bf16[128,128], index: 4, kind: output, shape index: {}]
  %s5 = sld [smem:[#allocation0]]
  $region26: #{vgg_forward.6} parent=0
    _
  %s7 = ssub.s32 1, %s5
  %s8 = scalar_select 0, %s7, %s5
  // Predicated region
  $region2: #{vgg_forward.6} parent=0 // pred_check
    _
  $region3: #{vgg_forward.6} parent=0 // pred_check_branch
    %10 = sbr.rel (0) target = $region5
  $region4: #{vgg_forward.6} parent=0 // pred_region
    _
  $region5: #{vgg_forward.6} parent=0 // pred_fallthru
    _
  // Predicated region
  $region6: #{vgg_forward.6} parent=0 // pred_check
    _
  $region7: #{vgg_forward.6} parent=0 // pred_check_branch
    %12 = sbr.rel (0) target = $region9
  $region8: #{vgg_forward.6} parent=0 // pred_region
    _
  $region9: #{vgg_forward.6} parent=0 // pred_fallthru
    _
  // Predicated region
  $region10: #{vgg_forward.6} parent=0 // pred_check
    _
  $region11: #{vgg_forward.6} parent=0 // pred_check_branch
    %14 = sbr.rel (0) target = $region13
  $region12: #{vgg_forward.6} parent=0 // pred_region
    _
  $region13: #{vgg_forward.6} parent=0 // pred_fallthru
    _
  // Predicated region
  $region14: #{vgg_forward.6} parent=0 // pred_check
    _
  $region15: #{vgg_forward.6} parent=0 // pred_check_branch
    %16 = sbr.rel (0) target = $region17
  $region16: #{vgg_forward.6} parent=0 // pred_region
    _
  $region17: #{vgg_forward.6} parent=0 // pred_fallthru
    _
  %v18 = vld [vmem:[%s0] sm:$0xff]
  %v19 = vld [vmem:[%s0 + $0x8] sm:$0xff]
  %v20 = vld [vmem:[%s0 + $0x10] sm:$0xf]
  %v21 = vld [vmem:[%s0 + $0x14] sm:$0xff]
  %v22 = vld [vmem:[%s0 + $0x1c] sm:$0xff]
  %v23 = vld [vmem:[%s0 + $0x24] sm:$0xf]
  %v24 = vld [vmem:[%s0 + $0x28] sm:$0xff]
  %v25 = vld [vmem:[%s0 + $0x30] sm:$0xff]
  %v26 = vld [vmem:[%s0 + $0x38] sm:$0xf]
  %v27 = vld [vmem:[%s0 + $0x3c] sm:$0xff]
  %v28 = vld [vmem:[%s0 + $0x44] sm:$0xff]
  %v29 = vld [vmem:[%s0 + $0x4c] sm:$0xf]
  %v30 = vld [vmem:[%s0 + $0x50] sm:$0xff]
  %v31 = vld [vmem:[%s0 + $0x58] sm:$0xff]
  %v32 = vld [vmem:[%s0 + $0x60] sm:$0xf]
  %v33 = vld [vmem:[%s0 + $0x64] sm:$0xff]
  %v34 = vld [vmem:[%s0 + $0x6c] sm:$0xff]
  %v35 = vld [vmem:[%s0 + $0x74] sm:$0xf]
  %v36 = vld [vmem:[%s0 + $0x78] sm:$0xff]
  %v37 = vld [vmem:[%s0 + $0x80] sm:$0xff]
  %v38 = vld [vmem:[%s0 + $0x88] sm:$0xf]
  %v39 = vld [vmem:[%s0 + $0x8c] sm:$0xff]
  %v40 = vld [vmem:[%s0 + $0x94] sm:$0xff]
  %v41 = vld [vmem:[%s0 + $0x9c] sm:$0xf]
  %v42 = vld [vmem:[%s0 + $0xa0] sm:$0xff]
  %v43 = vld [vmem:[%s0 + $0xa8] sm:$0xff]
  %v44 = vld [vmem:[%s0 + $0xb0] sm:$0xf]
  %v45 = vld [vmem:[%s0 + $0xb4] sm:$0xff]
  %v46 = vld [vmem:[%s0 + $0xbc] sm:$0xff]
  %v47 = vld [vmem:[%s0 + $0xc4] sm:$0xf]
  %v48 = vld [vmem:[%s0 + $0xc8] sm:$0xff]
  %v49 = vld [vmem:[%s0 + $0xd0] sm:$0xff]
  %v50 = vld [vmem:[%s0 + $0xd8] sm:$0xf]
  %v51 = vld [vmem:[%s0 + $0xdc] sm:$0xff]
  %v52 = vld [vmem:[%s0 + $0xe4] sm:$0xff]
  %v53 = vld [vmem:[%s0 + $0xec] sm:$0xf]
  %v54 = vld [vmem:[%s0 + $0xf0] sm:$0xff]
  %v55 = vld [vmem:[%s0 + $0xf8] sm:$0xff]
  %v56 = vld [vmem:[%s0 + $0x100] sm:$0xf]
  %v57 = vld [vmem:[%s0 + $0x104] sm:$0xff]
  %v58 = vld [vmem:[%s0 + $0x10c] sm:$0xff]
  %v59 = vld [vmem:[%s0 + $0x114] sm:$0xf]
  %v60 = vld [vmem:[%s0 + $0x118] sm:$0xff]
  %v61 = vld [vmem:[%s0 + $0x120] sm:$0xff]
  %v62 = vld [vmem:[%s0 + $0x128] sm:$0xf]
  %v63 = vld [vmem:[%s0 + $0x12c] sm:$0xff]
  %v64 = vld [vmem:[%s0 + $0x134] sm:$0xff]
  %v65 = vld [vmem:[%s0 + $0x13c] sm:$0xf]
  %v66 = vld [vmem:[%s0 + $0x140] sm:$0xff]
  %v67 = vld [vmem:[%s0 + $0x148] sm:$0xff]
  %v68 = vld [vmem:[%s0 + $0x150] sm:$0xf]
  %v69 = vld [vmem:[%s0 + $0x154] sm:$0xff]
  %v70 = vld [vmem:[%s0 + $0x15c] sm:$0xff]
  %v71 = vld [vmem:[%s0 + $0x164] sm:$0xf]
  %v72 = vld [vmem:[%s0 + $0x168] sm:$0xff]
  %v73 = vld [vmem:[%s0 + $0x170] sm:$0xff]
  %v74 = vld [vmem:[%s0 + $0x178] sm:$0xf]
  %v75 = vld [vmem:[%s0 + $0x17c] sm:$0xff]
  %v76 = vld [vmem:[%s0 + $0x184] sm:$0xff]
  %v77 = vld [vmem:[%s0 + $0x18c] sm:$0xf]
  %v78 = vld [vmem:[%s0 + $0x190] sm:$0xff]
  %v79 = vld [vmem:[%s0 + $0x198] sm:$0xff]
  %v80 = vld [vmem:[%s0 + $0x1a0] sm:$0xf]
  %v81 = vld [vmem:[%s0 + $0x1a4] sm:$0xff]
  %v82 = vld [vmem:[%s0 + $0x1ac] sm:$0xff]
  %v83 = vld [vmem:[%s0 + $0x1b4] sm:$0xf]
  %v84 = vld [vmem:[%s0 + $0x1b8] sm:$0xff]
  %v85 = vld [vmem:[%s0 + $0x1c0] sm:$0xff]
  %v86 = vld [vmem:[%s0 + $0x1c8] sm:$0xf]
  %v87 = vld [vmem:[%s0 + $0x1cc] sm:$0xff]
  %v88 = vld [vmem:[%s0 + $0x1d4] sm:$0xff]
  %v89 = vld [vmem:[%s0 + $0x1dc] sm:$0xf]
  %v90 = vld [vmem:[%s0 + $0x1e0] sm:$0xff]
  %v91 = vld [vmem:[%s0 + $0x1e8] sm:$0xff]
  %v92 = vld [vmem:[%s0 + $0x1f0] sm:$0xf]
  %v93 = vld [vmem:[%s0 + $0x1f4] sm:$0xff]
  %v94 = vld [vmem:[%s0 + $0x1fc] sm:$0xff]
  %v95 = vld [vmem:[%s0 + $0x204] sm:$0xf]
  %v96 = vld [vmem:[%s0 + $0x208] sm:$0xff]
  %v97 = vld [vmem:[%s0 + $0x210] sm:$0xff]
  %v98 = vld [vmem:[%s0 + $0x218] sm:$0xf]
  %v99 = vld [vmem:[%s0 + $0x21c] sm:$0xff]
  %v100 = vld [vmem:[%s0 + $0x224] sm:$0xff]
  %v101 = vld [vmem:[%s0 + $0x22c] sm:$0xf]
  %v102 = vld [vmem:[%s0 + $0x230] sm:$0xff]
  %v103 = vld [vmem:[%s0 + $0x238] sm:$0xff]
  %v104 = vld [vmem:[%s0 + $0x240] sm:$0xf]
  %v105 = vld [vmem:[%s0 + $0x244] sm:$0xff]
  %v106 = vld [vmem:[%s0 + $0x24c] sm:$0xff]
  %v107 = vld [vmem:[%s0 + $0x254] sm:$0xf]
  %v108 = vld [vmem:[%s0 + $0x258] sm:$0xff]
  %v109 = vld [vmem:[%s0 + $0x260] sm:$0xff]
  %v110 = vld [vmem:[%s0 + $0x268] sm:$0xf]
  %v111 = vld [vmem:[%s0 + $0x26c] sm:$0xff]
  %v112 = vld [vmem:[%s0 + $0x274] sm:$0xff]
  %v113 = vld [vmem:[%s0 + $0x27c] sm:$0xf]
  %v114 = vld [vmem:[%s0 + $0x280] sm:$0xff]
  %v115 = vld [vmem:[%s0 + $0x288] sm:$0xff]
  %v116 = vld [vmem:[%s0 + $0x290] sm:$0xf]
  %v117 = vld [vmem:[%s0 + $0x294] sm:$0xff]
  %v118 = vld [vmem:[%s0 + $0x29c] sm:$0xff]
  %v119 = vld [vmem:[%s0 + $0x2a4] sm:$0xf]
  %v120 = vld [vmem:[%s0 + $0x2a8] sm:$0xff]
  %v121 = vld [vmem:[%s0 + $0x2b0] sm:$0xff]
  %v122 = vld [vmem:[%s0 + $0x2b8] sm:$0xf]
  %v123 = vld [vmem:[%s0 + $0x2bc] sm:$0xff]
  %v124 = vld [vmem:[%s0 + $0x2c4] sm:$0xff]
  %v125 = vld [vmem:[%s0 + $0x2cc] sm:$0xf]
  %v126 = vld [vmem:[%s0 + $0x2d0] sm:$0xff]
  %v127 = vld [vmem:[%s0 + $0x2d8] sm:$0xff]
  %v128 = vld [vmem:[%s0 + $0x2e0] sm:$0xf]
  %v129 = vld [vmem:[%s0 + $0x2e4] sm:$0xff]
  %v130 = vld [vmem:[%s0 + $0x2ec] sm:$0xff]
  %v131 = vld [vmem:[%s0 + $0x2f4] sm:$0xf]
  %v132 = vld [vmem:[%s0 + $0x2f8] sm:$0xff]
  %v133 = vld [vmem:[%s0 + $0x300] sm:$0xff]
  %v134 = vld [vmem:[%s0 + $0x308] sm:$0xf]
  %v135 = vld [vmem:[%s0 + $0x30c] sm:$0xff]
  %v136 = vld [vmem:[%s0 + $0x314] sm:$0xff]
  %v137 = vld [vmem:[%s0 + $0x31c] sm:$0xf]
  %v138 = vld [vmem:[%s0 + $0x320] sm:$0xff]
  %v139 = vld [vmem:[%s0 + $0x328] sm:$0xff]
  %v140 = vld [vmem:[%s0 + $0x330] sm:$0xf]
  %v141 = vld [vmem:[%s0 + $0x334] sm:$0xff]
  %v142 = vld [vmem:[%s0 + $0x33c] sm:$0xff]
  %v143 = vld [vmem:[%s0 + $0x344] sm:$0xf]
  %v144 = vld [vmem:[%s0 + $0x348] sm:$0xff]
  %v145 = vld [vmem:[%s0 + $0x350] sm:$0xff]
  %v146 = vld [vmem:[%s0 + $0x358] sm:$0xf]
  %v147 = vld [vmem:[%s0 + $0x35c] sm:$0xff]
  %v148 = vld [vmem:[%s0 + $0x364] sm:$0xff]
  %v149 = vld [vmem:[%s0 + $0x36c] sm:$0xf]
  %v150 = vld [vmem:[%s0 + $0x370] sm:$0xff]
  %v151 = vld [vmem:[%s0 + $0x378] sm:$0xff]
  %v152 = vld [vmem:[%s0 + $0x380] sm:$0xf]
  %v153 = vld [vmem:[%s0 + $0x384] sm:$0xff]
  %v154 = vld [vmem:[%s0 + $0x38c] sm:$0xff]
  %v155 = vld [vmem:[%s0 + $0x394] sm:$0xf]
  %v156 = vld [vmem:[%s0 + $0x398] sm:$0xff]
  %v157 = vld [vmem:[%s0 + $0x3a0] sm:$0xff]
  %v158 = vld [vmem:[%s0 + $0x3a8] sm:$0xf]
  %v159 = vld [vmem:[%s0 + $0x3ac] sm:$0xff]
  %v160 = vld [vmem:[%s0 + $0x3b4] sm:$0xff]
  %v161 = vld [vmem:[%s0 + $0x3bc] sm:$0xf]
  %v162 = vld [vmem:[%s0 + $0x3c0] sm:$0xff]
  %v163 = vld [vmem:[%s0 + $0x3c8] sm:$0xff]
  %v164 = vld [vmem:[%s0 + $0x3d0] sm:$0xf]
  %v165 = vld [vmem:[%s0 + $0x3d4] sm:$0xff]
  %v166 = vld [vmem:[%s0 + $0x3dc] sm:$0xff]
  %v167 = vld [vmem:[%s0 + $0x3e4] sm:$0xf]
  %v168 = vld [vmem:[%s0 + $0x3e8] sm:$0xff]
  %v169 = vld [vmem:[%s0 + $0x3f0] sm:$0xff]
  %v170 = vld [vmem:[%s0 + $0x3f8] sm:$0xf]
  %v171 = vld [vmem:[%s0 + $0x3fc] sm:$0xff]
  %v172 = vld [vmem:[%s0 + $0x404] sm:$0xff]
  %v173 = vld [vmem:[%s0 + $0x40c] sm:$0xf]
  %v174 = vld [vmem:[%s0 + $0x410] sm:$0xff]
  %v175 = vld [vmem:[%s0 + $0x418] sm:$0xff]
  %v176 = vld [vmem:[%s0 + $0x420] sm:$0xf]
  %v177 = vld [vmem:[%s0 + $0x424] sm:$0xff]
  %v178 = vld [vmem:[%s0 + $0x42c] sm:$0xff]
  %v179 = vld [vmem:[%s0 + $0x434] sm:$0xf]
  %v180 = vld [vmem:[%s0 + $0x438] sm:$0xff]
  %v181 = vld [vmem:[%s0 + $0x440] sm:$0xff]
  %v182 = vld [vmem:[%s0 + $0x448] sm:$0xf]
  %v183 = vld [vmem:[%s0 + $0x44c] sm:$0xff]
  %v184 = vld [vmem:[%s0 + $0x454] sm:$0xff]
  %v185 = vld [vmem:[%s0 + $0x45c] sm:$0xf]
  %v186 = vld [vmem:[%s0 + $0x460] sm:$0xff]
  %v187 = vld [vmem:[%s0 + $0x468] sm:$0xff]
  %v188 = vld [vmem:[%s0 + $0x470] sm:$0xf]
  %v189 = vld [vmem:[%s0 + $0x474] sm:$0xff]
  %v190 = vld [vmem:[%s0 + $0x47c] sm:$0xff]
  %v191 = vld [vmem:[%s0 + $0x484] sm:$0xf]
  %v192 = vld [vmem:[%s0 + $0x488] sm:$0xff]
  %v193 = vld [vmem:[%s0 + $0x490] sm:$0xff]
  %v194 = vld [vmem:[%s0 + $0x498] sm:$0xf]
  %v195 = vld [vmem:[%s0 + $0x49c] sm:$0xff]
  %v196 = vld [vmem:[%s0 + $0x4a4] sm:$0xff]
  %v197 = vld [vmem:[%s0 + $0x4ac] sm:$0xf]
  %v198 = vld [vmem:[%s0 + $0x4b0] sm:$0xff]
  %v199 = vld [vmem:[%s0 + $0x4b8] sm:$0xff]
  %v200 = vld [vmem:[%s0 + $0x4c0] sm:$0xf]
  %v201 = vld [vmem:[%s0 + $0x4c4] sm:$0xff]
  %v202 = vld [vmem:[%s0 + $0x4cc] sm:$0xff]
  %v203 = vld [vmem:[%s0 + $0x4d4] sm:$0xf]
  %v204 = vld [vmem:[%s0 + $0x4d8] sm:$0xff]
  %v205 = vld [vmem:[%s0 + $0x4e0] sm:$0xff]
  %v206 = vld [vmem:[%s0 + $0x4e8] sm:$0xf]
  %v207 = vld [vmem:[%s0 + $0x4ec] sm:$0xff]
  %v208 = vld [vmem:[%s0 + $0x4f4] sm:$0xff]
  %v209 = vld [vmem:[%s0 + $0x4fc] sm:$0xf]
  %v210 = vld [vmem:[%s1] sm:$0xf]
  %v211 = vld [vmem:[%s1 + $0x4] sm:$0xf]
  %v212 = vld [vmem:[%s1 + $0x8] sm:$0xf]
  %v213 = vld [vmem:[%s1 + $0xc] sm:$0xf]
  %v214 = vld [vmem:[%s1 + $0x10] sm:$0xf]
  %v215 = vld [vmem:[%s1 + $0x14] sm:$0xf]
  %v216 = vld [vmem:[%s1 + $0x18] sm:$0xf]
  %v217 = vld [vmem:[%s1 + $0x1c] sm:$0xf]
  %v218 = vld [vmem:[%s1 + $0x20] sm:$0xf]
  %v219 = vld [vmem:[%s1 + $0x24] sm:$0xf]
  %v220 = vld [vmem:[%s1 + $0x28] sm:$0xf]
  %v221 = vld [vmem:[%s1 + $0x2c] sm:$0xf]
  %v222 = vld [vmem:[%s1 + $0x30] sm:$0xf]
  %v223 = vld [vmem:[%s1 + $0x34] sm:$0xf]
  %v224 = vld [vmem:[%s1 + $0x38] sm:$0xf]
  %v225 = vld [vmem:[%s1 + $0x3c] sm:$0xf]
  %v226 = vld [vmem:[%s1 + $0x40] sm:$0xf]
  %v227 = vld [vmem:[%s1 + $0x44] sm:$0xf]
  %v228 = vld [vmem:[%s1 + $0x48] sm:$0xf]
  %v229 = vld [vmem:[%s1 + $0x4c] sm:$0xf]
  %v230 = vld [vmem:[%s1 + $0x50] sm:$0xf]
  %v231 = vld [vmem:[%s1 + $0x54] sm:$0xf]
  %v232 = vld [vmem:[%s1 + $0x58] sm:$0xf]
  %v233 = vld [vmem:[%s1 + $0x5c] sm:$0xf]
  %v234 = vld [vmem:[%s1 + $0x60] sm:$0xf]
  %v235 = vld [vmem:[%s1 + $0x64] sm:$0xf]
  %v236 = vld [vmem:[%s1 + $0x68] sm:$0xf]
  %v237 = vld [vmem:[%s1 + $0x6c] sm:$0xf]
  %v238 = vld [vmem:[%s1 + $0x70] sm:$0xf]
  %v239 = vld [vmem:[%s1 + $0x74] sm:$0xf]
  %v240 = vld [vmem:[%s1 + $0x78] sm:$0xf]
  %v241 = vld [vmem:[%s1 + $0x7c] sm:$0xf]
  %v242 = vld [vmem:[%s1 + $0x80] sm:$0xf]
  %v243 = vld [vmem:[%s1 + $0x84] sm:$0xf]
  %v244 = vld [vmem:[%s1 + $0x88] sm:$0xf]
  %v245 = vld [vmem:[%s1 + $0x8c] sm:$0xf]
  %v246 = vld [vmem:[%s1 + $0x90] sm:$0xf]
  %v247 = vld [vmem:[%s1 + $0x94] sm:$0xf]
  %v248 = vld [vmem:[%s1 + $0x98] sm:$0xf]
  %v249 = vld [vmem:[%s1 + $0x9c] sm:$0xf]
  %v250 = vld [vmem:[%s1 + $0xa0] sm:$0xf]
  %v251 = vld [vmem:[%s1 + $0xa4] sm:$0xf]
  %v252 = vld [vmem:[%s1 + $0xa8] sm:$0xf]
  %v253 = vld [vmem:[%s1 + $0xac] sm:$0xf]
  %v254 = vld [vmem:[%s1 + $0xb0] sm:$0xf]
  %v255 = vld [vmem:[%s1 + $0xb4] sm:$0xf]
  %v256 = vld [vmem:[%s1 + $0xb8] sm:$0xf]
  %v257 = vld [vmem:[%s1 + $0xbc] sm:$0xf]
  %v258 = vld [vmem:[%s1 + $0xc0] sm:$0xf]
  %v259 = vld [vmem:[%s1 + $0xc4] sm:$0xf]
  %v260 = vld [vmem:[%s1 + $0xc8] sm:$0xf]
  %v261 = vld [vmem:[%s1 + $0xcc] sm:$0xf]
  %v262 = vld [vmem:[%s1 + $0xd0] sm:$0xf]
  %v263 = vld [vmem:[%s1 + $0xd4] sm:$0xf]
  %v264 = vld [vmem:[%s1 + $0xd8] sm:$0xf]
  %v265 = vld [vmem:[%s1 + $0xdc] sm:$0xf]
  %v266 = vld [vmem:[%s1 + $0xe0] sm:$0xf]
  %v267 = vld [vmem:[%s1 + $0xe4] sm:$0xf]
  %v268 = vld [vmem:[%s1 + $0xe8] sm:$0xf]
  %v269 = vld [vmem:[%s1 + $0xec] sm:$0xf]
  %v270 = vld [vmem:[%s1 + $0xf0] sm:$0xf]
  %v271 = vld [vmem:[%s1 + $0xf4] sm:$0xf]
  %v272 = vld [vmem:[%s1 + $0xf8] sm:$0xf]
  %v273 = vld [vmem:[%s1 + $0xfc] sm:$0xf]
  %v274 = vld [vmem:[%s1 + $0x100] sm:$0xf]
  %v275 = vld [vmem:[%s1 + $0x104] sm:$0xf]
  %v276 = vld [vmem:[%s1 + $0x108] sm:$0xf]
  %v277 = vld [vmem:[%s1 + $0x10c] sm:$0xf]
  %v278 = vld [vmem:[%s1 + $0x110] sm:$0xf]
  %v279 = vld [vmem:[%s1 + $0x114] sm:$0xf]
  %v280 = vld [vmem:[%s1 + $0x118] sm:$0xf]
  %v281 = vld [vmem:[%s1 + $0x11c] sm:$0xf]
  %v474 = vunpack.c.l.b16 %v18
  %v475 = vunpack.c.h.b16 %v18
  %v476 = vunpack.c.l.b16 %v19
  %v477 = vunpack.c.h.b16 %v19
  %v478 = vunpack.c.l.b16 %v20
  %v479 = vunpack.c.l.b16 %v21
  %v480 = vunpack.c.h.b16 %v21
  %v481 = vunpack.c.l.b16 %v22
  %v482 = vunpack.c.h.b16 %v22
  %v483 = vunpack.c.l.b16 %v23
  %v484 = vunpack.c.l.b16 %v24
  %v485 = vunpack.c.h.b16 %v24
  %v486 = vunpack.c.l.b16 %v25
  %v487 = vunpack.c.h.b16 %v25
  %v488 = vunpack.c.l.b16 %v26
  %v489 = vunpack.c.l.b16 %v27
  %v490 = vunpack.c.h.b16 %v27
  %v491 = vunpack.c.l.b16 %v28
  %v492 = vunpack.c.h.b16 %v28
  %v493 = vunpack.c.l.b16 %v29
  %v494 = vunpack.c.l.b16 %v30
  %v495 = vunpack.c.h.b16 %v30
  %v496 = vunpack.c.l.b16 %v31
  %v497 = vunpack.c.h.b16 %v31
  %v498 = vunpack.c.l.b16 %v32
  %v499 = vunpack.c.l.b16 %v33
  %v500 = vunpack.c.h.b16 %v33
  %v501 = vunpack.c.l.b16 %v34
  %v502 = vunpack.c.h.b16 %v34
  %v503 = vunpack.c.l.b16 %v35
  %v504 = vunpack.c.l.b16 %v36
  %v505 = vunpack.c.h.b16 %v36
  %v506 = vunpack.c.l.b16 %v37
  %v507 = vunpack.c.h.b16 %v37
  %v508 = vunpack.c.l.b16 %v38
  %v509 = vunpack.c.l.b16 %v39
  %v510 = vunpack.c.h.b16 %v39
  %v511 = vunpack.c.l.b16 %v40
  %v512 = vunpack.c.h.b16 %v40
  %v513 = vunpack.c.l.b16 %v41
  %v514 = vunpack.c.l.b16 %v42
  %v515 = vunpack.c.h.b16 %v42
  %v516 = vunpack.c.l.b16 %v43
  %v517 = vunpack.c.h.b16 %v43
  %v518 = vunpack.c.l.b16 %v44
  %v519 = vunpack.c.l.b16 %v45
  %v520 = vunpack.c.h.b16 %v45
  %v521 = vunpack.c.l.b16 %v46
  %v522 = vunpack.c.h.b16 %v46
  %v523 = vunpack.c.l.b16 %v47
  %v524 = vunpack.c.l.b16 %v48
  %v525 = vunpack.c.h.b16 %v48
  %v526 = vunpack.c.l.b16 %v49
  %v527 = vunpack.c.h.b16 %v49
  %v528 = vunpack.c.l.b16 %v50
  %v529 = vunpack.c.l.b16 %v51
  %v530 = vunpack.c.h.b16 %v51
  %v531 = vunpack.c.l.b16 %v52
  %v532 = vunpack.c.h.b16 %v52
  %v533 = vunpack.c.l.b16 %v53
  %v534 = vunpack.c.l.b16 %v54
  %v535 = vunpack.c.h.b16 %v54
  %v536 = vunpack.c.l.b16 %v55
  %v537 = vunpack.c.h.b16 %v55
  %v538 = vunpack.c.l.b16 %v56
  %v539 = vunpack.c.l.b16 %v57
  %v540 = vunpack.c.h.b16 %v57
  %v541 = vunpack.c.l.b16 %v58
  %v542 = vunpack.c.h.b16 %v58
  %v543 = vunpack.c.l.b16 %v59
  %v544 = vunpack.c.l.b16 %v60
  %v545 = vunpack.c.h.b16 %v60
  %v546 = vunpack.c.l.b16 %v61
  %v547 = vunpack.c.h.b16 %v61
  %v548 = vunpack.c.l.b16 %v62
  %v549 = vunpack.c.l.b16 %v63
  %v550 = vunpack.c.h.b16 %v63
  %v551 = vunpack.c.l.b16 %v64
  %v552 = vunpack.c.h.b16 %v64
  %v553 = vunpack.c.l.b16 %v65
  %v554 = vunpack.c.l.b16 %v66
  %v555 = vunpack.c.h.b16 %v66
  %v556 = vunpack.c.l.b16 %v67
  %v557 = vunpack.c.h.b16 %v67
  %v558 = vunpack.c.l.b16 %v68
  %v559 = vunpack.c.l.b16 %v69
  %v560 = vunpack.c.h.b16 %v69
  %v561 = vunpack.c.l.b16 %v70
  %v562 = vunpack.c.h.b16 %v70
  %v563 = vunpack.c.l.b16 %v71
  %v564 = vunpack.c.l.b16 %v72
  %v565 = vunpack.c.h.b16 %v72
  %v566 = vunpack.c.l.b16 %v73
  %v567 = vunpack.c.h.b16 %v73
  %v568 = vunpack.c.l.b16 %v74
  %v569 = vunpack.c.l.b16 %v75
  %v570 = vunpack.c.h.b16 %v75
  %v571 = vunpack.c.l.b16 %v76
  %v572 = vunpack.c.h.b16 %v76
  %v573 = vunpack.c.l.b16 %v77
  %v574 = vunpack.c.l.b16 %v78
  %v575 = vunpack.c.h.b16 %v78
  %v576 = vunpack.c.l.b16 %v79
  %v577 = vunpack.c.h.b16 %v79
  %v578 = vunpack.c.l.b16 %v80
  %v579 = vunpack.c.l.b16 %v81
  %v580 = vunpack.c.h.b16 %v81
  %v581 = vunpack.c.l.b16 %v82
  %v582 = vunpack.c.h.b16 %v82
  %v583 = vunpack.c.l.b16 %v83
  %v584 = vunpack.c.l.b16 %v84
  %v585 = vunpack.c.h.b16 %v84
  %v586 = vunpack.c.l.b16 %v85
  %v587 = vunpack.c.h.b16 %v85
  %v588 = vunpack.c.l.b16 %v86
  %v589 = vunpack.c.l.b16 %v87
  %v590 = vunpack.c.h.b16 %v87
  %v591 = vunpack.c.l.b16 %v88
  %v592 = vunpack.c.h.b16 %v88
  %v593 = vunpack.c.l.b16 %v89
  %v594 = vunpack.c.l.b16 %v90
  %v595 = vunpack.c.h.b16 %v90
  %v596 = vunpack.c.l.b16 %v91
  %v597 = vunpack.c.h.b16 %v91
  %v598 = vunpack.c.l.b16 %v92
  %v599 = vunpack.c.l.b16 %v93
  %v600 = vunpack.c.h.b16 %v93
  %v601 = vunpack.c.l.b16 %v94
  %v602 = vunpack.c.h.b16 %v94
  %v603 = vunpack.c.l.b16 %v95
  %v604 = vunpack.c.l.b16 %v96
  %v605 = vunpack.c.h.b16 %v96
  %v606 = vunpack.c.l.b16 %v97
  %v607 = vunpack.c.h.b16 %v97
  %v608 = vunpack.c.l.b16 %v98
  %v609 = vunpack.c.l.b16 %v99
  %v610 = vunpack.c.h.b16 %v99
  %v611 = vunpack.c.l.b16 %v100
  %v612 = vunpack.c.h.b16 %v100
  %v613 = vunpack.c.l.b16 %v101
  %v614 = vunpack.c.l.b16 %v102
  %v615 = vunpack.c.h.b16 %v102
  %v616 = vunpack.c.l.b16 %v103
  %v617 = vunpack.c.h.b16 %v103
  %v618 = vunpack.c.l.b16 %v104
  %v619 = vunpack.c.l.b16 %v105
  %v620 = vunpack.c.h.b16 %v105
  %v621 = vunpack.c.l.b16 %v106
  %v622 = vunpack.c.h.b16 %v106
  %v623 = vunpack.c.l.b16 %v107
  %v624 = vunpack.c.l.b16 %v108
  %v625 = vunpack.c.h.b16 %v108
  %v626 = vunpack.c.l.b16 %v109
  %v627 = vunpack.c.h.b16 %v109
  %v628 = vunpack.c.l.b16 %v110
  %v629 = vunpack.c.l.b16 %v111
  %v630 = vunpack.c.h.b16 %v111
  %v631 = vunpack.c.l.b16 %v112
  %v632 = vunpack.c.h.b16 %v112
  %v633 = vunpack.c.l.b16 %v113
  %v634 = vunpack.c.l.b16 %v114
  %v635 = vunpack.c.h.b16 %v114
  %v636 = vunpack.c.l.b16 %v115
  %v637 = vunpack.c.h.b16 %v115
  %v638 = vunpack.c.l.b16 %v116
  %v639 = vunpack.c.l.b16 %v117
  %v640 = vunpack.c.h.b16 %v117
  %v641 = vunpack.c.l.b16 %v118
  %v642 = vunpack.c.h.b16 %v118
  %v643 = vunpack.c.l.b16 %v119
  %v644 = vunpack.c.l.b16 %v120
  %v645 = vunpack.c.h.b16 %v120
  %v646 = vunpack.c.l.b16 %v121
  %v647 = vunpack.c.h.b16 %v121
  %v648 = vunpack.c.l.b16 %v122
  %v649 = vunpack.c.l.b16 %v123
  %v650 = vunpack.c.h.b16 %v123
  %v651 = vunpack.c.l.b16 %v124
  %v652 = vunpack.c.h.b16 %v124
  %v653 = vunpack.c.l.b16 %v125
  %v654 = vunpack.c.l.b16 %v126
  %v655 = vunpack.c.h.b16 %v126
  %v656 = vunpack.c.l.b16 %v127
  %v657 = vunpack.c.h.b16 %v127
  %v658 = vunpack.c.l.b16 %v128
  %v659 = vunpack.c.l.b16 %v129
  %v660 = vunpack.c.h.b16 %v129
  %v661 = vunpack.c.l.b16 %v130
  %v662 = vunpack.c.h.b16 %v130
  %v663 = vunpack.c.l.b16 %v131
  %v664 = vunpack.c.l.b16 %v132
  %v665 = vunpack.c.h.b16 %v132
  %v666 = vunpack.c.l.b16 %v133
  %v667 = vunpack.c.h.b16 %v133
  %v668 = vunpack.c.l.b16 %v134
  %v669 = vunpack.c.l.b16 %v135
  %v670 = vunpack.c.h.b16 %v135
  %v671 = vunpack.c.l.b16 %v136
  %v672 = vunpack.c.h.b16 %v136
  %v673 = vunpack.c.l.b16 %v137
  %v674 = vunpack.c.l.b16 %v138
  %v675 = vunpack.c.h.b16 %v138
  %v676 = vunpack.c.l.b16 %v139
  %v677 = vunpack.c.h.b16 %v139
  %v678 = vunpack.c.l.b16 %v140
  %v679 = vunpack.c.l.b16 %v141
  %v680 = vunpack.c.h.b16 %v141
  %v681 = vunpack.c.l.b16 %v142
  %v682 = vunpack.c.h.b16 %v142
  %v683 = vunpack.c.l.b16 %v143
  %v684 = vunpack.c.l.b16 %v144
  %v685 = vunpack.c.h.b16 %v144
  %v686 = vunpack.c.l.b16 %v145
  %v687 = vunpack.c.h.b16 %v145
  %v688 = vunpack.c.l.b16 %v146
  %v689 = vunpack.c.l.b16 %v147
  %v690 = vunpack.c.h.b16 %v147
  %v691 = vunpack.c.l.b16 %v148
  %v692 = vunpack.c.h.b16 %v148
  %v693 = vunpack.c.l.b16 %v149
  %v694 = vunpack.c.l.b16 %v150
  %v695 = vunpack.c.h.b16 %v150
  %v696 = vunpack.c.l.b16 %v151
  %v697 = vunpack.c.h.b16 %v151
  %v698 = vunpack.c.l.b16 %v152
  %v699 = vunpack.c.l.b16 %v153
  %v700 = vunpack.c.h.b16 %v153
  %v701 = vunpack.c.l.b16 %v154
  %v702 = vunpack.c.h.b16 %v154
  %v703 = vunpack.c.l.b16 %v155
  %v704 = vunpack.c.l.b16 %v156
  %v705 = vunpack.c.h.b16 %v156
  %v706 = vunpack.c.l.b16 %v157
  %v707 = vunpack.c.h.b16 %v157
  %v708 = vunpack.c.l.b16 %v158
  %v709 = vunpack.c.l.b16 %v159
  %v710 = vunpack.c.h.b16 %v159
  %v711 = vunpack.c.l.b16 %v160
  %v712 = vunpack.c.h.b16 %v160
  %v713 = vunpack.c.l.b16 %v161
  %v714 = vunpack.c.l.b16 %v162
  %v715 = vunpack.c.h.b16 %v162
  %v716 = vunpack.c.l.b16 %v163
  %v717 = vunpack.c.h.b16 %v163
  %v718 = vunpack.c.l.b16 %v164
  %v719 = vunpack.c.l.b16 %v165
  %v720 = vunpack.c.h.b16 %v165
  %v721 = vunpack.c.l.b16 %v166
  %v722 = vunpack.c.h.b16 %v166
  %v723 = vunpack.c.l.b16 %v167
  %v724 = vunpack.c.l.b16 %v168
  %v725 = vunpack.c.h.b16 %v168
  %v726 = vunpack.c.l.b16 %v169
  %v727 = vunpack.c.h.b16 %v169
  %v728 = vunpack.c.l.b16 %v170
  %v729 = vunpack.c.l.b16 %v171
  %v730 = vunpack.c.h.b16 %v171
  %v731 = vunpack.c.l.b16 %v172
  %v732 = vunpack.c.h.b16 %v172
  %v733 = vunpack.c.l.b16 %v173
  %v734 = vunpack.c.l.b16 %v174
  %v735 = vunpack.c.h.b16 %v174
  %v736 = vunpack.c.l.b16 %v175
  %v737 = vunpack.c.h.b16 %v175
  %v738 = vunpack.c.l.b16 %v176
  %v739 = vunpack.c.l.b16 %v177
  %v740 = vunpack.c.h.b16 %v177
  %v741 = vunpack.c.l.b16 %v178
  %v742 = vunpack.c.h.b16 %v178
  %v743 = vunpack.c.l.b16 %v179
  %v744 = vunpack.c.l.b16 %v180
  %v745 = vunpack.c.h.b16 %v180
  %v746 = vunpack.c.l.b16 %v181
  %v747 = vunpack.c.h.b16 %v181
  %v748 = vunpack.c.l.b16 %v182
  %v749 = vunpack.c.l.b16 %v183
  %v750 = vunpack.c.h.b16 %v183
  %v751 = vunpack.c.l.b16 %v184
  %v752 = vunpack.c.h.b16 %v184
  %v753 = vunpack.c.l.b16 %v185
  %v754 = vunpack.c.l.b16 %v186
  %v755 = vunpack.c.h.b16 %v186
  %v756 = vunpack.c.l.b16 %v187
  %v757 = vunpack.c.h.b16 %v187
  %v758 = vunpack.c.l.b16 %v188
  %v759 = vunpack.c.l.b16 %v189
  %v760 = vunpack.c.h.b16 %v189
  %v761 = vunpack.c.l.b16 %v190
  %v762 = vunpack.c.h.b16 %v190
  %v763 = vunpack.c.l.b16 %v191
  %v764 = vunpack.c.l.b16 %v192
  %v765 = vunpack.c.h.b16 %v192
  %v766 = vunpack.c.l.b16 %v193
  %v767 = vunpack.c.h.b16 %v193
  %v768 = vunpack.c.l.b16 %v194
  %v769 = vunpack.c.l.b16 %v195
  %v770 = vunpack.c.h.b16 %v195
  %v771 = vunpack.c.l.b16 %v196
  %v772 = vunpack.c.h.b16 %v196
  %v773 = vunpack.c.l.b16 %v197
  %v774 = vunpack.c.l.b16 %v198
  %v775 = vunpack.c.h.b16 %v198
  %v776 = vunpack.c.l.b16 %v199
  %v777 = vunpack.c.h.b16 %v199
  %v778 = vunpack.c.l.b16 %v200
  %v779 = vunpack.c.l.b16 %v201
  %v780 = vunpack.c.h.b16 %v201
  %v781 = vunpack.c.l.b16 %v202
  %v782 = vunpack.c.h.b16 %v202
  %v783 = vunpack.c.l.b16 %v203
  %v784 = vunpack.c.l.b16 %v204
  %v785 = vunpack.c.h.b16 %v204
  %v786 = vunpack.c.l.b16 %v205
  %v787 = vunpack.c.h.b16 %v205
  %v788 = vunpack.c.l.b16 %v206
  %v789 = vunpack.c.l.b16 %v207
  %v790 = vunpack.c.h.b16 %v207
  %v791 = vunpack.c.l.b16 %v208
  %v792 = vunpack.c.h.b16 %v208
  %v793 = vunpack.c.l.b16 %v209
  %v794 = vpack.c.b16 %v479, %v474
  %v795 = vpack.c.b16 %v480, %v475
  %v796 = vpack.c.b16 %v481, %v476
  %v797 = vpack.c.b16 %v482, %v477
  %v798 = vpack.c.b16 %v483, %v478
  %v799 = vpack.c.b16 %v489, %v484
  %v800 = vpack.c.b16 %v490, %v485
  %v801 = vpack.c.b16 %v491, %v486
  %v802 = vpack.c.b16 %v492, %v487
  %v803 = vpack.c.b16 %v493, %v488
  %v804 = vpack.c.b16 %v499, %v494
  %v805 = vpack.c.b16 %v500, %v495
  %v806 = vpack.c.b16 %v501, %v496
  %v807 = vpack.c.b16 %v502, %v497
  %v808 = vpack.c.b16 %v503, %v498
  %v809 = vpack.c.b16 %v509, %v504
  %v810 = vpack.c.b16 %v510, %v505
  %v811 = vpack.c.b16 %v511, %v506
  %v812 = vpack.c.b16 %v512, %v507
  %v813 = vpack.c.b16 %v513, %v508
  %v814 = vpack.c.b16 %v519, %v514
  %v815 = vpack.c.b16 %v520, %v515
  %v816 = vpack.c.b16 %v521, %v516
  %v817 = vpack.c.b16 %v522, %v517
  %v818 = vpack.c.b16 %v523, %v518
  %v819 = vpack.c.b16 %v529, %v524
  %v820 = vpack.c.b16 %v530, %v525
  %v821 = vpack.c.b16 %v531, %v526
  %v822 = vpack.c.b16 %v532, %v527
  %v823 = vpack.c.b16 %v533, %v528
  %v824 = vpack.c.b16 %v539, %v534
  %v825 = vpack.c.b16 %v540, %v535
  %v826 = vpack.c.b16 %v541, %v536
  %v827 = vpack.c.b16 %v542, %v537
  %v828 = vpack.c.b16 %v543, %v538
  %v829 = vpack.c.b16 %v549, %v544
  %v830 = vpack.c.b16 %v550, %v545
  %v831 = vpack.c.b16 %v551, %v546
  %v832 = vpack.c.b16 %v552, %v547
  %v833 = vpack.c.b16 %v553, %v548
  %v834 = vpack.c.b16 %v559, %v554
  %v835 = vpack.c.b16 %v560, %v555
  %v836 = vpack.c.b16 %v561, %v556
  %v837 = vpack.c.b16 %v562, %v557
  %v838 = vpack.c.b16 %v563, %v558
  %v839 = vpack.c.b16 %v569, %v564
  %v840 = vpack.c.b16 %v570, %v565
  %v841 = vpack.c.b16 %v571, %v566
  %v842 = vpack.c.b16 %v572, %v567
  %v843 = vpack.c.b16 %v573, %v568
  %v844 = vpack.c.b16 %v579, %v574
  %v845 = vpack.c.b16 %v580, %v575
  %v846 = vpack.c.b16 %v581, %v576
  %v847 = vpack.c.b16 %v582, %v577
  %v848 = vpack.c.b16 %v583, %v578
  %v849 = vpack.c.b16 %v589, %v584
  %v850 = vpack.c.b16 %v590, %v585
  %v851 = vpack.c.b16 %v591, %v586
  %v852 = vpack.c.b16 %v592, %v587
  %v853 = vpack.c.b16 %v593, %v588
  %v854 = vpack.c.b16 %v599, %v594
  %v855 = vpack.c.b16 %v600, %v595
  %v856 = vpack.c.b16 %v601, %v596
  %v857 = vpack.c.b16 %v602, %v597
  %v858 = vpack.c.b16 %v603, %v598
  %v859 = vpack.c.b16 %v609, %v604
  %v860 = vpack.c.b16 %v610, %v605
  %v861 = vpack.c.b16 %v611, %v606
  %v862 = vpack.c.b16 %v612, %v607
  %v863 = vpack.c.b16 %v613, %v608
  %v864 = vpack.c.b16 %v619, %v614
  %v865 = vpack.c.b16 %v620, %v615
  %v866 = vpack.c.b16 %v621, %v616
  %v867 = vpack.c.b16 %v622, %v617
  %v868 = vpack.c.b16 %v623, %v618
  %v869 = vpack.c.b16 %v629, %v624
  %v870 = vpack.c.b16 %v630, %v625
  %v871 = vpack.c.b16 %v631, %v626
  %v872 = vpack.c.b16 %v632, %v627
  %v873 = vpack.c.b16 %v633, %v628
  %v874 = vpack.c.b16 %v639, %v634
  %v875 = vpack.c.b16 %v640, %v635
  %v876 = vpack.c.b16 %v641, %v636
  %v877 = vpack.c.b16 %v642, %v637
  %v878 = vpack.c.b16 %v643, %v638
  %v879 = vpack.c.b16 %v649, %v644
  %v880 = vpack.c.b16 %v650, %v645
  %v881 = vpack.c.b16 %v651, %v646
  %v882 = vpack.c.b16 %v652, %v647
  %v883 = vpack.c.b16 %v653, %v648
  %v884 = vpack.c.b16 %v659, %v654
  %v885 = vpack.c.b16 %v660, %v655
  %v886 = vpack.c.b16 %v661, %v656
  %v887 = vpack.c.b16 %v662, %v657
  %v888 = vpack.c.b16 %v663, %v658
  %v889 = vpack.c.b16 %v669, %v664
  %v890 = vpack.c.b16 %v670, %v665
  %v891 = vpack.c.b16 %v671, %v666
  %v892 = vpack.c.b16 %v672, %v667
  %v893 = vpack.c.b16 %v673, %v668
  %v894 = vpack.c.b16 %v679, %v674
  %v895 = vpack.c.b16 %v680, %v675
  %v896 = vpack.c.b16 %v681, %v676
  %v897 = vpack.c.b16 %v682, %v677
  %v898 = vpack.c.b16 %v683, %v678
  %v899 = vpack.c.b16 %v689, %v684
  %v900 = vpack.c.b16 %v690, %v685
  %v901 = vpack.c.b16 %v691, %v686
  %v902 = vpack.c.b16 %v692, %v687
  %v903 = vpack.c.b16 %v693, %v688
  %v904 = vpack.c.b16 %v699, %v694
  %v905 = vpack.c.b16 %v700, %v695
  %v906 = vpack.c.b16 %v701, %v696
  %v907 = vpack.c.b16 %v702, %v697
  %v908 = vpack.c.b16 %v703, %v698
  %v909 = vpack.c.b16 %v709, %v704
  %v910 = vpack.c.b16 %v710, %v705
  %v911 = vpack.c.b16 %v711, %v706
  %v912 = vpack.c.b16 %v712, %v707
  %v913 = vpack.c.b16 %v713, %v708
  %v914 = vpack.c.b16 %v719, %v714
  %v915 = vpack.c.b16 %v720, %v715
  %v916 = vpack.c.b16 %v721, %v716
  %v917 = vpack.c.b16 %v722, %v717
  %v918 = vpack.c.b16 %v723, %v718
  %v919 = vpack.c.b16 %v729, %v724
  %v920 = vpack.c.b16 %v730, %v725
  %v921 = vpack.c.b16 %v731, %v726
  %v922 = vpack.c.b16 %v732, %v727
  %v923 = vpack.c.b16 %v733, %v728
  %v924 = vpack.c.b16 %v739, %v734
  %v925 = vpack.c.b16 %v740, %v735
  %v926 = vpack.c.b16 %v741, %v736
  %v927 = vpack.c.b16 %v742, %v737
  %v928 = vpack.c.b16 %v743, %v738
  %v929 = vpack.c.b16 %v749, %v744
  %v930 = vpack.c.b16 %v750, %v745
  %v931 = vpack.c.b16 %v751, %v746
  %v932 = vpack.c.b16 %v752, %v747
  %v933 = vpack.c.b16 %v753, %v748
  %v934 = vpack.c.b16 %v759, %v754
  %v935 = vpack.c.b16 %v760, %v755
  %v936 = vpack.c.b16 %v761, %v756
  %v937 = vpack.c.b16 %v762, %v757
  %v938 = vpack.c.b16 %v763, %v758
  %v939 = vpack.c.b16 %v769, %v764
  %v940 = vpack.c.b16 %v770, %v765
  %v941 = vpack.c.b16 %v771, %v766
  %v942 = vpack.c.b16 %v772, %v767
  %v943 = vpack.c.b16 %v773, %v768
  %v944 = vpack.c.b16 %v779, %v774
  %v945 = vpack.c.b16 %v780, %v775
  %v946 = vpack.c.b16 %v781, %v776
  %v947 = vpack.c.b16 %v782, %v777
  %v948 = vpack.c.b16 %v783, %v778
  %v949 = vpack.c.b16 %v789, %v784
  %v950 = vpack.c.b16 %v790, %v785
  %v951 = vpack.c.b16 %v791, %v786
  %v952 = vpack.c.b16 %v792, %v787
  %v953 = vpack.c.b16 %v793, %v788
  %v1154 = vunpack.c.l.b16 %v210
  %v1155 = vunpack.c.l.b16 %v211
  %v1156 = vunpack.c.l.b16 %v212
  %v1157 = vunpack.c.l.b16 %v213
  %v1158 = vunpack.c.l.b16 %v214
  %v1159 = vunpack.c.l.b16 %v215
  %v1160 = vunpack.c.l.b16 %v216
  %v1161 = vunpack.c.l.b16 %v217
  %v1162 = vunpack.c.l.b16 %v218
  %v1163 = vunpack.c.l.b16 %v219
  %v1164 = vunpack.c.l.b16 %v220
  %v1165 = vunpack.c.l.b16 %v221
  %v1166 = vunpack.c.l.b16 %v222
  %v1167 = vunpack.c.l.b16 %v223
  %v1168 = vunpack.c.l.b16 %v224
  %v1169 = vunpack.c.l.b16 %v225
  %v1170 = vunpack.c.l.b16 %v226
  %v1171 = vunpack.c.l.b16 %v227
  %v1172 = vunpack.c.l.b16 %v228
  %v1173 = vunpack.c.l.b16 %v229
  %v1174 = vunpack.c.l.b16 %v230
  %v1175 = vunpack.c.l.b16 %v231
  %v1176 = vunpack.c.l.b16 %v232
  %v1177 = vunpack.c.l.b16 %v233
  %v1178 = vunpack.c.l.b16 %v234
  %v1179 = vunpack.c.l.b16 %v235
  %v1180 = vunpack.c.l.b16 %v236
  %v1181 = vunpack.c.l.b16 %v237
  %v1182 = vunpack.c.l.b16 %v238
  %v1183 = vunpack.c.l.b16 %v239
  %v1184 = vunpack.c.l.b16 %v240
  %v1185 = vunpack.c.l.b16 %v241
  %v1186 = vunpack.c.l.b16 %v242
  %v1187 = vunpack.c.l.b16 %v243
  %v1188 = vunpack.c.l.b16 %v244
  %v1189 = vunpack.c.l.b16 %v245
  %v1190 = vunpack.c.l.b16 %v246
  %v1191 = vunpack.c.l.b16 %v247
  %v1192 = vunpack.c.l.b16 %v248
  %v1193 = vunpack.c.l.b16 %v249
  %v1194 = vunpack.c.l.b16 %v250
  %v1195 = vunpack.c.l.b16 %v251
  %v1196 = vunpack.c.l.b16 %v252
  %v1197 = vunpack.c.l.b16 %v253
  %v1198 = vunpack.c.l.b16 %v254
  %v1199 = vunpack.c.l.b16 %v255
  %v1200 = vunpack.c.l.b16 %v256
  %v1201 = vunpack.c.l.b16 %v257
  %v1202 = vunpack.c.l.b16 %v258
  %v1203 = vunpack.c.l.b16 %v259
  %v1204 = vunpack.c.l.b16 %v260
  %v1205 = vunpack.c.l.b16 %v261
  %v1206 = vunpack.c.l.b16 %v262
  %v1207 = vunpack.c.l.b16 %v263
  %v1208 = vunpack.c.l.b16 %v264
  %v1209 = vunpack.c.l.b16 %v265
  %v1210 = vunpack.c.l.b16 %v266
  %v1211 = vunpack.c.l.b16 %v267
  %v1212 = vunpack.c.l.b16 %v268
  %v1213 = vunpack.c.l.b16 %v269
  %v1214 = vunpack.c.l.b16 %v270
  %v1215 = vunpack.c.l.b16 %v271
  %v1216 = vunpack.c.l.b16 %v272
  %v1217 = vunpack.c.l.b16 %v273
  %v1218 = vunpack.c.l.b16 %v274
  %v1219 = vunpack.c.l.b16 %v275
  %v1220 = vunpack.c.l.b16 %v276
  %v1221 = vunpack.c.l.b16 %v277
  %v1222 = vunpack.c.l.b16 %v278
  %v1223 = vunpack.c.l.b16 %v279
  %v1224 = vunpack.c.l.b16 %v280
  %v1225 = vunpack.c.l.b16 %v281
  %v1226 = vpack.c.b16 %v1155, %v1154
  %v1227 = vpack.c.b16 %v1157, %v1156
  %v1228 = vpack.c.b16 %v1159, %v1158
  %v1229 = vpack.c.b16 %v1161, %v1160
  %v1230 = vpack.c.b16 %v1163, %v1162
  %v1231 = vpack.c.b16 %v1165, %v1164
  %v1232 = vpack.c.b16 %v1167, %v1166
  %v1233 = vpack.c.b16 %v1169, %v1168
  %v1234 = vpack.c.b16 %v1171, %v1170
  %v1235 = vpack.c.b16 %v1173, %v1172
  %v1236 = vpack.c.b16 %v1175, %v1174
  %v1237 = vpack.c.b16 %v1177, %v1176
  %v1238 = vpack.c.b16 %v1179, %v1178
  %v1239 = vpack.c.b16 %v1181, %v1180
  %v1240 = vpack.c.b16 %v1183, %v1182
  %v1241 = vpack.c.b16 %v1185, %v1184
  %v1242 = vpack.c.b16 %v1187, %v1186
  %v1243 = vpack.c.b16 %v1189, %v1188
  %v1244 = vpack.c.b16 %v1191, %v1190
  %v1245 = vpack.c.b16 %v1193, %v1192
  %v1246 = vpack.c.b16 %v1195, %v1194
  %v1247 = vpack.c.b16 %v1197, %v1196
  %v1248 = vpack.c.b16 %v1199, %v1198
  %v1249 = vpack.c.b16 %v1201, %v1200
  %v1250 = vpack.c.b16 %v1203, %v1202
  %v1251 = vpack.c.b16 %v1205, %v1204
  %v1252 = vpack.c.b16 %v1207, %v1206
  %v1253 = vpack.c.b16 %v1209, %v1208
  %v1254 = vpack.c.b16 %v1211, %v1210
  %v1255 = vpack.c.b16 %v1213, %v1212
  %v1256 = vpack.c.b16 %v1215, %v1214
  %v1257 = vpack.c.b16 %v1217, %v1216
  %v1258 = vpack.c.b16 %v1219, %v1218
  %v1259 = vpack.c.b16 %v1221, %v1220
  %v1260 = vpack.c.b16 %v1223, %v1222
  %v1261 = vpack.c.b16 %v1225, %v1224
  %vm1298 = vcmask 523264
  %v1300 = vsel %vm1298, %v798, 0
  %v1303 = vsel %vm1298, %v803, 0
  %v1306 = vsel %vm1298, %v808, 0
  %v1309 = vsel %vm1298, %v813, 0
  %v1312 = vsel %vm1298, %v818, 0
  %v1315 = vsel %vm1298, %v823, 0
  %v1318 = vsel %vm1298, %v828, 0
  %v1321 = vsel %vm1298, %v833, 0
  %v1324 = vsel %vm1298, %v838, 0
  %v1327 = vsel %vm1298, %v843, 0
  %v1330 = vsel %vm1298, %v848, 0
  %v1333 = vsel %vm1298, %v853, 0
  %v1336 = vsel %vm1298, %v858, 0
  %v1339 = vsel %vm1298, %v863, 0
  %v1342 = vsel %vm1298, %v868, 0
  %v1345 = vsel %vm1298, %v873, 0
  %v1348 = vsel %vm1298, %v878, 0
  %v1351 = vsel %vm1298, %v883, 0
  %v1354 = vsel %vm1298, %v888, 0
  %v1357 = vsel %vm1298, %v893, 0
  %v1360 = vsel %vm1298, %v898, 0
  %v1363 = vsel %vm1298, %v903, 0
  %v1366 = vsel %vm1298, %v908, 0
  %v1369 = vsel %vm1298, %v913, 0
  %v1372 = vsel %vm1298, %v918, 0
  %v1375 = vsel %vm1298, %v923, 0
  %v1378 = vsel %vm1298, %v928, 0
  %v1381 = vsel %vm1298, %v933, 0
  %v1384 = vsel %vm1298, %v938, 0
  %v1387 = vsel %vm1298, %v943, 0
  %v1390 = vsel %vm1298, %v948, 0
  %v1393 = vsel %vm1298, %v953, 0
  %1395 = vmatprep.subr.bf16.mxu0 0
  %1396 = vmatpush1.bf16.msra.mxu0 %v1226
  %1397 = vmatprep.subr.bf16.mxu0 0
  %1398 = vmatpush1.bf16.msra.mxu0 %v1227
  %1399 = vmatprep.subr.bf16.mxu0 0
  %1400 = vmatpush1.bf16.msra.mxu0 %v1228
  %1401 = vmatprep.subr.bf16.mxu0 0
  %1402 = vmatpush1.bf16.msra.mxu0 %v1229
  %1403 = vmatprep.subr.bf16.mxu0 0
  %1404 = vmatpush1.bf16.msra.mxu0 %v1230
  %1405 = vmatprep.subr.bf16.mxu0 0
  %1406 = vmatpush1.bf16.msra.mxu0 %v1231
  %1407 = vmatprep.subr.bf16.mxu0 0
  %1408 = vmatpush1.bf16.msra.mxu0 %v1232
  %1409 = vmatprep.subr.bf16.mxu0 0
  %1410 = vmatpush1.bf16.msra.mxu0 %v1233
  %1411 = vmatprep.subr.bf16.mxu0 0
  %1412 = vmatpush1.bf16.msra.mxu0 %v1234
  %1413 = vmatprep.subr.bf16.mxu0 0
  %1414 = vmatpush1.bf16.msra.mxu0 %v1235
  %1415 = vmatprep.subr.bf16.mxu0 0
  %1416 = vmatpush1.bf16.msra.mxu0 %v1236
  %1417 = vmatprep.subr.bf16.mxu0 0
  %1418 = vmatpush1.bf16.msra.mxu0 %v1237
  %1419 = vmatprep.subr.bf16.mxu0 0
  %1420 = vmatpush1.bf16.msra.mxu0 %v1238
  %1421 = vmatprep.subr.bf16.mxu0 0
  %1422 = vmatpush1.bf16.msra.mxu0 %v1239
  %1423 = vmatprep.subr.bf16.mxu0 0
  %1424 = vmatpush1.bf16.msra.mxu0 %v1240
  %1425 = vmatprep.subr.bf16.mxu0 0
  %1426 = vmatpush1.bf16.msra.mxu0 %v1241
  %1427 = vmatprep.mubr.bf16.mxu0 %v795
  %1428 = vmatmul.mubr.bf16.gmra.mrb[0].mxu0 %v794
  %v1429 = vpop.f32.mrb[0].mxu0
  %v1430 = vadd.f32 0.0, %v1429
  %v1431 = vpop.f32.mrb[0].mxu0
  %v1432 = vpop.f32.mrb[0].mxu0
  %v1433 = vadd.f32 0.0, %v1432
  %v1434 = vpop.f32.mrb[0].mxu0
  %1435 = vmatprep.mubr.bf16.mxu0 %v800
  %1436 = vmatmul.mubr.bf16.gmra.mrb[0].mxu0 %v799
  %v1437 = vpop.f32.mrb[0].mxu0
  %v1438 = vadd.f32 0.0, %v1437
  %v1439 = vpop.f32.mrb[0].mxu0
  %v1440 = vpop.f32.mrb[0].mxu0
  %v1441 = vadd.f32 0.0, %v1440
  %v1442 = vpop.f32.mrb[0].mxu0
  %1443 = vmatprep.mubr.bf16.mxu0 %v805
  %1444 = vmatmul.mubr.bf16.gmra.mrb[0].mxu0 %v804
  %v1445 = vpop.f32.mrb[0].mxu0
  %v1446 = vadd.f32 0.0, %v1445
  %v1447 = vpop.f32.mrb[0].mxu0
  %v1448 = vpop.f32.mrb[0].mxu0
  %v1449 = vadd.f32 0.0, %v1448
  %v1450 = vpop.f32.mrb[0].mxu0
  %1451 = vmatprep.mubr.bf16.mxu0 %v810
  %1452 = vmatmul.mubr.bf16.gmra.mrb[0].mxu0 %v809
  %v1453 = vpop.f32.mrb[0].mxu0
  %v1454 = vadd.f32 0.0, %v1453
  %v1455 = vpop.f32.mrb[0].mxu0
  %v1456 = vpop.f32.mrb[0].mxu0
  %v1457 = vadd.f32 0.0, %v1456
  %v1458 = vpop.f32.mrb[0].mxu0
  %1459 = vmatprep.mubr.bf16.mxu0 %v815
  %1460 = vmatmul.mubr.bf16.gmra.mrb[0].mxu0 %v814
  %v1461 = vpop.f32.mrb[0].mxu0
  %v1462 = vadd.f32 0.0, %v1461
  %v1463 = vpop.f32.mrb[0].mxu0
  %v1464 = vpop.f32.mrb[0].mxu0
  %v1465 = vadd.f32 0.0, %v1464
  %v1466 = vpop.f32.mrb[0].mxu0
  %1467 = vmatprep.mubr.bf16.mxu0 %v820
  %1468 = vmatmul.mubr.bf16.gmra.mrb[0].mxu0 %v819
  %v1469 = vpop.f32.mrb[0].mxu0
  %v1470 = vadd.f32 0.0, %v1469
  %v1471 = vpop.f32.mrb[0].mxu0
  %v1472 = vpop.f32.mrb[0].mxu0
  %v1473 = vadd.f32 0.0, %v1472
  %v1474 = vpop.f32.mrb[0].mxu0
  %1475 = vmatprep.mubr.bf16.mxu0 %v825
  %1476 = vmatmul.mubr.bf16.gmra.mrb[0].mxu0 %v824
  %v1477 = vpop.f32.mrb[0].mxu0
  %v1478 = vadd.f32 0.0, %v1477
  %v1479 = vpop.f32.mrb[0].mxu0
  %v1480 = vpop.f32.mrb[0].mxu0
  %v1481 = vadd.f32 0.0, %v1480
  %v1482 = vpop.f32.mrb[0].mxu0
  %1483 = vmatprep.mubr.bf16.mxu0 %v830
  %1484 = vmatmul.mubr.bf16.gmra.mrb[0].mxu0 %v829
  %v1485 = vpop.f32.mrb[0].mxu0
  %v1486 = vadd.f32 0.0, %v1485
  %v1487 = vpop.f32.mrb[0].mxu0
  %v1488 = vpop.f32.mrb[0].mxu0
  %v1489 = vadd.f32 0.0, %v1488
  %v1490 = vpop.f32.mrb[0].mxu0
  %1491 = vmatprep.mubr.bf16.mxu0 %v835
  %1492 = vmatmul.mubr.bf16.gmra.mrb[0].mxu0 %v834
  %v1493 = vpop.f32.mrb[0].mxu0
  %v1494 = vadd.f32 0.0, %v1493
  %v1495 = vpop.f32.mrb[0].mxu0
  %v1496 = vpop.f32.mrb[0].mxu0
  %v1497 = vadd.f32 0.0, %v1496
  %v1498 = vpop.f32.mrb[0].mxu0
  %1499 = vmatprep.mubr.bf16.mxu0 %v840
  %1500 = vmatmul.mubr.bf16.gmra.mrb[0].mxu0 %v839
  %v1501 = vpop.f32.mrb[0].mxu0
  %v1502 = vadd.f32 0.0, %v1501
  %v1503 = vpop.f32.mrb[0].mxu0
  %v1504 = vpop.f32.mrb[0].mxu0
  %v1505 = vadd.f32 0.0, %v1504
  %v1506 = vpop.f32.mrb[0].mxu0
  %1507 = vmatprep.mubr.bf16.mxu0 %v845
  %1508 = vmatmul.mubr.bf16.gmra.mrb[0].mxu0 %v844
  %v1509 = vpop.f32.mrb[0].mxu0
  %v1510 = vadd.f32 0.0, %v1509
  %v1511 = vpop.f32.mrb[0].mxu0
  %v1512 = vpop.f32.mrb[0].mxu0
  %v1513 = vadd.f32 0.0, %v1512
  %v1514 = vpop.f32.mrb[0].mxu0
  %1515 = vmatprep.mubr.bf16.mxu0 %v850
  %1516 = vmatmul.mubr.bf16.gmra.mrb[0].mxu0 %v849
  %v1517 = vpop.f32.mrb[0].mxu0
  %v1518 = vadd.f32 0.0, %v1517
  %v1519 = vpop.f32.mrb[0].mxu0
  %v1520 = vpop.f32.mrb[0].mxu0
  %v1521 = vadd.f32 0.0, %v1520
  %v1522 = vpop.f32.mrb[0].mxu0
  %1523 = vmatprep.mubr.bf16.mxu0 %v855
  %1524 = vmatmul.mubr.bf16.gmra.mrb[0].mxu0 %v854
  %v1525 = vpop.f32.mrb[0].mxu0
  %v1526 = vadd.f32 0.0, %v1525
  %v1527 = vpop.f32.mrb[0].mxu0
  %v1528 = vpop.f32.mrb[0].mxu0
  %v1529 = vadd.f32 0.0, %v1528
  %v1530 = vpop.f32.mrb[0].mxu0
  %1531 = vmatprep.mubr.bf16.mxu0 %v860
  %1532 = vmatmul.mubr.bf16.gmra.mrb[0].mxu0 %v859
  %v1533 = vpop.f32.mrb[0].mxu0
  %v1534 = vadd.f32 0.0, %v1533
  %v1535 = vpop.f32.mrb[0].mxu0
  %v1536 = vpop.f32.mrb[0].mxu0
  %v1537 = vadd.f32 0.0, %v1536
  %v1538 = vpop.f32.mrb[0].mxu0
  %1539 = vmatprep.mubr.bf16.mxu0 %v865
  %1540 = vmatmul.mubr.bf16.gmra.mrb[0].mxu0 %v864
  %v1541 = vpop.f32.mrb[0].mxu0
  %v1542 = vadd.f32 0.0, %v1541
  %v1543 = vpop.f32.mrb[0].mxu0
  %v1544 = vpop.f32.mrb[0].mxu0
  %v1545 = vadd.f32 0.0, %v1544
  %v1546 = vpop.f32.mrb[0].mxu0
  %1547 = vmatprep.mubr.bf16.mxu0 %v870
  %1548 = vmatmul.mubr.bf16.gmra.mrb[0].mxu0 %v869
  %v1549 = vpop.f32.mrb[0].mxu0
  %v1550 = vadd.f32 0.0, %v1549
  %v1551 = vpop.f32.mrb[0].mxu0
  %v1552 = vpop.f32.mrb[0].mxu0
  %v1553 = vadd.f32 0.0, %v1552
  %v1554 = vpop.f32.mrb[0].mxu0
  %1555 = vmatprep.mubr.bf16.mxu0 %v875
  %1556 = vmatmul.mubr.bf16.gmra.mrb[0].mxu0 %v874
  %v1557 = vpop.f32.mrb[0].mxu0
  %v1558 = vadd.f32 0.0, %v1557
  %v1559 = vpop.f32.mrb[0].mxu0
  %v1560 = vpop.f32.mrb[0].mxu0
  %v1561 = vadd.f32 0.0, %v1560
  %v1562 = vpop.f32.mrb[0].mxu0
  %1563 = vmatprep.mubr.bf16.mxu0 %v880
  %1564 = vmatmul.mubr.bf16.gmra.mrb[0].mxu0 %v879
  %v1565 = vpop.f32.mrb[0].mxu0
  %v1566 = vadd.f32 0.0, %v1565
  %v1567 = vpop.f32.mrb[0].mxu0
  %v1568 = vpop.f32.mrb[0].mxu0
  %v1569 = vadd.f32 0.0, %v1568
  %v1570 = vpop.f32.mrb[0].mxu0
  %1571 = vmatprep.mubr.bf16.mxu0 %v885
  %1572 = vmatmul.mubr.bf16.gmra.mrb[0].mxu0 %v884
  %v1573 = vpop.f32.mrb[0].mxu0
  %v1574 = vadd.f32 0.0, %v1573
  %v1575 = vpop.f32.mrb[0].mxu0
  %v1576 = vpop.f32.mrb[0].mxu0
  %v1577 = vadd.f32 0.0, %v1576
  %v1578 = vpop.f32.mrb[0].mxu0
  %1579 = vmatprep.mubr.bf16.mxu0 %v890
  %1580 = vmatmul.mubr.bf16.gmra.mrb[0].mxu0 %v889
  %v1581 = vpop.f32.mrb[0].mxu0
  %v1582 = vadd.f32 0.0, %v1581
  %v1583 = vpop.f32.mrb[0].mxu0
  %v1584 = vpop.f32.mrb[0].mxu0
  %v1585 = vadd.f32 0.0, %v1584
  %v1586 = vpop.f32.mrb[0].mxu0
  %1587 = vmatprep.mubr.bf16.mxu0 %v895
  %1588 = vmatmul.mubr.bf16.gmra.mrb[0].mxu0 %v894
  %v1589 = vpop.f32.mrb[0].mxu0
  %v1590 = vadd.f32 0.0, %v1589
  %v1591 = vpop.f32.mrb[0].mxu0
  %v1592 = vpop.f32.mrb[0].mxu0
  %v1593 = vadd.f32 0.0, %v1592
  %v1594 = vpop.f32.mrb[0].mxu0
  %1595 = vmatprep.mubr.bf16.mxu0 %v900
  %1596 = vmatmul.mubr.bf16.gmra.mrb[0].mxu0 %v899
  %v1597 = vpop.f32.mrb[0].mxu0
  %v1598 = vadd.f32 0.0, %v1597
  %v1599 = vpop.f32.mrb[0].mxu0
  %v1600 = vpop.f32.mrb[0].mxu0
  %v1601 = vadd.f32 0.0, %v1600
  %v1602 = vpop.f32.mrb[0].mxu0
  %1603 = vmatprep.mubr.bf16.mxu0 %v905
  %1604 = vmatmul.mubr.bf16.gmra.mrb[0].mxu0 %v904
  %v1605 = vpop.f32.mrb[0].mxu0
  %v1606 = vadd.f32 0.0, %v1605
  %v1607 = vpop.f32.mrb[0].mxu0
  %v1608 = vpop.f32.mrb[0].mxu0
  %v1609 = vadd.f32 0.0, %v1608
  %v1610 = vpop.f32.mrb[0].mxu0
  %1611 = vmatprep.mubr.bf16.mxu0 %v910
  %1612 = vmatmul.mubr.bf16.gmra.mrb[0].mxu0 %v909
  %v1613 = vpop.f32.mrb[0].mxu0
  %v1614 = vadd.f32 0.0, %v1613
  %v1615 = vpop.f32.mrb[0].mxu0
  %v1616 = vpop.f32.mrb[0].mxu0
  %v1617 = vadd.f32 0.0, %v1616
  %v1618 = vpop.f32.mrb[0].mxu0
  %1619 = vmatprep.mubr.bf16.mxu0 %v915
  %1620 = vmatmul.mubr.bf16.gmra.mrb[0].mxu0 %v914
  %v1621 = vpop.f32.mrb[0].mxu0
  %v1622 = vadd.f32 0.0, %v1621
  %v1623 = vpop.f32.mrb[0].mxu0
  %v1624 = vpop.f32.mrb[0].mxu0
  %v1625 = vadd.f32 0.0, %v1624
  %v1626 = vpop.f32.mrb[0].mxu0
  %1627 = vmatprep.mubr.bf16.mxu0 %v920
  %1628 = vmatmul.mubr.bf16.gmra.mrb[0].mxu0 %v919
  %v1629 = vpop.f32.mrb[0].mxu0
  %v1630 = vadd.f32 0.0, %v1629
  %v1631 = vpop.f32.mrb[0].mxu0
  %v1632 = vpop.f32.mrb[0].mxu0
  %v1633 = vadd.f32 0.0, %v1632
  %v1634 = vpop.f32.mrb[0].mxu0
  %1635 = vmatprep.mubr.bf16.mxu0 %v925
  %1636 = vmatmul.mubr.bf16.gmra.mrb[0].mxu0 %v924
  %v1637 = vpop.f32.mrb[0].mxu0
  %v1638 = vadd.f32 0.0, %v1637
  %v1639 = vpop.f32.mrb[0].mxu0
  %v1640 = vpop.f32.mrb[0].mxu0
  %v1641 = vadd.f32 0.0, %v1640
  %v1642 = vpop.f32.mrb[0].mxu0
  %1643 = vmatprep.mubr.bf16.mxu0 %v930
  %1644 = vmatmul.mubr.bf16.gmra.mrb[0].mxu0 %v929
  %v1645 = vpop.f32.mrb[0].mxu0
  %v1646 = vadd.f32 0.0, %v1645
  %v1647 = vpop.f32.mrb[0].mxu0
  %v1648 = vpop.f32.mrb[0].mxu0
  %v1649 = vadd.f32 0.0, %v1648
  %v1650 = vpop.f32.mrb[0].mxu0
  %1651 = vmatprep.mubr.bf16.mxu0 %v935
  %1652 = vmatmul.mubr.bf16.gmra.mrb[0].mxu0 %v934
  %v1653 = vpop.f32.mrb[0].mxu0
  %v1654 = vadd.f32 0.0, %v1653
  %v1655 = vpop.f32.mrb[0].mxu0
  %v1656 = vpop.f32.mrb[0].mxu0
  %v1657 = vadd.f32 0.0, %v1656
  %v1658 = vpop.f32.mrb[0].mxu0
  %1659 = vmatprep.mubr.bf16.mxu0 %v940
  %1660 = vmatmul.mubr.bf16.gmra.mrb[0].mxu0 %v939
  %v1661 = vpop.f32.mrb[0].mxu0
  %v1662 = vadd.f32 0.0, %v1661
  %v1663 = vpop.f32.mrb[0].mxu0
  %v1664 = vpop.f32.mrb[0].mxu0
  %v1665 = vadd.f32 0.0, %v1664
  %v1666 = vpop.f32.mrb[0].mxu0
  %1667 = vmatprep.mubr.bf16.mxu0 %v945
  %1668 = vmatmul.mubr.bf16.gmra.mrb[0].mxu0 %v944
  %v1669 = vpop.f32.mrb[0].mxu0
  %v1670 = vadd.f32 0.0, %v1669
  %v1671 = vpop.f32.mrb[0].mxu0
  %v1672 = vpop.f32.mrb[0].mxu0
  %v1673 = vadd.f32 0.0, %v1672
  %v1674 = vpop.f32.mrb[0].mxu0
  %1675 = vmatprep.mubr.bf16.mxu0 %v950
  %1676 = vmatmul.mubr.bf16.gmra.mrb[0].mxu0 %v949
  %v1677 = vpop.f32.mrb[0].mxu0
  %v1678 = vadd.f32 0.0, %v1677
  %v1679 = vpop.f32.mrb[0].mxu0
  %v1680 = vpop.f32.mrb[0].mxu0
  %v1681 = vadd.f32 0.0, %v1680
  %v1682 = vpop.f32.mrb[0].mxu0
  %1683 = vdwg.mxu0
  %1684 = vmatprep.subr.bf16.mxu0 0
  %1685 = vmatpush1.bf16.msra.mxu0 %v1242
  %1686 = vmatprep.subr.bf16.mxu0 0
  %1687 = vmatpush1.bf16.msra.mxu0 %v1243
  %1688 = vmatprep.subr.bf16.mxu0 0
  %1689 = vmatpush1.bf16.msra.mxu0 %v1244
  %1690 = vmatprep.subr.bf16.mxu0 0
  %1691 = vmatpush1.bf16.msra.mxu0 %v1245
  %1692 = vmatprep.subr.bf16.mxu0 0
  %1693 = vmatpush1.bf16.msra.mxu0 %v1246
  %1694 = vmatprep.subr.bf16.mxu0 0
  %1695 = vmatpush1.bf16.msra.mxu0 %v1247
  %1696 = vmatprep.subr.bf16.mxu0 0
  %1697 = vmatpush1.bf16.msra.mxu0 %v1248
  %1698 = vmatprep.subr.bf16.mxu0 0
  %1699 = vmatpush1.bf16.msra.mxu0 %v1249
  %1700 = vmatprep.subr.bf16.mxu0 0
  %1701 = vmatpush1.bf16.msra.mxu0 %v1250
  %1702 = vmatprep.subr.bf16.mxu0 0
  %1703 = vmatpush1.bf16.msra.mxu0 %v1251
  %1704 = vmatprep.subr.bf16.mxu0 0
  %1705 = vmatpush1.bf16.msra.mxu0 %v1252
  %1706 = vmatprep.subr.bf16.mxu0 0
  %1707 = vmatpush1.bf16.msra.mxu0 %v1253
  %1708 = vmatprep.subr.bf16.mxu0 0
  %1709 = vmatpush1.bf16.msra.mxu0 %v1254
  %1710 = vmatprep.subr.bf16.mxu0 0
  %1711 = vmatpush1.bf16.msra.mxu0 %v1255
  %1712 = vmatprep.subr.bf16.mxu0 0
  %1713 = vmatpush1.bf16.msra.mxu0 %v1256
  %1714 = vmatprep.subr.bf16.mxu0 0
  %1715 = vmatpush1.bf16.msra.mxu0 %v1257
  %1716 = vmatprep.mubr.bf16.mxu0 %v797
  %1717 = vmatmul.mubr.bf16.gmra.mrb[0].mxu0 %v796
  %v1718 = vpop.f32.mrb[0].mxu0
  %v1719 = vadd.f32 %v1430, %v1718
  %v1720 = vpop.f32.mrb[0].mxu0
  %v1721 = vpop.f32.mrb[0].mxu0
  %v1722 = vadd.f32 %v1433, %v1721
  %v1723 = vpop.f32.mrb[0].mxu0
  %1724 = vmatprep.mubr.bf16.mxu0 %v802
  %1725 = vmatmul.mubr.bf16.gmra.mrb[0].mxu0 %v801
  %v1726 = vpop.f32.mrb[0].mxu0
  %v1727 = vadd.f32 %v1438, %v1726
  %v1728 = vpop.f32.mrb[0].mxu0
  %v1729 = vpop.f32.mrb[0].mxu0
  %v1730 = vadd.f32 %v1441, %v1729
  %v1731 = vpop.f32.mrb[0].mxu0
  %1732 = vmatprep.mubr.bf16.mxu0 %v807
  %1733 = vmatmul.mubr.bf16.gmra.mrb[0].mxu0 %v806
  %v1734 = vpop.f32.mrb[0].mxu0
  %v1735 = vadd.f32 %v1446, %v1734
  %v1736 = vpop.f32.mrb[0].mxu0
  %v1737 = vpop.f32.mrb[0].mxu0
  %v1738 = vadd.f32 %v1449, %v1737
  %v1739 = vpop.f32.mrb[0].mxu0
  %1740 = vmatprep.mubr.bf16.mxu0 %v812
  %1741 = vmatmul.mubr.bf16.gmra.mrb[0].mxu0 %v811
  %v1742 = vpop.f32.mrb[0].mxu0
  %v1743 = vadd.f32 %v1454, %v1742
  %v1744 = vpop.f32.mrb[0].mxu0
  %v1745 = vpop.f32.mrb[0].mxu0
  %v1746 = vadd.f32 %v1457, %v1745
  %v1747 = vpop.f32.mrb[0].mxu0
  %1748 = vmatprep.mubr.bf16.mxu0 %v817
  %1749 = vmatmul.mubr.bf16.gmra.mrb[0].mxu0 %v816
  %v1750 = vpop.f32.mrb[0].mxu0
  %v1751 = vadd.f32 %v1462, %v1750
  %v1752 = vpop.f32.mrb[0].mxu0
  %v1753 = vpop.f32.mrb[0].mxu0
  %v1754 = vadd.f32 %v1465, %v1753
  %v1755 = vpop.f32.mrb[0].mxu0
  %1756 = vmatprep.mubr.bf16.mxu0 %v822
  %1757 = vmatmul.mubr.bf16.gmra.mrb[0].mxu0 %v821
  %v1758 = vpop.f32.mrb[0].mxu0
  %v1759 = vadd.f32 %v1470, %v1758
  %v1760 = vpop.f32.mrb[0].mxu0
  %v1761 = vpop.f32.mrb[0].mxu0
  %v1762 = vadd.f32 %v1473, %v1761
  %v1763 = vpop.f32.mrb[0].mxu0
  %1764 = vmatprep.mubr.bf16.mxu0 %v827
  %1765 = vmatmul.mubr.bf16.gmra.mrb[0].mxu0 %v826
  %v1766 = vpop.f32.mrb[0].mxu0
  %v1767 = vadd.f32 %v1478, %v1766
  %v1768 = vpop.f32.mrb[0].mxu0
  %v1769 = vpop.f32.mrb[0].mxu0
  %v1770 = vadd.f32 %v1481, %v1769
  %v1771 = vpop.f32.mrb[0].mxu0
  %1772 = vmatprep.mubr.bf16.mxu0 %v832
  %1773 = vmatmul.mubr.bf16.gmra.mrb[0].mxu0 %v831
  %v1774 = vpop.f32.mrb[0].mxu0
  %v1775 = vadd.f32 %v1486, %v1774
  %v1776 = vpop.f32.mrb[0].mxu0
  %v1777 = vpop.f32.mrb[0].mxu0
  %v1778 = vadd.f32 %v1489, %v1777
  %v1779 = vpop.f32.mrb[0].mxu0
  %1780 = vmatprep.mubr.bf16.mxu0 %v837
  %1781 = vmatmul.mubr.bf16.gmra.mrb[0].mxu0 %v836
  %v1782 = vpop.f32.mrb[0].mxu0
  %v1783 = vadd.f32 %v1494, %v1782
  %v1784 = vpop.f32.mrb[0].mxu0
  %v1785 = vpop.f32.mrb[0].mxu0
  %v1786 = vadd.f32 %v1497, %v1785
  %v1787 = vpop.f32.mrb[0].mxu0
  %1788 = vmatprep.mubr.bf16.mxu0 %v842
  %1789 = vmatmul.mubr.bf16.gmra.mrb[0].mxu0 %v841
  %v1790 = vpop.f32.mrb[0].mxu0
  %v1791 = vadd.f32 %v1502, %v1790
  %v1792 = vpop.f32.mrb[0].mxu0
  %v1793 = vpop.f32.mrb[0].mxu0
  %v1794 = vadd.f32 %v1505, %v1793
  %v1795 = vpop.f32.mrb[0].mxu0
  %1796 = vmatprep.mubr.bf16.mxu0 %v847
  %1797 = vmatmul.mubr.bf16.gmra.mrb[0].mxu0 %v846
  %v1798 = vpop.f32.mrb[0].mxu0
  %v1799 = vadd.f32 %v1510, %v1798
  %v1800 = vpop.f32.mrb[0].mxu0
  %v1801 = vpop.f32.mrb[0].mxu0
  %v1802 = vadd.f32 %v1513, %v1801
  %v1803 = vpop.f32.mrb[0].mxu0
  %1804 = vmatprep.mubr.bf16.mxu0 %v852
  %1805 = vmatmul.mubr.bf16.gmra.mrb[0].mxu0 %v851
  %v1806 = vpop.f32.mrb[0].mxu0
  %v1807 = vadd.f32 %v1518, %v1806
  %v1808 = vpop.f32.mrb[0].mxu0
  %v1809 = vpop.f32.mrb[0].mxu0
  %v1810 = vadd.f32 %v1521, %v1809
  %v1811 = vpop.f32.mrb[0].mxu0
  %1812 = vmatprep.mubr.bf16.mxu0 %v857
  %1813 = vmatmul.mubr.bf16.gmra.mrb[0].mxu0 %v856
  %v1814 = vpop.f32.mrb[0].mxu0
  %v1815 = vadd.f32 %v1526, %v1814
  %v1816 = vpop.f32.mrb[0].mxu0
  %v1817 = vpop.f32.mrb[0].mxu0
  %v1818 = vadd.f32 %v1529, %v1817
  %v1819 = vpop.f32.mrb[0].mxu0
  %1820 = vmatprep.mubr.bf16.mxu0 %v862
  %1821 = vmatmul.mubr.bf16.gmra.mrb[0].mxu0 %v861
  %v1822 = vpop.f32.mrb[0].mxu0
  %v1823 = vadd.f32 %v1534, %v1822
  %v1824 = vpop.f32.mrb[0].mxu0
  %v1825 = vpop.f32.mrb[0].mxu0
  %v1826 = vadd.f32 %v1537, %v1825
  %v1827 = vpop.f32.mrb[0].mxu0
  %1828 = vmatprep.mubr.bf16.mxu0 %v867
  %1829 = vmatmul.mubr.bf16.gmra.mrb[0].mxu0 %v866
  %v1830 = vpop.f32.mrb[0].mxu0
  %v1831 = vadd.f32 %v1542, %v1830
  %v1832 = vpop.f32.mrb[0].mxu0
  %v1833 = vpop.f32.mrb[0].mxu0
  %v1834 = vadd.f32 %v1545, %v1833
  %v1835 = vpop.f32.mrb[0].mxu0
  %1836 = vmatprep.mubr.bf16.mxu0 %v872
  %1837 = vmatmul.mubr.bf16.gmra.mrb[0].mxu0 %v871
  %v1838 = vpop.f32.mrb[0].mxu0
  %v1839 = vadd.f32 %v1550, %v1838
  %v1840 = vpop.f32.mrb[0].mxu0
  %v1841 = vpop.f32.mrb[0].mxu0
  %v1842 = vadd.f32 %v1553, %v1841
  %v1843 = vpop.f32.mrb[0].mxu0
  %1844 = vmatprep.mubr.bf16.mxu0 %v877
  %1845 = vmatmul.mubr.bf16.gmra.mrb[0].mxu0 %v876
  %v1846 = vpop.f32.mrb[0].mxu0
  %v1847 = vadd.f32 %v1558, %v1846
  %v1848 = vpop.f32.mrb[0].mxu0
  %v1849 = vpop.f32.mrb[0].mxu0
  %v1850 = vadd.f32 %v1561, %v1849
  %v1851 = vpop.f32.mrb[0].mxu0
  %1852 = vmatprep.mubr.bf16.mxu0 %v882
  %1853 = vmatmul.mubr.bf16.gmra.mrb[0].mxu0 %v881
  %v1854 = vpop.f32.mrb[0].mxu0
  %v1855 = vadd.f32 %v1566, %v1854
  %v1856 = vpop.f32.mrb[0].mxu0
  %v1857 = vpop.f32.mrb[0].mxu0
  %v1858 = vadd.f32 %v1569, %v1857
  %v1859 = vpop.f32.mrb[0].mxu0
  %1860 = vmatprep.mubr.bf16.mxu0 %v887
  %1861 = vmatmul.mubr.bf16.gmra.mrb[0].mxu0 %v886
  %v1862 = vpop.f32.mrb[0].mxu0
  %v1863 = vadd.f32 %v1574, %v1862
  %v1864 = vpop.f32.mrb[0].mxu0
  %v1865 = vpop.f32.mrb[0].mxu0
  %v1866 = vadd.f32 %v1577, %v1865
  %v1867 = vpop.f32.mrb[0].mxu0
  %1868 = vmatprep.mubr.bf16.mxu0 %v892
  %1869 = vmatmul.mubr.bf16.gmra.mrb[0].mxu0 %v891
  %v1870 = vpop.f32.mrb[0].mxu0
  %v1871 = vadd.f32 %v1582, %v1870
  %v1872 = vpop.f32.mrb[0].mxu0
  %v1873 = vpop.f32.mrb[0].mxu0
  %v1874 = vadd.f32 %v1585, %v1873
  %v1875 = vpop.f32.mrb[0].mxu0
  %1876 = vmatprep.mubr.bf16.mxu0 %v897
  %1877 = vmatmul.mubr.bf16.gmra.mrb[0].mxu0 %v896
  %v1878 = vpop.f32.mrb[0].mxu0
  %v1879 = vadd.f32 %v1590, %v1878
  %v1880 = vpop.f32.mrb[0].mxu0
  %v1881 = vpop.f32.mrb[0].mxu0
  %v1882 = vadd.f32 %v1593, %v1881
  %v1883 = vpop.f32.mrb[0].mxu0
  %1884 = vmatprep.mubr.bf16.mxu0 %v902
  %1885 = vmatmul.mubr.bf16.gmra.mrb[0].mxu0 %v901
  %v1886 = vpop.f32.mrb[0].mxu0
  %v1887 = vadd.f32 %v1598, %v1886
  %v1888 = vpop.f32.mrb[0].mxu0
  %v1889 = vpop.f32.mrb[0].mxu0
  %v1890 = vadd.f32 %v1601, %v1889
  %v1891 = vpop.f32.mrb[0].mxu0
  %1892 = vmatprep.mubr.bf16.mxu0 %v907
  %1893 = vmatmul.mubr.bf16.gmra.mrb[0].mxu0 %v906
  %v1894 = vpop.f32.mrb[0].mxu0
  %v1895 = vadd.f32 %v1606, %v1894
  %v1896 = vpop.f32.mrb[0].mxu0
  %v1897 = vpop.f32.mrb[0].mxu0
  %v1898 = vadd.f32 %v1609, %v1897
  %v1899 = vpop.f32.mrb[0].mxu0
  %1900 = vmatprep.mubr.bf16.mxu0 %v912
  %1901 = vmatmul.mubr.bf16.gmra.mrb[0].mxu0 %v911
  %v1902 = vpop.f32.mrb[0].mxu0
  %v1903 = vadd.f32 %v1614, %v1902
  %v1904 = vpop.f32.mrb[0].mxu0
  %v1905 = vpop.f32.mrb[0].mxu0
  %v1906 = vadd.f32 %v1617, %v1905
  %v1907 = vpop.f32.mrb[0].mxu0
  %1908 = vmatprep.mubr.bf16.mxu0 %v917
  %1909 = vmatmul.mubr.bf16.gmra.mrb[0].mxu0 %v916
  %v1910 = vpop.f32.mrb[0].mxu0
  %v1911 = vadd.f32 %v1622, %v1910
  %v1912 = vpop.f32.mrb[0].mxu0
  %v1913 = vpop.f32.mrb[0].mxu0
  %v1914 = vadd.f32 %v1625, %v1913
  %v1915 = vpop.f32.mrb[0].mxu0
  %1916 = vmatprep.mubr.bf16.mxu0 %v922
  %1917 = vmatmul.mubr.bf16.gmra.mrb[0].mxu0 %v921
  %v1918 = vpop.f32.mrb[0].mxu0
  %v1919 = vadd.f32 %v1630, %v1918
  %v1920 = vpop.f32.mrb[0].mxu0
  %v1921 = vpop.f32.mrb[0].mxu0
  %v1922 = vadd.f32 %v1633, %v1921
  %v1923 = vpop.f32.mrb[0].mxu0
  %1924 = vmatprep.mubr.bf16.mxu0 %v927
  %1925 = vmatmul.mubr.bf16.gmra.mrb[0].mxu0 %v926
  %v1926 = vpop.f32.mrb[0].mxu0
  %v1927 = vadd.f32 %v1638, %v1926
  %v1928 = vpop.f32.mrb[0].mxu0
  %v1929 = vpop.f32.mrb[0].mxu0
  %v1930 = vadd.f32 %v1641, %v1929
  %v1931 = vpop.f32.mrb[0].mxu0
  %1932 = vmatprep.mubr.bf16.mxu0 %v932
  %1933 = vmatmul.mubr.bf16.gmra.mrb[0].mxu0 %v931
  %v1934 = vpop.f32.mrb[0].mxu0
  %v1935 = vadd.f32 %v1646, %v1934
  %v1936 = vpop.f32.mrb[0].mxu0
  %v1937 = vpop.f32.mrb[0].mxu0
  %v1938 = vadd.f32 %v1649, %v1937
  %v1939 = vpop.f32.mrb[0].mxu0
  %1940 = vmatprep.mubr.bf16.mxu0 %v937
  %1941 = vmatmul.mubr.bf16.gmra.mrb[0].mxu0 %v936
  %v1942 = vpop.f32.mrb[0].mxu0
  %v1943 = vadd.f32 %v1654, %v1942
  %v1944 = vpop.f32.mrb[0].mxu0
  %v1945 = vpop.f32.mrb[0].mxu0
  %v1946 = vadd.f32 %v1657, %v1945
  %v1947 = vpop.f32.mrb[0].mxu0
  %1948 = vmatprep.mubr.bf16.mxu0 %v942
  %1949 = vmatmul.mubr.bf16.gmra.mrb[0].mxu0 %v941
  %v1950 = vpop.f32.mrb[0].mxu0
  %v1951 = vadd.f32 %v1662, %v1950
  %v1952 = vpop.f32.mrb[0].mxu0
  %v1953 = vpop.f32.mrb[0].mxu0
  %v1954 = vadd.f32 %v1665, %v1953
  %v1955 = vpop.f32.mrb[0].mxu0
  %1956 = vmatprep.mubr.bf16.mxu0 %v947
  %1957 = vmatmul.mubr.bf16.gmra.mrb[0].mxu0 %v946
  %v1958 = vpop.f32.mrb[0].mxu0
  %v1959 = vadd.f32 %v1670, %v1958
  %v1960 = vpop.f32.mrb[0].mxu0
  %v1961 = vpop.f32.mrb[0].mxu0
  %v1962 = vadd.f32 %v1673, %v1961
  %v1963 = vpop.f32.mrb[0].mxu0
  %1964 = vmatprep.mubr.bf16.mxu0 %v952
  %1965 = vmatmul.mubr.bf16.gmra.mrb[0].mxu0 %v951
  %v1966 = vpop.f32.mrb[0].mxu0
  %v1967 = vadd.f32 %v1678, %v1966
  %v1968 = vpop.f32.mrb[0].mxu0
  %v1969 = vpop.f32.mrb[0].mxu0
  %v1970 = vadd.f32 %v1681, %v1969
  %v1971 = vpop.f32.mrb[0].mxu0
  %1972 = vdwg.mxu0
  %1973 = vmatprep.subr.bf16.mxu0 0
  %1974 = vmatpush1.bf16.msra.mxu0 %v1258
  %1975 = vmatprep.subr.bf16.mxu0 0
  %1976 = vmatpush1.bf16.msra.mxu0 %v1259
  %1977 = vmatprep.subr.bf16.mxu0 0
  %1978 = vmatpush1.bf16.msra.mxu0 %v1260
  %1979 = vmatprep.subr.bf16.mxu0 0
  %1980 = vmatpush1.bf16.msra.mxu0 %v1261
  %1981 = vmatprep.subr.bf16.mxu0 0
  %1982 = vmatpush1.bf16.msra.mxu0 0
  %1983 = vmatprep.subr.bf16.mxu0 0
  %1984 = vmatpush1.bf16.msra.mxu0 0
  %1985 = vmatprep.subr.bf16.mxu0 0
  %1986 = vmatpush1.bf16.msra.mxu0 0
  %1987 = vmatprep.subr.bf16.mxu0 0
  %1988 = vmatpush1.bf16.msra.mxu0 0
  %1989 = vmatprep.subr.bf16.mxu0 0
  %1990 = vmatpush1.bf16.msra.mxu0 0
  %1991 = vmatprep.subr.bf16.mxu0 0
  %1992 = vmatpush1.bf16.msra.mxu0 0
  %1993 = vmatprep.subr.bf16.mxu0 0
  %1994 = vmatpush1.bf16.msra.mxu0 0
  %1995 = vmatprep.subr.bf16.mxu0 0
  %1996 = vmatpush1.bf16.msra.mxu0 0
  %1997 = vmatprep.subr.bf16.mxu0 0
  %1998 = vmatpush1.bf16.msra.mxu0 0
  %1999 = vmatprep.subr.bf16.mxu0 0
  %2000 = vmatpush1.bf16.msra.mxu0 0
  %2001 = vmatprep.subr.bf16.mxu0 0
  %2002 = vmatpush1.bf16.msra.mxu0 0
  %2003 = vmatprep.subr.bf16.mxu0 0
  %2004 = vmatpush1.bf16.msra.mxu0 0
  %2005 = vmatprep.mubr.bf16.mxu0 0
  %2006 = vmatmul.mubr.bf16.gmra.mrb[0].mxu0 %v1300
  %v2007 = vpop.f32.mrb[0].mxu0
  %v2008 = vadd.f32 %v1719, %v2007
  %v2009 = vpop.f32.mrb[0].mxu0
  %v2010 = vpop.f32.mrb[0].mxu0
  %v2011 = vadd.f32 %v1722, %v2010
  %v2012 = vpop.f32.mrb[0].mxu0
  %2013 = vmatprep.mubr.bf16.mxu0 0
  %2014 = vmatmul.mubr.bf16.gmra.mrb[0].mxu0 %v1303
  %v2015 = vpop.f32.mrb[0].mxu0
  %v2016 = vadd.f32 %v1727, %v2015
  %v2017 = vpop.f32.mrb[0].mxu0
  %v2018 = vpop.f32.mrb[0].mxu0
  %v2019 = vadd.f32 %v1730, %v2018
  %v2020 = vpop.f32.mrb[0].mxu0
  %2021 = vmatprep.mubr.bf16.mxu0 0
  %2022 = vmatmul.mubr.bf16.gmra.mrb[0].mxu0 %v1306
  %v2023 = vpop.f32.mrb[0].mxu0
  %v2024 = vadd.f32 %v1735, %v2023
  %v2025 = vpop.f32.mrb[0].mxu0
  %v2026 = vpop.f32.mrb[0].mxu0
  %v2027 = vadd.f32 %v1738, %v2026
  %v2028 = vpop.f32.mrb[0].mxu0
  %2029 = vmatprep.mubr.bf16.mxu0 0
  %2030 = vmatmul.mubr.bf16.gmra.mrb[0].mxu0 %v1309
  %v2031 = vpop.f32.mrb[0].mxu0
  %v2032 = vadd.f32 %v1743, %v2031
  %v2033 = vpop.f32.mrb[0].mxu0
  %v2034 = vpop.f32.mrb[0].mxu0
  %v2035 = vadd.f32 %v1746, %v2034
  %v2036 = vpop.f32.mrb[0].mxu0
  %2037 = vmatprep.mubr.bf16.mxu0 0
  %2038 = vmatmul.mubr.bf16.gmra.mrb[0].mxu0 %v1312
  %v2039 = vpop.f32.mrb[0].mxu0
  %v2040 = vadd.f32 %v1751, %v2039
  %v2041 = vpop.f32.mrb[0].mxu0
  %v2042 = vpop.f32.mrb[0].mxu0
  %v2043 = vadd.f32 %v1754, %v2042
  %v2044 = vpop.f32.mrb[0].mxu0
  %2045 = vmatprep.mubr.bf16.mxu0 0
  %2046 = vmatmul.mubr.bf16.gmra.mrb[0].mxu0 %v1315
  %v2047 = vpop.f32.mrb[0].mxu0
  %v2048 = vadd.f32 %v1759, %v2047
  %v2049 = vpop.f32.mrb[0].mxu0
  %v2050 = vpop.f32.mrb[0].mxu0
  %v2051 = vadd.f32 %v1762, %v2050
  %v2052 = vpop.f32.mrb[0].mxu0
  %2053 = vmatprep.mubr.bf16.mxu0 0
  %2054 = vmatmul.mubr.bf16.gmra.mrb[0].mxu0 %v1318
  %v2055 = vpop.f32.mrb[0].mxu0
  %v2056 = vadd.f32 %v1767, %v2055
  %v2057 = vpop.f32.mrb[0].mxu0
  %v2058 = vpop.f32.mrb[0].mxu0
  %v2059 = vadd.f32 %v1770, %v2058
  %v2060 = vpop.f32.mrb[0].mxu0
  %2061 = vmatprep.mubr.bf16.mxu0 0
  %2062 = vmatmul.mubr.bf16.gmra.mrb[0].mxu0 %v1321
  %v2063 = vpop.f32.mrb[0].mxu0
  %v2064 = vadd.f32 %v1775, %v2063
  %v2065 = vpop.f32.mrb[0].mxu0
  %v2066 = vpop.f32.mrb[0].mxu0
  %v2067 = vadd.f32 %v1778, %v2066
  %v2068 = vpop.f32.mrb[0].mxu0
  %2069 = vmatprep.mubr.bf16.mxu0 0
  %2070 = vmatmul.mubr.bf16.gmra.mrb[0].mxu0 %v1324
  %v2071 = vpop.f32.mrb[0].mxu0
  %v2072 = vadd.f32 %v1783, %v2071
  %v2073 = vpop.f32.mrb[0].mxu0
  %v2074 = vpop.f32.mrb[0].mxu0
  %v2075 = vadd.f32 %v1786, %v2074
  %v2076 = vpop.f32.mrb[0].mxu0
  %2077 = vmatprep.mubr.bf16.mxu0 0
  %2078 = vmatmul.mubr.bf16.gmra.mrb[0].mxu0 %v1327
  %v2079 = vpop.f32.mrb[0].mxu0
  %v2080 = vadd.f32 %v1791, %v2079
  %v2081 = vpop.f32.mrb[0].mxu0
  %v2082 = vpop.f32.mrb[0].mxu0
  %v2083 = vadd.f32 %v1794, %v2082
  %v2084 = vpop.f32.mrb[0].mxu0
  %2085 = vmatprep.mubr.bf16.mxu0 0
  %2086 = vmatmul.mubr.bf16.gmra.mrb[0].mxu0 %v1330
  %v2087 = vpop.f32.mrb[0].mxu0
  %v2088 = vadd.f32 %v1799, %v2087
  %v2089 = vpop.f32.mrb[0].mxu0
  %v2090 = vpop.f32.mrb[0].mxu0
  %v2091 = vadd.f32 %v1802, %v2090
  %v2092 = vpop.f32.mrb[0].mxu0
  %2093 = vmatprep.mubr.bf16.mxu0 0
  %2094 = vmatmul.mubr.bf16.gmra.mrb[0].mxu0 %v1333
  %v2095 = vpop.f32.mrb[0].mxu0
  %v2096 = vadd.f32 %v1807, %v2095
  %v2097 = vpop.f32.mrb[0].mxu0
  %v2098 = vpop.f32.mrb[0].mxu0
  %v2099 = vadd.f32 %v1810, %v2098
  %v2100 = vpop.f32.mrb[0].mxu0
  %2101 = vmatprep.mubr.bf16.mxu0 0
  %2102 = vmatmul.mubr.bf16.gmra.mrb[0].mxu0 %v1336
  %v2103 = vpop.f32.mrb[0].mxu0
  %v2104 = vadd.f32 %v1815, %v2103
  %v2105 = vpop.f32.mrb[0].mxu0
  %v2106 = vpop.f32.mrb[0].mxu0
  %v2107 = vadd.f32 %v1818, %v2106
  %v2108 = vpop.f32.mrb[0].mxu0
  %2109 = vmatprep.mubr.bf16.mxu0 0
  %2110 = vmatmul.mubr.bf16.gmra.mrb[0].mxu0 %v1339
  %v2111 = vpop.f32.mrb[0].mxu0
  %v2112 = vadd.f32 %v1823, %v2111
  %v2113 = vpop.f32.mrb[0].mxu0
  %v2114 = vpop.f32.mrb[0].mxu0
  %v2115 = vadd.f32 %v1826, %v2114
  %v2116 = vpop.f32.mrb[0].mxu0
  %2117 = vmatprep.mubr.bf16.mxu0 0
  %2118 = vmatmul.mubr.bf16.gmra.mrb[0].mxu0 %v1342
  %v2119 = vpop.f32.mrb[0].mxu0
  %v2120 = vadd.f32 %v1831, %v2119
  %v2121 = vpop.f32.mrb[0].mxu0
  %v2122 = vpop.f32.mrb[0].mxu0
  %v2123 = vadd.f32 %v1834, %v2122
  %v2124 = vpop.f32.mrb[0].mxu0
  %2125 = vmatprep.mubr.bf16.mxu0 0
  %2126 = vmatmul.mubr.bf16.gmra.mrb[0].mxu0 %v1345
  %v2127 = vpop.f32.mrb[0].mxu0
  %v2128 = vadd.f32 %v1839, %v2127
  %v2129 = vpop.f32.mrb[0].mxu0
  %v2130 = vpop.f32.mrb[0].mxu0
  %v2131 = vadd.f32 %v1842, %v2130
  %v2132 = vpop.f32.mrb[0].mxu0
  %2133 = vmatprep.mubr.bf16.mxu0 0
  %2134 = vmatmul.mubr.bf16.gmra.mrb[0].mxu0 %v1348
  %v2135 = vpop.f32.mrb[0].mxu0
  %v2136 = vadd.f32 %v1847, %v2135
  %v2137 = vpop.f32.mrb[0].mxu0
  %v2138 = vpop.f32.mrb[0].mxu0
  %v2139 = vadd.f32 %v1850, %v2138
  %v2140 = vpop.f32.mrb[0].mxu0
  %2141 = vmatprep.mubr.bf16.mxu0 0
  %2142 = vmatmul.mubr.bf16.gmra.mrb[0].mxu0 %v1351
  %v2143 = vpop.f32.mrb[0].mxu0
  %v2144 = vadd.f32 %v1855, %v2143
  %v2145 = vpop.f32.mrb[0].mxu0
  %v2146 = vpop.f32.mrb[0].mxu0
  %v2147 = vadd.f32 %v1858, %v2146
  %v2148 = vpop.f32.mrb[0].mxu0
  %2149 = vmatprep.mubr.bf16.mxu0 0
  %2150 = vmatmul.mubr.bf16.gmra.mrb[0].mxu0 %v1354
  %v2151 = vpop.f32.mrb[0].mxu0
  %v2152 = vadd.f32 %v1863, %v2151
  %v2153 = vpop.f32.mrb[0].mxu0
  %v2154 = vpop.f32.mrb[0].mxu0
  %v2155 = vadd.f32 %v1866, %v2154
  %v2156 = vpop.f32.mrb[0].mxu0
  %2157 = vmatprep.mubr.bf16.mxu0 0
  %2158 = vmatmul.mubr.bf16.gmra.mrb[0].mxu0 %v1357
  %v2159 = vpop.f32.mrb[0].mxu0
  %v2160 = vadd.f32 %v1871, %v2159
  %v2161 = vpop.f32.mrb[0].mxu0
  %v2162 = vpop.f32.mrb[0].mxu0
  %v2163 = vadd.f32 %v1874, %v2162
  %v2164 = vpop.f32.mrb[0].mxu0
  %2165 = vmatprep.mubr.bf16.mxu0 0
  %2166 = vmatmul.mubr.bf16.gmra.mrb[0].mxu0 %v1360
  %v2167 = vpop.f32.mrb[0].mxu0
  %v2168 = vadd.f32 %v1879, %v2167
  %v2169 = vpop.f32.mrb[0].mxu0
  %v2170 = vpop.f32.mrb[0].mxu0
  %v2171 = vadd.f32 %v1882, %v2170
  %v2172 = vpop.f32.mrb[0].mxu0
  %2173 = vmatprep.mubr.bf16.mxu0 0
  %2174 = vmatmul.mubr.bf16.gmra.mrb[0].mxu0 %v1363
  %v2175 = vpop.f32.mrb[0].mxu0
  %v2176 = vadd.f32 %v1887, %v2175
  %v2177 = vpop.f32.mrb[0].mxu0
  %v2178 = vpop.f32.mrb[0].mxu0
  %v2179 = vadd.f32 %v1890, %v2178
  %v2180 = vpop.f32.mrb[0].mxu0
  %2181 = vmatprep.mubr.bf16.mxu0 0
  %2182 = vmatmul.mubr.bf16.gmra.mrb[0].mxu0 %v1366
  %v2183 = vpop.f32.mrb[0].mxu0
  %v2184 = vadd.f32 %v1895, %v2183
  %v2185 = vpop.f32.mrb[0].mxu0
  %v2186 = vpop.f32.mrb[0].mxu0
  %v2187 = vadd.f32 %v1898, %v2186
  %v2188 = vpop.f32.mrb[0].mxu0
  %2189 = vmatprep.mubr.bf16.mxu0 0
  %2190 = vmatmul.mubr.bf16.gmra.mrb[0].mxu0 %v1369
  %v2191 = vpop.f32.mrb[0].mxu0
  %v2192 = vadd.f32 %v1903, %v2191
  %v2193 = vpop.f32.mrb[0].mxu0
  %v2194 = vpop.f32.mrb[0].mxu0
  %v2195 = vadd.f32 %v1906, %v2194
  %v2196 = vpop.f32.mrb[0].mxu0
  %2197 = vmatprep.mubr.bf16.mxu0 0
  %2198 = vmatmul.mubr.bf16.gmra.mrb[0].mxu0 %v1372
  %v2199 = vpop.f32.mrb[0].mxu0
  %v2200 = vadd.f32 %v1911, %v2199
  %v2201 = vpop.f32.mrb[0].mxu0
  %v2202 = vpop.f32.mrb[0].mxu0
  %v2203 = vadd.f32 %v1914, %v2202
  %v2204 = vpop.f32.mrb[0].mxu0
  %2205 = vmatprep.mubr.bf16.mxu0 0
  %2206 = vmatmul.mubr.bf16.gmra.mrb[0].mxu0 %v1375
  %v2207 = vpop.f32.mrb[0].mxu0
  %v2208 = vadd.f32 %v1919, %v2207
  %v2209 = vpop.f32.mrb[0].mxu0
  %v2210 = vpop.f32.mrb[0].mxu0
  %v2211 = vadd.f32 %v1922, %v2210
  %v2212 = vpop.f32.mrb[0].mxu0
  %2213 = vmatprep.mubr.bf16.mxu0 0
  %2214 = vmatmul.mubr.bf16.gmra.mrb[0].mxu0 %v1378
  %v2215 = vpop.f32.mrb[0].mxu0
  %v2216 = vadd.f32 %v1927, %v2215
  %v2217 = vpop.f32.mrb[0].mxu0
  %v2218 = vpop.f32.mrb[0].mxu0
  %v2219 = vadd.f32 %v1930, %v2218
  %v2220 = vpop.f32.mrb[0].mxu0
  %2221 = vmatprep.mubr.bf16.mxu0 0
  %2222 = vmatmul.mubr.bf16.gmra.mrb[0].mxu0 %v1381
  %v2223 = vpop.f32.mrb[0].mxu0
  %v2224 = vadd.f32 %v1935, %v2223
  %v2225 = vpop.f32.mrb[0].mxu0
  %v2226 = vpop.f32.mrb[0].mxu0
  %v2227 = vadd.f32 %v1938, %v2226
  %v2228 = vpop.f32.mrb[0].mxu0
  %2229 = vmatprep.mubr.bf16.mxu0 0
  %2230 = vmatmul.mubr.bf16.gmra.mrb[0].mxu0 %v1384
  %v2231 = vpop.f32.mrb[0].mxu0
  %v2232 = vadd.f32 %v1943, %v2231
  %v2233 = vpop.f32.mrb[0].mxu0
  %v2234 = vpop.f32.mrb[0].mxu0
  %v2235 = vadd.f32 %v1946, %v2234
  %v2236 = vpop.f32.mrb[0].mxu0
  %2237 = vmatprep.mubr.bf16.mxu0 0
  %2238 = vmatmul.mubr.bf16.gmra.mrb[0].mxu0 %v1387
  %v2239 = vpop.f32.mrb[0].mxu0
  %v2240 = vadd.f32 %v1951, %v2239
  %v2241 = vpop.f32.mrb[0].mxu0
  %v2242 = vpop.f32.mrb[0].mxu0
  %v2243 = vadd.f32 %v1954, %v2242
  %v2244 = vpop.f32.mrb[0].mxu0
  %2245 = vmatprep.mubr.bf16.mxu0 0
  %2246 = vmatmul.mubr.bf16.gmra.mrb[0].mxu0 %v1390
  %v2247 = vpop.f32.mrb[0].mxu0
  %v2248 = vadd.f32 %v1959, %v2247
  %v2249 = vpop.f32.mrb[0].mxu0
  %v2250 = vpop.f32.mrb[0].mxu0
  %v2251 = vadd.f32 %v1962, %v2250
  %v2252 = vpop.f32.mrb[0].mxu0
  %2253 = vmatprep.mubr.bf16.mxu0 0
  %2254 = vmatmul.mubr.bf16.gmra.mrb[0].mxu0 %v1393
  %v2255 = vpop.f32.mrb[0].mxu0
  %v2256 = vadd.f32 %v1967, %v2255
  %v2257 = vpop.f32.mrb[0].mxu0
  %v2258 = vpop.f32.mrb[0].mxu0
  %v2259 = vadd.f32 %v1970, %v2258
  %v2260 = vpop.f32.mrb[0].mxu0
  %2261 = vdwg.mxu0
  %v2262 = vld [vmem:[%s2] sm:$0x1]
  %v2264 = vlaneseq
  %v2265 = vshrl.u32 %v2264, 7
  %v2266 = vsub.s32 0, %v2265
  %v2267 = vrot.slane %v2262, %v2266
  %v2269 = vmul.f32 %v2008, %v2267
  %v2270 = vmul.f32 %v2011, %v2267
  %v2271 = vmul.f32 %v2016, %v2267
  %v2272 = vmul.f32 %v2019, %v2267
  %v2273 = vmul.f32 %v2024, %v2267
  %v2274 = vmul.f32 %v2027, %v2267
  %v2275 = vmul.f32 %v2032, %v2267
  %v2276 = vmul.f32 %v2035, %v2267
  %v2277 = vmul.f32 %v2040, %v2267
  %v2278 = vmul.f32 %v2043, %v2267
  %v2279 = vmul.f32 %v2048, %v2267
  %v2280 = vmul.f32 %v2051, %v2267
  %v2281 = vmul.f32 %v2056, %v2267
  %v2282 = vmul.f32 %v2059, %v2267
  %v2283 = vmul.f32 %v2064, %v2267
  %v2284 = vmul.f32 %v2067, %v2267
  %v2285 = vmul.f32 %v2072, %v2267
  %v2286 = vmul.f32 %v2075, %v2267
  %v2287 = vmul.f32 %v2080, %v2267
  %v2288 = vmul.f32 %v2083, %v2267
  %v2289 = vmul.f32 %v2088, %v2267
  %v2290 = vmul.f32 %v2091, %v2267
  %v2291 = vmul.f32 %v2096, %v2267
  %v2292 = vmul.f32 %v2099, %v2267
  %v2293 = vmul.f32 %v2104, %v2267
  %v2294 = vmul.f32 %v2107, %v2267
  %v2295 = vmul.f32 %v2112, %v2267
  %v2296 = vmul.f32 %v2115, %v2267
  %v2297 = vmul.f32 %v2120, %v2267
  %v2298 = vmul.f32 %v2123, %v2267
  %v2299 = vmul.f32 %v2128, %v2267
  %v2300 = vmul.f32 %v2131, %v2267
  %v2301 = vmul.f32 %v2136, %v2267
  %v2302 = vmul.f32 %v2139, %v2267
  %v2303 = vmul.f32 %v2144, %v2267
  %v2304 = vmul.f32 %v2147, %v2267
  %v2305 = vmul.f32 %v2152, %v2267
  %v2306 = vmul.f32 %v2155, %v2267
  %v2307 = vmul.f32 %v2160, %v2267
  %v2308 = vmul.f32 %v2163, %v2267
  %v2309 = vmul.f32 %v2168, %v2267
  %v2310 = vmul.f32 %v2171, %v2267
  %v2311 = vmul.f32 %v2176, %v2267
  %v2312 = vmul.f32 %v2179, %v2267
  %v2313 = vmul.f32 %v2184, %v2267
  %v2314 = vmul.f32 %v2187, %v2267
  %v2315 = vmul.f32 %v2192, %v2267
  %v2316 = vmul.f32 %v2195, %v2267
  %v2317 = vmul.f32 %v2200, %v2267
  %v2318 = vmul.f32 %v2203, %v2267
  %v2319 = vmul.f32 %v2208, %v2267
  %v2320 = vmul.f32 %v2211, %v2267
  %v2321 = vmul.f32 %v2216, %v2267
  %v2322 = vmul.f32 %v2219, %v2267
  %v2323 = vmul.f32 %v2224, %v2267
  %v2324 = vmul.f32 %v2227, %v2267
  %v2325 = vmul.f32 %v2232, %v2267
  %v2326 = vmul.f32 %v2235, %v2267
  %v2327 = vmul.f32 %v2240, %v2267
  %v2328 = vmul.f32 %v2243, %v2267
  %v2329 = vmul.f32 %v2248, %v2267
  %v2330 = vmul.f32 %v2251, %v2267
  %v2331 = vmul.f32 %v2256, %v2267
  %v2332 = vmul.f32 %v2259, %v2267
  %v2333 = vld [vmem:[%s3] sm:$0x1]
  %v2335 = vlaneseq
  %v2336 = vshrl.u32 %v2335, 7
  %v2337 = vsub.s32 0, %v2336
  %v2338 = vrot.slane %v2333, %v2337
  %v2340 = vadd.f32 %v2269, %v2338
  %v2341 = vadd.f32 %v2270, %v2338
  %v2342 = vadd.f32 %v2271, %v2338
  %v2343 = vadd.f32 %v2272, %v2338
  %v2344 = vadd.f32 %v2273, %v2338
  %v2345 = vadd.f32 %v2274, %v2338
  %v2346 = vadd.f32 %v2275, %v2338
  %v2347 = vadd.f32 %v2276, %v2338
  %v2348 = vadd.f32 %v2277, %v2338
  %v2349 = vadd.f32 %v2278, %v2338
  %v2350 = vadd.f32 %v2279, %v2338
  %v2351 = vadd.f32 %v2280, %v2338
  %v2352 = vadd.f32 %v2281, %v2338
  %v2353 = vadd.f32 %v2282, %v2338
  %v2354 = vadd.f32 %v2283, %v2338
  %v2355 = vadd.f32 %v2284, %v2338
  %v2356 = vadd.f32 %v2285, %v2338
  %v2357 = vadd.f32 %v2286, %v2338
  %v2358 = vadd.f32 %v2287, %v2338
  %v2359 = vadd.f32 %v2288, %v2338
  %v2360 = vadd.f32 %v2289, %v2338
  %v2361 = vadd.f32 %v2290, %v2338
  %v2362 = vadd.f32 %v2291, %v2338
  %v2363 = vadd.f32 %v2292, %v2338
  %v2364 = vadd.f32 %v2293, %v2338
  %v2365 = vadd.f32 %v2294, %v2338
  %v2366 = vadd.f32 %v2295, %v2338
  %v2367 = vadd.f32 %v2296, %v2338
  %v2368 = vadd.f32 %v2297, %v2338
  %v2369 = vadd.f32 %v2298, %v2338
  %v2370 = vadd.f32 %v2299, %v2338
  %v2371 = vadd.f32 %v2300, %v2338
  %v2372 = vadd.f32 %v2301, %v2338
  %v2373 = vadd.f32 %v2302, %v2338
  %v2374 = vadd.f32 %v2303, %v2338
  %v2375 = vadd.f32 %v2304, %v2338
  %v2376 = vadd.f32 %v2305, %v2338
  %v2377 = vadd.f32 %v2306, %v2338
  %v2378 = vadd.f32 %v2307, %v2338
  %v2379 = vadd.f32 %v2308, %v2338
  %v2380 = vadd.f32 %v2309, %v2338
  %v2381 = vadd.f32 %v2310, %v2338
  %v2382 = vadd.f32 %v2311, %v2338
  %v2383 = vadd.f32 %v2312, %v2338
  %v2384 = vadd.f32 %v2313, %v2338
  %v2385 = vadd.f32 %v2314, %v2338
  %v2386 = vadd.f32 %v2315, %v2338
  %v2387 = vadd.f32 %v2316, %v2338
  %v2388 = vadd.f32 %v2317, %v2338
  %v2389 = vadd.f32 %v2318, %v2338
  %v2390 = vadd.f32 %v2319, %v2338
  %v2391 = vadd.f32 %v2320, %v2338
  %v2392 = vadd.f32 %v2321, %v2338
  %v2393 = vadd.f32 %v2322, %v2338
  %v2394 = vadd.f32 %v2323, %v2338
  %v2395 = vadd.f32 %v2324, %v2338
  %v2396 = vadd.f32 %v2325, %v2338
  %v2397 = vadd.f32 %v2326, %v2338
  %v2398 = vadd.f32 %v2327, %v2338
  %v2399 = vadd.f32 %v2328, %v2338
  %v2400 = vadd.f32 %v2329, %v2338
  %v2401 = vadd.f32 %v2330, %v2338
  %v2402 = vadd.f32 %v2331, %v2338
  %v2403 = vadd.f32 %v2332, %v2338
  %v2404 = vmax.f32 %v2340, 0.0
  %v2405 = vmax.f32 %v2341, 0.0
  %v2406 = vmax.f32 %v2342, 0.0
  %v2407 = vmax.f32 %v2343, 0.0
  %v2408 = vmax.f32 %v2344, 0.0
  %v2409 = vmax.f32 %v2345, 0.0
  %v2410 = vmax.f32 %v2346, 0.0
  %v2411 = vmax.f32 %v2347, 0.0
  %v2412 = vmax.f32 %v2348, 0.0
  %v2413 = vmax.f32 %v2349, 0.0
  %v2414 = vmax.f32 %v2350, 0.0
  %v2415 = vmax.f32 %v2351, 0.0
  %v2416 = vmax.f32 %v2352, 0.0
  %v2417 = vmax.f32 %v2353, 0.0
  %v2418 = vmax.f32 %v2354, 0.0
  %v2419 = vmax.f32 %v2355, 0.0
  %v2420 = vmax.f32 %v2356, 0.0
  %v2421 = vmax.f32 %v2357, 0.0
  %v2422 = vmax.f32 %v2358, 0.0
  %v2423 = vmax.f32 %v2359, 0.0
  %v2424 = vmax.f32 %v2360, 0.0
  %v2425 = vmax.f32 %v2361, 0.0
  %v2426 = vmax.f32 %v2362, 0.0
  %v2427 = vmax.f32 %v2363, 0.0
  %v2428 = vmax.f32 %v2364, 0.0
  %v2429 = vmax.f32 %v2365, 0.0
  %v2430 = vmax.f32 %v2366, 0.0
  %v2431 = vmax.f32 %v2367, 0.0
  %v2432 = vmax.f32 %v2368, 0.0
  %v2433 = vmax.f32 %v2369, 0.0
  %v2434 = vmax.f32 %v2370, 0.0
  %v2435 = vmax.f32 %v2371, 0.0
  %v2436 = vmax.f32 %v2372, 0.0
  %v2437 = vmax.f32 %v2373, 0.0
  %v2438 = vmax.f32 %v2374, 0.0
  %v2439 = vmax.f32 %v2375, 0.0
  %v2440 = vmax.f32 %v2376, 0.0
  %v2441 = vmax.f32 %v2377, 0.0
  %v2442 = vmax.f32 %v2378, 0.0
  %v2443 = vmax.f32 %v2379, 0.0
  %v2444 = vmax.f32 %v2380, 0.0
  %v2445 = vmax.f32 %v2381, 0.0
  %v2446 = vmax.f32 %v2382, 0.0
  %v2447 = vmax.f32 %v2383, 0.0
  %v2448 = vmax.f32 %v2384, 0.0
  %v2449 = vmax.f32 %v2385, 0.0
  %v2450 = vmax.f32 %v2386, 0.0
  %v2451 = vmax.f32 %v2387, 0.0
  %v2452 = vmax.f32 %v2388, 0.0
  %v2453 = vmax.f32 %v2389, 0.0
  %v2454 = vmax.f32 %v2390, 0.0
  %v2455 = vmax.f32 %v2391, 0.0
  %v2456 = vmax.f32 %v2392, 0.0
  %v2457 = vmax.f32 %v2393, 0.0
  %v2458 = vmax.f32 %v2394, 0.0
  %v2459 = vmax.f32 %v2395, 0.0
  %v2460 = vmax.f32 %v2396, 0.0
  %v2461 = vmax.f32 %v2397, 0.0
  %v2462 = vmax.f32 %v2398, 0.0
  %v2463 = vmax.f32 %v2399, 0.0
  %v2464 = vmax.f32 %v2400, 0.0
  %v2465 = vmax.f32 %v2401, 0.0
  %v2466 = vmax.f32 %v2402, 0.0
  %v2467 = vmax.f32 %v2403, 0.0
  %v2468 = vmax.f32 %v2404, %v2412
  %v2469 = vmax.f32 %v2405, %v2413
  %v2470 = vmax.f32 %v2406, %v2414
  %v2471 = vmax.f32 %v2407, %v2415
  %v2472 = vmax.f32 %v2408, %v2416
  %v2473 = vmax.f32 %v2409, %v2417
  %v2474 = vmax.f32 %v2410, %v2418
  %v2475 = vmax.f32 %v2411, %v2419
  %v2476 = vmax.f32 %v2420, %v2428
  %v2477 = vmax.f32 %v2421, %v2429
  %v2478 = vmax.f32 %v2422, %v2430
  %v2479 = vmax.f32 %v2423, %v2431
  %v2480 = vmax.f32 %v2424, %v2432
  %v2481 = vmax.f32 %v2425, %v2433
  %v2482 = vmax.f32 %v2426, %v2434
  %v2483 = vmax.f32 %v2427, %v2435
  %v2484 = vmax.f32 %v2468, %v2476
  %v2485 = vmax.f32 %v2469, %v2477
  %v2486 = vmax.f32 %v2470, %v2478
  %v2487 = vmax.f32 %v2471, %v2479
  %v2488 = vmax.f32 %v2472, %v2480
  %v2489 = vmax.f32 %v2473, %v2481
  %v2490 = vmax.f32 %v2474, %v2482
  %v2491 = vmax.f32 %v2475, %v2483
  %v2492 = vpack.c.bf16 %v2485, %v2484
  %v2493 = vpack.c.bf16 %v2487, %v2486
  %v2494 = vpack.c.bf16 %v2489, %v2488
  %v2495 = vpack.c.bf16 %v2491, %v2490
  %v2500 = vunpack.c.l.b16 %v2492
  %v2501 = vunpack.c.h.b16 %v2492
  %v2502 = vunpack.c.l.b16 %v2493
  %v2503 = vunpack.c.h.b16 %v2493
  %v2504 = vunpack.c.l.b16 %v2494
  %v2505 = vunpack.c.h.b16 %v2494
  %v2506 = vunpack.c.l.b16 %v2495
  %v2507 = vunpack.c.h.b16 %v2495
  %v2508 = vpack.c.b16 %v2500, %v2500
  %v2509 = vpack.c.b16 %v2501, %v2501
  %v2510 = vpack.c.b16 %v2502, %v2502
  %v2511 = vpack.c.b16 %v2503, %v2503
  %v2512 = vpack.c.b16 %v2504, %v2504
  %v2513 = vpack.c.b16 %v2505, %v2505
  %v2514 = vpack.c.b16 %v2506, %v2506
  %v2515 = vpack.c.b16 %v2507, %v2507
  %2524 = vst [vmem:[%s4] sm:$0xf] %v2508
  %2525 = vst [vmem:[%s4 + $0x4] sm:$0xf] %v2509
  %2526 = vst [vmem:[%s4 + $0x8] sm:$0xf] %v2510
  %2527 = vst [vmem:[%s4 + $0xc] sm:$0xf] %v2511
  %2528 = vst [vmem:[%s4 + $0x10] sm:$0xf] %v2512
  %2529 = vst [vmem:[%s4 + $0x14] sm:$0xf] %v2513
  %2530 = vst [vmem:[%s4 + $0x18] sm:$0xf] %v2514
  %2531 = vst [vmem:[%s4 + $0x1c] sm:$0xf] %v2515
  %v2532 = vmax.f32 %v2436, %v2444
  %v2533 = vmax.f32 %v2437, %v2445
  %v2534 = vmax.f32 %v2438, %v2446
  %v2535 = vmax.f32 %v2439, %v2447
  %v2536 = vmax.f32 %v2440, %v2448
  %v2537 = vmax.f32 %v2441, %v2449
  %v2538 = vmax.f32 %v2442, %v2450
  %v2539 = vmax.f32 %v2443, %v2451
  %v2540 = vmax.f32 %v2452, %v2460
  %v2541 = vmax.f32 %v2453, %v2461
  %v2542 = vmax.f32 %v2454, %v2462
  %v2543 = vmax.f32 %v2455, %v2463
  %v2544 = vmax.f32 %v2456, %v2464
  %v2545 = vmax.f32 %v2457, %v2465
  %v2546 = vmax.f32 %v2458, %v2466
  %v2547 = vmax.f32 %v2459, %v2467
  %v2548 = vmax.f32 %v2532, %v2540
  %v2549 = vmax.f32 %v2533, %v2541
  %v2550 = vmax.f32 %v2534, %v2542
  %v2551 = vmax.f32 %v2535, %v2543
  %v2552 = vmax.f32 %v2536, %v2544
  %v2553 = vmax.f32 %v2537, %v2545
  %v2554 = vmax.f32 %v2538, %v2546
  %v2555 = vmax.f32 %v2539, %v2547
  %v2556 = vpack.c.bf16 %v2549, %v2548
  %v2557 = vpack.c.bf16 %v2551, %v2550
  %v2558 = vpack.c.bf16 %v2553, %v2552
  %v2559 = vpack.c.bf16 %v2555, %v2554
  %v2564 = vunpack.c.l.b16 %v2556
  %v2565 = vunpack.c.h.b16 %v2556
  %v2566 = vunpack.c.l.b16 %v2557
  %v2567 = vunpack.c.h.b16 %v2557
  %v2568 = vunpack.c.l.b16 %v2558
  %v2569 = vunpack.c.h.b16 %v2558
  %v2570 = vunpack.c.l.b16 %v2559
  %v2571 = vunpack.c.h.b16 %v2559
  %v2572 = vpack.c.b16 %v2564, %v2564
  %v2573 = vpack.c.b16 %v2565, %v2565
  %v2574 = vpack.c.b16 %v2566, %v2566
  %v2575 = vpack.c.b16 %v2567, %v2567
  %v2576 = vpack.c.b16 %v2568, %v2568
  %v2577 = vpack.c.b16 %v2569, %v2569
  %v2578 = vpack.c.b16 %v2570, %v2570
  %v2579 = vpack.c.b16 %v2571, %v2571
  %2588 = vst [vmem:[%s4 + $0x20] sm:$0xf] %v2572
  %2589 = vst [vmem:[%s4 + $0x24] sm:$0xf] %v2573
  %2590 = vst [vmem:[%s4 + $0x28] sm:$0xf] %v2574
  %2591 = vst [vmem:[%s4 + $0x2c] sm:$0xf] %v2575
  %2592 = vst [vmem:[%s4 + $0x30] sm:$0xf] %v2576
  %2593 = vst [vmem:[%s4 + $0x34] sm:$0xf] %v2577
  %2594 = vst [vmem:[%s4 + $0x38] sm:$0xf] %v2578
  %2595 = vst [vmem:[%s4 + $0x3c] sm:$0xf] %v2579
  // Predicated region
  $region18: #{vgg_forward.6} parent=0 // pred_check
    _
  $region19: #{vgg_forward.6} parent=0 // pred_check_branch
    %2597 = sbr.rel (0) target = $region21
  $region20: #{vgg_forward.6} parent=0 // pred_region
    _
  $region21: #{vgg_forward.6} parent=0 // pred_fallthru
    _
  // Predicated region
  $region22: #{vgg_forward.6} parent=0 // pred_check
    _
  $region23: #{vgg_forward.6} parent=0 // pred_check_branch
    %2599 = sbr.rel (0) target = $region25
  $region24: #{vgg_forward.6} parent=0 // pred_region
    _
  $region25: #{vgg_forward.6} parent=0 // pred_fallthru
    _

// kernel: vgg_forward.8
$region0: #{vgg_forward.8}
  #allocation0 [shape = 'u32[]', space=smem, size = 0x4, offset = 0x4, fixed_abs, tag = 'smem constant byte address 0x4 - core index']
  #allocation1 [shape = 'u32[144,128]{1,0:T(1,128)}', space=vmem, size = 0x12000, scoped, tag = 'internal scratch']
  %s0 = inlined_call_operand.vmem [shape: bf16[2,512], index: 0, kind: input, shape index: {}]
  %s1 = inlined_call_operand.vmem [shape: s8[512,512], index: 1, kind: input, shape index: {}]
  %s2 = inlined_call_operand.vmem [shape: f32[1,512], index: 2, kind: input, shape index: {}]
  %s3 = inlined_call_operand.vmem [shape: f32[1,512], index: 3, kind: input, shape index: {}]
  %s4 = inlined_call_operand.vmem [shape: bf16[2,512], index: 4, kind: output, shape index: {}]
  %s5 = sld [smem:[#allocation0]]
  $region72: #{vgg_forward.8} parent=0
    _
  %s7 = ssub.s32 1, %s5
  %s8 = scalar_select 0, %s7, %s5
  $region1: #{vgg_forward.8} parent=0
    #allocation2 [shape = 'u8[262144]{0}', space=vmem, size = 0x40000, scoped, tag = 'input window, operand 1']
    loop: start=0, step=1, limit=4
    $region2: #{vgg_forward.8} parent=1 // loop_pre_header
      _
    $region3: #{vgg_forward.8} parent=1 // loop_header
      %s10 = sphi 0, %s14
      %p11 = scmp.ge.s32.totalorder %s10, 4
      %s18 = sphi 0, %s18
      %s20 = sphi 0, %s18
      %s21 = sphi 0, %s20
      %s35 = sphi 0, %s21
      %s41 = sphi 0, %s43
      %s44 = sphi 0, %s41
      %s45 = sphi 0, %s44
      %s61 = sphi 0, %s45
      %s67 = sphi 0, %s69
      %s70 = sphi 0, %s67
      %s71 = sphi 0, %s70
      %s87 = sphi 0, %s71
      %s93 = sphi 0, %s95
      %s96 = sphi 0, %s93
      %s97 = sphi 0, %s96
      %s113 = sphi 0, %s97
      %s119 = sphi 0, %s121
      %s122 = sphi 0, %s119
      %s123 = sphi 0, %s122
      %s139 = sphi 0, %s123
    $region4: #{vgg_forward.8} parent=1 // loop_header_branch
      %13 = sbr.rel (%p11) target = $region8
    $region5: #{vgg_forward.8} parent=1 // loop_body
      %s15 = ssub.s32 %s10, 1
      %s16 = ssub.s32 %s10, 2
      %s17 = sadd.s32 %s10, 1
      %s19 = sadd.s32 %s18, 1
      %p22 = scmp.eq.s32.totalorder %s10, 1
      %p23 = scmp.ne.s32.totalorder %s18, %s20
      %p24 = scmp.eq.s32.totalorder %s10, 0
      %p25 = por %p23, %p24
      %p26 = scmp.ne.s32.totalorder %s18, %s20
      %p27 = scmp.eq.s32.totalorder %s15, 1
      %p28 = por %p26, %p27
      %p29 = scmp.ne.s32.totalorder %s20, %s21
      %p30 = scmp.eq.s32.totalorder %s15, 0
      %p31 = por %p29, %p30
      %p32 = scmp.ne.s32.totalorder %s20, %s21
      %p33 = scmp.eq.s32.totalorder %s16, 1
      %p34 = por %p32, %p33
      %p36 = scmp.ne.s32.totalorder %s21, %s35
      %p37 = scmp.eq.s32.totalorder %s16, 0
      %p38 = por %p36, %p37
      %s39 = ssub.s32 %s10, %s17
      %p40 = scmp.eq.s32.totalorder %s39, 0
      %s42 = sadd.s32 %s41, 1
      %s43 = scalar_select %p40, %s41, %s42
      %p46 = pneg %p40
      %p47 = scmp.eq.s32.totalorder %s10, 1
      %p48 = por %p46, %p47
      %p49 = scmp.ne.s32.totalorder %s41, %s44
      %p50 = scmp.eq.s32.totalorder %s10, 0
      %p51 = por %p49, %p50
      %p52 = scmp.ne.s32.totalorder %s41, %s44
      %p53 = scmp.eq.s32.totalorder %s15, 1
      %p54 = por %p52, %p53
      %p55 = scmp.ne.s32.totalorder %s44, %s45
      %p56 = scmp.eq.s32.totalorder %s15, 0
      %p57 = por %p55, %p56
      %p58 = scmp.ne.s32.totalorder %s44, %s45
      %p59 = scmp.eq.s32.totalorder %s16, 1
      %p60 = por %p58, %p59
      %p62 = scmp.ne.s32.totalorder %s45, %s61
      %p63 = scmp.eq.s32.totalorder %s16, 0
      %p64 = por %p62, %p63
      %s65 = ssub.s32 %s10, %s17
      %p66 = scmp.eq.s32.totalorder %s65, 0
      %s68 = sadd.s32 %s67, 1
      %s69 = scalar_select %p66, %s67, %s68
      %p72 = pneg %p66
      %p73 = scmp.eq.s32.totalorder %s10, 1
      %p74 = por %p72, %p73
      %p75 = scmp.ne.s32.totalorder %s67, %s70
      %p76 = scmp.eq.s32.totalorder %s10, 0
      %p77 = por %p75, %p76
      %p78 = scmp.ne.s32.totalorder %s67, %s70
      %p79 = scmp.eq.s32.totalorder %s15, 1
      %p80 = por %p78, %p79
      %p81 = scmp.ne.s32.totalorder %s70, %s71
      %p82 = scmp.eq.s32.totalorder %s15, 0
      %p83 = por %p81, %p82
      %p84 = scmp.ne.s32.totalorder %s70, %s71
      %p85 = scmp.eq.s32.totalorder %s16, 1
      %p86 = por %p84, %p85
      %p88 = scmp.ne.s32.totalorder %s71, %s87
      %p89 = scmp.eq.s32.totalorder %s16, 0
      %p90 = por %p88, %p89
      %s91 = ssub.s32 %s10, %s17
      %p92 = scmp.eq.s32.totalorder %s91, 0
      %s94 = sadd.s32 %s93, 1
      %s95 = scalar_select %p92, %s93, %s94
      %p98 = pneg %p92
      %p99 = scmp.eq.s32.totalorder %s10, 1
      %p100 = por %p98, %p99
      %p101 = scmp.ne.s32.totalorder %s93, %s96
      %p102 = scmp.eq.s32.totalorder %s10, 0
      %p103 = por %p101, %p102
      %p104 = scmp.ne.s32.totalorder %s93, %s96
      %p105 = scmp.eq.s32.totalorder %s15, 1
      %p106 = por %p104, %p105
      %p107 = scmp.ne.s32.totalorder %s96, %s97
      %p108 = scmp.eq.s32.totalorder %s15, 0
      %p109 = por %p107, %p108
      %p110 = scmp.ne.s32.totalorder %s96, %s97
      %p111 = scmp.eq.s32.totalorder %s16, 1
      %p112 = por %p110, %p111
      %p114 = scmp.ne.s32.totalorder %s97, %s113
      %p115 = scmp.eq.s32.totalorder %s16, 0
      %p116 = por %p114, %p115
      %s117 = ssub.s32 %s10, %s17
      %p118 = scmp.eq.s32.totalorder %s117, 0
      %s120 = sadd.s32 %s119, 1
      %s121 = scalar_select %p118, %s119, %s120
      %p124 = pneg %p118
      %p125 = scmp.eq.s32.totalorder %s10, 1
      %p126 = por %p124, %p125
      %p127 = scmp.ne.s32.totalorder %s119, %s122
      %p128 = scmp.eq.s32.totalorder %s10, 0
      %p129 = por %p127, %p128
      %p130 = scmp.ne.s32.totalorder %s119, %s122
      %p131 = scmp.eq.s32.totalorder %s15, 1
      %p132 = por %p130, %p131
      %p133 = scmp.ne.s32.totalorder %s122, %s123
      %p134 = scmp.eq.s32.totalorder %s15, 0
      %p135 = por %p133, %p134
      %p136 = scmp.ne.s32.totalorder %s122, %s123
      %p137 = scmp.eq.s32.totalorder %s16, 1
      %p138 = por %p136, %p137
      %p140 = scmp.ne.s32.totalorder %s123, %s139
      %p141 = scmp.eq.s32.totalorder %s16, 0
      %p142 = por %p140, %p141
      %p143 = scmp.le.s32.totalorder 1, %s10
      %p144 = scmp.lt.s32.totalorder %s10, 3
      %p145 = pnand %p143, %p144
      %p146 = pneg %p145
      // Predicated region
      $region9: #{vgg_forward.8} parent=5 // pred_check
        _
      $region10: #{vgg_forward.8} parent=5 // pred_check_branch
        %148 = sbr.rel (%p145) target = $region12
      $region11: #{vgg_forward.8} parent=5 // pred_region
        %s149 = ssub.s32 %s10, 1
        // Predicated region
        $region13: #{vgg_forward.8} parent=11 // pred_check
          %p150 = pneg %p31
        $region14: #{vgg_forward.8} parent=11 // pred_check_branch
          %152 = sbr.rel (%p150) target = $region16
        $region15: #{vgg_forward.8} parent=11 // pred_region
          _
        $region16: #{vgg_forward.8} parent=11 // pred_fallthru
          _
      $region12: #{vgg_forward.8} parent=5 // pred_fallthru
        _
      %p153 = scmp.lt.s32.totalorder %s10, 2
      // Predicated region
      $region17: #{vgg_forward.8} parent=5 // pred_check
        %p154 = pneg %p153
      $region18: #{vgg_forward.8} parent=5 // pred_check_branch
        %156 = sbr.rel (%p154) target = $region20
      $region19: #{vgg_forward.8} parent=5 // pred_region
        // Predicated region
        $region21: #{vgg_forward.8} parent=19 // pred_check
          %p157 = pneg %p51
        $region22: #{vgg_forward.8} parent=19 // pred_check_branch
          %159 = sbr.rel (%p157) target = $region24
        $region23: #{vgg_forward.8} parent=19 // pred_region
          %s160 = sand.u32 %s41, 1
          %s161 = sand.u32 %s41, 1
          %s162 = smul.addr %s161, 256
          %s163 = scalar_lea.vmem [#allocation2], %s162
          %s164 = smul.u32 2, %s10
          %s165 = smul.addr %s164, 8
          %s166 = scalar_lea.vmem %s1, %s165
          // Predicated region
          $region25: #{vgg_forward.8} parent=23 // pred_check
            _
          $region26: #{vgg_forward.8} parent=23 // pred_check_branch
            %168 = sbr.rel (0) target = $region28
          $region27: #{vgg_forward.8} parent=23 // pred_region
            // Predicated region
            $region29: #{vgg_forward.8} parent=27 // pred_check
              _
            $region30: #{vgg_forward.8} parent=27 // pred_check_branch
              %170 = sbr.rel (0) target = $region32
            $region31: #{vgg_forward.8} parent=27 // pred_region
              loop: start=0, step=1, limit=1
              $region33: #{vgg_forward.8} parent=31 // loop_pre_header
                _
              $region34: #{vgg_forward.8} parent=31 // loop_header
                %s172 = sphi 0, %s176
                %p173 = scmp.ge.s32.totalorder %s172, 1
                %s177 = sphi %s166, %s166
                %s178 = sphi %s163, %s163
              $region35: #{vgg_forward.8} parent=31 // loop_header_branch
                %175 = sbr.rel (%p173) target = $region39
              $region36: #{vgg_forward.8} parent=31 // loop_body
                %v179 = vld [vmem:[%s177] sm:$0xff]
                %180 = vst [vmem:[%s178] sm:$0xff] %v179
                %v181 = vld [vmem:[%s177 + $0x8] sm:$0xff]
                %182 = vst [vmem:[%s178 + $0x8] sm:$0xff] %v181
                %v183 = vld [vmem:[%s177 + $0x20] sm:$0xff]
                %184 = vst [vmem:[%s178 + $0x10] sm:$0xff] %v183
                %v185 = vld [vmem:[%s177 + $0x28] sm:$0xff]
                %186 = vst [vmem:[%s178 + $0x18] sm:$0xff] %v185
                %v187 = vld [vmem:[%s177 + $0x40] sm:$0xff]
                %188 = vst [vmem:[%s178 + $0x20] sm:$0xff] %v187
                %v189 = vld [vmem:[%s177 + $0x48] sm:$0xff]
                %190 = vst [vmem:[%s178 + $0x28] sm:$0xff] %v189
                %v191 = vld [vmem:[%s177 + $0x60] sm:$0xff]
                %192 = vst [vmem:[%s178 + $0x30] sm:$0xff] %v191
                %v193 = vld [vmem:[%s177 + $0x68] sm:$0xff]
                %194 = vst [vmem:[%s178 + $0x38] sm:$0xff] %v193
                %v195 = vld [vmem:[%s177 + $0x80] sm:$0xff]
                %196 = vst [vmem:[%s178 + $0x40] sm:$0xff] %v195
                %v197 = vld [vmem:[%s177 + $0x88] sm:$0xff]
                %198 = vst [vmem:[%s178 + $0x48] sm:$0xff] %v197
                %v199 = vld [vmem:[%s177 + $0xa0] sm:$0xff]
                %200 = vst [vmem:[%s178 + $0x50] sm:$0xff] %v199
                %v201 = vld [vmem:[%s177 + $0xa8] sm:$0xff]
                %202 = vst [vmem:[%s178 + $0x58] sm:$0xff] %v201
                %v203 = vld [vmem:[%s177 + $0xc0] sm:$0xff]
                %204 = vst [vmem:[%s178 + $0x60] sm:$0xff] %v203
                %v205 = vld [vmem:[%s177 + $0xc8] sm:$0xff]
                %206 = vst [vmem:[%s178 + $0x68] sm:$0xff] %v205
                %v207 = vld [vmem:[%s177 + $0xe0] sm:$0xff]
                %208 = vst [vmem:[%s178 + $0x70] sm:$0xff] %v207
                %v209 = vld [vmem:[%s177 + $0xe8] sm:$0xff]
                %210 = vst [vmem:[%s178 + $0x78] sm:$0xff] %v209
                %v211 = vld [vmem:[%s177 + $0x100] sm:$0xff]
                %212 = vst [vmem:[%s178 + $0x80] sm:$0xff] %v211
                %v213 = vld [vmem:[%s177 + $0x108] sm:$0xff]
                %214 = vst [vmem:[%s178 + $0x88] sm:$0xff] %v213
                %v215 = vld [vmem:[%s177 + $0x120] sm:$0xff]
                %216 = vst [vmem:[%s178 + $0x90] sm:$0xff] %v215
                %v217 = vld [vmem:[%s177 + $0x128] sm:$0xff]
                %218 = vst [vmem:[%s178 + $0x98] sm:$0xff] %v217
                %v219 = vld [vmem:[%s177 + $0x140] sm:$0xff]
                %220 = vst [vmem:[%s178 + $0xa0] sm:$0xff] %v219
                %v221 = vld [vmem:[%s177 + $0x148] sm:$0xff]
                %222 = vst [vmem:[%s178 + $0xa8] sm:$0xff] %v221
                %v223 = vld [vmem:[%s177 + $0x160] sm:$0xff]
                %224 = vst [vmem:[%s178 + $0xb0] sm:$0xff] %v223
                %v225 = vld [vmem:[%s177 + $0x168] sm:$0xff]
                %226 = vst [vmem:[%s178 + $0xb8] sm:$0xff] %v225
                %v227 = vld [vmem:[%s177 + $0x180] sm:$0xff]
                %228 = vst [vmem:[%s178 + $0xc0] sm:$0xff] %v227
                %v229 = vld [vmem:[%s177 + $0x188] sm:$0xff]
                %230 = vst [vmem:[%s178 + $0xc8] sm:$0xff] %v229
                %v231 = vld [vmem:[%s177 + $0x1a0] sm:$0xff]
                %232 = vst [vmem:[%s178 + $0xd0] sm:$0xff] %v231
                %v233 = vld [vmem:[%s177 + $0x1a8] sm:$0xff]
                %234 = vst [vmem:[%s178 + $0xd8] sm:$0xff] %v233
                %v235 = vld [vmem:[%s177 + $0x1c0] sm:$0xff]
                %236 = vst [vmem:[%s178 + $0xe0] sm:$0xff] %v235
                %v237 = vld [vmem:[%s177 + $0x1c8] sm:$0xff]
                %238 = vst [vmem:[%s178 + $0xe8] sm:$0xff] %v237
                %v239 = vld [vmem:[%s177 + $0x1e0] sm:$0xff]
                %240 = vst [vmem:[%s178 + $0xf0] sm:$0xff] %v239
                %v241 = vld [vmem:[%s177 + $0x1e8] sm:$0xff]
                %242 = vst [vmem:[%s178 + $0xf8] sm:$0xff] %v241
              $region37: #{vgg_forward.8} parent=31 // loop_footer
                %s176 = sadd.s32 1, %s172
              $region38: #{vgg_forward.8} parent=31 // loop_footer_branch
                %171 = sbr.rel target = $region34
              $region39: #{vgg_forward.8} parent=31 // loop_exit
                _
            $region32: #{vgg_forward.8} parent=27 // pred_fallthru
              _
            // Predicated region
            $region40: #{vgg_forward.8} parent=27 // pred_check
              _
            $region41: #{vgg_forward.8} parent=27 // pred_check_branch
              %244 = sbr.rel target = $region43
            $region42: #{vgg_forward.8} parent=27 // pred_region
              _
            $region43: #{vgg_forward.8} parent=27 // pred_fallthru
              _
          $region28: #{vgg_forward.8} parent=23 // pred_fallthru
            _
          %245 = vnop
        $region24: #{vgg_forward.8} parent=19 // pred_fallthru
          _
        // Predicated region
        $region44: #{vgg_forward.8} parent=19 // pred_check
          %p246 = pneg %p77
        $region45: #{vgg_forward.8} parent=19 // pred_check_branch
          %248 = sbr.rel (%p246) target = $region47
        $region46: #{vgg_forward.8} parent=19 // pred_region
          %s249 = smul.u32 2, %s10
          %p250 = scmp.lt.s32.totalorder %s249, 3
          %s251 = scalar_select %p250, %s249, 3
          %s252 = scalar_lea.vmem %s2, %s251
          %s253 = smul.u32 2, %s10
        $region47: #{vgg_forward.8} parent=19 // pred_fallthru
          _
        // Predicated region
        $region48: #{vgg_forward.8} parent=19 // pred_check
          %p254 = pneg %p103
        $region49: #{vgg_forward.8} parent=19 // pred_check_branch
          %256 = sbr.rel (%p254) target = $region51
        $region50: #{vgg_forward.8} parent=19 // pred_region
          %s257 = smul.u32 2, %s10
          %p258 = scmp.lt.s32.totalorder %s257, 3
          %s259 = scalar_select %p258, %s257, 3
          %s260 = scalar_lea.vmem %s3, %s259
          %s261 = smul.u32 2, %s10
        $region51: #{vgg_forward.8} parent=19 // pred_fallthru
          _
      $region20: #{vgg_forward.8} parent=5 // pred_fallthru
        _
      %p262 = scmp.le.s32.totalorder 1, %s10
      %p263 = scmp.lt.s32.totalorder %s10, 3
      %p264 = pnand %p262, %p263
      %p265 = pneg %p264
      // Predicated region
      $region52: #{vgg_forward.8} parent=5 // pred_check
        _
      $region53: #{vgg_forward.8} parent=5 // pred_check_branch
        %267 = sbr.rel (%p264) target = $region55
      $region54: #{vgg_forward.8} parent=5 // pred_region
        %s268 = ssub.s32 %s10, 1
        %s269 = sand.u32 %s44, 1
        %s270 = sand.u32 %s44, 1
        %s271 = smul.addr %s270, 256
        %s272 = scalar_lea.vmem [#allocation2], %s271
        // Predicated region
        $region56: #{vgg_forward.8} parent=54 // pred_check
          %p273 = pneg %p57
        $region57: #{vgg_forward.8} parent=54 // pred_check_branch
          %275 = sbr.rel (%p273) target = $region59
        $region58: #{vgg_forward.8} parent=54 // pred_region
          _
        $region59: #{vgg_forward.8} parent=54 // pred_fallthru
          _
        %p276 = pneg %p31
        %p277 = pneg %p28
        %s278 = sand.u32 %s44, 1
        %s279 = sand.u32 %s44, 1
        %s280 = smul.addr %s279, 256
        %s281 = scalar_lea.vmem [#allocation2], %s280
        %p282 = pneg %p57
        %p283 = pneg %p54
        %s284 = smul.u32 2, %s15
        %p285 = scmp.lt.s32.totalorder %s284, 3
        %s286 = scalar_select %p285, %s284, 3
        %s287 = scalar_lea.vmem %s2, %s286
        %p288 = pneg %p83
        %p289 = pneg %p80
        %s290 = smul.u32 2, %s15
        %p291 = scmp.lt.s32.totalorder %s290, 3
        %s292 = scalar_select %p291, %s290, 3
        %s293 = scalar_lea.vmem %s3, %s292
        %p294 = pneg %p109
        %p295 = pneg %p106
        %p296 = pneg %p135
        %p297 = pneg %p132
        %s298 = smul.u32 2, %s15
        %p299 = scmp.lt.s32.totalorder %s298, 3
        %s300 = scalar_select %p299, %s298, 3
        %s301 = scalar_lea.vmem %s4, %s300
        %s302 = smul.u32 2, %s15
        %s303 = smul.u32 2, %s15
        %p304 = scmp.lt.s32.totalorder %s303, 3
        %s305 = scalar_select %p304, %s303, 3
        %s306 = scalar_lea.vmem %s2, %s305
        %s307 = smul.u32 2, %s15
        %s308 = smul.u32 2, %s15
        %p309 = scmp.lt.s32.totalorder %s308, 3
        %s310 = scalar_select %p309, %s308, 3
        %s311 = scalar_lea.vmem %s3, %s310
        %s312 = smul.u32 2, %s15
        %s313 = smul.u32 2, %s15
        %p314 = scmp.lt.s32.totalorder %s313, 3
        %s315 = scalar_select %p314, %s313, 3
        %s316 = scalar_lea.vmem %s4, %s315
        %s317 = smul.u32 2, %s15
        %v318 = vld [vmem:[%s272] sm:$0xff]
        %v319 = vld [vmem:[%s272 + $0x8] sm:$0xff]
        %v320 = vld [vmem:[%s272 + $0x10] sm:$0xff]
        %v321 = vld [vmem:[%s272 + $0x18] sm:$0xff]
        %v322 = vld [vmem:[%s272 + $0x20] sm:$0xff]
        %v323 = vld [vmem:[%s272 + $0x28] sm:$0xff]
        %v324 = vld [vmem:[%s272 + $0x30] sm:$0xff]
        %v325 = vld [vmem:[%s272 + $0x38] sm:$0xff]
        %v326 = vld [vmem:[%s272 + $0x40] sm:$0xff]
        %v327 = vld [vmem:[%s272 + $0x48] sm:$0xff]
        %v328 = vld [vmem:[%s272 + $0x50] sm:$0xff]
        %v329 = vld [vmem:[%s272 + $0x58] sm:$0xff]
        %v330 = vld [vmem:[%s272 + $0x60] sm:$0xff]
        %v331 = vld [vmem:[%s272 + $0x68] sm:$0xff]
        %v332 = vld [vmem:[%s272 + $0x70] sm:$0xff]
        %v333 = vld [vmem:[%s272 + $0x78] sm:$0xff]
        %v334 = vld [vmem:[%s272 + $0x80] sm:$0xff]
        %v335 = vld [vmem:[%s272 + $0x88] sm:$0xff]
        %v336 = vld [vmem:[%s272 + $0x90] sm:$0xff]
        %v337 = vld [vmem:[%s272 + $0x98] sm:$0xff]
        %v338 = vld [vmem:[%s272 + $0xa0] sm:$0xff]
        %v339 = vld [vmem:[%s272 + $0xa8] sm:$0xff]
        %v340 = vld [vmem:[%s272 + $0xb0] sm:$0xff]
        %v341 = vld [vmem:[%s272 + $0xb8] sm:$0xff]
        %v342 = vld [vmem:[%s272 + $0xc0] sm:$0xff]
        %v343 = vld [vmem:[%s272 + $0xc8] sm:$0xff]
        %v344 = vld [vmem:[%s272 + $0xd0] sm:$0xff]
        %v345 = vld [vmem:[%s272 + $0xd8] sm:$0xff]
        %v346 = vld [vmem:[%s272 + $0xe0] sm:$0xff]
        %v347 = vld [vmem:[%s272 + $0xe8] sm:$0xff]
        %v348 = vld [vmem:[%s272 + $0xf0] sm:$0xff]
        %v349 = vld [vmem:[%s272 + $0xf8] sm:$0xff]
        %v350 = vunpack.c.l.s8.bf16 %v318
        %v351 = vunpack.c.l.s8.bf16 %v319
        %v352 = vunpack.c.h.s8.bf16 %v318
        %v353 = vunpack.c.h.s8.bf16 %v319
        %v354 = vunpack.c.l.s8.bf16 %v320
        %v355 = vunpack.c.l.s8.bf16 %v321
        %v356 = vunpack.c.h.s8.bf16 %v320
        %v357 = vunpack.c.h.s8.bf16 %v321
        %v358 = vunpack.c.l.s8.bf16 %v322
        %v359 = vunpack.c.l.s8.bf16 %v323
        %v360 = vunpack.c.h.s8.bf16 %v322
        %v361 = vunpack.c.h.s8.bf16 %v323
        %v362 = vunpack.c.l.s8.bf16 %v324
        %v363 = vunpack.c.l.s8.bf16 %v325
        %v364 = vunpack.c.h.s8.bf16 %v324
        %v365 = vunpack.c.h.s8.bf16 %v325
        %v366 = vunpack.c.l.s8.bf16 %v326
        %v367 = vunpack.c.l.s8.bf16 %v327
        %v368 = vunpack.c.h.s8.bf16 %v326
        %v369 = vunpack.c.h.s8.bf16 %v327
        %v370 = vunpack.c.l.s8.bf16 %v328
        %v371 = vunpack.c.l.s8.bf16 %v329
        %v372 = vunpack.c.h.s8.bf16 %v328
        %v373 = vunpack.c.h.s8.bf16 %v329
        %v374 = vunpack.c.l.s8.bf16 %v330
        %v375 = vunpack.c.l.s8.bf16 %v331
        %v376 = vunpack.c.h.s8.bf16 %v330
        %v377 = vunpack.c.h.s8.bf16 %v331
        %v378 = vunpack.c.l.s8.bf16 %v332
        %v379 = vunpack.c.l.s8.bf16 %v333
        %v380 = vunpack.c.h.s8.bf16 %v332
        %v381 = vunpack.c.h.s8.bf16 %v333
        %v382 = vunpack.c.l.s8.bf16 %v334
        %v383 = vunpack.c.l.s8.bf16 %v335
        %v384 = vunpack.c.h.s8.bf16 %v334
        %v385 = vunpack.c.h.s8.bf16 %v335
        %v386 = vunpack.c.l.s8.bf16 %v336
        %v387 = vunpack.c.l.s8.bf16 %v337
        %v388 = vunpack.c.h.s8.bf16 %v336
        %v389 = vunpack.c.h.s8.bf16 %v337
        %v390 = vunpack.c.l.s8.bf16 %v338
        %v391 = vunpack.c.l.s8.bf16 %v339
        %v392 = vunpack.c.h.s8.bf16 %v338
        %v393 = vunpack.c.h.s8.bf16 %v339
        %v394 = vunpack.c.l.s8.bf16 %v340
        %v395 = vunpack.c.l.s8.bf16 %v341
        %v396 = vunpack.c.h.s8.bf16 %v340
        %v397 = vunpack.c.h.s8.bf16 %v341
        %v398 = vunpack.c.l.s8.bf16 %v342
        %v399 = vunpack.c.l.s8.bf16 %v343
        %v400 = vunpack.c.h.s8.bf16 %v342
        %v401 = vunpack.c.h.s8.bf16 %v343
        %v402 = vunpack.c.l.s8.bf16 %v344
        %v403 = vunpack.c.l.s8.bf16 %v345
        %v404 = vunpack.c.h.s8.bf16 %v344
        %v405 = vunpack.c.h.s8.bf16 %v345
        %v406 = vunpack.c.l.s8.bf16 %v346
        %v407 = vunpack.c.l.s8.bf16 %v347
        %v408 = vunpack.c.h.s8.bf16 %v346
        %v409 = vunpack.c.h.s8.bf16 %v347
        %v410 = vunpack.c.l.s8.bf16 %v348
        %v411 = vunpack.c.l.s8.bf16 %v349
        %v412 = vunpack.c.h.s8.bf16 %v348
        %v413 = vunpack.c.h.s8.bf16 %v349
        %v414 = vld [vmem:[%s0] sm:$0xf]
        %v417 = vunpack.c.l.s4 1966171168
        %v418 = vunpack.c.0.s8 %v417
        %v419 = vlaneseq
        %v420 = vshrl.u32 %v419, 7
        %v421 = vsub.s32 %v418, %v420
        %v422 = vrot.slane %v414, %v421
        %v423 = vcombine.high %v422, %v422
        %v425 = vunpack.c.l.s4 1966171168
        %v426 = vunpack.c.0.s8 %v425
        %v427 = vlaneseq
        %v428 = vshrl.u32 %v427, 7
        %v429 = vsub.s32 %v426, %v428
        %v430 = vrot.slane %v422, %v429
        %v432 = vunpack.c.l.s4 1966171168
        %v433 = vunpack.c.0.s8 %v432
        %v434 = vlaneseq
        %v435 = vshrl.u32 %v434, 7
        %v436 = vsub.s32 %v433, %v435
        %v437 = vrot.slane %v423, %v436
        %v438 = vcombine.high %v430, %v430
        %v439 = vcombine.high %v437, %v437
        %444 = vmatprep.subr.bf16.mxu0 %v351
        %445 = vmatpush1.bf16.msra.mxu0 %v350
        %446 = vmatprep.subr.bf16.mxu0 %v353
        %447 = vmatpush1.bf16.msra.mxu0 %v352
        %448 = vmatprep.subr.bf16.mxu0 %v355
        %449 = vmatpush1.bf16.msra.mxu0 %v354
        %450 = vmatprep.subr.bf16.mxu0 %v357
        %451 = vmatpush1.bf16.msra.mxu0 %v356
        %452 = vmatprep.subr.bf16.mxu0 %v359
        %453 = vmatpush1.bf16.msra.mxu0 %v358
        %454 = vmatprep.subr.bf16.mxu0 %v361
        %455 = vmatpush1.bf16.msra.mxu0 %v360
        %456 = vmatprep.subr.bf16.mxu0 %v363
        %457 = vmatpush1.bf16.msra.mxu0 %v362
        %458 = vmatprep.subr.bf16.mxu0 %v365
        %459 = vmatpush1.bf16.msra.mxu0 %v364
        %460 = vmatprep.subr.bf16.mxu0 %v367
        %461 = vmatpush1.bf16.msra.mxu0 %v366
        %462 = vmatprep.subr.bf16.mxu0 %v369
        %463 = vmatpush1.bf16.msra.mxu0 %v368
        %464 = vmatprep.subr.bf16.mxu0 %v371
        %465 = vmatpush1.bf16.msra.mxu0 %v370
        %466 = vmatprep.subr.bf16.mxu0 %v373
        %467 = vmatpush1.bf16.msra.mxu0 %v372
        %468 = vmatprep.subr.bf16.mxu0 %v375
        %469 = vmatpush1.bf16.msra.mxu0 %v374
        %470 = vmatprep.subr.bf16.mxu0 %v377
        %471 = vmatpush1.bf16.msra.mxu0 %v376
        %472 = vmatprep.subr.bf16.mxu0 %v379
        %473 = vmatpush1.bf16.msra.mxu0 %v378
        %474 = vmatprep.subr.bf16.mxu0 %v381
        %475 = vmatpush1.bf16.msra.mxu0 %v380
        %476 = vmatprep.mubr.bf16.mxu0 %v437
        %477 = vmatmul.mubr.bf16.gmra.mrb[0].mxu0 %v430
        %v478 = vpop.f32.mrb[0].mxu0
        %v479 = vadd.f32 0.0, %v478
        %v480 = vpop.f32.mrb[0].mxu0
        %v481 = vadd.f32 0.0, %v480
        %v482 = vpop.f32.mrb[0].mxu0
        %v483 = vpop.f32.mrb[0].mxu0
        %484 = vdwg.mxu0
        %485 = vmatprep.subr.bf16.mxu0 %v383
        %486 = vmatpush1.bf16.msra.mxu0 %v382
        %487 = vmatprep.subr.bf16.mxu0 %v385
        %488 = vmatpush1.bf16.msra.mxu0 %v384
        %489 = vmatprep.subr.bf16.mxu0 %v387
        %490 = vmatpush1.bf16.msra.mxu0 %v386
        %491 = vmatprep.subr.bf16.mxu0 %v389
        %492 = vmatpush1.bf16.msra.mxu0 %v388
        %493 = vmatprep.subr.bf16.mxu0 %v391
        %494 = vmatpush1.bf16.msra.mxu0 %v390
        %495 = vmatprep.subr.bf16.mxu0 %v393
        %496 = vmatpush1.bf16.msra.mxu0 %v392
        %497 = vmatprep.subr.bf16.mxu0 %v395
        %498 = vmatpush1.bf16.msra.mxu0 %v394
        %499 = vmatprep.subr.bf16.mxu0 %v397
        %500 = vmatpush1.bf16.msra.mxu0 %v396
        %501 = vmatprep.subr.bf16.mxu0 %v399
        %502 = vmatpush1.bf16.msra.mxu0 %v398
        %503 = vmatprep.subr.bf16.mxu0 %v401
        %504 = vmatpush1.bf16.msra.mxu0 %v400
        %505 = vmatprep.subr.bf16.mxu0 %v403
        %506 = vmatpush1.bf16.msra.mxu0 %v402
        %507 = vmatprep.subr.bf16.mxu0 %v405
        %508 = vmatpush1.bf16.msra.mxu0 %v404
        %509 = vmatprep.subr.bf16.mxu0 %v407
        %510 = vmatpush1.bf16.msra.mxu0 %v406
        %511 = vmatprep.subr.bf16.mxu0 %v409
        %512 = vmatpush1.bf16.msra.mxu0 %v408
        %513 = vmatprep.subr.bf16.mxu0 %v411
        %514 = vmatpush1.bf16.msra.mxu0 %v410
        %515 = vmatprep.subr.bf16.mxu0 %v413
        %516 = vmatpush1.bf16.msra.mxu0 %v412
        %517 = vmatprep.mubr.bf16.mxu0 %v439
        %518 = vmatmul.mubr.bf16.gmra.mrb[0].mxu0 %v438
        %v519 = vpop.f32.mrb[0].mxu0
        %v520 = vadd.f32 %v479, %v519
        %v521 = vpop.f32.mrb[0].mxu0
        %v522 = vadd.f32 %v481, %v521
        %v523 = vpop.f32.mrb[0].mxu0
        %v524 = vpop.f32.mrb[0].mxu0
        %525 = vdwg.mxu0
        %v526 = vld [vmem:[%s306] sm:$0x3]
        %v528 = vlaneseq
        %v529 = vshrl.u32 %v528, 7
        %v530 = vsub.s32 0, %v529
        %v531 = vrot.slane %v526, %v530
        %v532 = vlaneseq
        %v533 = vshrl.u32 %v532, 7
        %v534 = vsub.s32 1, %v533
        %v535 = vrot.slane %v526, %v534
        %v538 = vmul.f32 %v520, %v531
        %v539 = vmul.f32 %v522, %v535
        %v540 = vld [vmem:[%s311] sm:$0x3]
        %v542 = vlaneseq
        %v543 = vshrl.u32 %v542, 7
        %v544 = vsub.s32 0, %v543
        %v545 = vrot.slane %v540, %v544
        %v546 = vlaneseq
        %v547 = vshrl.u32 %v546, 7
        %v548 = vsub.s32 1, %v547
        %v549 = vrot.slane %v540, %v548
        %v552 = vadd.f32 %v538, %v545
        %v553 = vadd.f32 %v539, %v549
        %v554 = vmax.f32 %v552, 0.0
        %v555 = vmax.f32 %v553, 0.0
        %v556 = vpack.c.bf16 %v554, %v554
        %v557 = vpack.c.bf16 %v555, %v555
        %v560 = vcombine.low %v556, %v557
        %v562 = vunpack.c.l.s4 1966171168
        %v563 = vunpack.c.0.s8 %v562
        %v564 = vlaneseq
        %v565 = vshrl.u32 %v564, 7
        %v566 = vsub.s32 %v563, %v565
        %v567 = vrot.slane %v560, %v566
        %v569 = vunpack.c.l.s4 1966171168
        %v570 = vunpack.c.0.s8 %v569
        %v571 = vlaneseq
        %v572 = vshrl.u32 %v571, 7
        %v573 = vsub.s32 %v570, %v572
        %v574 = vrot.slane %v567, %v573
        %576 = vst [vmem:[%s316] sm:$0x3] %v574
        %s577 = smul.u32 2, %s15
        %p578 = scmp.lt.s32.totalorder %s577, 3
        %s579 = scalar_select %p578, %s577, 3
        %s580 = scalar_lea.vmem %s4, %s579
        // Predicated region
        $region60: #{vgg_forward.8} parent=54 // pred_check
          %p581 = pneg %p132
        $region61: #{vgg_forward.8} parent=54 // pred_check_branch
          %583 = sbr.rel (%p581) target = $region63
        $region62: #{vgg_forward.8} parent=54 // pred_region
          %s584 = smul.u32 2, %s15
        $region63: #{vgg_forward.8} parent=54 // pred_fallthru
          _
      $region55: #{vgg_forward.8} parent=5 // pred_fallthru
        _
      %p585 = scmp.le.s32.totalorder 2, %s10
      // Predicated region
      $region64: #{vgg_forward.8} parent=5 // pred_check
        %p586 = pneg %p585
      $region65: #{vgg_forward.8} parent=5 // pred_check_branch
        %588 = sbr.rel (%p586) target = $region67
      $region66: #{vgg_forward.8} parent=5 // pred_region
        %s589 = ssub.s32 %s10, 2
        // Predicated region
        $region68: #{vgg_forward.8} parent=66 // pred_check
          %p590 = pneg %p138
        $region69: #{vgg_forward.8} parent=66 // pred_check_branch
          %592 = sbr.rel (%p590) target = $region71
        $region70: #{vgg_forward.8} parent=66 // pred_region
          %s593 = smul.u32 2, %s16
          %p594 = scmp.lt.s32.totalorder %s593, 3
          %s595 = scalar_select %p594, %s593, 3
          %s596 = scalar_lea.vmem %s4, %s595
        $region71: #{vgg_forward.8} parent=66 // pred_fallthru
          _
      $region67: #{vgg_forward.8} parent=5 // pred_fallthru
        _
    $region6: #{vgg_forward.8} parent=1 // loop_footer
      %s14 = sadd.s32 1, %s10
    $region7: #{vgg_forward.8} parent=1 // loop_footer_branch
      %9 = sbr.rel target = $region3
    $region8: #{vgg_forward.8} parent=1 // loop_exit
      _

// kernel: vgg_forward.7
$region0: #{vgg_forward.7}
  #allocation0 [shape = 'u32[]', space=smem, size = 0x4, offset = 0x4, fixed_abs, tag = 'smem constant byte address 0x4 - core index']
  #allocation1 [shape = 'u32[144,128]{1,0:T(1,128)}', space=vmem, size = 0x12000, scoped, tag = 'internal scratch']
  %s0 = inlined_call_operand.vmem [shape: bf16[2,8192], index: 0, kind: input, shape index: {}]
  %s1 = inlined_call_operand.vmem [shape: s8[8192,512], index: 1, kind: input, shape index: {}]
  %s2 = inlined_call_operand.vmem [shape: f32[1,512], index: 2, kind: input, shape index: {}]
  %s3 = inlined_call_operand.vmem [shape: f32[1,512], index: 3, kind: input, shape index: {}]
  %s4 = inlined_call_operand.vmem [shape: bf16[2,512], index: 4, kind: output, shape index: {}]
  %s5 = sld [smem:[#allocation0]]
  $region72: #{vgg_forward.7} parent=0
    _
  %s7 = ssub.s32 1, %s5
  %s8 = scalar_select 0, %s7, %s5
  $region1: #{vgg_forward.7} parent=0
    #allocation2 [shape = 'u8[4194304]{0}', space=vmem, size = 0x400000, scoped, tag = 'input window, operand 1']
    loop: start=0, step=1, limit=4
    $region2: #{vgg_forward.7} parent=1 // loop_pre_header
      _
    $region3: #{vgg_forward.7} parent=1 // loop_header
      %s10 = sphi 0, %s14
      %p11 = scmp.ge.s32.totalorder %s10, 4
      %s18 = sphi 0, %s18
      %s20 = sphi 0, %s18
      %s21 = sphi 0, %s20
      %s35 = sphi 0, %s21
      %s41 = sphi 0, %s43
      %s44 = sphi 0, %s41
      %s45 = sphi 0, %s44
      %s61 = sphi 0, %s45
      %s67 = sphi 0, %s69
      %s70 = sphi 0, %s67
      %s71 = sphi 0, %s70
      %s87 = sphi 0, %s71
      %s93 = sphi 0, %s95
      %s96 = sphi 0, %s93
      %s97 = sphi 0, %s96
      %s113 = sphi 0, %s97
      %s119 = sphi 0, %s121
      %s122 = sphi 0, %s119
      %s123 = sphi 0, %s122
      %s139 = sphi 0, %s123
    $region4: #{vgg_forward.7} parent=1 // loop_header_branch
      %13 = sbr.rel (%p11) target = $region8
    $region5: #{vgg_forward.7} parent=1 // loop_body
      %s15 = ssub.s32 %s10, 1
      %s16 = ssub.s32 %s10, 2
      %s17 = sadd.s32 %s10, 1
      %s19 = sadd.s32 %s18, 1
      %p22 = scmp.eq.s32.totalorder %s10, 1
      %p23 = scmp.ne.s32.totalorder %s18, %s20
      %p24 = scmp.eq.s32.totalorder %s10, 0
      %p25 = por %p23, %p24
      %p26 = scmp.ne.s32.totalorder %s18, %s20
      %p27 = scmp.eq.s32.totalorder %s15, 1
      %p28 = por %p26, %p27
      %p29 = scmp.ne.s32.totalorder %s20, %s21
      %p30 = scmp.eq.s32.totalorder %s15, 0
      %p31 = por %p29, %p30
      %p32 = scmp.ne.s32.totalorder %s20, %s21
      %p33 = scmp.eq.s32.totalorder %s16, 1
      %p34 = por %p32, %p33
      %p36 = scmp.ne.s32.totalorder %s21, %s35
      %p37 = scmp.eq.s32.totalorder %s16, 0
      %p38 = por %p36, %p37
      %s39 = ssub.s32 %s10, %s17
      %p40 = scmp.eq.s32.totalorder %s39, 0
      %s42 = sadd.s32 %s41, 1
      %s43 = scalar_select %p40, %s41, %s42
      %p46 = pneg %p40
      %p47 = scmp.eq.s32.totalorder %s10, 1
      %p48 = por %p46, %p47
      %p49 = scmp.ne.s32.totalorder %s41, %s44
      %p50 = scmp.eq.s32.totalorder %s10, 0
      %p51 = por %p49, %p50
      %p52 = scmp.ne.s32.totalorder %s41, %s44
      %p53 = scmp.eq.s32.totalorder %s15, 1
      %p54 = por %p52, %p53
      %p55 = scmp.ne.s32.totalorder %s44, %s45
      %p56 = scmp.eq.s32.totalorder %s15, 0
      %p57 = por %p55, %p56
      %p58 = scmp.ne.s32.totalorder %s44, %s45
      %p59 = scmp.eq.s32.totalorder %s16, 1
      %p60 = por %p58, %p59
      %p62 = scmp.ne.s32.totalorder %s45, %s61
      %p63 = scmp.eq.s32.totalorder %s16, 0
      %p64 = por %p62, %p63
      %s65 = ssub.s32 %s10, %s17
      %p66 = scmp.eq.s32.totalorder %s65, 0
      %s68 = sadd.s32 %s67, 1
      %s69 = scalar_select %p66, %s67, %s68
      %p72 = pneg %p66
      %p73 = scmp.eq.s32.totalorder %s10, 1
      %p74 = por %p72, %p73
      %p75 = scmp.ne.s32.totalorder %s67, %s70
      %p76 = scmp.eq.s32.totalorder %s10, 0
      %p77 = por %p75, %p76
      %p78 = scmp.ne.s32.totalorder %s67, %s70
      %p79 = scmp.eq.s32.totalorder %s15, 1
      %p80 = por %p78, %p79
      %p81 = scmp.ne.s32.totalorder %s70, %s71
      %p82 = scmp.eq.s32.totalorder %s15, 0
      %p83 = por %p81, %p82
      %p84 = scmp.ne.s32.totalorder %s70, %s71
      %p85 = scmp.eq.s32.totalorder %s16, 1
      %p86 = por %p84, %p85
      %p88 = scmp.ne.s32.totalorder %s71, %s87
      %p89 = scmp.eq.s32.totalorder %s16, 0
      %p90 = por %p88, %p89
      %s91 = ssub.s32 %s10, %s17
      %p92 = scmp.eq.s32.totalorder %s91, 0
      %s94 = sadd.s32 %s93, 1
      %s95 = scalar_select %p92, %s93, %s94
      %p98 = pneg %p92
      %p99 = scmp.eq.s32.totalorder %s10, 1
      %p100 = por %p98, %p99
      %p101 = scmp.ne.s32.totalorder %s93, %s96
      %p102 = scmp.eq.s32.totalorder %s10, 0
      %p103 = por %p101, %p102
      %p104 = scmp.ne.s32.totalorder %s93, %s96
      %p105 = scmp.eq.s32.totalorder %s15, 1
      %p106 = por %p104, %p105
      %p107 = scmp.ne.s32.totalorder %s96, %s97
      %p108 = scmp.eq.s32.totalorder %s15, 0
      %p109 = por %p107, %p108
      %p110 = scmp.ne.s32.totalorder %s96, %s97
      %p111 = scmp.eq.s32.totalorder %s16, 1
      %p112 = por %p110, %p111
      %p114 = scmp.ne.s32.totalorder %s97, %s113
      %p115 = scmp.eq.s32.totalorder %s16, 0
      %p116 = por %p114, %p115
      %s117 = ssub.s32 %s10, %s17
      %p118 = scmp.eq.s32.totalorder %s117, 0
      %s120 = sadd.s32 %s119, 1
      %s121 = scalar_select %p118, %s119, %s120
      %p124 = pneg %p118
      %p125 = scmp.eq.s32.totalorder %s10, 1
      %p126 = por %p124, %p125
      %p127 = scmp.ne.s32.totalorder %s119, %s122
      %p128 = scmp.eq.s32.totalorder %s10, 0
      %p129 = por %p127, %p128
      %p130 = scmp.ne.s32.totalorder %s119, %s122
      %p131 = scmp.eq.s32.totalorder %s15, 1
      %p132 = por %p130, %p131
      %p133 = scmp.ne.s32.totalorder %s122, %s123
      %p134 = scmp.eq.s32.totalorder %s15, 0
      %p135 = por %p133, %p134
      %p136 = scmp.ne.s32.totalorder %s122, %s123
      %p137 = scmp.eq.s32.totalorder %s16, 1
      %p138 = por %p136, %p137
      %p140 = scmp.ne.s32.totalorder %s123, %s139
      %p141 = scmp.eq.s32.totalorder %s16, 0
      %p142 = por %p140, %p141
      %p143 = scmp.le.s32.totalorder 1, %s10
      %p144 = scmp.lt.s32.totalorder %s10, 3
      %p145 = pnand %p143, %p144
      %p146 = pneg %p145
      // Predicated region
      $region9: #{vgg_forward.7} parent=5 // pred_check
        _
      $region10: #{vgg_forward.7} parent=5 // pred_check_branch
        %148 = sbr.rel (%p145) target = $region12
      $region11: #{vgg_forward.7} parent=5 // pred_region
        %s149 = ssub.s32 %s10, 1
        // Predicated region
        $region13: #{vgg_forward.7} parent=11 // pred_check
          %p150 = pneg %p31
        $region14: #{vgg_forward.7} parent=11 // pred_check_branch
          %152 = sbr.rel (%p150) target = $region16
        $region15: #{vgg_forward.7} parent=11 // pred_region
          _
        $region16: #{vgg_forward.7} parent=11 // pred_fallthru
          _
      $region12: #{vgg_forward.7} parent=5 // pred_fallthru
        _
      %p153 = scmp.lt.s32.totalorder %s10, 2
      // Predicated region
      $region17: #{vgg_forward.7} parent=5 // pred_check
        %p154 = pneg %p153
      $region18: #{vgg_forward.7} parent=5 // pred_check_branch
        %156 = sbr.rel (%p154) target = $region20
      $region19: #{vgg_forward.7} parent=5 // pred_region
        // Predicated region
        $region21: #{vgg_forward.7} parent=19 // pred_check
          %p157 = pneg %p51
        $region22: #{vgg_forward.7} parent=19 // pred_check_branch
          %159 = sbr.rel (%p157) target = $region24
        $region23: #{vgg_forward.7} parent=19 // pred_region
          %s160 = sand.u32 %s41, 1
          %s161 = sand.u32 %s41, 1
          %s162 = smul.addr %s161, 4096
          %s163 = scalar_lea.vmem [#allocation2], %s162
          %s164 = smul.u32 2, %s10
          %s165 = smul.addr %s164, 8
          %s166 = scalar_lea.vmem %s1, %s165
          // Predicated region
          $region25: #{vgg_forward.7} parent=23 // pred_check
            _
          $region26: #{vgg_forward.7} parent=23 // pred_check_branch
            %168 = sbr.rel (0) target = $region28
          $region27: #{vgg_forward.7} parent=23 // pred_region
            // Predicated region
            $region29: #{vgg_forward.7} parent=27 // pred_check
              _
            $region30: #{vgg_forward.7} parent=27 // pred_check_branch
              %170 = sbr.rel (0) target = $region32
            $region31: #{vgg_forward.7} parent=27 // pred_region
              loop: start=0, step=1, limit=1
              $region33: #{vgg_forward.7} parent=31 // loop_pre_header
                _
              $region34: #{vgg_forward.7} parent=31 // loop_header
                %s172 = sphi 0, %s176
                %p173 = scmp.ge.s32.totalorder %s172, 1
                %s177 = sphi %s166, %s166
                %s178 = sphi %s163, %s163
              $region35: #{vgg_forward.7} parent=31 // loop_header_branch
                %175 = sbr.rel (%p173) target = $region39
              $region36: #{vgg_forward.7} parent=31 // loop_body
                %v179 = vld [vmem:[%s177] sm:$0xff]
                %180 = vst [vmem:[%s178] sm:$0xff] %v179
                %v181 = vld [vmem:[%s177 + $0x8] sm:$0xff]
                %182 = vst [vmem:[%s178 + $0x8] sm:$0xff] %v181
                %v183 = vld [vmem:[%s177 + $0x20] sm:$0xff]
                %184 = vst [vmem:[%s178 + $0x10] sm:$0xff] %v183
                %v185 = vld [vmem:[%s177 + $0x28] sm:$0xff]
                %186 = vst [vmem:[%s178 + $0x18] sm:$0xff] %v185
                %v187 = vld [vmem:[%s177 + $0x40] sm:$0xff]
                %188 = vst [vmem:[%s178 + $0x20] sm:$0xff] %v187
                %v189 = vld [vmem:[%s177 + $0x48] sm:$0xff]
                %190 = vst [vmem:[%s178 + $0x28] sm:$0xff] %v189
                %v191 = vld [vmem:[%s177 + $0x60] sm:$0xff]
                %192 = vst [vmem:[%s178 + $0x30] sm:$0xff] %v191
                %v193 = vld [vmem:[%s177 + $0x68] sm:$0xff]
                %194 = vst [vmem:[%s178 + $0x38] sm:$0xff] %v193
                %v195 = vld [vmem:[%s177 + $0x80] sm:$0xff]
                %196 = vst [vmem:[%s178 + $0x40] sm:$0xff] %v195
                %v197 = vld [vmem:[%s177 + $0x88] sm:$0xff]
                %198 = vst [vmem:[%s178 + $0x48] sm:$0xff] %v197
                %v199 = vld [vmem:[%s177 + $0xa0] sm:$0xff]
                %200 = vst [vmem:[%s178 + $0x50] sm:$0xff] %v199
                %v201 = vld [vmem:[%s177 + $0xa8] sm:$0xff]
                %202 = vst [vmem:[%s178 + $0x58] sm:$0xff] %v201
                %v203 = vld [vmem:[%s177 + $0xc0] sm:$0xff]
                %204 = vst [vmem:[%s178 + $0x60] sm:$0xff] %v203
                %v205 = vld [vmem:[%s177 + $0xc8] sm:$0xff]
                %206 = vst [vmem:[%s178 + $0x68] sm:$0xff] %v205
                %v207 = vld [vmem:[%s177 + $0xe0] sm:$0xff]
                %208 = vst [vmem:[%s178 + $0x70] sm:$0xff] %v207
                %v209 = vld [vmem:[%s177 + $0xe8] sm:$0xff]
                %210 = vst [vmem:[%s178 + $0x78] sm:$0xff] %v209
                %v211 = vld [vmem:[%s177 + $0x100] sm:$0xff]
                %212 = vst [vmem:[%s178 + $0x80] sm:$0xff] %v211
                %v213 = vld [vmem:[%s177 + $0x108] sm:$0xff]
                %214 = vst [vmem:[%s178 + $0x88] sm:$0xff] %v213
                %v215 = vld [vmem:[%s177 + $0x120] sm:$0xff]
                %216 = vst [vmem:[%s178 + $0x90] sm:$0xff] %v215
                %v217 = vld [vmem:[%s177 + $0x128] sm:$0xff]
                %218 = vst [vmem:[%s178 + $0x98] sm:$0xff] %v217
                %v219 = vld [vmem:[%s177 + $0x140] sm:$0xff]
                %220 = vst [vmem:[%s178 + $0xa0] sm:$0xff] %v219
                %v221 = vld [vmem:[%s177 + $0x148] sm:$0xff]
                %222 = vst [vmem:[%s178 + $0xa8] sm:$0xff] %v221
                %v223 = vld [vmem:[%s177 + $0x160] sm:$0xff]
                %224 = vst [vmem:[%s178 + $0xb0] sm:$0xff] %v223
                %v225 = vld [vmem:[%s177 + $0x168] sm:$0xff]
                %226 = vst [vmem:[%s178 + $0xb8] sm:$0xff] %v225
                %v227 = vld [vmem:[%s177 + $0x180] sm:$0xff]
                %228 = vst [vmem:[%s178 + $0xc0] sm:$0xff] %v227
                %v229 = vld [vmem:[%s177 + $0x188] sm:$0xff]
                %230 = vst [vmem:[%s178 + $0xc8] sm:$0xff] %v229
                %v231 = vld [vmem:[%s177 + $0x1a0] sm:$0xff]
                %232 = vst [vmem:[%s178 + $0xd0] sm:$0xff] %v231
                %v233 = vld [vmem:[%s177 + $0x1a8] sm:$0xff]
                %234 = vst [vmem:[%s178 + $0xd8] sm:$0xff] %v233
                %v235 = vld [vmem:[%s177 + $0x1c0] sm:$0xff]
                %236 = vst [vmem:[%s178 + $0xe0] sm:$0xff] %v235
                %v237 = vld [vmem:[%s177 + $0x1c8] sm:$0xff]
                %238 = vst [vmem:[%s178 + $0xe8] sm:$0xff] %v237
                %v239 = vld [vmem:[%s177 + $0x1e0] sm:$0xff]
                %240 = vst [vmem:[%s178 + $0xf0] sm:$0xff] %v239
                %v241 = vld [vmem:[%s177 + $0x1e8] sm:$0xff]
                %242 = vst [vmem:[%s178 + $0xf8] sm:$0xff] %v241
                %v243 = vld [vmem:[%s177 + $0x200] sm:$0xff]
                %244 = vst [vmem:[%s178 + $0x100] sm:$0xff] %v243
                %v245 = vld [vmem:[%s177 + $0x208] sm:$0xff]
                %246 = vst [vmem:[%s178 + $0x108] sm:$0xff] %v245
                %v247 = vld [vmem:[%s177 + $0x220] sm:$0xff]
                %248 = vst [vmem:[%s178 + $0x110] sm:$0xff] %v247
                %v249 = vld [vmem:[%s177 + $0x228] sm:$0xff]
                %250 = vst [vmem:[%s178 + $0x118] sm:$0xff] %v249
                %v251 = vld [vmem:[%s177 + $0x240] sm:$0xff]
                %252 = vst [vmem:[%s178 + $0x120] sm:$0xff] %v251
                %v253 = vld [vmem:[%s177 + $0x248] sm:$0xff]
                %254 = vst [vmem:[%s178 + $0x128] sm:$0xff] %v253
                %v255 = vld [vmem:[%s177 + $0x260] sm:$0xff]
                %256 = vst [vmem:[%s178 + $0x130] sm:$0xff] %v255
                %v257 = vld [vmem:[%s177 + $0x268] sm:$0xff]
                %258 = vst [vmem:[%s178 + $0x138] sm:$0xff] %v257
                %v259 = vld [vmem:[%s177 + $0x280] sm:$0xff]
                %260 = vst [vmem:[%s178 + $0x140] sm:$0xff] %v259
                %v261 = vld [vmem:[%s177 + $0x288] sm:$0xff]
                %262 = vst [vmem:[%s178 + $0x148] sm:$0xff] %v261
                %v263 = vld [vmem:[%s177 + $0x2a0] sm:$0xff]
                %264 = vst [vmem:[%s178 + $0x150] sm:$0xff] %v263
                %v265 = vld [vmem:[%s177 + $0x2a8] sm:$0xff]
                %266 = vst [vmem:[%s178 + $0x158] sm:$0xff] %v265
                %v267 = vld [vmem:[%s177 + $0x2c0] sm:$0xff]
                %268 = vst [vmem:[%s178 + $0x160] sm:$0xff] %v267
                %v269 = vld [vmem:[%s177 + $0x2c8] sm:$0xff]
                %270 = vst [vmem:[%s178 + $0x168] sm:$0xff] %v269
                %v271 = vld [vmem:[%s177 + $0x2e0] sm:$0xff]
                %272 = vst [vmem:[%s178 + $0x170] sm:$0xff] %v271
                %v273 = vld [vmem:[%s177 + $0x2e8] sm:$0xff]
                %274 = vst [vmem:[%s178 + $0x178] sm:$0xff] %v273
                %v275 = vld [vmem:[%s177 + $0x300] sm:$0xff]
                %276 = vst [vmem:[%s178 + $0x180] sm:$0xff] %v275
                %v277 = vld [vmem:[%s177 + $0x308] sm:$0xff]
                %278 = vst [vmem:[%s178 + $0x188] sm:$0xff] %v277
                %v279 = vld [vmem:[%s177 + $0x320] sm:$0xff]
                %280 = vst [vmem:[%s178 + $0x190] sm:$0xff] %v279
                %v281 = vld [vmem:[%s177 + $0x328] sm:$0xff]
                %282 = vst [vmem:[%s178 + $0x198] sm:$0xff] %v281
                %v283 = vld [vmem:[%s177 + $0x340] sm:$0xff]
                %284 = vst [vmem:[%s178 + $0x1a0] sm:$0xff] %v283
                %v285 = vld [vmem:[%s177 + $0x348] sm:$0xff]
                %286 = vst [vmem:[%s178 + $0x1a8] sm:$0xff] %v285
                %v287 = vld [vmem:[%s177 + $0x360] sm:$0xff]
                %288 = vst [vmem:[%s178 + $0x1b0] sm:$0xff] %v287
                %v289 = vld [vmem:[%s177 + $0x368] sm:$0xff]
                %290 = vst [vmem:[%s178 + $0x1b8] sm:$0xff] %v289
                %v291 = vld [vmem:[%s177 + $0x380] sm:$0xff]
                %292 = vst [vmem:[%s178 + $0x1c0] sm:$0xff] %v291
                %v293 = vld [vmem:[%s177 + $0x388] sm:$0xff]
                %294 = vst [vmem:[%s178 + $0x1c8] sm:$0xff] %v293
                %v295 = vld [vmem:[%s177 + $0x3a0] sm:$0xff]
                %296 = vst [vmem:[%s178 + $0x1d0] sm:$0xff] %v295
                %v297 = vld [vmem:[%s177 + $0x3a8] sm:$0xff]
                %298 = vst [vmem:[%s178 + $0x1d8] sm:$0xff] %v297
                %v299 = vld [vmem:[%s177 + $0x3c0] sm:$0xff]
                %300 = vst [vmem:[%s178 + $0x1e0] sm:$0xff] %v299
                %v301 = vld [vmem:[%s177 + $0x3c8] sm:$0xff]
                %302 = vst [vmem:[%s178 + $0x1e8] sm:$0xff] %v301
                %v303 = vld [vmem:[%s177 + $0x3e0] sm:$0xff]
                %304 = vst [vmem:[%s178 + $0x1f0] sm:$0xff] %v303
                %v305 = vld [vmem:[%s177 + $0x3e8] sm:$0xff]
                %306 = vst [vmem:[%s178 + $0x1f8] sm:$0xff] %v305
                %v307 = vld [vmem:[%s177 + $0x400] sm:$0xff]
                %308 = vst [vmem:[%s178 + $0x200] sm:$0xff] %v307
                %v309 = vld [vmem:[%s177 + $0x408] sm:$0xff]
                %310 = vst [vmem:[%s178 + $0x208] sm:$0xff] %v309
                %v311 = vld [vmem:[%s177 + $0x420] sm:$0xff]
                %312 = vst [vmem:[%s178 + $0x210] sm:$0xff] %v311
                %v313 = vld [vmem:[%s177 + $0x428] sm:$0xff]
                %314 = vst [vmem:[%s178 + $0x218] sm:$0xff] %v313
                %v315 = vld [vmem:[%s177 + $0x440] sm:$0xff]
                %316 = vst [vmem:[%s178 + $0x220] sm:$0xff] %v315
                %v317 = vld [vmem:[%s177 + $0x448] sm:$0xff]
                %318 = vst [vmem:[%s178 + $0x228] sm:$0xff] %v317
                %v319 = vld [vmem:[%s177 + $0x460] sm:$0xff]
                %320 = vst [vmem:[%s178 + $0x230] sm:$0xff] %v319
                %v321 = vld [vmem:[%s177 + $0x468] sm:$0xff]
                %322 = vst [vmem:[%s178 + $0x238] sm:$0xff] %v321
                %v323 = vld [vmem:[%s177 + $0x480] sm:$0xff]
                %324 = vst [vmem:[%s178 + $0x240] sm:$0xff] %v323
                %v325 = vld [vmem:[%s177 + $0x488] sm:$0xff]
                %326 = vst [vmem:[%s178 + $0x248] sm:$0xff] %v325
                %v327 = vld [vmem:[%s177 + $0x4a0] sm:$0xff]
                %328 = vst [vmem:[%s178 + $0x250] sm:$0xff] %v327
                %v329 = vld [vmem:[%s177 + $0x4a8] sm:$0xff]
                %330 = vst [vmem:[%s178 + $0x258] sm:$0xff] %v329
                %v331 = vld [vmem:[%s177 + $0x4c0] sm:$0xff]
                %332 = vst [vmem:[%s178 + $0x260] sm:$0xff] %v331
                %v333 = vld [vmem:[%s177 + $0x4c8] sm:$0xff]
                %334 = vst [vmem:[%s178 + $0x268] sm:$0xff] %v333
                %v335 = vld [vmem:[%s177 + $0x4e0] sm:$0xff]
                %336 = vst [vmem:[%s178 + $0x270] sm:$0xff] %v335
                %v337 = vld [vmem:[%s177 + $0x4e8] sm:$0xff]
                %338 = vst [vmem:[%s178 + $0x278] sm:$0xff] %v337
                %v339 = vld [vmem:[%s177 + $0x500] sm:$0xff]
                %340 = vst [vmem:[%s178 + $0x280] sm:$0xff] %v339
                %v341 = vld [vmem:[%s177 + $0x508] sm:$0xff]
                %342 = vst [vmem:[%s178 + $0x288] sm:$0xff] %v341
                %v343 = vld [vmem:[%s177 + $0x520] sm:$0xff]
                %344 = vst [vmem:[%s178 + $0x290] sm:$0xff] %v343
                %v345 = vld [vmem:[%s177 + $0x528] sm:$0xff]
                %346 = vst [vmem:[%s178 + $0x298] sm:$0xff] %v345
                %v347 = vld [vmem:[%s177 + $0x540] sm:$0xff]
                %348 = vst [vmem:[%s178 + $0x2a0] sm:$0xff] %v347
                %v349 = vld [vmem:[%s177 + $0x548] sm:$0xff]
                %350 = vst [vmem:[%s178 + $0x2a8] sm:$0xff] %v349
                %v351 = vld [vmem:[%s177 + $0x560] sm:$0xff]
                %352 = vst [vmem:[%s178 + $0x2b0] sm:$0xff] %v351
                %v353 = vld [vmem:[%s177 + $0x568] sm:$0xff]
                %354 = vst [vmem:[%s178 + $0x2b8] sm:$0xff] %v353
                %v355 = vld [vmem:[%s177 + $0x580] sm:$0xff]
                %356 = vst [vmem:[%s178 + $0x2c0] sm:$0xff] %v355
                %v357 = vld [vmem:[%s177 + $0x588] sm:$0xff]
                %358 = vst [vmem:[%s178 + $0x2c8] sm:$0xff] %v357
                %v359 = vld [vmem:[%s177 + $0x5a0] sm:$0xff]
                %360 = vst [vmem:[%s178 + $0x2d0] sm:$0xff] %v359
                %v361 = vld [vmem:[%s177 + $0x5a8] sm:$0xff]
                %362 = vst [vmem:[%s178 + $0x2d8] sm:$0xff] %v361
                %v363 = vld [vmem:[%s177 + $0x5c0] sm:$0xff]
                %364 = vst [vmem:[%s178 + $0x2e0] sm:$0xff] %v363
                %v365 = vld [vmem:[%s177 + $0x5c8] sm:$0xff]
                %366 = vst [vmem:[%s178 + $0x2e8] sm:$0xff] %v365
                %v367 = vld [vmem:[%s177 + $0x5e0] sm:$0xff]
                %368 = vst [vmem:[%s178 + $0x2f0] sm:$0xff] %v367
                %v369 = vld [vmem:[%s177 + $0x5e8] sm:$0xff]
                %370 = vst [vmem:[%s178 + $0x2f8] sm:$0xff] %v369
                %v371 = vld [vmem:[%s177 + $0x600] sm:$0xff]
                %372 = vst [vmem:[%s178 + $0x300] sm:$0xff] %v371
                %v373 = vld [vmem:[%s177 + $0x608] sm:$0xff]
                %374 = vst [vmem:[%s178 + $0x308] sm:$0xff] %v373
                %v375 = vld [vmem:[%s177 + $0x620] sm:$0xff]
                %376 = vst [vmem:[%s178 + $0x310] sm:$0xff] %v375
                %v377 = vld [vmem:[%s177 + $0x628] sm:$0xff]
                %378 = vst [vmem:[%s178 + $0x318] sm:$0xff] %v377
                %v379 = vld [vmem:[%s177 + $0x640] sm:$0xff]
                %380 = vst [vmem:[%s178 + $0x320] sm:$0xff] %v379
                %v381 = vld [vmem:[%s177 + $0x648] sm:$0xff]
                %382 = vst [vmem:[%s178 + $0x328] sm:$0xff] %v381
                %v383 = vld [vmem:[%s177 + $0x660] sm:$0xff]
                %384 = vst [vmem:[%s178 + $0x330] sm:$0xff] %v383
                %v385 = vld [vmem:[%s177 + $0x668] sm:$0xff]
                %386 = vst [vmem:[%s178 + $0x338] sm:$0xff] %v385
                %v387 = vld [vmem:[%s177 + $0x680] sm:$0xff]
                %388 = vst [vmem:[%s178 + $0x340] sm:$0xff] %v387
                %v389 = vld [vmem:[%s177 + $0x688] sm:$0xff]
                %390 = vst [vmem:[%s178 + $0x348] sm:$0xff] %v389
                %v391 = vld [vmem:[%s177 + $0x6a0] sm:$0xff]
                %392 = vst [vmem:[%s178 + $0x350] sm:$0xff] %v391
                %v393 = vld [vmem:[%s177 + $0x6a8] sm:$0xff]
                %394 = vst [vmem:[%s178 + $0x358] sm:$0xff] %v393
                %v395 = vld [vmem:[%s177 + $0x6c0] sm:$0xff]
                %396 = vst [vmem:[%s178 + $0x360] sm:$0xff] %v395
                %v397 = vld [vmem:[%s177 + $0x6c8] sm:$0xff]
                %398 = vst [vmem:[%s178 + $0x368] sm:$0xff] %v397
                %v399 = vld [vmem:[%s177 + $0x6e0] sm:$0xff]
                %400 = vst [vmem:[%s178 + $0x370] sm:$0xff] %v399
                %v401 = vld [vmem:[%s177 + $0x6e8] sm:$0xff]
                %402 = vst [vmem:[%s178 + $0x378] sm:$0xff] %v401
                %v403 = vld [vmem:[%s177 + $0x700] sm:$0xff]
                %404 = vst [vmem:[%s178 + $0x380] sm:$0xff] %v403
                %v405 = vld [vmem:[%s177 + $0x708] sm:$0xff]
                %406 = vst [vmem:[%s178 + $0x388] sm:$0xff] %v405
                %v407 = vld [vmem:[%s177 + $0x720] sm:$0xff]
                %408 = vst [vmem:[%s178 + $0x390] sm:$0xff] %v407
                %v409 = vld [vmem:[%s177 + $0x728] sm:$0xff]
                %410 = vst [vmem:[%s178 + $0x398] sm:$0xff] %v409
                %v411 = vld [vmem:[%s177 + $0x740] sm:$0xff]
                %412 = vst [vmem:[%s178 + $0x3a0] sm:$0xff] %v411
                %v413 = vld [vmem:[%s177 + $0x748] sm:$0xff]
                %414 = vst [vmem:[%s178 + $0x3a8] sm:$0xff] %v413
                %v415 = vld [vmem:[%s177 + $0x760] sm:$0xff]
                %416 = vst [vmem:[%s178 + $0x3b0] sm:$0xff] %v415
                %v417 = vld [vmem:[%s177 + $0x768] sm:$0xff]
                %418 = vst [vmem:[%s178 + $0x3b8] sm:$0xff] %v417
                %v419 = vld [vmem:[%s177 + $0x780] sm:$0xff]
                %420 = vst [vmem:[%s178 + $0x3c0] sm:$0xff] %v419
                %v421 = vld [vmem:[%s177 + $0x788] sm:$0xff]
                %422 = vst [vmem:[%s178 + $0x3c8] sm:$0xff] %v421
                %v423 = vld [vmem:[%s177 + $0x7a0] sm:$0xff]
                %424 = vst [vmem:[%s178 + $0x3d0] sm:$0xff] %v423
                %v425 = vld [vmem:[%s177 + $0x7a8] sm:$0xff]
                %426 = vst [vmem:[%s178 + $0x3d8] sm:$0xff] %v425
                %v427 = vld [vmem:[%s177 + $0x7c0] sm:$0xff]
                %428 = vst [vmem:[%s178 + $0x3e0] sm:$0xff] %v427
                %v429 = vld [vmem:[%s177 + $0x7c8] sm:$0xff]
                %430 = vst [vmem:[%s178 + $0x3e8] sm:$0xff] %v429
                %v431 = vld [vmem:[%s177 + $0x7e0] sm:$0xff]
                %432 = vst [vmem:[%s178 + $0x3f0] sm:$0xff] %v431
                %v433 = vld [vmem:[%s177 + $0x7e8] sm:$0xff]
                %434 = vst [vmem:[%s178 + $0x3f8] sm:$0xff] %v433
                %v435 = vld [vmem:[%s177 + $0x800] sm:$0xff]
                %436 = vst [vmem:[%s178 + $0x400] sm:$0xff] %v435
                %v437 = vld [vmem:[%s177 + $0x808] sm:$0xff]
                %438 = vst [vmem:[%s178 + $0x408] sm:$0xff] %v437
                %v439 = vld [vmem:[%s177 + $0x820] sm:$0xff]
                %440 = vst [vmem:[%s178 + $0x410] sm:$0xff] %v439
                %v441 = vld [vmem:[%s177 + $0x828] sm:$0xff]
                %442 = vst [vmem:[%s178 + $0x418] sm:$0xff] %v441
                %v443 = vld [vmem:[%s177 + $0x840] sm:$0xff]
                %444 = vst [vmem:[%s178 + $0x420] sm:$0xff] %v443
                %v445 = vld [vmem:[%s177 + $0x848] sm:$0xff]
                %446 = vst [vmem:[%s178 + $0x428] sm:$0xff] %v445
                %v447 = vld [vmem:[%s177 + $0x860] sm:$0xff]
                %448 = vst [vmem:[%s178 + $0x430] sm:$0xff] %v447
                %v449 = vld [vmem:[%s177 + $0x868] sm:$0xff]
                %450 = vst [vmem:[%s178 + $0x438] sm:$0xff] %v449
                %v451 = vld [vmem:[%s177 + $0x880] sm:$0xff]
                %452 = vst [vmem:[%s178 + $0x440] sm:$0xff] %v451
                %v453 = vld [vmem:[%s177 + $0x888] sm:$0xff]
                %454 = vst [vmem:[%s178 + $0x448] sm:$0xff] %v453
                %v455 = vld [vmem:[%s177 + $0x8a0] sm:$0xff]
                %456 = vst [vmem:[%s178 + $0x450] sm:$0xff] %v455
                %v457 = vld [vmem:[%s177 + $0x8a8] sm:$0xff]
                %458 = vst [vmem:[%s178 + $0x458] sm:$0xff] %v457
                %v459 = vld [vmem:[%s177 + $0x8c0] sm:$0xff]
                %460 = vst [vmem:[%s178 + $0x460] sm:$0xff] %v459
                %v461 = vld [vmem:[%s177 + $0x8c8] sm:$0xff]
                %462 = vst [vmem:[%s178 + $0x468] sm:$0xff] %v461
                %v463 = vld [vmem:[%s177 + $0x8e0] sm:$0xff]
                %464 = vst [vmem:[%s178 + $0x470] sm:$0xff] %v463
                %v465 = vld [vmem:[%s177 + $0x8e8] sm:$0xff]
                %466 = vst [vmem:[%s178 + $0x478] sm:$0xff] %v465
                %v467 = vld [vmem:[%s177 + $0x900] sm:$0xff]
                %468 = vst [vmem:[%s178 + $0x480] sm:$0xff] %v467
                %v469 = vld [vmem:[%s177 + $0x908] sm:$0xff]
                %470 = vst [vmem:[%s178 + $0x488] sm:$0xff] %v469
                %v471 = vld [vmem:[%s177 + $0x920] sm:$0xff]
                %472 = vst [vmem:[%s178 + $0x490] sm:$0xff] %v471
                %v473 = vld [vmem:[%s177 + $0x928] sm:$0xff]
                %474 = vst [vmem:[%s178 + $0x498] sm:$0xff] %v473
                %v475 = vld [vmem:[%s177 + $0x940] sm:$0xff]
                %476 = vst [vmem:[%s178 + $0x4a0] sm:$0xff] %v475
                %v477 = vld [vmem:[%s177 + $0x948] sm:$0xff]
                %478 = vst [vmem:[%s178 + $0x4a8] sm:$0xff] %v477
                %v479 = vld [vmem:[%s177 + $0x960] sm:$0xff]
                %480 = vst [vmem:[%s178 + $0x4b0] sm:$0xff] %v479
                %v481 = vld [vmem:[%s177 + $0x968] sm:$0xff]
                %482 = vst [vmem:[%s178 + $0x4b8] sm:$0xff] %v481
                %v483 = vld [vmem:[%s177 + $0x980] sm:$0xff]
                %484 = vst [vmem:[%s178 + $0x4c0] sm:$0xff] %v483
                %v485 = vld [vmem:[%s177 + $0x988] sm:$0xff]
                %486 = vst [vmem:[%s178 + $0x4c8] sm:$0xff] %v485
                %v487 = vld [vmem:[%s177 + $0x9a0] sm:$0xff]
                %488 = vst [vmem:[%s178 + $0x4d0] sm:$0xff] %v487
                %v489 = vld [vmem:[%s177 + $0x9a8] sm:$0xff]
                %490 = vst [vmem:[%s178 + $0x4d8] sm:$0xff] %v489
                %v491 = vld [vmem:[%s177 + $0x9c0] sm:$0xff]
                %492 = vst [vmem:[%s178 + $0x4e0] sm:$0xff] %v491
                %v493 = vld [vmem:[%s177 + $0x9c8] sm:$0xff]
                %494 = vst [vmem:[%s178 + $0x4e8] sm:$0xff] %v493
                %v495 = vld [vmem:[%s177 + $0x9e0] sm:$0xff]
                %496 = vst [vmem:[%s178 + $0x4f0] sm:$0xff] %v495
                %v497 = vld [vmem:[%s177 + $0x9e8] sm:$0xff]
                %498 = vst [vmem:[%s178 + $0x4f8] sm:$0xff] %v497
                %v499 = vld [vmem:[%s177 + $0xa00] sm:$0xff]
                %500 = vst [vmem:[%s178 + $0x500] sm:$0xff] %v499
                %v501 = vld [vmem:[%s177 + $0xa08] sm:$0xff]
                %502 = vst [vmem:[%s178 + $0x508] sm:$0xff] %v501
                %v503 = vld [vmem:[%s177 + $0xa20] sm:$0xff]
                %504 = vst [vmem:[%s178 + $0x510] sm:$0xff] %v503
                %v505 = vld [vmem:[%s177 + $0xa28] sm:$0xff]
                %506 = vst [vmem:[%s178 + $0x518] sm:$0xff] %v505
                %v507 = vld [vmem:[%s177 + $0xa40] sm:$0xff]
                %508 = vst [vmem:[%s178 + $0x520] sm:$0xff] %v507
                %v509 = vld [vmem:[%s177 + $0xa48] sm:$0xff]
                %510 = vst [vmem:[%s178 + $0x528] sm:$0xff] %v509
                %v511 = vld [vmem:[%s177 + $0xa60] sm:$0xff]
                %512 = vst [vmem:[%s178 + $0x530] sm:$0xff] %v511
                %v513 = vld [vmem:[%s177 + $0xa68] sm:$0xff]
                %514 = vst [vmem:[%s178 + $0x538] sm:$0xff] %v513
                %v515 = vld [vmem:[%s177 + $0xa80] sm:$0xff]
                %516 = vst [vmem:[%s178 + $0x540] sm:$0xff] %v515
                %v517 = vld [vmem:[%s177 + $0xa88] sm:$0xff]
                %518 = vst [vmem:[%s178 + $0x548] sm:$0xff] %v517
                %v519 = vld [vmem:[%s177 + $0xaa0] sm:$0xff]
                %520 = vst [vmem:[%s178 + $0x550] sm:$0xff] %v519
                %v521 = vld [vmem:[%s177 + $0xaa8] sm:$0xff]
                %522 = vst [vmem:[%s178 + $0x558] sm:$0xff] %v521
                %v523 = vld [vmem:[%s177 + $0xac0] sm:$0xff]
                %524 = vst [vmem:[%s178 + $0x560] sm:$0xff] %v523
                %v525 = vld [vmem:[%s177 + $0xac8] sm:$0xff]
                %526 = vst [vmem:[%s178 + $0x568] sm:$0xff] %v525
                %v527 = vld [vmem:[%s177 + $0xae0] sm:$0xff]
                %528 = vst [vmem:[%s178 + $0x570] sm:$0xff] %v527
                %v529 = vld [vmem:[%s177 + $0xae8] sm:$0xff]
                %530 = vst [vmem:[%s178 + $0x578] sm:$0xff] %v529
                %v531 = vld [vmem:[%s177 + $0xb00] sm:$0xff]
                %532 = vst [vmem:[%s178 + $0x580] sm:$0xff] %v531
                %v533 = vld [vmem:[%s177 + $0xb08] sm:$0xff]
                %534 = vst [vmem:[%s178 + $0x588] sm:$0xff] %v533
                %v535 = vld [vmem:[%s177 + $0xb20] sm:$0xff]
                %536 = vst [vmem:[%s178 + $0x590] sm:$0xff] %v535
                %v537 = vld [vmem:[%s177 + $0xb28] sm:$0xff]
                %538 = vst [vmem:[%s178 + $0x598] sm:$0xff] %v537
                %v539 = vld [vmem:[%s177 + $0xb40] sm:$0xff]
                %540 = vst [vmem:[%s178 + $0x5a0] sm:$0xff] %v539
                %v541 = vld [vmem:[%s177 + $0xb48] sm:$0xff]
                %542 = vst [vmem:[%s178 + $0x5a8] sm:$0xff] %v541
                %v543 = vld [vmem:[%s177 + $0xb60] sm:$0xff]
                %544 = vst [vmem:[%s178 + $0x5b0] sm:$0xff] %v543
                %v545 = vld [vmem:[%s177 + $0xb68] sm:$0xff]
                %546 = vst [vmem:[%s178 + $0x5b8] sm:$0xff] %v545
                %v547 = vld [vmem:[%s177 + $0xb80] sm:$0xff]
                %548 = vst [vmem:[%s178 + $0x5c0] sm:$0xff] %v547
                %v549 = vld [vmem:[%s177 + $0xb88] sm:$0xff]
                %550 = vst [vmem:[%s178 + $0x5c8] sm:$0xff] %v549
                %v551 = vld [vmem:[%s177 + $0xba0] sm:$0xff]
                %552 = vst [vmem:[%s178 + $0x5d0] sm:$0xff] %v551
                %v553 = vld [vmem:[%s177 + $0xba8] sm:$0xff]
                %554 = vst [vmem:[%s178 + $0x5d8] sm:$0xff] %v553
                %v555 = vld [vmem:[%s177 + $0xbc0] sm:$0xff]
                %556 = vst [vmem:[%s178 + $0x5e0] sm:$0xff] %v555
                %v557 = vld [vmem:[%s177 + $0xbc8] sm:$0xff]
                %558 = vst [vmem:[%s178 + $0x5e8] sm:$0xff] %v557
                %v559 = vld [vmem:[%s177 + $0xbe0] sm:$0xff]
                %560 = vst [vmem:[%s178 + $0x5f0] sm:$0xff] %v559
                %v561 = vld [vmem:[%s177 + $0xbe8] sm:$0xff]
                %562 = vst [vmem:[%s178 + $0x5f8] sm:$0xff] %v561
                %v563 = vld [vmem:[%s177 + $0xc00] sm:$0xff]
                %564 = vst [vmem:[%s178 + $0x600] sm:$0xff] %v563
                %v565 = vld [vmem:[%s177 + $0xc08] sm:$0xff]
                %566 = vst [vmem:[%s178 + $0x608] sm:$0xff] %v565
                %v567 = vld [vmem:[%s177 + $0xc20] sm:$0xff]
                %568 = vst [vmem:[%s178 + $0x610] sm:$0xff] %v567
                %v569 = vld [vmem:[%s177 + $0xc28] sm:$0xff]
                %570 = vst [vmem:[%s178 + $0x618] sm:$0xff] %v569
                %v571 = vld [vmem:[%s177 + $0xc40] sm:$0xff]
                %572 = vst [vmem:[%s178 + $0x620] sm:$0xff] %v571
                %v573 = vld [vmem:[%s177 + $0xc48] sm:$0xff]
                %574 = vst [vmem:[%s178 + $0x628] sm:$0xff] %v573
                %v575 = vld [vmem:[%s177 + $0xc60] sm:$0xff]
                %576 = vst [vmem:[%s178 + $0x630] sm:$0xff] %v575
                %v577 = vld [vmem:[%s177 + $0xc68] sm:$0xff]
                %578 = vst [vmem:[%s178 + $0x638] sm:$0xff] %v577
                %v579 = vld [vmem:[%s177 + $0xc80] sm:$0xff]
                %580 = vst [vmem:[%s178 + $0x640] sm:$0xff] %v579
                %v581 = vld [vmem:[%s177 + $0xc88] sm:$0xff]
                %582 = vst [vmem:[%s178 + $0x648] sm:$0xff] %v581
                %v583 = vld [vmem:[%s177 + $0xca0] sm:$0xff]
                %584 = vst [vmem:[%s178 + $0x650] sm:$0xff] %v583
                %v585 = vld [vmem:[%s177 + $0xca8] sm:$0xff]
                %586 = vst [vmem:[%s178 + $0x658] sm:$0xff] %v585
                %v587 = vld [vmem:[%s177 + $0xcc0] sm:$0xff]
                %588 = vst [vmem:[%s178 + $0x660] sm:$0xff] %v587
                %v589 = vld [vmem:[%s177 + $0xcc8] sm:$0xff]
                %590 = vst [vmem:[%s178 + $0x668] sm:$0xff] %v589
                %v591 = vld [vmem:[%s177 + $0xce0] sm:$0xff]
                %592 = vst [vmem:[%s178 + $0x670] sm:$0xff] %v591
                %v593 = vld [vmem:[%s177 + $0xce8] sm:$0xff]
                %594 = vst [vmem:[%s178 + $0x678] sm:$0xff] %v593
                %v595 = vld [vmem:[%s177 + $0xd00] sm:$0xff]
                %596 = vst [vmem:[%s178 + $0x680] sm:$0xff] %v595
                %v597 = vld [vmem:[%s177 + $0xd08] sm:$0xff]
                %598 = vst [vmem:[%s178 + $0x688] sm:$0xff] %v597
                %v599 = vld [vmem:[%s177 + $0xd20] sm:$0xff]
                %600 = vst [vmem:[%s178 + $0x690] sm:$0xff] %v599
                %v601 = vld [vmem:[%s177 + $0xd28] sm:$0xff]
                %602 = vst [vmem:[%s178 + $0x698] sm:$0xff] %v601
                %v603 = vld [vmem:[%s177 + $0xd40] sm:$0xff]
                %604 = vst [vmem:[%s178 + $0x6a0] sm:$0xff] %v603
                %v605 = vld [vmem:[%s177 + $0xd48] sm:$0xff]
                %606 = vst [vmem:[%s178 + $0x6a8] sm:$0xff] %v605
                %v607 = vld [vmem:[%s177 + $0xd60] sm:$0xff]
                %608 = vst [vmem:[%s178 + $0x6b0] sm:$0xff] %v607
                %v609 = vld [vmem:[%s177 + $0xd68] sm:$0xff]
                %610 = vst [vmem:[%s178 + $0x6b8] sm:$0xff] %v609
                %v611 = vld [vmem:[%s177 + $0xd80] sm:$0xff]
                %612 = vst [vmem:[%s178 + $0x6c0] sm:$0xff] %v611
                %v613 = vld [vmem:[%s177 + $0xd88] sm:$0xff]
                %614 = vst [vmem:[%s178 + $0x6c8] sm:$0xff] %v613
                %v615 = vld [vmem:[%s177 + $0xda0] sm:$0xff]
                %616 = vst [vmem:[%s178 + $0x6d0] sm:$0xff] %v615
                %v617 = vld [vmem:[%s177 + $0xda8] sm:$0xff]
                %618 = vst [vmem:[%s178 + $0x6d8] sm:$0xff] %v617
                %v619 = vld [vmem:[%s177 + $0xdc0] sm:$0xff]
                %620 = vst [vmem:[%s178 + $0x6e0] sm:$0xff] %v619
                %v621 = vld [vmem:[%s177 + $0xdc8] sm:$0xff]
                %622 = vst [vmem:[%s178 + $0x6e8] sm:$0xff] %v621
                %v623 = vld [vmem:[%s177 + $0xde0] sm:$0xff]
                %624 = vst [vmem:[%s178 + $0x6f0] sm:$0xff] %v623
                %v625 = vld [vmem:[%s177 + $0xde8] sm:$0xff]
                %626 = vst [vmem:[%s178 + $0x6f8] sm:$0xff] %v625
                %v627 = vld [vmem:[%s177 + $0xe00] sm:$0xff]
                %628 = vst [vmem:[%s178 + $0x700] sm:$0xff] %v627
                %v629 = vld [vmem:[%s177 + $0xe08] sm:$0xff]
                %630 = vst [vmem:[%s178 + $0x708] sm:$0xff] %v629
                %v631 = vld [vmem:[%s177 + $0xe20] sm:$0xff]
                %632 = vst [vmem:[%s178 + $0x710] sm:$0xff] %v631
                %v633 = vld [vmem:[%s177 + $0xe28] sm:$0xff]
                %634 = vst [vmem:[%s178 + $0x718] sm:$0xff] %v633
                %v635 = vld [vmem:[%s177 + $0xe40] sm:$0xff]
                %636 = vst [vmem:[%s178 + $0x720] sm:$0xff] %v635
                %v637 = vld [vmem:[%s177 + $0xe48] sm:$0xff]
                %638 = vst [vmem:[%s178 + $0x728] sm:$0xff] %v637
                %v639 = vld [vmem:[%s177 + $0xe60] sm:$0xff]
                %640 = vst [vmem:[%s178 + $0x730] sm:$0xff] %v639
                %v641 = vld [vmem:[%s177 + $0xe68] sm:$0xff]
                %642 = vst [vmem:[%s178 + $0x738] sm:$0xff] %v641
                %v643 = vld [vmem:[%s177 + $0xe80] sm:$0xff]
                %644 = vst [vmem:[%s178 + $0x740] sm:$0xff] %v643
                %v645 = vld [vmem:[%s177 + $0xe88] sm:$0xff]
                %646 = vst [vmem:[%s178 + $0x748] sm:$0xff] %v645
                %v647 = vld [vmem:[%s177 + $0xea0] sm:$0xff]
                %648 = vst [vmem:[%s178 + $0x750] sm:$0xff] %v647
                %v649 = vld [vmem:[%s177 + $0xea8] sm:$0xff]
                %650 = vst [vmem:[%s178 + $0x758] sm:$0xff] %v649
                %v651 = vld [vmem:[%s177 + $0xec0] sm:$0xff]
                %652 = vst [vmem:[%s178 + $0x760] sm:$0xff] %v651
                %v653 = vld [vmem:[%s177 + $0xec8] sm:$0xff]
                %654 = vst [vmem:[%s178 + $0x768] sm:$0xff] %v653
                %v655 = vld [vmem:[%s177 + $0xee0] sm:$0xff]
                %656 = vst [vmem:[%s178 + $0x770] sm:$0xff] %v655
                %v657 = vld [vmem:[%s177 + $0xee8] sm:$0xff]
                %658 = vst [vmem:[%s178 + $0x778] sm:$0xff] %v657
                %v659 = vld [vmem:[%s177 + $0xf00] sm:$0xff]
                %660 = vst [vmem:[%s178 + $0x780] sm:$0xff] %v659
                %v661 = vld [vmem:[%s177 + $0xf08] sm:$0xff]
                %662 = vst [vmem:[%s178 + $0x788] sm:$0xff] %v661
                %v663 = vld [vmem:[%s177 + $0xf20] sm:$0xff]
                %664 = vst [vmem:[%s178 + $0x790] sm:$0xff] %v663
                %v665 = vld [vmem:[%s177 + $0xf28] sm:$0xff]
                %666 = vst [vmem:[%s178 + $0x798] sm:$0xff] %v665
                %v667 = vld [vmem:[%s177 + $0xf40] sm:$0xff]
                %668 = vst [vmem:[%s178 + $0x7a0] sm:$0xff] %v667
                %v669 = vld [vmem:[%s177 + $0xf48] sm:$0xff]
                %670 = vst [vmem:[%s178 + $0x7a8] sm:$0xff] %v669
                %v671 = vld [vmem:[%s177 + $0xf60] sm:$0xff]
                %672 = vst [vmem:[%s178 + $0x7b0] sm:$0xff] %v671
                %v673 = vld [vmem:[%s177 + $0xf68] sm:$0xff]
                %674 = vst [vmem:[%s178 + $0x7b8] sm:$0xff] %v673
                %v675 = vld [vmem:[%s177 + $0xf80] sm:$0xff]
                %676 = vst [vmem:[%s178 + $0x7c0] sm:$0xff] %v675
                %v677 = vld [vmem:[%s177 + $0xf88] sm:$0xff]
                %678 = vst [vmem:[%s178 + $0x7c8] sm:$0xff] %v677
                %v679 = vld [vmem:[%s177 + $0xfa0] sm:$0xff]
                %680 = vst [vmem:[%s178 + $0x7d0] sm:$0xff] %v679
                %v681 = vld [vmem:[%s177 + $0xfa8] sm:$0xff]
                %682 = vst [vmem:[%s178 + $0x7d8] sm:$0xff] %v681
                %v683 = vld [vmem:[%s177 + $0xfc0] sm:$0xff]
                %684 = vst [vmem:[%s178 + $0x7e0] sm:$0xff] %v683
                %v685 = vld [vmem:[%s177 + $0xfc8] sm:$0xff]
                %686 = vst [vmem:[%s178 + $0x7e8] sm:$0xff] %v685
                %v687 = vld [vmem:[%s177 + $0xfe0] sm:$0xff]
                %688 = vst [vmem:[%s178 + $0x7f0] sm:$0xff] %v687
                %v689 = vld [vmem:[%s177 + $0xfe8] sm:$0xff]
                %690 = vst [vmem:[%s178 + $0x7f8] sm:$0xff] %v689
                %v691 = vld [vmem:[%s177 + $0x1000] sm:$0xff]
                %692 = vst [vmem:[%s178 + $0x800] sm:$0xff] %v691
                %v693 = vld [vmem:[%s177 + $0x1008] sm:$0xff]
                %694 = vst [vmem:[%s178 + $0x808] sm:$0xff] %v693
                %v695 = vld [vmem:[%s177 + $0x1020] sm:$0xff]
                %696 = vst [vmem:[%s178 + $0x810] sm:$0xff] %v695
                %v697 = vld [vmem:[%s177 + $0x1028] sm:$0xff]
                %698 = vst [vmem:[%s178 + $0x818] sm:$0xff] %v697
                %v699 = vld [vmem:[%s177 + $0x1040] sm:$0xff]
                %700 = vst [vmem:[%s178 + $0x820] sm:$0xff] %v699
                %v701 = vld [vmem:[%s177 + $0x1048] sm:$0xff]
                %702 = vst [vmem:[%s178 + $0x828] sm:$0xff] %v701
                %v703 = vld [vmem:[%s177 + $0x1060] sm:$0xff]
                %704 = vst [vmem:[%s178 + $0x830] sm:$0xff] %v703
                %v705 = vld [vmem:[%s177 + $0x1068] sm:$0xff]
                %706 = vst [vmem:[%s178 + $0x838] sm:$0xff] %v705
                %v707 = vld [vmem:[%s177 + $0x1080] sm:$0xff]
                %708 = vst [vmem:[%s178 + $0x840] sm:$0xff] %v707
                %v709 = vld [vmem:[%s177 + $0x1088] sm:$0xff]
                %710 = vst [vmem:[%s178 + $0x848] sm:$0xff] %v709
                %v711 = vld [vmem:[%s177 + $0x10a0] sm:$0xff]
                %712 = vst [vmem:[%s178 + $0x850] sm:$0xff] %v711
                %v713 = vld [vmem:[%s177 + $0x10a8] sm:$0xff]
                %714 = vst [vmem:[%s178 + $0x858] sm:$0xff] %v713
                %v715 = vld [vmem:[%s177 + $0x10c0] sm:$0xff]
                %716 = vst [vmem:[%s178 + $0x860] sm:$0xff] %v715
                %v717 = vld [vmem:[%s177 + $0x10c8] sm:$0xff]
                %718 = vst [vmem:[%s178 + $0x868] sm:$0xff] %v717
                %v719 = vld [vmem:[%s177 + $0x10e0] sm:$0xff]
                %720 = vst [vmem:[%s178 + $0x870] sm:$0xff] %v719
                %v721 = vld [vmem:[%s177 + $0x10e8] sm:$0xff]
                %722 = vst [vmem:[%s178 + $0x878] sm:$0xff] %v721
                %v723 = vld [vmem:[%s177 + $0x1100] sm:$0xff]
                %724 = vst [vmem:[%s178 + $0x880] sm:$0xff] %v723
                %v725 = vld [vmem:[%s177 + $0x1108] sm:$0xff]
                %726 = vst [vmem:[%s178 + $0x888] sm:$0xff] %v725
                %v727 = vld [vmem:[%s177 + $0x1120] sm:$0xff]
                %728 = vst [vmem:[%s178 + $0x890] sm:$0xff] %v727
                %v729 = vld [vmem:[%s177 + $0x1128] sm:$0xff]
                %730 = vst [vmem:[%s178 + $0x898] sm:$0xff] %v729
                %v731 = vld [vmem:[%s177 + $0x1140] sm:$0xff]
                %732 = vst [vmem:[%s178 + $0x8a0] sm:$0xff] %v731
                %v733 = vld [vmem:[%s177 + $0x1148] sm:$0xff]
                %734 = vst [vmem:[%s178 + $0x8a8] sm:$0xff] %v733
                %v735 = vld [vmem:[%s177 + $0x1160] sm:$0xff]
                %736 = vst [vmem:[%s178 + $0x8b0] sm:$0xff] %v735
                %v737 = vld [vmem:[%s177 + $0x1168] sm:$0xff]
                %738 = vst [vmem:[%s178 + $0x8b8] sm:$0xff] %v737
                %v739 = vld [vmem:[%s177 + $0x1180] sm:$0xff]
                %740 = vst [vmem:[%s178 + $0x8c0] sm:$0xff] %v739
                %v741 = vld [vmem:[%s177 + $0x1188] sm:$0xff]
                %742 = vst [vmem:[%s178 + $0x8c8] sm:$0xff] %v741
                %v743 = vld [vmem:[%s177 + $0x11a0] sm:$0xff]
                %744 = vst [vmem:[%s178 + $0x8d0] sm:$0xff] %v743
                %v745 = vld [vmem:[%s177 + $0x11a8] sm:$0xff]
                %746 = vst [vmem:[%s178 + $0x8d8] sm:$0xff] %v745
                %v747 = vld [vmem:[%s177 + $0x11c0] sm:$0xff]
                %748 = vst [vmem:[%s178 + $0x8e0] sm:$0xff] %v747
                %v749 = vld [vmem:[%s177 + $0x11c8] sm:$0xff]
                %750 = vst [vmem:[%s178 + $0x8e8] sm:$0xff] %v749
                %v751 = vld [vmem:[%s177 + $0x11e0] sm:$0xff]
                %752 = vst [vmem:[%s178 + $0x8f0] sm:$0xff] %v751
                %v753 = vld [vmem:[%s177 + $0x11e8] sm:$0xff]
                %754 = vst [vmem:[%s178 + $0x8f8] sm:$0xff] %v753
                %v755 = vld [vmem:[%s177 + $0x1200] sm:$0xff]
                %756 = vst [vmem:[%s178 + $0x900] sm:$0xff] %v755
                %v757 = vld [vmem:[%s177 + $0x1208] sm:$0xff]
                %758 = vst [vmem:[%s178 + $0x908] sm:$0xff] %v757
                %v759 = vld [vmem:[%s177 + $0x1220] sm:$0xff]
                %760 = vst [vmem:[%s178 + $0x910] sm:$0xff] %v759
                %v761 = vld [vmem:[%s177 + $0x1228] sm:$0xff]
                %762 = vst [vmem:[%s178 + $0x918] sm:$0xff] %v761
                %v763 = vld [vmem:[%s177 + $0x1240] sm:$0xff]
                %764 = vst [vmem:[%s178 + $0x920] sm:$0xff] %v763
                %v765 = vld [vmem:[%s177 + $0x1248] sm:$0xff]
                %766 = vst [vmem:[%s178 + $0x928] sm:$0xff] %v765
                %v767 = vld [vmem:[%s177 + $0x1260] sm:$0xff]
                %768 = vst [vmem:[%s178 + $0x930] sm:$0xff] %v767
                %v769 = vld [vmem:[%s177 + $0x1268] sm:$0xff]
                %770 = vst [vmem:[%s178 + $0x938] sm:$0xff] %v769
                %v771 = vld [vmem:[%s177 + $0x1280] sm:$0xff]
                %772 = vst [vmem:[%s178 + $0x940] sm:$0xff] %v771
                %v773 = vld [vmem:[%s177 + $0x1288] sm:$0xff]
                %774 = vst [vmem:[%s178 + $0x948] sm:$0xff] %v773
                %v775 = vld [vmem:[%s177 + $0x12a0] sm:$0xff]
                %776 = vst [vmem:[%s178 + $0x950] sm:$0xff] %v775
                %v777 = vld [vmem:[%s177 + $0x12a8] sm:$0xff]
                %778 = vst [vmem:[%s178 + $0x958] sm:$0xff] %v777
                %v779 = vld [vmem:[%s177 + $0x12c0] sm:$0xff]
                %780 = vst [vmem:[%s178 + $0x960] sm:$0xff] %v779
                %v781 = vld [vmem:[%s177 + $0x12c8] sm:$0xff]
                %782 = vst [vmem:[%s178 + $0x968] sm:$0xff] %v781
                %v783 = vld [vmem:[%s177 + $0x12e0] sm:$0xff]
                %784 = vst [vmem:[%s178 + $0x970] sm:$0xff] %v783
                %v785 = vld [vmem:[%s177 + $0x12e8] sm:$0xff]
                %786 = vst [vmem:[%s178 + $0x978] sm:$0xff] %v785
                %v787 = vld [vmem:[%s177 + $0x1300] sm:$0xff]
                %788 = vst [vmem:[%s178 + $0x980] sm:$0xff] %v787
                %v789 = vld [vmem:[%s177 + $0x1308] sm:$0xff]
                %790 = vst [vmem:[%s178 + $0x988] sm:$0xff] %v789
                %v791 = vld [vmem:[%s177 + $0x1320] sm:$0xff]
                %792 = vst [vmem:[%s178 + $0x990] sm:$0xff] %v791
                %v793 = vld [vmem:[%s177 + $0x1328] sm:$0xff]
                %794 = vst [vmem:[%s178 + $0x998] sm:$0xff] %v793
                %v795 = vld [vmem:[%s177 + $0x1340] sm:$0xff]
                %796 = vst [vmem:[%s178 + $0x9a0] sm:$0xff] %v795
                %v797 = vld [vmem:[%s177 + $0x1348] sm:$0xff]
                %798 = vst [vmem:[%s178 + $0x9a8] sm:$0xff] %v797
                %v799 = vld [vmem:[%s177 + $0x1360] sm:$0xff]
                %800 = vst [vmem:[%s178 + $0x9b0] sm:$0xff] %v799
                %v801 = vld [vmem:[%s177 + $0x1368] sm:$0xff]
                %802 = vst [vmem:[%s178 + $0x9b8] sm:$0xff] %v801
                %v803 = vld [vmem:[%s177 + $0x1380] sm:$0xff]
                %804 = vst [vmem:[%s178 + $0x9c0] sm:$0xff] %v803
                %v805 = vld [vmem:[%s177 + $0x1388] sm:$0xff]
                %806 = vst [vmem:[%s178 + $0x9c8] sm:$0xff] %v805
                %v807 = vld [vmem:[%s177 + $0x13a0] sm:$0xff]
                %808 = vst [vmem:[%s178 + $0x9d0] sm:$0xff] %v807
                %v809 = vld [vmem:[%s177 + $0x13a8] sm:$0xff]
                %810 = vst [vmem:[%s178 + $0x9d8] sm:$0xff] %v809
                %v811 = vld [vmem:[%s177 + $0x13c0] sm:$0xff]
                %812 = vst [vmem:[%s178 + $0x9e0] sm:$0xff] %v811
                %v813 = vld [vmem:[%s177 + $0x13c8] sm:$0xff]
                %814 = vst [vmem:[%s178 + $0x9e8] sm:$0xff] %v813
                %v815 = vld [vmem:[%s177 + $0x13e0] sm:$0xff]
                %816 = vst [vmem:[%s178 + $0x9f0] sm:$0xff] %v815
                %v817 = vld [vmem:[%s177 + $0x13e8] sm:$0xff]
                %818 = vst [vmem:[%s178 + $0x9f8] sm:$0xff] %v817
                %v819 = vld [vmem:[%s177 + $0x1400] sm:$0xff]
                %820 = vst [vmem:[%s178 + $0xa00] sm:$0xff] %v819
                %v821 = vld [vmem:[%s177 + $0x1408] sm:$0xff]
                %822 = vst [vmem:[%s178 + $0xa08] sm:$0xff] %v821
                %v823 = vld [vmem:[%s177 + $0x1420] sm:$0xff]
                %824 = vst [vmem:[%s178 + $0xa10] sm:$0xff] %v823
                %v825 = vld [vmem:[%s177 + $0x1428] sm:$0xff]
                %826 = vst [vmem:[%s178 + $0xa18] sm:$0xff] %v825
                %v827 = vld [vmem:[%s177 + $0x1440] sm:$0xff]
                %828 = vst [vmem:[%s178 + $0xa20] sm:$0xff] %v827
                %v829 = vld [vmem:[%s177 + $0x1448] sm:$0xff]
                %830 = vst [vmem:[%s178 + $0xa28] sm:$0xff] %v829
                %v831 = vld [vmem:[%s177 + $0x1460] sm:$0xff]
                %832 = vst [vmem:[%s178 + $0xa30] sm:$0xff] %v831
                %v833 = vld [vmem:[%s177 + $0x1468] sm:$0xff]
                %834 = vst [vmem:[%s178 + $0xa38] sm:$0xff] %v833
                %v835 = vld [vmem:[%s177 + $0x1480] sm:$0xff]
                %836 = vst [vmem:[%s178 + $0xa40] sm:$0xff] %v835
                %v837 = vld [vmem:[%s177 + $0x1488] sm:$0xff]
                %838 = vst [vmem:[%s178 + $0xa48] sm:$0xff] %v837
                %v839 = vld [vmem:[%s177 + $0x14a0] sm:$0xff]
                %840 = vst [vmem:[%s178 + $0xa50] sm:$0xff] %v839
                %v841 = vld [vmem:[%s177 + $0x14a8] sm:$0xff]
                %842 = vst [vmem:[%s178 + $0xa58] sm:$0xff] %v841
                %v843 = vld [vmem:[%s177 + $0x14c0] sm:$0xff]
                %844 = vst [vmem:[%s178 + $0xa60] sm:$0xff] %v843
                %v845 = vld [vmem:[%s177 + $0x14c8] sm:$0xff]
                %846 = vst [vmem:[%s178 + $0xa68] sm:$0xff] %v845
                %v847 = vld [vmem:[%s177 + $0x14e0] sm:$0xff]
                %848 = vst [vmem:[%s178 + $0xa70] sm:$0xff] %v847
                %v849 = vld [vmem:[%s177 + $0x14e8] sm:$0xff]
                %850 = vst [vmem:[%s178 + $0xa78] sm:$0xff] %v849
                %v851 = vld [vmem:[%s177 + $0x1500] sm:$0xff]
                %852 = vst [vmem:[%s178 + $0xa80] sm:$0xff] %v851
                %v853 = vld [vmem:[%s177 + $0x1508] sm:$0xff]
                %854 = vst [vmem:[%s178 + $0xa88] sm:$0xff] %v853
                %v855 = vld [vmem:[%s177 + $0x1520] sm:$0xff]
                %856 = vst [vmem:[%s178 + $0xa90] sm:$0xff] %v855
                %v857 = vld [vmem:[%s177 + $0x1528] sm:$0xff]
                %858 = vst [vmem:[%s178 + $0xa98] sm:$0xff] %v857
                %v859 = vld [vmem:[%s177 + $0x1540] sm:$0xff]
                %860 = vst [vmem:[%s178 + $0xaa0] sm:$0xff] %v859
                %v861 = vld [vmem:[%s177 + $0x1548] sm:$0xff]
                %862 = vst [vmem:[%s178 + $0xaa8] sm:$0xff] %v861
                %v863 = vld [vmem:[%s177 + $0x1560] sm:$0xff]
                %864 = vst [vmem:[%s178 + $0xab0] sm:$0xff] %v863
                %v865 = vld [vmem:[%s177 + $0x1568] sm:$0xff]
                %866 = vst [vmem:[%s178 + $0xab8] sm:$0xff] %v865
                %v867 = vld [vmem:[%s177 + $0x1580] sm:$0xff]
                %868 = vst [vmem:[%s178 + $0xac0] sm:$0xff] %v867
                %v869 = vld [vmem:[%s177 + $0x1588] sm:$0xff]
                %870 = vst [vmem:[%s178 + $0xac8] sm:$0xff] %v869
                %v871 = vld [vmem:[%s177 + $0x15a0] sm:$0xff]
                %872 = vst [vmem:[%s178 + $0xad0] sm:$0xff] %v871
                %v873 = vld [vmem:[%s177 + $0x15a8] sm:$0xff]
                %874 = vst [vmem:[%s178 + $0xad8] sm:$0xff] %v873
                %v875 = vld [vmem:[%s177 + $0x15c0] sm:$0xff]
                %876 = vst [vmem:[%s178 + $0xae0] sm:$0xff] %v875
                %v877 = vld [vmem:[%s177 + $0x15c8] sm:$0xff]
                %878 = vst [vmem:[%s178 + $0xae8] sm:$0xff] %v877
                %v879 = vld [vmem:[%s177 + $0x15e0] sm:$0xff]
                %880 = vst [vmem:[%s178 + $0xaf0] sm:$0xff] %v879
                %v881 = vld [vmem:[%s177 + $0x15e8] sm:$0xff]
                %882 = vst [vmem:[%s178 + $0xaf8] sm:$0xff] %v881
                %v883 = vld [vmem:[%s177 + $0x1600] sm:$0xff]
                %884 = vst [vmem:[%s178 + $0xb00] sm:$0xff] %v883
                %v885 = vld [vmem:[%s177 + $0x1608] sm:$0xff]
                %886 = vst [vmem:[%s178 + $0xb08] sm:$0xff] %v885
                %v887 = vld [vmem:[%s177 + $0x1620] sm:$0xff]
                %888 = vst [vmem:[%s178 + $0xb10] sm:$0xff] %v887
                %v889 = vld [vmem:[%s177 + $0x1628] sm:$0xff]
                %890 = vst [vmem:[%s178 + $0xb18] sm:$0xff] %v889
                %v891 = vld [vmem:[%s177 + $0x1640] sm:$0xff]
                %892 = vst [vmem:[%s178 + $0xb20] sm:$0xff] %v891
                %v893 = vld [vmem:[%s177 + $0x1648] sm:$0xff]
                %894 = vst [vmem:[%s178 + $0xb28] sm:$0xff] %v893
                %v895 = vld [vmem:[%s177 + $0x1660] sm:$0xff]
                %896 = vst [vmem:[%s178 + $0xb30] sm:$0xff] %v895
                %v897 = vld [vmem:[%s177 + $0x1668] sm:$0xff]
                %898 = vst [vmem:[%s178 + $0xb38] sm:$0xff] %v897
                %v899 = vld [vmem:[%s177 + $0x1680] sm:$0xff]
                %900 = vst [vmem:[%s178 + $0xb40] sm:$0xff] %v899
                %v901 = vld [vmem:[%s177 + $0x1688] sm:$0xff]
                %902 = vst [vmem:[%s178 + $0xb48] sm:$0xff] %v901
                %v903 = vld [vmem:[%s177 + $0x16a0] sm:$0xff]
                %904 = vst [vmem:[%s178 + $0xb50] sm:$0xff] %v903
                %v905 = vld [vmem:[%s177 + $0x16a8] sm:$0xff]
                %906 = vst [vmem:[%s178 + $0xb58] sm:$0xff] %v905
                %v907 = vld [vmem:[%s177 + $0x16c0] sm:$0xff]
                %908 = vst [vmem:[%s178 + $0xb60] sm:$0xff] %v907
                %v909 = vld [vmem:[%s177 + $0x16c8] sm:$0xff]
                %910 = vst [vmem:[%s178 + $0xb68] sm:$0xff] %v909
                %v911 = vld [vmem:[%s177 + $0x16e0] sm:$0xff]
                %912 = vst [vmem:[%s178 + $0xb70] sm:$0xff] %v911
                %v913 = vld [vmem:[%s177 + $0x16e8] sm:$0xff]
                %914 = vst [vmem:[%s178 + $0xb78] sm:$0xff] %v913
                %v915 = vld [vmem:[%s177 + $0x1700] sm:$0xff]
                %916 = vst [vmem:[%s178 + $0xb80] sm:$0xff] %v915
                %v917 = vld [vmem:[%s177 + $0x1708] sm:$0xff]
                %918 = vst [vmem:[%s178 + $0xb88] sm:$0xff] %v917
                %v919 = vld [vmem:[%s177 + $0x1720] sm:$0xff]
                %920 = vst [vmem:[%s178 + $0xb90] sm:$0xff] %v919
                %v921 = vld [vmem:[%s177 + $0x1728] sm:$0xff]
                %922 = vst [vmem:[%s178 + $0xb98] sm:$0xff] %v921
                %v923 = vld [vmem:[%s177 + $0x1740] sm:$0xff]
                %924 = vst [vmem:[%s178 + $0xba0] sm:$0xff] %v923
                %v925 = vld [vmem:[%s177 + $0x1748] sm:$0xff]
                %926 = vst [vmem:[%s178 + $0xba8] sm:$0xff] %v925
                %v927 = vld [vmem:[%s177 + $0x1760] sm:$0xff]
                %928 = vst [vmem:[%s178 + $0xbb0] sm:$0xff] %v927
                %v929 = vld [vmem:[%s177 + $0x1768] sm:$0xff]
                %930 = vst [vmem:[%s178 + $0xbb8] sm:$0xff] %v929
                %v931 = vld [vmem:[%s177 + $0x1780] sm:$0xff]
                %932 = vst [vmem:[%s178 + $0xbc0] sm:$0xff] %v931
                %v933 = vld [vmem:[%s177 + $0x1788] sm:$0xff]
                %934 = vst [vmem:[%s178 + $0xbc8] sm:$0xff] %v933
                %v935 = vld [vmem:[%s177 + $0x17a0] sm:$0xff]
                %936 = vst [vmem:[%s178 + $0xbd0] sm:$0xff] %v935
                %v937 = vld [vmem:[%s177 + $0x17a8] sm:$0xff]
                %938 = vst [vmem:[%s178 + $0xbd8] sm:$0xff] %v937
                %v939 = vld [vmem:[%s177 + $0x17c0] sm:$0xff]
                %940 = vst [vmem:[%s178 + $0xbe0] sm:$0xff] %v939
                %v941 = vld [vmem:[%s177 + $0x17c8] sm:$0xff]
                %942 = vst [vmem:[%s178 + $0xbe8] sm:$0xff] %v941
                %v943 = vld [vmem:[%s177 + $0x17e0] sm:$0xff]
                %944 = vst [vmem:[%s178 + $0xbf0] sm:$0xff] %v943
                %v945 = vld [vmem:[%s177 + $0x17e8] sm:$0xff]
                %946 = vst [vmem:[%s178 + $0xbf8] sm:$0xff] %v945
                %v947 = vld [vmem:[%s177 + $0x1800] sm:$0xff]
                %948 = vst [vmem:[%s178 + $0xc00] sm:$0xff] %v947
                %v949 = vld [vmem:[%s177 + $0x1808] sm:$0xff]
                %950 = vst [vmem:[%s178 + $0xc08] sm:$0xff] %v949
                %v951 = vld [vmem:[%s177 + $0x1820] sm:$0xff]
                %952 = vst [vmem:[%s178 + $0xc10] sm:$0xff] %v951
                %v953 = vld [vmem:[%s177 + $0x1828] sm:$0xff]
                %954 = vst [vmem:[%s178 + $0xc18] sm:$0xff] %v953
                %v955 = vld [vmem:[%s177 + $0x1840] sm:$0xff]
                %956 = vst [vmem:[%s178 + $0xc20] sm:$0xff] %v955
                %v957 = vld [vmem:[%s177 + $0x1848] sm:$0xff]
                %958 = vst [vmem:[%s178 + $0xc28] sm:$0xff] %v957
                %v959 = vld [vmem:[%s177 + $0x1860] sm:$0xff]
                %960 = vst [vmem:[%s178 + $0xc30] sm:$0xff] %v959
                %v961 = vld [vmem:[%s177 + $0x1868] sm:$0xff]
                %962 = vst [vmem:[%s178 + $0xc38] sm:$0xff] %v961
                %v963 = vld [vmem:[%s177 + $0x1880] sm:$0xff]
                %964 = vst [vmem:[%s178 + $0xc40] sm:$0xff] %v963
                %v965 = vld [vmem:[%s177 + $0x1888] sm:$0xff]
                %966 = vst [vmem:[%s178 + $0xc48] sm:$0xff] %v965
                %v967 = vld [vmem:[%s177 + $0x18a0] sm:$0xff]
                %968 = vst [vmem:[%s178 + $0xc50] sm:$0xff] %v967
                %v969 = vld [vmem:[%s177 + $0x18a8] sm:$0xff]
                %970 = vst [vmem:[%s178 + $0xc58] sm:$0xff] %v969
                %v971 = vld [vmem:[%s177 + $0x18c0] sm:$0xff]
                %972 = vst [vmem:[%s178 + $0xc60] sm:$0xff] %v971
                %v973 = vld [vmem:[%s177 + $0x18c8] sm:$0xff]
                %974 = vst [vmem:[%s178 + $0xc68] sm:$0xff] %v973
                %v975 = vld [vmem:[%s177 + $0x18e0] sm:$0xff]
                %976 = vst [vmem:[%s178 + $0xc70] sm:$0xff] %v975
                %v977 = vld [vmem:[%s177 + $0x18e8] sm:$0xff]
                %978 = vst [vmem:[%s178 + $0xc78] sm:$0xff] %v977
                %v979 = vld [vmem:[%s177 + $0x1900] sm:$0xff]
                %980 = vst [vmem:[%s178 + $0xc80] sm:$0xff] %v979
                %v981 = vld [vmem:[%s177 + $0x1908] sm:$0xff]
                %982 = vst [vmem:[%s178 + $0xc88] sm:$0xff] %v981
                %v983 = vld [vmem:[%s177 + $0x1920] sm:$0xff]
                %984 = vst [vmem:[%s178 + $0xc90] sm:$0xff] %v983
                %v985 = vld [vmem:[%s177 + $0x1928] sm:$0xff]
                %986 = vst [vmem:[%s178 + $0xc98] sm:$0xff] %v985
                %v987 = vld [vmem:[%s177 + $0x1940] sm:$0xff]
                %988 = vst [vmem:[%s178 + $0xca0] sm:$0xff] %v987
                %v989 = vld [vmem:[%s177 + $0x1948] sm:$0xff]
                %990 = vst [vmem:[%s178 + $0xca8] sm:$0xff] %v989
                %v991 = vld [vmem:[%s177 + $0x1960] sm:$0xff]
                %992 = vst [vmem:[%s178 + $0xcb0] sm:$0xff] %v991
                %v993 = vld [vmem:[%s177 + $0x1968] sm:$0xff]
                %994 = vst [vmem:[%s178 + $0xcb8] sm:$0xff] %v993
                %v995 = vld [vmem:[%s177 + $0x1980] sm:$0xff]
                %996 = vst [vmem:[%s178 + $0xcc0] sm:$0xff] %v995
                %v997 = vld [vmem:[%s177 + $0x1988] sm:$0xff]
                %998 = vst [vmem:[%s178 + $0xcc8] sm:$0xff] %v997
                %v999 = vld [vmem:[%s177 + $0x19a0] sm:$0xff]
                %1000 = vst [vmem:[%s178 + $0xcd0] sm:$0xff] %v999
                %v1001 = vld [vmem:[%s177 + $0x19a8] sm:$0xff]
                %1002 = vst [vmem:[%s178 + $0xcd8] sm:$0xff] %v1001
                %v1003 = vld [vmem:[%s177 + $0x19c0] sm:$0xff]
                %1004 = vst [vmem:[%s178 + $0xce0] sm:$0xff] %v1003
                %v1005 = vld [vmem:[%s177 + $0x19c8] sm:$0xff]
                %1006 = vst [vmem:[%s178 + $0xce8] sm:$0xff] %v1005
                %v1007 = vld [vmem:[%s177 + $0x19e0] sm:$0xff]
                %1008 = vst [vmem:[%s178 + $0xcf0] sm:$0xff] %v1007
                %v1009 = vld [vmem:[%s177 + $0x19e8] sm:$0xff]
                %1010 = vst [vmem:[%s178 + $0xcf8] sm:$0xff] %v1009
                %v1011 = vld [vmem:[%s177 + $0x1a00] sm:$0xff]
                %1012 = vst [vmem:[%s178 + $0xd00] sm:$0xff] %v1011
                %v1013 = vld [vmem:[%s177 + $0x1a08] sm:$0xff]
                %1014 = vst [vmem:[%s178 + $0xd08] sm:$0xff] %v1013
                %v1015 = vld [vmem:[%s177 + $0x1a20] sm:$0xff]
                %1016 = vst [vmem:[%s178 + $0xd10] sm:$0xff] %v1015
                %v1017 = vld [vmem:[%s177 + $0x1a28] sm:$0xff]
                %1018 = vst [vmem:[%s178 + $0xd18] sm:$0xff] %v1017
                %v1019 = vld [vmem:[%s177 + $0x1a40] sm:$0xff]
                %1020 = vst [vmem:[%s178 + $0xd20] sm:$0xff] %v1019
                %v1021 = vld [vmem:[%s177 + $0x1a48] sm:$0xff]
                %1022 = vst [vmem:[%s178 + $0xd28] sm:$0xff] %v1021
                %v1023 = vld [vmem:[%s177 + $0x1a60] sm:$0xff]
                %1024 = vst [vmem:[%s178 + $0xd30] sm:$0xff] %v1023
                %v1025 = vld [vmem:[%s177 + $0x1a68] sm:$0xff]
                %1026 = vst [vmem:[%s178 + $0xd38] sm:$0xff] %v1025
                %v1027 = vld [vmem:[%s177 + $0x1a80] sm:$0xff]
                %1028 = vst [vmem:[%s178 + $0xd40] sm:$0xff] %v1027
                %v1029 = vld [vmem:[%s177 + $0x1a88] sm:$0xff]
                %1030 = vst [vmem:[%s178 + $0xd48] sm:$0xff] %v1029
                %v1031 = vld [vmem:[%s177 + $0x1aa0] sm:$0xff]
                %1032 = vst [vmem:[%s178 + $0xd50] sm:$0xff] %v1031
                %v1033 = vld [vmem:[%s177 + $0x1aa8] sm:$0xff]
                %1034 = vst [vmem:[%s178 + $0xd58] sm:$0xff] %v1033
                %v1035 = vld [vmem:[%s177 + $0x1ac0] sm:$0xff]
                %1036 = vst [vmem:[%s178 + $0xd60] sm:$0xff] %v1035
                %v1037 = vld [vmem:[%s177 + $0x1ac8] sm:$0xff]
                %1038 = vst [vmem:[%s178 + $0xd68] sm:$0xff] %v1037
                %v1039 = vld [vmem:[%s177 + $0x1ae0] sm:$0xff]
                %1040 = vst [vmem:[%s178 + $0xd70] sm:$0xff] %v1039
                %v1041 = vld [vmem:[%s177 + $0x1ae8] sm:$0xff]
                %1042 = vst [vmem:[%s178 + $0xd78] sm:$0xff] %v1041
                %v1043 = vld [vmem:[%s177 + $0x1b00] sm:$0xff]
                %1044 = vst [vmem:[%s178 + $0xd80] sm:$0xff] %v1043
                %v1045 = vld [vmem:[%s177 + $0x1b08] sm:$0xff]
                %1046 = vst [vmem:[%s178 + $0xd88] sm:$0xff] %v1045
                %v1047 = vld [vmem:[%s177 + $0x1b20] sm:$0xff]
                %1048 = vst [vmem:[%s178 + $0xd90] sm:$0xff] %v1047
                %v1049 = vld [vmem:[%s177 + $0x1b28] sm:$0xff]
                %1050 = vst [vmem:[%s178 + $0xd98] sm:$0xff] %v1049
                %v1051 = vld [vmem:[%s177 + $0x1b40] sm:$0xff]
                %1052 = vst [vmem:[%s178 + $0xda0] sm:$0xff] %v1051
                %v1053 = vld [vmem:[%s177 + $0x1b48] sm:$0xff]
                %1054 = vst [vmem:[%s178 + $0xda8] sm:$0xff] %v1053
                %v1055 = vld [vmem:[%s177 + $0x1b60] sm:$0xff]
                %1056 = vst [vmem:[%s178 + $0xdb0] sm:$0xff] %v1055
                %v1057 = vld [vmem:[%s177 + $0x1b68] sm:$0xff]
                %1058 = vst [vmem:[%s178 + $0xdb8] sm:$0xff] %v1057
                %v1059 = vld [vmem:[%s177 + $0x1b80] sm:$0xff]
                %1060 = vst [vmem:[%s178 + $0xdc0] sm:$0xff] %v1059
                %v1061 = vld [vmem:[%s177 + $0x1b88] sm:$0xff]
                %1062 = vst [vmem:[%s178 + $0xdc8] sm:$0xff] %v1061
                %v1063 = vld [vmem:[%s177 + $0x1ba0] sm:$0xff]
                %1064 = vst [vmem:[%s178 + $0xdd0] sm:$0xff] %v1063
                %v1065 = vld [vmem:[%s177 + $0x1ba8] sm:$0xff]
                %1066 = vst [vmem:[%s178 + $0xdd8] sm:$0xff] %v1065
                %v1067 = vld [vmem:[%s177 + $0x1bc0] sm:$0xff]
                %1068 = vst [vmem:[%s178 + $0xde0] sm:$0xff] %v1067
                %v1069 = vld [vmem:[%s177 + $0x1bc8] sm:$0xff]
                %1070 = vst [vmem:[%s178 + $0xde8] sm:$0xff] %v1069
                %v1071 = vld [vmem:[%s177 + $0x1be0] sm:$0xff]
                %1072 = vst [vmem:[%s178 + $0xdf0] sm:$0xff] %v1071
                %v1073 = vld [vmem:[%s177 + $0x1be8] sm:$0xff]
                %1074 = vst [vmem:[%s178 + $0xdf8] sm:$0xff] %v1073
                %v1075 = vld [vmem:[%s177 + $0x1c00] sm:$0xff]
                %1076 = vst [vmem:[%s178 + $0xe00] sm:$0xff] %v1075
                %v1077 = vld [vmem:[%s177 + $0x1c08] sm:$0xff]
                %1078 = vst [vmem:[%s178 + $0xe08] sm:$0xff] %v1077
                %v1079 = vld [vmem:[%s177 + $0x1c20] sm:$0xff]
                %1080 = vst [vmem:[%s178 + $0xe10] sm:$0xff] %v1079
                %v1081 = vld [vmem:[%s177 + $0x1c28] sm:$0xff]
                %1082 = vst [vmem:[%s178 + $0xe18] sm:$0xff] %v1081
                %v1083 = vld [vmem:[%s177 + $0x1c40] sm:$0xff]
                %1084 = vst [vmem:[%s178 + $0xe20] sm:$0xff] %v1083
                %v1085 = vld [vmem:[%s177 + $0x1c48] sm:$0xff]
                %1086 = vst [vmem:[%s178 + $0xe28] sm:$0xff] %v1085
                %v1087 = vld [vmem:[%s177 + $0x1c60] sm:$0xff]
                %1088 = vst [vmem:[%s178 + $0xe30] sm:$0xff] %v1087
                %v1089 = vld [vmem:[%s177 + $0x1c68] sm:$0xff]
                %1090 = vst [vmem:[%s178 + $0xe38] sm:$0xff] %v1089
                %v1091 = vld [vmem:[%s177 + $0x1c80] sm:$0xff]
                %1092 = vst [vmem:[%s178 + $0xe40] sm:$0xff] %v1091
                %v1093 = vld [vmem:[%s177 + $0x1c88] sm:$0xff]
                %1094 = vst [vmem:[%s178 + $0xe48] sm:$0xff] %v1093
                %v1095 = vld [vmem:[%s177 + $0x1ca0] sm:$0xff]
                %1096 = vst [vmem:[%s178 + $0xe50] sm:$0xff] %v1095
                %v1097 = vld [vmem:[%s177 + $0x1ca8] sm:$0xff]
                %1098 = vst [vmem:[%s178 + $0xe58] sm:$0xff] %v1097
                %v1099 = vld [vmem:[%s177 + $0x1cc0] sm:$0xff]
                %1100 = vst [vmem:[%s178 + $0xe60] sm:$0xff] %v1099
                %v1101 = vld [vmem:[%s177 + $0x1cc8] sm:$0xff]
                %1102 = vst [vmem:[%s178 + $0xe68] sm:$0xff] %v1101
                %v1103 = vld [vmem:[%s177 + $0x1ce0] sm:$0xff]
                %1104 = vst [vmem:[%s178 + $0xe70] sm:$0xff] %v1103
                %v1105 = vld [vmem:[%s177 + $0x1ce8] sm:$0xff]
                %1106 = vst [vmem:[%s178 + $0xe78] sm:$0xff] %v1105
                %v1107 = vld [vmem:[%s177 + $0x1d00] sm:$0xff]
                %1108 = vst [vmem:[%s178 + $0xe80] sm:$0xff] %v1107
                %v1109 = vld [vmem:[%s177 + $0x1d08] sm:$0xff]
                %1110 = vst [vmem:[%s178 + $0xe88] sm:$0xff] %v1109
                %v1111 = vld [vmem:[%s177 + $0x1d20] sm:$0xff]
                %1112 = vst [vmem:[%s178 + $0xe90] sm:$0xff] %v1111
                %v1113 = vld [vmem:[%s177 + $0x1d28] sm:$0xff]
                %1114 = vst [vmem:[%s178 + $0xe98] sm:$0xff] %v1113
                %v1115 = vld [vmem:[%s177 + $0x1d40] sm:$0xff]
                %1116 = vst [vmem:[%s178 + $0xea0] sm:$0xff] %v1115
                %v1117 = vld [vmem:[%s177 + $0x1d48] sm:$0xff]
                %1118 = vst [vmem:[%s178 + $0xea8] sm:$0xff] %v1117
                %v1119 = vld [vmem:[%s177 + $0x1d60] sm:$0xff]
                %1120 = vst [vmem:[%s178 + $0xeb0] sm:$0xff] %v1119
                %v1121 = vld [vmem:[%s177 + $0x1d68] sm:$0xff]
                %1122 = vst [vmem:[%s178 + $0xeb8] sm:$0xff] %v1121
                %v1123 = vld [vmem:[%s177 + $0x1d80] sm:$0xff]
                %1124 = vst [vmem:[%s178 + $0xec0] sm:$0xff] %v1123
                %v1125 = vld [vmem:[%s177 + $0x1d88] sm:$0xff]
                %1126 = vst [vmem:[%s178 + $0xec8] sm:$0xff] %v1125
                %v1127 = vld [vmem:[%s177 + $0x1da0] sm:$0xff]
                %1128 = vst [vmem:[%s178 + $0xed0] sm:$0xff] %v1127
                %v1129 = vld [vmem:[%s177 + $0x1da8] sm:$0xff]
                %1130 = vst [vmem:[%s178 + $0xed8] sm:$0xff] %v1129
                %v1131 = vld [vmem:[%s177 + $0x1dc0] sm:$0xff]
                %1132 = vst [vmem:[%s178 + $0xee0] sm:$0xff] %v1131
                %v1133 = vld [vmem:[%s177 + $0x1dc8] sm:$0xff]
                %1134 = vst [vmem:[%s178 + $0xee8] sm:$0xff] %v1133
                %v1135 = vld [vmem:[%s177 + $0x1de0] sm:$0xff]
                %1136 = vst [vmem:[%s178 + $0xef0] sm:$0xff] %v1135
                %v1137 = vld [vmem:[%s177 + $0x1de8] sm:$0xff]
                %1138 = vst [vmem:[%s178 + $0xef8] sm:$0xff] %v1137
                %v1139 = vld [vmem:[%s177 + $0x1e00] sm:$0xff]
                %1140 = vst [vmem:[%s178 + $0xf00] sm:$0xff] %v1139
                %v1141 = vld [vmem:[%s177 + $0x1e08] sm:$0xff]
                %1142 = vst [vmem:[%s178 + $0xf08] sm:$0xff] %v1141
                %v1143 = vld [vmem:[%s177 + $0x1e20] sm:$0xff]
                %1144 = vst [vmem:[%s178 + $0xf10] sm:$0xff] %v1143
                %v1145 = vld [vmem:[%s177 + $0x1e28] sm:$0xff]
                %1146 = vst [vmem:[%s178 + $0xf18] sm:$0xff] %v1145
                %v1147 = vld [vmem:[%s177 + $0x1e40] sm:$0xff]
                %1148 = vst [vmem:[%s178 + $0xf20] sm:$0xff] %v1147
                %v1149 = vld [vmem:[%s177 + $0x1e48] sm:$0xff]
                %1150 = vst [vmem:[%s178 + $0xf28] sm:$0xff] %v1149
                %v1151 = vld [vmem:[%s177 + $0x1e60] sm:$0xff]
                %1152 = vst [vmem:[%s178 + $0xf30] sm:$0xff] %v1151
                %v1153 = vld [vmem:[%s177 + $0x1e68] sm:$0xff]
                %1154 = vst [vmem:[%s178 + $0xf38] sm:$0xff] %v1153
                %v1155 = vld [vmem:[%s177 + $0x1e80] sm:$0xff]
                %1156 = vst [vmem:[%s178 + $0xf40] sm:$0xff] %v1155
                %v1157 = vld [vmem:[%s177 + $0x1e88] sm:$0xff]
                %1158 = vst [vmem:[%s178 + $0xf48] sm:$0xff] %v1157
                %v1159 = vld [vmem:[%s177 + $0x1ea0] sm:$0xff]
                %1160 = vst [vmem:[%s178 + $0xf50] sm:$0xff] %v1159
                %v1161 = vld [vmem:[%s177 + $0x1ea8] sm:$0xff]
                %1162 = vst [vmem:[%s178 + $0xf58] sm:$0xff] %v1161
                %v1163 = vld [vmem:[%s177 + $0x1ec0] sm:$0xff]
                %1164 = vst [vmem:[%s178 + $0xf60] sm:$0xff] %v1163
                %v1165 = vld [vmem:[%s177 + $0x1ec8] sm:$0xff]
                %1166 = vst [vmem:[%s178 + $0xf68] sm:$0xff] %v1165
                %v1167 = vld [vmem:[%s177 + $0x1ee0] sm:$0xff]
                %1168 = vst [vmem:[%s178 + $0xf70] sm:$0xff] %v1167
                %v1169 = vld [vmem:[%s177 + $0x1ee8] sm:$0xff]
                %1170 = vst [vmem:[%s178 + $0xf78] sm:$0xff] %v1169
                %v1171 = vld [vmem:[%s177 + $0x1f00] sm:$0xff]
                %1172 = vst [vmem:[%s178 + $0xf80] sm:$0xff] %v1171
                %v1173 = vld [vmem:[%s177 + $0x1f08] sm:$0xff]
                %1174 = vst [vmem:[%s178 + $0xf88] sm:$0xff] %v1173
                %v1175 = vld [vmem:[%s177 + $0x1f20] sm:$0xff]
                %1176 = vst [vmem:[%s178 + $0xf90] sm:$0xff] %v1175
                %v1177 = vld [vmem:[%s177 + $0x1f28] sm:$0xff]
                %1178 = vst [vmem:[%s178 + $0xf98] sm:$0xff] %v1177
                %v1179 = vld [vmem:[%s177 + $0x1f40] sm:$0xff]
                %1180 = vst [vmem:[%s178 + $0xfa0] sm:$0xff] %v1179
                %v1181 = vld [vmem:[%s177 + $0x1f48] sm:$0xff]
                %1182 = vst [vmem:[%s178 + $0xfa8] sm:$0xff] %v1181
                %v1183 = vld [vmem:[%s177 + $0x1f60] sm:$0xff]
                %1184 = vst [vmem:[%s178 + $0xfb0] sm:$0xff] %v1183
                %v1185 = vld [vmem:[%s177 + $0x1f68] sm:$0xff]
                %1186 = vst [vmem:[%s178 + $0xfb8] sm:$0xff] %v1185
                %v1187 = vld [vmem:[%s177 + $0x1f80] sm:$0xff]
                %1188 = vst [vmem:[%s178 + $0xfc0] sm:$0xff] %v1187
                %v1189 = vld [vmem:[%s177 + $0x1f88] sm:$0xff]
                %1190 = vst [vmem:[%s178 + $0xfc8] sm:$0xff] %v1189
                %v1191 = vld [vmem:[%s177 + $0x1fa0] sm:$0xff]
                %1192 = vst [vmem:[%s178 + $0xfd0] sm:$0xff] %v1191
                %v1193 = vld [vmem:[%s177 + $0x1fa8] sm:$0xff]
                %1194 = vst [vmem:[%s178 + $0xfd8] sm:$0xff] %v1193
                %v1195 = vld [vmem:[%s177 + $0x1fc0] sm:$0xff]
                %1196 = vst [vmem:[%s178 + $0xfe0] sm:$0xff] %v1195
                %v1197 = vld [vmem:[%s177 + $0x1fc8] sm:$0xff]
                %1198 = vst [vmem:[%s178 + $0xfe8] sm:$0xff] %v1197
                %v1199 = vld [vmem:[%s177 + $0x1fe0] sm:$0xff]
                %1200 = vst [vmem:[%s178 + $0xff0] sm:$0xff] %v1199
                %v1201 = vld [vmem:[%s177 + $0x1fe8] sm:$0xff]
                %1202 = vst [vmem:[%s178 + $0xff8] sm:$0xff] %v1201
              $region37: #{vgg_forward.7} parent=31 // loop_footer
                %s176 = sadd.s32 1, %s172
              $region38: #{vgg_forward.7} parent=31 // loop_footer_branch
                %171 = sbr.rel target = $region34
              $region39: #{vgg_forward.7} parent=31 // loop_exit
                _
            $region32: #{vgg_forward.7} parent=27 // pred_fallthru
              _
            // Predicated region
            $region40: #{vgg_forward.7} parent=27 // pred_check
              _
            $region41: #{vgg_forward.7} parent=27 // pred_check_branch
              %1204 = sbr.rel target = $region43
            $region42: #{vgg_forward.7} parent=27 // pred_region
              _
            $region43: #{vgg_forward.7} parent=27 // pred_fallthru
              _
          $region28: #{vgg_forward.7} parent=23 // pred_fallthru
            _
          %1205 = vnop
        $region24: #{vgg_forward.7} parent=19 // pred_fallthru
          _
        // Predicated region
        $region44: #{vgg_forward.7} parent=19 // pred_check
          %p1206 = pneg %p77
        $region45: #{vgg_forward.7} parent=19 // pred_check_branch
          %1208 = sbr.rel (%p1206) target = $region47
        $region46: #{vgg_forward.7} parent=19 // pred_region
          %s1209 = smul.u32 2, %s10
          %p1210 = scmp.lt.s32.totalorder %s1209, 3
          %s1211 = scalar_select %p1210, %s1209, 3
          %s1212 = scalar_lea.vmem %s2, %s1211
          %s1213 = smul.u32 2, %s10
        $region47: #{vgg_forward.7} parent=19 // pred_fallthru
          _
        // Predicated region
        $region48: #{vgg_forward.7} parent=19 // pred_check
          %p1214 = pneg %p103
        $region49: #{vgg_forward.7} parent=19 // pred_check_branch
          %1216 = sbr.rel (%p1214) target = $region51
        $region50: #{vgg_forward.7} parent=19 // pred_region
          %s1217 = smul.u32 2, %s10
          %p1218 = scmp.lt.s32.totalorder %s1217, 3
          %s1219 = scalar_select %p1218, %s1217, 3
          %s1220 = scalar_lea.vmem %s3, %s1219
          %s1221 = smul.u32 2, %s10
        $region51: #{vgg_forward.7} parent=19 // pred_fallthru
          _
      $region20: #{vgg_forward.7} parent=5 // pred_fallthru
        _
      %p1222 = scmp.le.s32.totalorder 1, %s10
      %p1223 = scmp.lt.s32.totalorder %s10, 3
      %p1224 = pnand %p1222, %p1223
      %p1225 = pneg %p1224
      // Predicated region
      $region52: #{vgg_forward.7} parent=5 // pred_check
        _
      $region53: #{vgg_forward.7} parent=5 // pred_check_branch
        %1227 = sbr.rel (%p1224) target = $region55
      $region54: #{vgg_forward.7} parent=5 // pred_region
        %s1228 = ssub.s32 %s10, 1
        %s1229 = sand.u32 %s44, 1
        %s1230 = sand.u32 %s44, 1
        %s1231 = smul.addr %s1230, 4096
        %s1232 = scalar_lea.vmem [#allocation2], %s1231
        // Predicated region
        $region56: #{vgg_forward.7} parent=54 // pred_check
          %p1233 = pneg %p57
        $region57: #{vgg_forward.7} parent=54 // pred_check_branch
          %1235 = sbr.rel (%p1233) target = $region59
        $region58: #{vgg_forward.7} parent=54 // pred_region
          _
        $region59: #{vgg_forward.7} parent=54 // pred_fallthru
          _
        %p1236 = pneg %p31
        %p1237 = pneg %p28
        %s1238 = sand.u32 %s44, 1
        %s1239 = sand.u32 %s44, 1
        %s1240 = smul.addr %s1239, 4096
        %s1241 = scalar_lea.vmem [#allocation2], %s1240
        %p1242 = pneg %p57
        %p1243 = pneg %p54
        %s1244 = smul.u32 2, %s15
        %p1245 = scmp.lt.s32.totalorder %s1244, 3
        %s1246 = scalar_select %p1245, %s1244, 3
        %s1247 = scalar_lea.vmem %s2, %s1246
        %p1248 = pneg %p83
        %p1249 = pneg %p80
        %s1250 = smul.u32 2, %s15
        %p1251 = scmp.lt.s32.totalorder %s1250, 3
        %s1252 = scalar_select %p1251, %s1250, 3
        %s1253 = scalar_lea.vmem %s3, %s1252
        %p1254 = pneg %p109
        %p1255 = pneg %p106
        %p1256 = pneg %p135
        %p1257 = pneg %p132
        %s1258 = smul.u32 2, %s15
        %p1259 = scmp.lt.s32.totalorder %s1258, 3
        %s1260 = scalar_select %p1259, %s1258, 3
        %s1261 = scalar_lea.vmem %s4, %s1260
        %s1262 = smul.u32 2, %s15
        %s1263 = smul.u32 2, %s15
        %p1264 = scmp.lt.s32.totalorder %s1263, 3
        %s1265 = scalar_select %p1264, %s1263, 3
        %s1266 = scalar_lea.vmem %s2, %s1265
        %s1267 = smul.u32 2, %s15
        %s1268 = smul.u32 2, %s15
        %p1269 = scmp.lt.s32.totalorder %s1268, 3
        %s1270 = scalar_select %p1269, %s1268, 3
        %s1271 = scalar_lea.vmem %s3, %s1270
        %s1272 = smul.u32 2, %s15
        %s1273 = smul.u32 2, %s15
        %p1274 = scmp.lt.s32.totalorder %s1273, 3
        %s1275 = scalar_select %p1274, %s1273, 3
        %s1276 = scalar_lea.vmem %s4, %s1275
        %s1277 = smul.u32 2, %s15
        %v1278 = vld [vmem:[%s1232] sm:$0xff]
        %v1279 = vld [vmem:[%s1232 + $0x8] sm:$0xff]
        %v1280 = vld [vmem:[%s1232 + $0x10] sm:$0xff]
        %v1281 = vld [vmem:[%s1232 + $0x18] sm:$0xff]
        %v1282 = vld [vmem:[%s1232 + $0x20] sm:$0xff]
        %v1283 = vld [vmem:[%s1232 + $0x28] sm:$0xff]
        %v1284 = vld [vmem:[%s1232 + $0x30] sm:$0xff]
        %v1285 = vld [vmem:[%s1232 + $0x38] sm:$0xff]
        %v1286 = vld [vmem:[%s1232 + $0x40] sm:$0xff]
        %v1287 = vld [vmem:[%s1232 + $0x48] sm:$0xff]
        %v1288 = vld [vmem:[%s1232 + $0x50] sm:$0xff]
        %v1289 = vld [vmem:[%s1232 + $0x58] sm:$0xff]
        %v1290 = vld [vmem:[%s1232 + $0x60] sm:$0xff]
        %v1291 = vld [vmem:[%s1232 + $0x68] sm:$0xff]
        %v1292 = vld [vmem:[%s1232 + $0x70] sm:$0xff]
        %v1293 = vld [vmem:[%s1232 + $0x78] sm:$0xff]
        %v1294 = vld [vmem:[%s1232 + $0x80] sm:$0xff]
        %v1295 = vld [vmem:[%s1232 + $0x88] sm:$0xff]
        %v1296 = vld [vmem:[%s1232 + $0x90] sm:$0xff]
        %v1297 = vld [vmem:[%s1232 + $0x98] sm:$0xff]
        %v1298 = vld [vmem:[%s1232 + $0xa0] sm:$0xff]
        %v1299 = vld [vmem:[%s1232 + $0xa8] sm:$0xff]
        %v1300 = vld [vmem:[%s1232 + $0xb0] sm:$0xff]
        %v1301 = vld [vmem:[%s1232 + $0xb8] sm:$0xff]
        %v1302 = vld [vmem:[%s1232 + $0xc0] sm:$0xff]
        %v1303 = vld [vmem:[%s1232 + $0xc8] sm:$0xff]
        %v1304 = vld [vmem:[%s1232 + $0xd0] sm:$0xff]
        %v1305 = vld [vmem:[%s1232 + $0xd8] sm:$0xff]
        %v1306 = vld [vmem:[%s1232 + $0xe0] sm:$0xff]
        %v1307 = vld [vmem:[%s1232 + $0xe8] sm:$0xff]
        %v1308 = vld [vmem:[%s1232 + $0xf0] sm:$0xff]
        %v1309 = vld [vmem:[%s1232 + $0xf8] sm:$0xff]
        %v1310 = vld [vmem:[%s1232 + $0x100] sm:$0xff]
        %v1311 = vld [vmem:[%s1232 + $0x108] sm:$0xff]
        %v1312 = vld [vmem:[%s1232 + $0x110] sm:$0xff]
        %v1313 = vld [vmem:[%s1232 + $0x118] sm:$0xff]
        %v1314 = vld [vmem:[%s1232 + $0x120] sm:$0xff]
        %v1315 = vld [vmem:[%s1232 + $0x128] sm:$0xff]
        %v1316 = vld [vmem:[%s1232 + $0x130] sm:$0xff]
        %v1317 = vld [vmem:[%s1232 + $0x138] sm:$0xff]
        %v1318 = vld [vmem:[%s1232 + $0x140] sm:$0xff]
        %v1319 = vld [vmem:[%s1232 + $0x148] sm:$0xff]
        %v1320 = vld [vmem:[%s1232 + $0x150] sm:$0xff]
        %v1321 = vld [vmem:[%s1232 + $0x158] sm:$0xff]
        %v1322 = vld [vmem:[%s1232 + $0x160] sm:$0xff]
        %v1323 = vld [vmem:[%s1232 + $0x168] sm:$0xff]
        %v1324 = vld [vmem:[%s1232 + $0x170] sm:$0xff]
        %v1325 = vld [vmem:[%s1232 + $0x178] sm:$0xff]
        %v1326 = vld [vmem:[%s1232 + $0x180] sm:$0xff]
        %v1327 = vld [vmem:[%s1232 + $0x188] sm:$0xff]
        %v1328 = vld [vmem:[%s1232 + $0x190] sm:$0xff]
        %v1329 = vld [vmem:[%s1232 + $0x198] sm:$0xff]
        %v1330 = vld [vmem:[%s1232 + $0x1a0] sm:$0xff]
        %v1331 = vld [vmem:[%s1232 + $0x1a8] sm:$0xff]
        %v1332 = vld [vmem:[%s1232 + $0x1b0] sm:$0xff]
        %v1333 = vld [vmem:[%s1232 + $0x1b8] sm:$0xff]
        %v1334 = vld [vmem:[%s1232 + $0x1c0] sm:$0xff]
        %v1335 = vld [vmem:[%s1232 + $0x1c8] sm:$0xff]
        %v1336 = vld [vmem:[%s1232 + $0x1d0] sm:$0xff]
        %v1337 = vld [vmem:[%s1232 + $0x1d8] sm:$0xff]
        %v1338 = vld [vmem:[%s1232 + $0x1e0] sm:$0xff]
        %v1339 = vld [vmem:[%s1232 + $0x1e8] sm:$0xff]
        %v1340 = vld [vmem:[%s1232 + $0x1f0] sm:$0xff]
        %v1341 = vld [vmem:[%s1232 + $0x1f8] sm:$0xff]
        %v1342 = vld [vmem:[%s1232 + $0x200] sm:$0xff]
        %v1343 = vld [vmem:[%s1232 + $0x208] sm:$0xff]
        %v1344 = vld [vmem:[%s1232 + $0x210] sm:$0xff]
        %v1345 = vld [vmem:[%s1232 + $0x218] sm:$0xff]
        %v1346 = vld [vmem:[%s1232 + $0x220] sm:$0xff]
        %v1347 = vld [vmem:[%s1232 + $0x228] sm:$0xff]
        %v1348 = vld [vmem:[%s1232 + $0x230] sm:$0xff]
        %v1349 = vld [vmem:[%s1232 + $0x238] sm:$0xff]
        %v1350 = vld [vmem:[%s1232 + $0x240] sm:$0xff]
        %v1351 = vld [vmem:[%s1232 + $0x248] sm:$0xff]
        %v1352 = vld [vmem:[%s1232 + $0x250] sm:$0xff]
        %v1353 = vld [vmem:[%s1232 + $0x258] sm:$0xff]
        %v1354 = vld [vmem:[%s1232 + $0x260] sm:$0xff]
        %v1355 = vld [vmem:[%s1232 + $0x268] sm:$0xff]
        %v1356 = vld [vmem:[%s1232 + $0x270] sm:$0xff]
        %v1357 = vld [vmem:[%s1232 + $0x278] sm:$0xff]
        %v1358 = vld [vmem:[%s1232 + $0x280] sm:$0xff]
        %v1359 = vld [vmem:[%s1232 + $0x288] sm:$0xff]
        %v1360 = vld [vmem:[%s1232 + $0x290] sm:$0xff]
        %v1361 = vld [vmem:[%s1232 + $0x298] sm:$0xff]
        %v1362 = vld [vmem:[%s1232 + $0x2a0] sm:$0xff]
        %v1363 = vld [vmem:[%s1232 + $0x2a8] sm:$0xff]
        %v1364 = vld [vmem:[%s1232 + $0x2b0] sm:$0xff]
        %v1365 = vld [vmem:[%s1232 + $0x2b8] sm:$0xff]
        %v1366 = vld [vmem:[%s1232 + $0x2c0] sm:$0xff]
        %v1367 = vld [vmem:[%s1232 + $0x2c8] sm:$0xff]
        %v1368 = vld [vmem:[%s1232 + $0x2d0] sm:$0xff]
        %v1369 = vld [vmem:[%s1232 + $0x2d8] sm:$0xff]
        %v1370 = vld [vmem:[%s1232 + $0x2e0] sm:$0xff]
        %v1371 = vld [vmem:[%s1232 + $0x2e8] sm:$0xff]
        %v1372 = vld [vmem:[%s1232 + $0x2f0] sm:$0xff]
        %v1373 = vld [vmem:[%s1232 + $0x2f8] sm:$0xff]
        %v1374 = vld [vmem:[%s1232 + $0x300] sm:$0xff]
        %v1375 = vld [vmem:[%s1232 + $0x308] sm:$0xff]
        %v1376 = vld [vmem:[%s1232 + $0x310] sm:$0xff]
        %v1377 = vld [vmem:[%s1232 + $0x318] sm:$0xff]
        %v1378 = vld [vmem:[%s1232 + $0x320] sm:$0xff]
        %v1379 = vld [vmem:[%s1232 + $0x328] sm:$0xff]
        %v1380 = vld [vmem:[%s1232 + $0x330] sm:$0xff]
        %v1381 = vld [vmem:[%s1232 + $0x338] sm:$0xff]
        %v1382 = vld [vmem:[%s1232 + $0x340] sm:$0xff]
        %v1383 = vld [vmem:[%s1232 + $0x348] sm:$0xff]
        %v1384 = vld [vmem:[%s1232 + $0x350] sm:$0xff]
        %v1385 = vld [vmem:[%s1232 + $0x358] sm:$0xff]
        %v1386 = vld [vmem:[%s1232 + $0x360] sm:$0xff]
        %v1387 = vld [vmem:[%s1232 + $0x368] sm:$0xff]
        %v1388 = vld [vmem:[%s1232 + $0x370] sm:$0xff]
        %v1389 = vld [vmem:[%s1232 + $0x378] sm:$0xff]
        %v1390 = vld [vmem:[%s1232 + $0x380] sm:$0xff]
        %v1391 = vld [vmem:[%s1232 + $0x388] sm:$0xff]
        %v1392 = vld [vmem:[%s1232 + $0x390] sm:$0xff]
        %v1393 = vld [vmem:[%s1232 + $0x398] sm:$0xff]
        %v1394 = vld [vmem:[%s1232 + $0x3a0] sm:$0xff]
        %v1395 = vld [vmem:[%s1232 + $0x3a8] sm:$0xff]
        %v1396 = vld [vmem:[%s1232 + $0x3b0] sm:$0xff]
        %v1397 = vld [vmem:[%s1232 + $0x3b8] sm:$0xff]
        %v1398 = vld [vmem:[%s1232 + $0x3c0] sm:$0xff]
        %v1399 = vld [vmem:[%s1232 + $0x3c8] sm:$0xff]
        %v1400 = vld [vmem:[%s1232 + $0x3d0] sm:$0xff]
        %v1401 = vld [vmem:[%s1232 + $0x3d8] sm:$0xff]
        %v1402 = vld [vmem:[%s1232 + $0x3e0] sm:$0xff]
        %v1403 = vld [vmem:[%s1232 + $0x3e8] sm:$0xff]
        %v1404 = vld [vmem:[%s1232 + $0x3f0] sm:$0xff]
        %v1405 = vld [vmem:[%s1232 + $0x3f8] sm:$0xff]
        %v1406 = vld [vmem:[%s1232 + $0x400] sm:$0xff]
        %v1407 = vld [vmem:[%s1232 + $0x408] sm:$0xff]
        %v1408 = vld [vmem:[%s1232 + $0x410] sm:$0xff]
        %v1409 = vld [vmem:[%s1232 + $0x418] sm:$0xff]
        %v1410 = vld [vmem:[%s1232 + $0x420] sm:$0xff]
        %v1411 = vld [vmem:[%s1232 + $0x428] sm:$0xff]
        %v1412 = vld [vmem:[%s1232 + $0x430] sm:$0xff]
        %v1413 = vld [vmem:[%s1232 + $0x438] sm:$0xff]
        %v1414 = vld [vmem:[%s1232 + $0x440] sm:$0xff]
        %v1415 = vld [vmem:[%s1232 + $0x448] sm:$0xff]
        %v1416 = vld [vmem:[%s1232 + $0x450] sm:$0xff]
        %v1417 = vld [vmem:[%s1232 + $0x458] sm:$0xff]
        %v1418 = vld [vmem:[%s1232 + $0x460] sm:$0xff]
        %v1419 = vld [vmem:[%s1232 + $0x468] sm:$0xff]
        %v1420 = vld [vmem:[%s1232 + $0x470] sm:$0xff]
        %v1421 = vld [vmem:[%s1232 + $0x478] sm:$0xff]
        %v1422 = vld [vmem:[%s1232 + $0x480] sm:$0xff]
        %v1423 = vld [vmem:[%s1232 + $0x488] sm:$0xff]
        %v1424 = vld [vmem:[%s1232 + $0x490] sm:$0xff]
        %v1425 = vld [vmem:[%s1232 + $0x498] sm:$0xff]
        %v1426 = vld [vmem:[%s1232 + $0x4a0] sm:$0xff]
        %v1427 = vld [vmem:[%s1232 + $0x4a8] sm:$0xff]
        %v1428 = vld [vmem:[%s1232 + $0x4b0] sm:$0xff]
        %v1429 = vld [vmem:[%s1232 + $0x4b8] sm:$0xff]
        %v1430 = vld [vmem:[%s1232 + $0x4c0] sm:$0xff]
        %v1431 = vld [vmem:[%s1232 + $0x4c8] sm:$0xff]
        %v1432 = vld [vmem:[%s1232 + $0x4d0] sm:$0xff]
        %v1433 = vld [vmem:[%s1232 + $0x4d8] sm:$0xff]
        %v1434 = vld [vmem:[%s1232 + $0x4e0] sm:$0xff]
        %v1435 = vld [vmem:[%s1232 + $0x4e8] sm:$0xff]
        %v1436 = vld [vmem:[%s1232 + $0x4f0] sm:$0xff]
        %v1437 = vld [vmem:[%s1232 + $0x4f8] sm:$0xff]
        %v1438 = vld [vmem:[%s1232 + $0x500] sm:$0xff]
        %v1439 = vld [vmem:[%s1232 + $0x508] sm:$0xff]
        %v1440 = vld [vmem:[%s1232 + $0x510] sm:$0xff]
        %v1441 = vld [vmem:[%s1232 + $0x518] sm:$0xff]
        %v1442 = vld [vmem:[%s1232 + $0x520] sm:$0xff]
        %v1443 = vld [vmem:[%s1232 + $0x528] sm:$0xff]
        %v1444 = vld [vmem:[%s1232 + $0x530] sm:$0xff]
        %v1445 = vld [vmem:[%s1232 + $0x538] sm:$0xff]
        %v1446 = vld [vmem:[%s1232 + $0x540] sm:$0xff]
        %v1447 = vld [vmem:[%s1232 + $0x548] sm:$0xff]
        %v1448 = vld [vmem:[%s1232 + $0x550] sm:$0xff]
        %v1449 = vld [vmem:[%s1232 + $0x558] sm:$0xff]
        %v1450 = vld [vmem:[%s1232 + $0x560] sm:$0xff]
        %v1451 = vld [vmem:[%s1232 + $0x568] sm:$0xff]
        %v1452 = vld [vmem:[%s1232 + $0x570] sm:$0xff]
        %v1453 = vld [vmem:[%s1232 + $0x578] sm:$0xff]
        %v1454 = vld [vmem:[%s1232 + $0x580] sm:$0xff]
        %v1455 = vld [vmem:[%s1232 + $0x588] sm:$0xff]
        %v1456 = vld [vmem:[%s1232 + $0x590] sm:$0xff]
        %v1457 = vld [vmem:[%s1232 + $0x598] sm:$0xff]
        %v1458 = vld [vmem:[%s1232 + $0x5a0] sm:$0xff]
        %v1459 = vld [vmem:[%s1232 + $0x5a8] sm:$0xff]
        %v1460 = vld [vmem:[%s1232 + $0x5b0] sm:$0xff]
        %v1461 = vld [vmem:[%s1232 + $0x5b8] sm:$0xff]
        %v1462 = vld [vmem:[%s1232 + $0x5c0] sm:$0xff]
        %v1463 = vld [vmem:[%s1232 + $0x5c8] sm:$0xff]
        %v1464 = vld [vmem:[%s1232 + $0x5d0] sm:$0xff]
        %v1465 = vld [vmem:[%s1232 + $0x5d8] sm:$0xff]
        %v1466 = vld [vmem:[%s1232 + $0x5e0] sm:$0xff]
        %v1467 = vld [vmem:[%s1232 + $0x5e8] sm:$0xff]
        %v1468 = vld [vmem:[%s1232 + $0x5f0] sm:$0xff]
        %v1469 = vld [vmem:[%s1232 + $0x5f8] sm:$0xff]
        %v1470 = vld [vmem:[%s1232 + $0x600] sm:$0xff]
        %v1471 = vld [vmem:[%s1232 + $0x608] sm:$0xff]
        %v1472 = vld [vmem:[%s1232 + $0x610] sm:$0xff]
        %v1473 = vld [vmem:[%s1232 + $0x618] sm:$0xff]
        %v1474 = vld [vmem:[%s1232 + $0x620] sm:$0xff]
        %v1475 = vld [vmem:[%s1232 + $0x628] sm:$0xff]
        %v1476 = vld [vmem:[%s1232 + $0x630] sm:$0xff]
        %v1477 = vld [vmem:[%s1232 + $0x638] sm:$0xff]
        %v1478 = vld [vmem:[%s1232 + $0x640] sm:$0xff]
        %v1479 = vld [vmem:[%s1232 + $0x648] sm:$0xff]
        %v1480 = vld [vmem:[%s1232 + $0x650] sm:$0xff]
        %v1481 = vld [vmem:[%s1232 + $0x658] sm:$0xff]
        %v1482 = vld [vmem:[%s1232 + $0x660] sm:$0xff]
        %v1483 = vld [vmem:[%s1232 + $0x668] sm:$0xff]
        %v1484 = vld [vmem:[%s1232 + $0x670] sm:$0xff]
        %v1485 = vld [vmem:[%s1232 + $0x678] sm:$0xff]
        %v1486 = vld [vmem:[%s1232 + $0x680] sm:$0xff]
        %v1487 = vld [vmem:[%s1232 + $0x688] sm:$0xff]
        %v1488 = vld [vmem:[%s1232 + $0x690] sm:$0xff]
        %v1489 = vld [vmem:[%s1232 + $0x698] sm:$0xff]
        %v1490 = vld [vmem:[%s1232 + $0x6a0] sm:$0xff]
        %v1491 = vld [vmem:[%s1232 + $0x6a8] sm:$0xff]
        %v1492 = vld [vmem:[%s1232 + $0x6b0] sm:$0xff]
        %v1493 = vld [vmem:[%s1232 + $0x6b8] sm:$0xff]
        %v1494 = vld [vmem:[%s1232 + $0x6c0] sm:$0xff]
        %v1495 = vld [vmem:[%s1232 + $0x6c8] sm:$0xff]
        %v1496 = vld [vmem:[%s1232 + $0x6d0] sm:$0xff]
        %v1497 = vld [vmem:[%s1232 + $0x6d8] sm:$0xff]
        %v1498 = vld [vmem:[%s1232 + $0x6e0] sm:$0xff]
        %v1499 = vld [vmem:[%s1232 + $0x6e8] sm:$0xff]
        %v1500 = vld [vmem:[%s1232 + $0x6f0] sm:$0xff]
        %v1501 = vld [vmem:[%s1232 + $0x6f8] sm:$0xff]
        %v1502 = vld [vmem:[%s1232 + $0x700] sm:$0xff]
        %v1503 = vld [vmem:[%s1232 + $0x708] sm:$0xff]
        %v1504 = vld [vmem:[%s1232 + $0x710] sm:$0xff]
        %v1505 = vld [vmem:[%s1232 + $0x718] sm:$0xff]
        %v1506 = vld [vmem:[%s1232 + $0x720] sm:$0xff]
        %v1507 = vld [vmem:[%s1232 + $0x728] sm:$0xff]
        %v1508 = vld [vmem:[%s1232 + $0x730] sm:$0xff]
        %v1509 = vld [vmem:[%s1232 + $0x738] sm:$0xff]
        %v1510 = vld [vmem:[%s1232 + $0x740] sm:$0xff]
        %v1511 = vld [vmem:[%s1232 + $0x748] sm:$0xff]
        %v1512 = vld [vmem:[%s1232 + $0x750] sm:$0xff]
        %v1513 = vld [vmem:[%s1232 + $0x758] sm:$0xff]
        %v1514 = vld [vmem:[%s1232 + $0x760] sm:$0xff]
        %v1515 = vld [vmem:[%s1232 + $0x768] sm:$0xff]
        %v1516 = vld [vmem:[%s1232 + $0x770] sm:$0xff]
        %v1517 = vld [vmem:[%s1232 + $0x778] sm:$0xff]
        %v1518 = vld [vmem:[%s1232 + $0x780] sm:$0xff]
        %v1519 = vld [vmem:[%s1232 + $0x788] sm:$0xff]
        %v1520 = vld [vmem:[%s1232 + $0x790] sm:$0xff]
        %v1521 = vld [vmem:[%s1232 + $0x798] sm:$0xff]
        %v1522 = vld [vmem:[%s1232 + $0x7a0] sm:$0xff]
        %v1523 = vld [vmem:[%s1232 + $0x7a8] sm:$0xff]
        %v1524 = vld [vmem:[%s1232 + $0x7b0] sm:$0xff]
        %v1525 = vld [vmem:[%s1232 + $0x7b8] sm:$0xff]
        %v1526 = vld [vmem:[%s1232 + $0x7c0] sm:$0xff]
        %v1527 = vld [vmem:[%s1232 + $0x7c8] sm:$0xff]
        %v1528 = vld [vmem:[%s1232 + $0x7d0] sm:$0xff]
        %v1529 = vld [vmem:[%s1232 + $0x7d8] sm:$0xff]
        %v1530 = vld [vmem:[%s1232 + $0x7e0] sm:$0xff]
        %v1531 = vld [vmem:[%s1232 + $0x7e8] sm:$0xff]
        %v1532 = vld [vmem:[%s1232 + $0x7f0] sm:$0xff]
        %v1533 = vld [vmem:[%s1232 + $0x7f8] sm:$0xff]
        %v1534 = vld [vmem:[%s1232 + $0x800] sm:$0xff]
        %v1535 = vld [vmem:[%s1232 + $0x808] sm:$0xff]
        %v1536 = vld [vmem:[%s1232 + $0x810] sm:$0xff]
        %v1537 = vld [vmem:[%s1232 + $0x818] sm:$0xff]
        %v1538 = vld [vmem:[%s1232 + $0x820] sm:$0xff]
        %v1539 = vld [vmem:[%s1232 + $0x828] sm:$0xff]
        %v1540 = vld [vmem:[%s1232 + $0x830] sm:$0xff]
        %v1541 = vld [vmem:[%s1232 + $0x838] sm:$0xff]
        %v1542 = vld [vmem:[%s1232 + $0x840] sm:$0xff]
        %v1543 = vld [vmem:[%s1232 + $0x848] sm:$0xff]
        %v1544 = vld [vmem:[%s1232 + $0x850] sm:$0xff]
        %v1545 = vld [vmem:[%s1232 + $0x858] sm:$0xff]
        %v1546 = vld [vmem:[%s1232 + $0x860] sm:$0xff]
        %v1547 = vld [vmem:[%s1232 + $0x868] sm:$0xff]
        %v1548 = vld [vmem:[%s1232 + $0x870] sm:$0xff]
        %v1549 = vld [vmem:[%s1232 + $0x878] sm:$0xff]
        %v1550 = vld [vmem:[%s1232 + $0x880] sm:$0xff]
        %v1551 = vld [vmem:[%s1232 + $0x888] sm:$0xff]
        %v1552 = vld [vmem:[%s1232 + $0x890] sm:$0xff]
        %v1553 = vld [vmem:[%s1232 + $0x898] sm:$0xff]
        %v1554 = vld [vmem:[%s1232 + $0x8a0] sm:$0xff]
        %v1555 = vld [vmem:[%s1232 + $0x8a8] sm:$0xff]
        %v1556 = vld [vmem:[%s1232 + $0x8b0] sm:$0xff]
        %v1557 = vld [vmem:[%s1232 + $0x8b8] sm:$0xff]
        %v1558 = vld [vmem:[%s1232 + $0x8c0] sm:$0xff]
        %v1559 = vld [vmem:[%s1232 + $0x8c8] sm:$0xff]
        %v1560 = vld [vmem:[%s1232 + $0x8d0] sm:$0xff]
        %v1561 = vld [vmem:[%s1232 + $0x8d8] sm:$0xff]
        %v1562 = vld [vmem:[%s1232 + $0x8e0] sm:$0xff]
        %v1563 = vld [vmem:[%s1232 + $0x8e8] sm:$0xff]
        %v1564 = vld [vmem:[%s1232 + $0x8f0] sm:$0xff]
        %v1565 = vld [vmem:[%s1232 + $0x8f8] sm:$0xff]
        %v1566 = vld [vmem:[%s1232 + $0x900] sm:$0xff]
        %v1567 = vld [vmem:[%s1232 + $0x908] sm:$0xff]
        %v1568 = vld [vmem:[%s1232 + $0x910] sm:$0xff]
        %v1569 = vld [vmem:[%s1232 + $0x918] sm:$0xff]
        %v1570 = vld [vmem:[%s1232 + $0x920] sm:$0xff]
        %v1571 = vld [vmem:[%s1232 + $0x928] sm:$0xff]
        %v1572 = vld [vmem:[%s1232 + $0x930] sm:$0xff]
        %v1573 = vld [vmem:[%s1232 + $0x938] sm:$0xff]
        %v1574 = vld [vmem:[%s1232 + $0x940] sm:$0xff]
        %v1575 = vld [vmem:[%s1232 + $0x948] sm:$0xff]
        %v1576 = vld [vmem:[%s1232 + $0x950] sm:$0xff]
        %v1577 = vld [vmem:[%s1232 + $0x958] sm:$0xff]
        %v1578 = vld [vmem:[%s1232 + $0x960] sm:$0xff]
        %v1579 = vld [vmem:[%s1232 + $0x968] sm:$0xff]
        %v1580 = vld [vmem:[%s1232 + $0x970] sm:$0xff]
        %v1581 = vld [vmem:[%s1232 + $0x978] sm:$0xff]
        %v1582 = vld [vmem:[%s1232 + $0x980] sm:$0xff]
        %v1583 = vld [vmem:[%s1232 + $0x988] sm:$0xff]
        %v1584 = vld [vmem:[%s1232 + $0x990] sm:$0xff]
        %v1585 = vld [vmem:[%s1232 + $0x998] sm:$0xff]
        %v1586 = vld [vmem:[%s1232 + $0x9a0] sm:$0xff]
        %v1587 = vld [vmem:[%s1232 + $0x9a8] sm:$0xff]
        %v1588 = vld [vmem:[%s1232 + $0x9b0] sm:$0xff]
        %v1589 = vld [vmem:[%s1232 + $0x9b8] sm:$0xff]
        %v1590 = vld [vmem:[%s1232 + $0x9c0] sm:$0xff]
        %v1591 = vld [vmem:[%s1232 + $0x9c8] sm:$0xff]
        %v1592 = vld [vmem:[%s1232 + $0x9d0] sm:$0xff]
        %v1593 = vld [vmem:[%s1232 + $0x9d8] sm:$0xff]
        %v1594 = vld [vmem:[%s1232 + $0x9e0] sm:$0xff]
        %v1595 = vld [vmem:[%s1232 + $0x9e8] sm:$0xff]
        %v1596 = vld [vmem:[%s1232 + $0x9f0] sm:$0xff]
        %v1597 = vld [vmem:[%s1232 + $0x9f8] sm:$0xff]
        %v1598 = vld [vmem:[%s1232 + $0xa00] sm:$0xff]
        %v1599 = vld [vmem:[%s1232 + $0xa08] sm:$0xff]
        %v1600 = vld [vmem:[%s1232 + $0xa10] sm:$0xff]
        %v1601 = vld [vmem:[%s1232 + $0xa18] sm:$0xff]
        %v1602 = vld [vmem:[%s1232 + $0xa20] sm:$0xff]
        %v1603 = vld [vmem:[%s1232 + $0xa28] sm:$0xff]
        %v1604 = vld [vmem:[%s1232 + $0xa30] sm:$0xff]
        %v1605 = vld [vmem:[%s1232 + $0xa38] sm:$0xff]
        %v1606 = vld [vmem:[%s1232 + $0xa40] sm:$0xff]
        %v1607 = vld [vmem:[%s1232 + $0xa48] sm:$0xff]
        %v1608 = vld [vmem:[%s1232 + $0xa50] sm:$0xff]
        %v1609 = vld [vmem:[%s1232 + $0xa58] sm:$0xff]
        %v1610 = vld [vmem:[%s1232 + $0xa60] sm:$0xff]
        %v1611 = vld [vmem:[%s1232 + $0xa68] sm:$0xff]
        %v1612 = vld [vmem:[%s1232 + $0xa70] sm:$0xff]
        %v1613 = vld [vmem:[%s1232 + $0xa78] sm:$0xff]
        %v1614 = vld [vmem:[%s1232 + $0xa80] sm:$0xff]
        %v1615 = vld [vmem:[%s1232 + $0xa88] sm:$0xff]
        %v1616 = vld [vmem:[%s1232 + $0xa90] sm:$0xff]
        %v1617 = vld [vmem:[%s1232 + $0xa98] sm:$0xff]
        %v1618 = vld [vmem:[%s1232 + $0xaa0] sm:$0xff]
        %v1619 = vld [vmem:[%s1232 + $0xaa8] sm:$0xff]
        %v1620 = vld [vmem:[%s1232 + $0xab0] sm:$0xff]
        %v1621 = vld [vmem:[%s1232 + $0xab8] sm:$0xff]
        %v1622 = vld [vmem:[%s1232 + $0xac0] sm:$0xff]
        %v1623 = vld [vmem:[%s1232 + $0xac8] sm:$0xff]
        %v1624 = vld [vmem:[%s1232 + $0xad0] sm:$0xff]
        %v1625 = vld [vmem:[%s1232 + $0xad8] sm:$0xff]
        %v1626 = vld [vmem:[%s1232 + $0xae0] sm:$0xff]
        %v1627 = vld [vmem:[%s1232 + $0xae8] sm:$0xff]
        %v1628 = vld [vmem:[%s1232 + $0xaf0] sm:$0xff]
        %v1629 = vld [vmem:[%s1232 + $0xaf8] sm:$0xff]
        %v1630 = vld [vmem:[%s1232 + $0xb00] sm:$0xff]
        %v1631 = vld [vmem:[%s1232 + $0xb08] sm:$0xff]
        %v1632 = vld [vmem:[%s1232 + $0xb10] sm:$0xff]
        %v1633 = vld [vmem:[%s1232 + $0xb18] sm:$0xff]
        %v1634 = vld [vmem:[%s1232 + $0xb20] sm:$0xff]
        %v1635 = vld [vmem:[%s1232 + $0xb28] sm:$0xff]
        %v1636 = vld [vmem:[%s1232 + $0xb30] sm:$0xff]
        %v1637 = vld [vmem:[%s1232 + $0xb38] sm:$0xff]
        %v1638 = vld [vmem:[%s1232 + $0xb40] sm:$0xff]
        %v1639 = vld [vmem:[%s1232 + $0xb48] sm:$0xff]
        %v1640 = vld [vmem:[%s1232 + $0xb50] sm:$0xff]
        %v1641 = vld [vmem:[%s1232 + $0xb58] sm:$0xff]
        %v1642 = vld [vmem:[%s1232 + $0xb60] sm:$0xff]
        %v1643 = vld [vmem:[%s1232 + $0xb68] sm:$0xff]
        %v1644 = vld [vmem:[%s1232 + $0xb70] sm:$0xff]
        %v1645 = vld [vmem:[%s1232 + $0xb78] sm:$0xff]
        %v1646 = vld [vmem:[%s1232 + $0xb80] sm:$0xff]
        %v1647 = vld [vmem:[%s1232 + $0xb88] sm:$0xff]
        %v1648 = vld [vmem:[%s1232 + $0xb90] sm:$0xff]
        %v1649 = vld [vmem:[%s1232 + $0xb98] sm:$0xff]
        %v1650 = vld [vmem:[%s1232 + $0xba0] sm:$0xff]
        %v1651 = vld [vmem:[%s1232 + $0xba8] sm:$0xff]
        %v1652 = vld [vmem:[%s1232 + $0xbb0] sm:$0xff]
        %v1653 = vld [vmem:[%s1232 + $0xbb8] sm:$0xff]
        %v1654 = vld [vmem:[%s1232 + $0xbc0] sm:$0xff]
        %v1655 = vld [vmem:[%s1232 + $0xbc8] sm:$0xff]
        %v1656 = vld [vmem:[%s1232 + $0xbd0] sm:$0xff]
        %v1657 = vld [vmem:[%s1232 + $0xbd8] sm:$0xff]
        %v1658 = vld [vmem:[%s1232 + $0xbe0] sm:$0xff]
        %v1659 = vld [vmem:[%s1232 + $0xbe8] sm:$0xff]
        %v1660 = vld [vmem:[%s1232 + $0xbf0] sm:$0xff]
        %v1661 = vld [vmem:[%s1232 + $0xbf8] sm:$0xff]
        %v1662 = vld [vmem:[%s1232 + $0xc00] sm:$0xff]
        %v1663 = vld [vmem:[%s1232 + $0xc08] sm:$0xff]
        %v1664 = vld [vmem:[%s1232 + $0xc10] sm:$0xff]
        %v1665 = vld [vmem:[%s1232 + $0xc18] sm:$0xff]
        %v1666 = vld [vmem:[%s1232 + $0xc20] sm:$0xff]
        %v1667 = vld [vmem:[%s1232 + $0xc28] sm:$0xff]
        %v1668 = vld [vmem:[%s1232 + $0xc30] sm:$0xff]
        %v1669 = vld [vmem:[%s1232 + $0xc38] sm:$0xff]
        %v1670 = vld [vmem:[%s1232 + $0xc40] sm:$0xff]
        %v1671 = vld [vmem:[%s1232 + $0xc48] sm:$0xff]
        %v1672 = vld [vmem:[%s1232 + $0xc50] sm:$0xff]
        %v1673 = vld [vmem:[%s1232 + $0xc58] sm:$0xff]
        %v1674 = vld [vmem:[%s1232 + $0xc60] sm:$0xff]
        %v1675 = vld [vmem:[%s1232 + $0xc68] sm:$0xff]
        %v1676 = vld [vmem:[%s1232 + $0xc70] sm:$0xff]
        %v1677 = vld [vmem:[%s1232 + $0xc78] sm:$0xff]
        %v1678 = vld [vmem:[%s1232 + $0xc80] sm:$0xff]
        %v1679 = vld [vmem:[%s1232 + $0xc88] sm:$0xff]
        %v1680 = vld [vmem:[%s1232 + $0xc90] sm:$0xff]
        %v1681 = vld [vmem:[%s1232 + $0xc98] sm:$0xff]
        %v1682 = vld [vmem:[%s1232 + $0xca0] sm:$0xff]
        %v1683 = vld [vmem:[%s1232 + $0xca8] sm:$0xff]
        %v1684 = vld [vmem:[%s1232 + $0xcb0] sm:$0xff]
        %v1685 = vld [vmem:[%s1232 + $0xcb8] sm:$0xff]
        %v1686 = vld [vmem:[%s1232 + $0xcc0] sm:$0xff]
        %v1687 = vld [vmem:[%s1232 + $0xcc8] sm:$0xff]
        %v1688 = vld [vmem:[%s1232 + $0xcd0] sm:$0xff]
        %v1689 = vld [vmem:[%s1232 + $0xcd8] sm:$0xff]
        %v1690 = vld [vmem:[%s1232 + $0xce0] sm:$0xff]
        %v1691 = vld [vmem:[%s1232 + $0xce8] sm:$0xff]
        %v1692 = vld [vmem:[%s1232 + $0xcf0] sm:$0xff]
        %v1693 = vld [vmem:[%s1232 + $0xcf8] sm:$0xff]
        %v1694 = vld [vmem:[%s1232 + $0xd00] sm:$0xff]
        %v1695 = vld [vmem:[%s1232 + $0xd08] sm:$0xff]
        %v1696 = vld [vmem:[%s1232 + $0xd10] sm:$0xff]
        %v1697 = vld [vmem:[%s1232 + $0xd18] sm:$0xff]
        %v1698 = vld [vmem:[%s1232 + $0xd20] sm:$0xff]
        %v1699 = vld [vmem:[%s1232 + $0xd28] sm:$0xff]
        %v1700 = vld [vmem:[%s1232 + $0xd30] sm:$0xff]
        %v1701 = vld [vmem:[%s1232 + $0xd38] sm:$0xff]
        %v1702 = vld [vmem:[%s1232 + $0xd40] sm:$0xff]
        %v1703 = vld [vmem:[%s1232 + $0xd48] sm:$0xff]
        %v1704 = vld [vmem:[%s1232 + $0xd50] sm:$0xff]
        %v1705 = vld [vmem:[%s1232 + $0xd58] sm:$0xff]
        %v1706 = vld [vmem:[%s1232 + $0xd60] sm:$0xff]
        %v1707 = vld [vmem:[%s1232 + $0xd68] sm:$0xff]
        %v1708 = vld [vmem:[%s1232 + $0xd70] sm:$0xff]
        %v1709 = vld [vmem:[%s1232 + $0xd78] sm:$0xff]
        %v1710 = vld [vmem:[%s1232 + $0xd80] sm:$0xff]
        %v1711 = vld [vmem:[%s1232 + $0xd88] sm:$0xff]
        %v1712 = vld [vmem:[%s1232 + $0xd90] sm:$0xff]
        %v1713 = vld [vmem:[%s1232 + $0xd98] sm:$0xff]
        %v1714 = vld [vmem:[%s1232 + $0xda0] sm:$0xff]
        %v1715 = vld [vmem:[%s1232 + $0xda8] sm:$0xff]
        %v1716 = vld [vmem:[%s1232 + $0xdb0] sm:$0xff]
        %v1717 = vld [vmem:[%s1232 + $0xdb8] sm:$0xff]
        %v1718 = vld [vmem:[%s1232 + $0xdc0] sm:$0xff]
        %v1719 = vld [vmem:[%s1232 + $0xdc8] sm:$0xff]
        %v1720 = vld [vmem:[%s1232 + $0xdd0] sm:$0xff]
        %v1721 = vld [vmem:[%s1232 + $0xdd8] sm:$0xff]
        %v1722 = vld [vmem:[%s1232 + $0xde0] sm:$0xff]
        %v1723 = vld [vmem:[%s1232 + $0xde8] sm:$0xff]
        %v1724 = vld [vmem:[%s1232 + $0xdf0] sm:$0xff]
        %v1725 = vld [vmem:[%s1232 + $0xdf8] sm:$0xff]
        %v1726 = vld [vmem:[%s1232 + $0xe00] sm:$0xff]
        %v1727 = vld [vmem:[%s1232 + $0xe08] sm:$0xff]
        %v1728 = vld [vmem:[%s1232 + $0xe10] sm:$0xff]
        %v1729 = vld [vmem:[%s1232 + $0xe18] sm:$0xff]
        %v1730 = vld [vmem:[%s1232 + $0xe20] sm:$0xff]
        %v1731 = vld [vmem:[%s1232 + $0xe28] sm:$0xff]
        %v1732 = vld [vmem:[%s1232 + $0xe30] sm:$0xff]
        %v1733 = vld [vmem:[%s1232 + $0xe38] sm:$0xff]
        %v1734 = vld [vmem:[%s1232 + $0xe40] sm:$0xff]
        %v1735 = vld [vmem:[%s1232 + $0xe48] sm:$0xff]
        %v1736 = vld [vmem:[%s1232 + $0xe50] sm:$0xff]
        %v1737 = vld [vmem:[%s1232 + $0xe58] sm:$0xff]
        %v1738 = vld [vmem:[%s1232 + $0xe60] sm:$0xff]
        %v1739 = vld [vmem:[%s1232 + $0xe68] sm:$0xff]
        %v1740 = vld [vmem:[%s1232 + $0xe70] sm:$0xff]
        %v1741 = vld [vmem:[%s1232 + $0xe78] sm:$0xff]
        %v1742 = vld [vmem:[%s1232 + $0xe80] sm:$0xff]
        %v1743 = vld [vmem:[%s1232 + $0xe88] sm:$0xff]
        %v1744 = vld [vmem:[%s1232 + $0xe90] sm:$0xff]
        %v1745 = vld [vmem:[%s1232 + $0xe98] sm:$0xff]
        %v1746 = vld [vmem:[%s1232 + $0xea0] sm:$0xff]
        %v1747 = vld [vmem:[%s1232 + $0xea8] sm:$0xff]
        %v1748 = vld [vmem:[%s1232 + $0xeb0] sm:$0xff]
        %v1749 = vld [vmem:[%s1232 + $0xeb8] sm:$0xff]
        %v1750 = vld [vmem:[%s1232 + $0xec0] sm:$0xff]
        %v1751 = vld [vmem:[%s1232 + $0xec8] sm:$0xff]
        %v1752 = vld [vmem:[%s1232 + $0xed0] sm:$0xff]
        %v1753 = vld [vmem:[%s1232 + $0xed8] sm:$0xff]
        %v1754 = vld [vmem:[%s1232 + $0xee0] sm:$0xff]
        %v1755 = vld [vmem:[%s1232 + $0xee8] sm:$0xff]
        %v1756 = vld [vmem:[%s1232 + $0xef0] sm:$0xff]
        %v1757 = vld [vmem:[%s1232 + $0xef8] sm:$0xff]
        %v1758 = vld [vmem:[%s1232 + $0xf00] sm:$0xff]
        %v1759 = vld [vmem:[%s1232 + $0xf08] sm:$0xff]
        %v1760 = vld [vmem:[%s1232 + $0xf10] sm:$0xff]
        %v1761 = vld [vmem:[%s1232 + $0xf18] sm:$0xff]
        %v1762 = vld [vmem:[%s1232 + $0xf20] sm:$0xff]
        %v1763 = vld [vmem:[%s1232 + $0xf28] sm:$0xff]
        %v1764 = vld [vmem:[%s1232 + $0xf30] sm:$0xff]
        %v1765 = vld [vmem:[%s1232 + $0xf38] sm:$0xff]
        %v1766 = vld [vmem:[%s1232 + $0xf40] sm:$0xff]
        %v1767 = vld [vmem:[%s1232 + $0xf48] sm:$0xff]
        %v1768 = vld [vmem:[%s1232 + $0xf50] sm:$0xff]
        %v1769 = vld [vmem:[%s1232 + $0xf58] sm:$0xff]
        %v1770 = vld [vmem:[%s1232 + $0xf60] sm:$0xff]
        %v1771 = vld [vmem:[%s1232 + $0xf68] sm:$0xff]
        %v1772 = vld [vmem:[%s1232 + $0xf70] sm:$0xff]
        %v1773 = vld [vmem:[%s1232 + $0xf78] sm:$0xff]
        %v1774 = vld [vmem:[%s1232 + $0xf80] sm:$0xff]
        %v1775 = vld [vmem:[%s1232 + $0xf88] sm:$0xff]
        %v1776 = vld [vmem:[%s1232 + $0xf90] sm:$0xff]
        %v1777 = vld [vmem:[%s1232 + $0xf98] sm:$0xff]
        %v1778 = vld [vmem:[%s1232 + $0xfa0] sm:$0xff]
        %v1779 = vld [vmem:[%s1232 + $0xfa8] sm:$0xff]
        %v1780 = vld [vmem:[%s1232 + $0xfb0] sm:$0xff]
        %v1781 = vld [vmem:[%s1232 + $0xfb8] sm:$0xff]
        %v1782 = vld [vmem:[%s1232 + $0xfc0] sm:$0xff]
        %v1783 = vld [vmem:[%s1232 + $0xfc8] sm:$0xff]
        %v1784 = vld [vmem:[%s1232 + $0xfd0] sm:$0xff]
        %v1785 = vld [vmem:[%s1232 + $0xfd8] sm:$0xff]
        %v1786 = vld [vmem:[%s1232 + $0xfe0] sm:$0xff]
        %v1787 = vld [vmem:[%s1232 + $0xfe8] sm:$0xff]
        %v1788 = vld [vmem:[%s1232 + $0xff0] sm:$0xff]
        %v1789 = vld [vmem:[%s1232 + $0xff8] sm:$0xff]
        %v1790 = vunpack.c.l.s8.bf16 %v1278
        %v1791 = vunpack.c.l.s8.bf16 %v1279
        %v1792 = vunpack.c.h.s8.bf16 %v1278
        %v1793 = vunpack.c.h.s8.bf16 %v1279
        %v1794 = vunpack.c.l.s8.bf16 %v1280
        %v1795 = vunpack.c.l.s8.bf16 %v1281
        %v1796 = vunpack.c.h.s8.bf16 %v1280
        %v1797 = vunpack.c.h.s8.bf16 %v1281
        %v1798 = vunpack.c.l.s8.bf16 %v1282
        %v1799 = vunpack.c.l.s8.bf16 %v1283
        %v1800 = vunpack.c.h.s8.bf16 %v1282
        %v1801 = vunpack.c.h.s8.bf16 %v1283
        %v1802 = vunpack.c.l.s8.bf16 %v1284
        %v1803 = vunpack.c.l.s8.bf16 %v1285
        %v1804 = vunpack.c.h.s8.bf16 %v1284
        %v1805 = vunpack.c.h.s8.bf16 %v1285
        %v1806 = vunpack.c.l.s8.bf16 %v1286
        %v1807 = vunpack.c.l.s8.bf16 %v1287
        %v1808 = vunpack.c.h.s8.bf16 %v1286
        %v1809 = vunpack.c.h.s8.bf16 %v1287
        %v1810 = vunpack.c.l.s8.bf16 %v1288
        %v1811 = vunpack.c.l.s8.bf16 %v1289
        %v1812 = vunpack.c.h.s8.bf16 %v1288
        %v1813 = vunpack.c.h.s8.bf16 %v1289
        %v1814 = vunpack.c.l.s8.bf16 %v1290
        %v1815 = vunpack.c.l.s8.bf16 %v1291
        %v1816 = vunpack.c.h.s8.bf16 %v1290
        %v1817 = vunpack.c.h.s8.bf16 %v1291
        %v1818 = vunpack.c.l.s8.bf16 %v1292
        %v1819 = vunpack.c.l.s8.bf16 %v1293
        %v1820 = vunpack.c.h.s8.bf16 %v1292
        %v1821 = vunpack.c.h.s8.bf16 %v1293
        %v1822 = vunpack.c.l.s8.bf16 %v1294
        %v1823 = vunpack.c.l.s8.bf16 %v1295
        %v1824 = vunpack.c.h.s8.bf16 %v1294
        %v1825 = vunpack.c.h.s8.bf16 %v1295
        %v1826 = vunpack.c.l.s8.bf16 %v1296
        %v1827 = vunpack.c.l.s8.bf16 %v1297
        %v1828 = vunpack.c.h.s8.bf16 %v1296
        %v1829 = vunpack.c.h.s8.bf16 %v1297
        %v1830 = vunpack.c.l.s8.bf16 %v1298
        %v1831 = vunpack.c.l.s8.bf16 %v1299
        %v1832 = vunpack.c.h.s8.bf16 %v1298
        %v1833 = vunpack.c.h.s8.bf16 %v1299
        %v1834 = vunpack.c.l.s8.bf16 %v1300
        %v1835 = vunpack.c.l.s8.bf16 %v1301
        %v1836 = vunpack.c.h.s8.bf16 %v1300
        %v1837 = vunpack.c.h.s8.bf16 %v1301
        %v1838 = vunpack.c.l.s8.bf16 %v1302
        %v1839 = vunpack.c.l.s8.bf16 %v1303
        %v1840 = vunpack.c.h.s8.bf16 %v1302
        %v1841 = vunpack.c.h.s8.bf16 %v1303
        %v1842 = vunpack.c.l.s8.bf16 %v1304
        %v1843 = vunpack.c.l.s8.bf16 %v1305
        %v1844 = vunpack.c.h.s8.bf16 %v1304
        %v1845 = vunpack.c.h.s8.bf16 %v1305
        %v1846 = vunpack.c.l.s8.bf16 %v1306
        %v1847 = vunpack.c.l.s8.bf16 %v1307
        %v1848 = vunpack.c.h.s8.bf16 %v1306
        %v1849 = vunpack.c.h.s8.bf16 %v1307
        %v1850 = vunpack.c.l.s8.bf16 %v1308
        %v1851 = vunpack.c.l.s8.bf16 %v1309
        %v1852 = vunpack.c.h.s8.bf16 %v1308
        %v1853 = vunpack.c.h.s8.bf16 %v1309
        %v1854 = vunpack.c.l.s8.bf16 %v1310
        %v1855 = vunpack.c.l.s8.bf16 %v1311
        %v1856 = vunpack.c.h.s8.bf16 %v1310
        %v1857 = vunpack.c.h.s8.bf16 %v1311
        %v1858 = vunpack.c.l.s8.bf16 %v1312
        %v1859 = vunpack.c.l.s8.bf16 %v1313
        %v1860 = vunpack.c.h.s8.bf16 %v1312
        %v1861 = vunpack.c.h.s8.bf16 %v1313
        %v1862 = vunpack.c.l.s8.bf16 %v1314
        %v1863 = vunpack.c.l.s8.bf16 %v1315
        %v1864 = vunpack.c.h.s8.bf16 %v1314
        %v1865 = vunpack.c.h.s8.bf16 %v1315
        %v1866 = vunpack.c.l.s8.bf16 %v1316
        %v1867 = vunpack.c.l.s8.bf16 %v1317
        %v1868 = vunpack.c.h.s8.bf16 %v1316
        %v1869 = vunpack.c.h.s8.bf16 %v1317
        %v1870 = vunpack.c.l.s8.bf16 %v1318
        %v1871 = vunpack.c.l.s8.bf16 %v1319
        %v1872 = vunpack.c.h.s8.bf16 %v1318
        %v1873 = vunpack.c.h.s8.bf16 %v1319
        %v1874 = vunpack.c.l.s8.bf16 %v1320
        %v1875 = vunpack.c.l.s8.bf16 %v1321
        %v1876 = vunpack.c.h.s8.bf16 %v1320
        %v1877 = vunpack.c.h.s8.bf16 %v1321
        %v1878 = vunpack.c.l.s8.bf16 %v1322
        %v1879 = vunpack.c.l.s8.bf16 %v1323
        %v1880 = vunpack.c.h.s8.bf16 %v1322
        %v1881 = vunpack.c.h.s8.bf16 %v1323
        %v1882 = vunpack.c.l.s8.bf16 %v1324
        %v1883 = vunpack.c.l.s8.bf16 %v1325
        %v1884 = vunpack.c.h.s8.bf16 %v1324
        %v1885 = vunpack.c.h.s8.bf16 %v1325
        %v1886 = vunpack.c.l.s8.bf16 %v1326
        %v1887 = vunpack.c.l.s8.bf16 %v1327
        %v1888 = vunpack.c.h.s8.bf16 %v1326
        %v1889 = vunpack.c.h.s8.bf16 %v1327
        %v1890 = vunpack.c.l.s8.bf16 %v1328
        %v1891 = vunpack.c.l.s8.bf16 %v1329
        %v1892 = vunpack.c.h.s8.bf16 %v1328
        %v1893 = vunpack.c.h.s8.bf16 %v1329
        %v1894 = vunpack.c.l.s8.bf16 %v1330
        %v1895 = vunpack.c.l.s8.bf16 %v1331
        %v1896 = vunpack.c.h.s8.bf16 %v1330
        %v1897 = vunpack.c.h.s8.bf16 %v1331
        %v1898 = vunpack.c.l.s8.bf16 %v1332
        %v1899 = vunpack.c.l.s8.bf16 %v1333
        %v1900 = vunpack.c.h.s8.bf16 %v1332
        %v1901 = vunpack.c.h.s8.bf16 %v1333
        %v1902 = vunpack.c.l.s8.bf16 %v1334
        %v1903 = vunpack.c.l.s8.bf16 %v1335
        %v1904 = vunpack.c.h.s8.bf16 %v1334
        %v1905 = vunpack.c.h.s8.bf16 %v1335
        %v1906 = vunpack.c.l.s8.bf16 %v1336
        %v1907 = vunpack.c.l.s8.bf16 %v1337
        %v1908 = vunpack.c.h.s8.bf16 %v1336
        %v1909 = vunpack.c.h.s8.bf16 %v1337
        %v1910 = vunpack.c.l.s8.bf16 %v1338
        %v1911 = vunpack.c.l.s8.bf16 %v1339
        %v1912 = vunpack.c.h.s8.bf16 %v1338
        %v1913 = vunpack.c.h.s8.bf16 %v1339
        %v1914 = vunpack.c.l.s8.bf16 %v1340
        %v1915 = vunpack.c.l.s8.bf16 %v1341
        %v1916 = vunpack.c.h.s8.bf16 %v1340
        %v1917 = vunpack.c.h.s8.bf16 %v1341
        %v1918 = vunpack.c.l.s8.bf16 %v1342
        %v1919 = vunpack.c.l.s8.bf16 %v1343
        %v1920 = vunpack.c.h.s8.bf16 %v1342
        %v1921 = vunpack.c.h.s8.bf16 %v1343
        %v1922 = vunpack.c.l.s8.bf16 %v1344
        %v1923 = vunpack.c.l.s8.bf16 %v1345
        %v1924 = vunpack.c.h.s8.bf16 %v1344
        %v1925 = vunpack.c.h.s8.bf16 %v1345
        %v1926 = vunpack.c.l.s8.bf16 %v1346
        %v1927 = vunpack.c.l.s8.bf16 %v1347
        %v1928 = vunpack.c.h.s8.bf16 %v1346
        %v1929 = vunpack.c.h.s8.bf16 %v1347
        %v1930 = vunpack.c.l.s8.bf16 %v1348
        %v1931 = vunpack.c.l.s8.bf16 %v1349
        %v1932 = vunpack.c.h.s8.bf16 %v1348
        %v1933 = vunpack.c.h.s8.bf16 %v1349
        %v1934 = vunpack.c.l.s8.bf16 %v1350
        %v1935 = vunpack.c.l.s8.bf16 %v1351
        %v1936 = vunpack.c.h.s8.bf16 %v1350
        %v1937 = vunpack.c.h.s8.bf16 %v1351
        %v1938 = vunpack.c.l.s8.bf16 %v1352
        %v1939 = vunpack.c.l.s8.bf16 %v1353
        %v1940 = vunpack.c.h.s8.bf16 %v1352
        %v1941 = vunpack.c.h.s8.bf16 %v1353
        %v1942 = vunpack.c.l.s8.bf16 %v1354
        %v1943 = vunpack.c.l.s8.bf16 %v1355
        %v1944 = vunpack.c.h.s8.bf16 %v1354
        %v1945 = vunpack.c.h.s8.bf16 %v1355
        %v1946 = vunpack.c.l.s8.bf16 %v1356
        %v1947 = vunpack.c.l.s8.bf16 %v1357
        %v1948 = vunpack.c.h.s8.bf16 %v1356
        %v1949 = vunpack.c.h.s8.bf16 %v1357
        %v1950 = vunpack.c.l.s8.bf16 %v1358
        %v1951 = vunpack.c.l.s8.bf16 %v1359
        %v1952 = vunpack.c.h.s8.bf16 %v1358
        %v1953 = vunpack.c.h.s8.bf16 %v1359
        %v1954 = vunpack.c.l.s8.bf16 %v1360
        %v1955 = vunpack.c.l.s8.bf16 %v1361
        %v1956 = vunpack.c.h.s8.bf16 %v1360
        %v1957 = vunpack.c.h.s8.bf16 %v1361
        %v1958 = vunpack.c.l.s8.bf16 %v1362
        %v1959 = vunpack.c.l.s8.bf16 %v1363
        %v1960 = vunpack.c.h.s8.bf16 %v1362
        %v1961 = vunpack.c.h.s8.bf16 %v1363
        %v1962 = vunpack.c.l.s8.bf16 %v1364
        %v1963 = vunpack.c.l.s8.bf16 %v1365
        %v1964 = vunpack.c.h.s8.bf16 %v1364
        %v1965 = vunpack.c.h.s8.bf16 %v1365
        %v1966 = vunpack.c.l.s8.bf16 %v1366
        %v1967 = vunpack.c.l.s8.bf16 %v1367
        %v1968 = vunpack.c.h.s8.bf16 %v1366
        %v1969 = vunpack.c.h.s8.bf16 %v1367
        %v1970 = vunpack.c.l.s8.bf16 %v1368
        %v1971 = vunpack.c.l.s8.bf16 %v1369
        %v1972 = vunpack.c.h.s8.bf16 %v1368
        %v1973 = vunpack.c.h.s8.bf16 %v1369
        %v1974 = vunpack.c.l.s8.bf16 %v1370
        %v1975 = vunpack.c.l.s8.bf16 %v1371
        %v1976 = vunpack.c.h.s8.bf16 %v1370
        %v1977 = vunpack.c.h.s8.bf16 %v1371
        %v1978 = vunpack.c.l.s8.bf16 %v1372
        %v1979 = vunpack.c.l.s8.bf16 %v1373
        %v1980 = vunpack.c.h.s8.bf16 %v1372
        %v1981 = vunpack.c.h.s8.bf16 %v1373
        %v1982 = vunpack.c.l.s8.bf16 %v1374
        %v1983 = vunpack.c.l.s8.bf16 %v1375
        %v1984 = vunpack.c.h.s8.bf16 %v1374
        %v1985 = vunpack.c.h.s8.bf16 %v1375
        %v1986 = vunpack.c.l.s8.bf16 %v1376
        %v1987 = vunpack.c.l.s8.bf16 %v1377
        %v1988 = vunpack.c.h.s8.bf16 %v1376
        %v1989 = vunpack.c.h.s8.bf16 %v1377
        %v1990 = vunpack.c.l.s8.bf16 %v1378
        %v1991 = vunpack.c.l.s8.bf16 %v1379
        %v1992 = vunpack.c.h.s8.bf16 %v1378
        %v1993 = vunpack.c.h.s8.bf16 %v1379
        %v1994 = vunpack.c.l.s8.bf16 %v1380
        %v1995 = vunpack.c.l.s8.bf16 %v1381
        %v1996 = vunpack.c.h.s8.bf16 %v1380
        %v1997 = vunpack.c.h.s8.bf16 %v1381
        %v1998 = vunpack.c.l.s8.bf16 %v1382
        %v1999 = vunpack.c.l.s8.bf16 %v1383
        %v2000 = vunpack.c.h.s8.bf16 %v1382
        %v2001 = vunpack.c.h.s8.bf16 %v1383
        %v2002 = vunpack.c.l.s8.bf16 %v1384
        %v2003 = vunpack.c.l.s8.bf16 %v1385
        %v2004 = vunpack.c.h.s8.bf16 %v1384
        %v2005 = vunpack.c.h.s8.bf16 %v1385
        %v2006 = vunpack.c.l.s8.bf16 %v1386
        %v2007 = vunpack.c.l.s8.bf16 %v1387
        %v2008 = vunpack.c.h.s8.bf16 %v1386
        %v2009 = vunpack.c.h.s8.bf16 %v1387
        %v2010 = vunpack.c.l.s8.bf16 %v1388
        %v2011 = vunpack.c.l.s8.bf16 %v1389
        %v2012 = vunpack.c.h.s8.bf16 %v1388
        %v2013 = vunpack.c.h.s8.bf16 %v1389
        %v2014 = vunpack.c.l.s8.bf16 %v1390
        %v2015 = vunpack.c.l.s8.bf16 %v1391
        %v2016 = vunpack.c.h.s8.bf16 %v1390
        %v2017 = vunpack.c.h.s8.bf16 %v1391
        %v2018 = vunpack.c.l.s8.bf16 %v1392
        %v2019 = vunpack.c.l.s8.bf16 %v1393
        %v2020 = vunpack.c.h.s8.bf16 %v1392
        %v2021 = vunpack.c.h.s8.bf16 %v1393
        %v2022 = vunpack.c.l.s8.bf16 %v1394
        %v2023 = vunpack.c.l.s8.bf16 %v1395
        %v2024 = vunpack.c.h.s8.bf16 %v1394
        %v2025 = vunpack.c.h.s8.bf16 %v1395
        %v2026 = vunpack.c.l.s8.bf16 %v1396
        %v2027 = vunpack.c.l.s8.bf16 %v1397
        %v2028 = vunpack.c.h.s8.bf16 %v1396
        %v2029 = vunpack.c.h.s8.bf16 %v1397
        %v2030 = vunpack.c.l.s8.bf16 %v1398
        %v2031 = vunpack.c.l.s8.bf16 %v1399
        %v2032 = vunpack.c.h.s8.bf16 %v1398
        %v2033 = vunpack.c.h.s8.bf16 %v1399
        %v2034 = vunpack.c.l.s8.bf16 %v1400
        %v2035 = vunpack.c.l.s8.bf16 %v1401
        %v2036 = vunpack.c.h.s8.bf16 %v1400
        %v2037 = vunpack.c.h.s8.bf16 %v1401
        %v2038 = vunpack.c.l.s8.bf16 %v1402
        %v2039 = vunpack.c.l.s8.bf16 %v1403
        %v2040 = vunpack.c.h.s8.bf16 %v1402
        %v2041 = vunpack.c.h.s8.bf16 %v1403
        %v2042 = vunpack.c.l.s8.bf16 %v1404
        %v2043 = vunpack.c.l.s8.bf16 %v1405
        %v2044 = vunpack.c.h.s8.bf16 %v1404
        %v2045 = vunpack.c.h.s8.bf16 %v1405
        %v2046 = vunpack.c.l.s8.bf16 %v1406
        %v2047 = vunpack.c.l.s8.bf16 %v1407
        %v2048 = vunpack.c.h.s8.bf16 %v1406
        %v2049 = vunpack.c.h.s8.bf16 %v1407
        %v2050 = vunpack.c.l.s8.bf16 %v1408
        %v2051 = vunpack.c.l.s8.bf16 %v1409
        %v2052 = vunpack.c.h.s8.bf16 %v1408
        %v2053 = vunpack.c.h.s8.bf16 %v1409
        %v2054 = vunpack.c.l.s8.bf16 %v1410
        %v2055 = vunpack.c.l.s8.bf16 %v1411
        %v2056 = vunpack.c.h.s8.bf16 %v1410
        %v2057 = vunpack.c.h.s8.bf16 %v1411
        %v2058 = vunpack.c.l.s8.bf16 %v1412
        %v2059 = vunpack.c.l.s8.bf16 %v1413
        %v2060 = vunpack.c.h.s8.bf16 %v1412
        %v2061 = vunpack.c.h.s8.bf16 %v1413
        %v2062 = vunpack.c.l.s8.bf16 %v1414
        %v2063 = vunpack.c.l.s8.bf16 %v1415
        %v2064 = vunpack.c.h.s8.bf16 %v1414
        %v2065 = vunpack.c.h.s8.bf16 %v1415
        %v2066 = vunpack.c.l.s8.bf16 %v1416
        %v2067 = vunpack.c.l.s8.bf16 %v1417
        %v2068 = vunpack.c.h.s8.bf16 %v1416
        %v2069 = vunpack.c.h.s8.bf16 %v1417
        %v2070 = vunpack.c.l.s8.bf16 %v1418
        %v2071 = vunpack.c.l.s8.bf16 %v1419
        %v2072 = vunpack.c.h.s8.bf16 %v1418
        %v2073 = vunpack.c.h.s8.bf16 %v1419
        %v2074 = vunpack.c.l.s8.bf16 %v1420
        %v2075 = vunpack.c.l.s8.bf16 %v1421
        %v2076 = vunpack.c.h.s8.bf16 %v1420
        %v2077 = vunpack.c.h.s8.bf16 %v1421
        %v2078 = vunpack.c.l.s8.bf16 %v1422
        %v2079 = vunpack.c.l.s8.bf16 %v1423
        %v2080 = vunpack.c.h.s8.bf16 %v1422
        %v2081 = vunpack.c.h.s8.bf16 %v1423
        %v2082 = vunpack.c.l.s8.bf16 %v1424
        %v2083 = vunpack.c.l.s8.bf16 %v1425
        %v2084 = vunpack.c.h.s8.bf16 %v1424
        %v2085 = vunpack.c.h.s8.bf16 %v1425
        %v2086 = vunpack.c.l.s8.bf16 %v1426
        %v2087 = vunpack.c.l.s8.bf16 %v1427
        %v2088 = vunpack.c.h.s8.bf16 %v1426
        %v2089 = vunpack.c.h.s8.bf16 %v1427
        %v2090 = vunpack.c.l.s8.bf16 %v1428
        %v2091 = vunpack.c.l.s8.bf16 %v1429
        %v2092 = vunpack.c.h.s8.bf16 %v1428
        %v2093 = vunpack.c.h.s8.bf16 %v1429
        %v2094 = vunpack.c.l.s8.bf16 %v1430
        %v2095 = vunpack.c.l.s8.bf16 %v1431
        %v2096 = vunpack.c.h.s8.bf16 %v1430
        %v2097 = vunpack.c.h.s8.bf16 %v1431
        %v2098 = vunpack.c.l.s8.bf16 %v1432
        %v2099 = vunpack.c.l.s8.bf16 %v1433
        %v2100 = vunpack.c.h.s8.bf16 %v1432
        %v2101 = vunpack.c.h.s8.bf16 %v1433
        %v2102 = vunpack.c.l.s8.bf16 %v1434
        %v2103 = vunpack.c.l.s8.bf16 %v1435
        %v2104 = vunpack.c.h.s8.bf16 %v1434
        %v2105 = vunpack.c.h.s8.bf16 %v1435
        %v2106 = vunpack.c.l.s8.bf16 %v1436
        %v2107 = vunpack.c.l.s8.bf16 %v1437
        %v2108 = vunpack.c.h.s8.bf16 %v1436
        %v2109 = vunpack.c.h.s8.bf16 %v1437
        %v2110 = vunpack.c.l.s8.bf16 %v1438
        %v2111 = vunpack.c.l.s8.bf16 %v1439
        %v2112 = vunpack.c.h.s8.bf16 %v1438
        %v2113 = vunpack.c.h.s8.bf16 %v1439
        %v2114 = vunpack.c.l.s8.bf16 %v1440
        %v2115 = vunpack.c.l.s8.bf16 %v1441
        %v2116 = vunpack.c.h.s8.bf16 %v1440
        %v2117 = vunpack.c.h.s8.bf16 %v1441
        %v2118 = vunpack.c.l.s8.bf16 %v1442
        %v2119 = vunpack.c.l.s8.bf16 %v1443
        %v2120 = vunpack.c.h.s8.bf16 %v1442
        %v2121 = vunpack.c.h.s8.bf16 %v1443
        %v2122 = vunpack.c.l.s8.bf16 %v1444
        %v2123 = vunpack.c.l.s8.bf16 %v1445
        %v2124 = vunpack.c.h.s8.bf16 %v1444
        %v2125 = vunpack.c.h.s8.bf16 %v1445
        %v2126 = vunpack.c.l.s8.bf16 %v1446
        %v2127 = vunpack.c.l.s8.bf16 %v1447
        %v2128 = vunpack.c.h.s8.bf16 %v1446
        %v2129 = vunpack.c.h.s8.bf16 %v1447
        %v2130 = vunpack.c.l.s8.bf16 %v1448
        %v2131 = vunpack.c.l.s8.bf16 %v1449
        %v2132 = vunpack.c.h.s8.bf16 %v1448
        %v2133 = vunpack.c.h.s8.bf16 %v1449
        %v2134 = vunpack.c.l.s8.bf16 %v1450
        %v2135 = vunpack.c.l.s8.bf16 %v1451
        %v2136 = vunpack.c.h.s8.bf16 %v1450
        %v2137 = vunpack.c.h.s8.bf16 %v1451
        %v2138 = vunpack.c.l.s8.bf16 %v1452
        %v2139 = vunpack.c.l.s8.bf16 %v1453
        %v2140 = vunpack.c.h.s8.bf16 %v1452
        %v2141 = vunpack.c.h.s8.bf16 %v1453
        %v2142 = vunpack.c.l.s8.bf16 %v1454
        %v2143 = vunpack.c.l.s8.bf16 %v1455
        %v2144 = vunpack.c.h.s8.bf16 %v1454
        %v2145 = vunpack.c.h.s8.bf16 %v1455
        %v2146 = vunpack.c.l.s8.bf16 %v1456
        %v2147 = vunpack.c.l.s8.bf16 %v1457
        %v2148 = vunpack.c.h.s8.bf16 %v1456
        %v2149 = vunpack.c.h.s8.bf16 %v1457
        %v2150 = vunpack.c.l.s8.bf16 %v1458
        %v2151 = vunpack.c.l.s8.bf16 %v1459
        %v2152 = vunpack.c.h.s8.bf16 %v1458
        %v2153 = vunpack.c.h.s8.bf16 %v1459
        %v2154 = vunpack.c.l.s8.bf16 %v1460
        %v2155 = vunpack.c.l.s8.bf16 %v1461
        %v2156 = vunpack.c.h.s8.bf16 %v1460
        %v2157 = vunpack.c.h.s8.bf16 %v1461
        %v2158 = vunpack.c.l.s8.bf16 %v1462
        %v2159 = vunpack.c.l.s8.bf16 %v1463
        %v2160 = vunpack.c.h.s8.bf16 %v1462
        %v2161 = vunpack.c.h.s8.bf16 %v1463
        %v2162 = vunpack.c.l.s8.bf16 %v1464
        %v2163 = vunpack.c.l.s8.bf16 %v1465
        %v2164 = vunpack.c.h.s8.bf16 %v1464
        %v2165 = vunpack.c.h.s8.bf16 %v1465
        %v2166 = vunpack.c.l.s8.bf16 %v1466
        %v2167 = vunpack.c.l.s8.bf16 %v1467
        %v2168 = vunpack.c.h.s8.bf16 %v1466
        %v2169 = vunpack.c.h.s8.bf16 %v1467
        %v2170 = vunpack.c.l.s8.bf16 %v1468
        %v2171 = vunpack.c.l.s8.bf16 %v1469
        %v2172 = vunpack.c.h.s8.bf16 %v1468
        %v2173 = vunpack.c.h.s8.bf16 %v1469
        %v2174 = vunpack.c.l.s8.bf16 %v1470
        %v2175 = vunpack.c.l.s8.bf16 %v1471
        %v2176 = vunpack.c.h.s8.bf16 %v1470
        %v2177 = vunpack.c.h.s8.bf16 %v1471
        %v2178 = vunpack.c.l.s8.bf16 %v1472
        %v2179 = vunpack.c.l.s8.bf16 %v1473
        %v2180 = vunpack.c.h.s8.bf16 %v1472
        %v2181 = vunpack.c.h.s8.bf16 %v1473
        %v2182 = vunpack.c.l.s8.bf16 %v1474
        %v2183 = vunpack.c.l.s8.bf16 %v1475
        %v2184 = vunpack.c.h.s8.bf16 %v1474
        %v2185 = vunpack.c.h.s8.bf16 %v1475
        %v2186 = vunpack.c.l.s8.bf16 %v1476
        %v2187 = vunpack.c.l.s8.bf16 %v1477
        %v2188 = vunpack.c.h.s8.bf16 %v1476
        %v2189 = vunpack.c.h.s8.bf16 %v1477
        %v2190 = vunpack.c.l.s8.bf16 %v1478
        %v2191 = vunpack.c.l.s8.bf16 %v1479
        %v2192 = vunpack.c.h.s8.bf16 %v1478
        %v2193 = vunpack.c.h.s8.bf16 %v1479
        %v2194 = vunpack.c.l.s8.bf16 %v1480
        %v2195 = vunpack.c.l.s8.bf16 %v1481
        %v2196 = vunpack.c.h.s8.bf16 %v1480
        %v2197 = vunpack.c.h.s8.bf16 %v1481
        %v2198 = vunpack.c.l.s8.bf16 %v1482
        %v2199 = vunpack.c.l.s8.bf16 %v1483
        %v2200 = vunpack.c.h.s8.bf16 %v1482
        %v2201 = vunpack.c.h.s8.bf16 %v1483
        %v2202 = vunpack.c.l.s8.bf16 %v1484
        %v2203 = vunpack.c.l.s8.bf16 %v1485
        %v2204 = vunpack.c.h.s8.bf16 %v1484
        %v2205 = vunpack.c.h.s8.bf16 %v1485
        %v2206 = vunpack.c.l.s8.bf16 %v1486
        %v2207 = vunpack.c.l.s8.bf16 %v1487
        %v2208 = vunpack.c.h.s8.bf16 %v1486
        %v2209 = vunpack.c.h.s8.bf16 %v1487
        %v2210 = vunpack.c.l.s8.bf16 %v1488
        %v2211 = vunpack.c.l.s8.bf16 %v1489
        %v2212 = vunpack.c.h.s8.bf16 %v1488
        %v2213 = vunpack.c.h.s8.bf16 %v1489
        %v2214 = vunpack.c.l.s8.bf16 %v1490
        %v2215 = vunpack.c.l.s8.bf16 %v1491
        %v2216 = vunpack.c.h.s8.bf16 %v1490
        %v2217 = vunpack.c.h.s8.bf16 %v1491
        %v2218 = vunpack.c.l.s8.bf16 %v1492
        %v2219 = vunpack.c.l.s8.bf16 %v1493
        %v2220 = vunpack.c.h.s8.bf16 %v1492
        %v2221 = vunpack.c.h.s8.bf16 %v1493
        %v2222 = vunpack.c.l.s8.bf16 %v1494
        %v2223 = vunpack.c.l.s8.bf16 %v1495
        %v2224 = vunpack.c.h.s8.bf16 %v1494
        %v2225 = vunpack.c.h.s8.bf16 %v1495
        %v2226 = vunpack.c.l.s8.bf16 %v1496
        %v2227 = vunpack.c.l.s8.bf16 %v1497
        %v2228 = vunpack.c.h.s8.bf16 %v1496
        %v2229 = vunpack.c.h.s8.bf16 %v1497
        %v2230 = vunpack.c.l.s8.bf16 %v1498
        %v2231 = vunpack.c.l.s8.bf16 %v1499
        %v2232 = vunpack.c.h.s8.bf16 %v1498
        %v2233 = vunpack.c.h.s8.bf16 %v1499
        %v2234 = vunpack.c.l.s8.bf16 %v1500
        %v2235 = vunpack.c.l.s8.bf16 %v1501
        %v2236 = vunpack.c.h.s8.bf16 %v1500
        %v2237 = vunpack.c.h.s8.bf16 %v1501
        %v2238 = vunpack.c.l.s8.bf16 %v1502
        %v2239 = vunpack.c.l.s8.bf16 %v1503
        %v2240 = vunpack.c.h.s8.bf16 %v1502
        %v2241 = vunpack.c.h.s8.bf16 %v1503
        %v2242 = vunpack.c.l.s8.bf16 %v1504
        %v2243 = vunpack.c.l.s8.bf16 %v1505
        %v2244 = vunpack.c.h.s8.bf16 %v1504
        %v2245 = vunpack.c.h.s8.bf16 %v1505
        %v2246 = vunpack.c.l.s8.bf16 %v1506
        %v2247 = vunpack.c.l.s8.bf16 %v1507
        %v2248 = vunpack.c.h.s8.bf16 %v1506
        %v2249 = vunpack.c.h.s8.bf16 %v1507
        %v2250 = vunpack.c.l.s8.bf16 %v1508
        %v2251 = vunpack.c.l.s8.bf16 %v1509
        %v2252 = vunpack.c.h.s8.bf16 %v1508
        %v2253 = vunpack.c.h.s8.bf16 %v1509
        %v2254 = vunpack.c.l.s8.bf16 %v1510
        %v2255 = vunpack.c.l.s8.bf16 %v1511
        %v2256 = vunpack.c.h.s8.bf16 %v1510
        %v2257 = vunpack.c.h.s8.bf16 %v1511
        %v2258 = vunpack.c.l.s8.bf16 %v1512
        %v2259 = vunpack.c.l.s8.bf16 %v1513
        %v2260 = vunpack.c.h.s8.bf16 %v1512
        %v2261 = vunpack.c.h.s8.bf16 %v1513
        %v2262 = vunpack.c.l.s8.bf16 %v1514
        %v2263 = vunpack.c.l.s8.bf16 %v1515
        %v2264 = vunpack.c.h.s8.bf16 %v1514
        %v2265 = vunpack.c.h.s8.bf16 %v1515
        %v2266 = vunpack.c.l.s8.bf16 %v1516
        %v2267 = vunpack.c.l.s8.bf16 %v1517
        %v2268 = vunpack.c.h.s8.bf16 %v1516
        %v2269 = vunpack.c.h.s8.bf16 %v1517
        %v2270 = vunpack.c.l.s8.bf16 %v1518
        %v2271 = vunpack.c.l.s8.bf16 %v1519
        %v2272 = vunpack.c.h.s8.bf16 %v1518
        %v2273 = vunpack.c.h.s8.bf16 %v1519
        %v2274 = vunpack.c.l.s8.bf16 %v1520
        %v2275 = vunpack.c.l.s8.bf16 %v1521
        %v2276 = vunpack.c.h.s8.bf16 %v1520
        %v2277 = vunpack.c.h.s8.bf16 %v1521
        %v2278 = vunpack.c.l.s8.bf16 %v1522
        %v2279 = vunpack.c.l.s8.bf16 %v1523
        %v2280 = vunpack.c.h.s8.bf16 %v1522
        %v2281 = vunpack.c.h.s8.bf16 %v1523
        %v2282 = vunpack.c.l.s8.bf16 %v1524
        %v2283 = vunpack.c.l.s8.bf16 %v1525
        %v2284 = vunpack.c.h.s8.bf16 %v1524
        %v2285 = vunpack.c.h.s8.bf16 %v1525
        %v2286 = vunpack.c.l.s8.bf16 %v1526
        %v2287 = vunpack.c.l.s8.bf16 %v1527
        %v2288 = vunpack.c.h.s8.bf16 %v1526
        %v2289 = vunpack.c.h.s8.bf16 %v1527
        %v2290 = vunpack.c.l.s8.bf16 %v1528
        %v2291 = vunpack.c.l.s8.bf16 %v1529
        %v2292 = vunpack.c.h.s8.bf16 %v1528
        %v2293 = vunpack.c.h.s8.bf16 %v1529
        %v2294 = vunpack.c.l.s8.bf16 %v1530
        %v2295 = vunpack.c.l.s8.bf16 %v1531
        %v2296 = vunpack.c.h.s8.bf16 %v1530
        %v2297 = vunpack.c.h.s8.bf16 %v1531
        %v2298 = vunpack.c.l.s8.bf16 %v1532
        %v2299 = vunpack.c.l.s8.bf16 %v1533
        %v2300 = vunpack.c.h.s8.bf16 %v1532
        %v2301 = vunpack.c.h.s8.bf16 %v1533
        %v2302 = vunpack.c.l.s8.bf16 %v1534
        %v2303 = vunpack.c.l.s8.bf16 %v1535
        %v2304 = vunpack.c.h.s8.bf16 %v1534
        %v2305 = vunpack.c.h.s8.bf16 %v1535
        %v2306 = vunpack.c.l.s8.bf16 %v1536
        %v2307 = vunpack.c.l.s8.bf16 %v1537
        %v2308 = vunpack.c.h.s8.bf16 %v1536
        %v2309 = vunpack.c.h.s8.bf16 %v1537
        %v2310 = vunpack.c.l.s8.bf16 %v1538
        %v2311 = vunpack.c.l.s8.bf16 %v1539
        %v2312 = vunpack.c.h.s8.bf16 %v1538
        %v2313 = vunpack.c.h.s8.bf16 %v1539
        %v2314 = vunpack.c.l.s8.bf16 %v1540
        %v2315 = vunpack.c.l.s8.bf16 %v1541
        %v2316 = vunpack.c.h.s8.bf16 %v1540
        %v2317 = vunpack.c.h.s8.bf16 %v1541
        %v2318 = vunpack.c.l.s8.bf16 %v1542
        %v2319 = vunpack.c.l.s8.bf16 %v1543
        %v2320 = vunpack.c.h.s8.bf16 %v1542
        %v2321 = vunpack.c.h.s8.bf16 %v1543
        %v2322 = vunpack.c.l.s8.bf16 %v1544
        %v2323 = vunpack.c.l.s8.bf16 %v1545
        %v2324 = vunpack.c.h.s8.bf16 %v1544
        %v2325 = vunpack.c.h.s8.bf16 %v1545
        %v2326 = vunpack.c.l.s8.bf16 %v1546
        %v2327 = vunpack.c.l.s8.bf16 %v1547
        %v2328 = vunpack.c.h.s8.bf16 %v1546
        %v2329 = vunpack.c.h.s8.bf16 %v1547
        %v2330 = vunpack.c.l.s8.bf16 %v1548
        %v2331 = vunpack.c.l.s8.bf16 %v1549
        %v2332 = vunpack.c.h.s8.bf16 %v1548
        %v2333 = vunpack.c.h.s8.bf16 %v1549
        %v2334 = vunpack.c.l.s8.bf16 %v1550
        %v2335 = vunpack.c.l.s8.bf16 %v1551
        %v2336 = vunpack.c.h.s8.bf16 %v1550
        %v2337 = vunpack.c.h.s8.bf16 %v1551
        %v2338 = vunpack.c.l.s8.bf16 %v1552
        %v2339 = vunpack.c.l.s8.bf16 %v1553
        %v2340 = vunpack.c.h.s8.bf16 %v1552
        %v2341 = vunpack.c.h.s8.bf16 %v1553
        %v2342 = vunpack.c.l.s8.bf16 %v1554
        %v2343 = vunpack.c.l.s8.bf16 %v1555
        %v2344 = vunpack.c.h.s8.bf16 %v1554
        %v2345 = vunpack.c.h.s8.bf16 %v1555
        %v2346 = vunpack.c.l.s8.bf16 %v1556
        %v2347 = vunpack.c.l.s8.bf16 %v1557
        %v2348 = vunpack.c.h.s8.bf16 %v1556
        %v2349 = vunpack.c.h.s8.bf16 %v1557
        %v2350 = vunpack.c.l.s8.bf16 %v1558
        %v2351 = vunpack.c.l.s8.bf16 %v1559
        %v2352 = vunpack.c.h.s8.bf16 %v1558
        %v2353 = vunpack.c.h.s8.bf16 %v1559
        %v2354 = vunpack.c.l.s8.bf16 %v1560
        %v2355 = vunpack.c.l.s8.bf16 %v1561
        %v2356 = vunpack.c.h.s8.bf16 %v1560
        %v2357 = vunpack.c.h.s8.bf16 %v1561
        %v2358 = vunpack.c.l.s8.bf16 %v1562
        %v2359 = vunpack.c.l.s8.bf16 %v1563
        %v2360 = vunpack.c.h.s8.bf16 %v1562
        %v2361 = vunpack.c.h.s8.bf16 %v1563
        %v2362 = vunpack.c.l.s8.bf16 %v1564
        %v2363 = vunpack.c.l.s8.bf16 %v1565
        %v2364 = vunpack.c.h.s8.bf16 %v1564
        %v2365 = vunpack.c.h.s8.bf16 %v1565
        %v2366 = vunpack.c.l.s8.bf16 %v1566
        %v2367 = vunpack.c.l.s8.bf16 %v1567
        %v2368 = vunpack.c.h.s8.bf16 %v1566
        %v2369 = vunpack.c.h.s8.bf16 %v1567
        %v2370 = vunpack.c.l.s8.bf16 %v1568
        %v2371 = vunpack.c.l.s8.bf16 %v1569
        %v2372 = vunpack.c.h.s8.bf16 %v1568
        %v2373 = vunpack.c.h.s8.bf16 %v1569
        %v2374 = vunpack.c.l.s8.bf16 %v1570
        %v2375 = vunpack.c.l.s8.bf16 %v1571
        %v2376 = vunpack.c.h.s8.bf16 %v1570
        %v2377 = vunpack.c.h.s8.bf16 %v1571
        %v2378 = vunpack.c.l.s8.bf16 %v1572
        %v2379 = vunpack.c.l.s8.bf16 %v1573
        %v2380 = vunpack.c.h.s8.bf16 %v1572
        %v2381 = vunpack.c.h.s8.bf16 %v1573
        %v2382 = vunpack.c.l.s8.bf16 %v1574
        %v2383 = vunpack.c.l.s8.bf16 %v1575
        %v2384 = vunpack.c.h.s8.bf16 %v1574
        %v2385 = vunpack.c.h.s8.bf16 %v1575
        %v2386 = vunpack.c.l.s8.bf16 %v1576
        %v2387 = vunpack.c.l.s8.bf16 %v1577
        %v2388 = vunpack.c.h.s8.bf16 %v1576
        %v2389 = vunpack.c.h.s8.bf16 %v1577
        %v2390 = vunpack.c.l.s8.bf16 %v1578
        %v2391 = vunpack.c.l.s8.bf16 %v1579
        %v2392 = vunpack.c.h.s8.bf16 %v1578
        %v2393 = vunpack.c.h.s8.bf16 %v1579
        %v2394 = vunpack.c.l.s8.bf16 %v1580
        %v2395 = vunpack.c.l.s8.bf16 %v1581
        %v2396 = vunpack.c.h.s8.bf16 %v1580
        %v2397 = vunpack.c.h.s8.bf16 %v1581
        %v2398 = vunpack.c.l.s8.bf16 %v1582
        %v2399 = vunpack.c.l.s8.bf16 %v1583
        %v2400 = vunpack.c.h.s8.bf16 %v1582
        %v2401 = vunpack.c.h.s8.bf16 %v1583
        %v2402 = vunpack.c.l.s8.bf16 %v1584
        %v2403 = vunpack.c.l.s8.bf16 %v1585
        %v2404 = vunpack.c.h.s8.bf16 %v1584
        %v2405 = vunpack.c.h.s8.bf16 %v1585
        %v2406 = vunpack.c.l.s8.bf16 %v1586
        %v2407 = vunpack.c.l.s8.bf16 %v1587
        %v2408 = vunpack.c.h.s8.bf16 %v1586
        %v2409 = vunpack.c.h.s8.bf16 %v1587
        %v2410 = vunpack.c.l.s8.bf16 %v1588
        %v2411 = vunpack.c.l.s8.bf16 %v1589
        %v2412 = vunpack.c.h.s8.bf16 %v1588
        %v2413 = vunpack.c.h.s8.bf16 %v1589
        %v2414 = vunpack.c.l.s8.bf16 %v1590
        %v2415 = vunpack.c.l.s8.bf16 %v1591
        %v2416 = vunpack.c.h.s8.bf16 %v1590
        %v2417 = vunpack.c.h.s8.bf16 %v1591
        %v2418 = vunpack.c.l.s8.bf16 %v1592
        %v2419 = vunpack.c.l.s8.bf16 %v1593
        %v2420 = vunpack.c.h.s8.bf16 %v1592
        %v2421 = vunpack.c.h.s8.bf16 %v1593
        %v2422 = vunpack.c.l.s8.bf16 %v1594
        %v2423 = vunpack.c.l.s8.bf16 %v1595
        %v2424 = vunpack.c.h.s8.bf16 %v1594
        %v2425 = vunpack.c.h.s8.bf16 %v1595
        %v2426 = vunpack.c.l.s8.bf16 %v1596
        %v2427 = vunpack.c.l.s8.bf16 %v1597
        %v2428 = vunpack.c.h.s8.bf16 %v1596
        %v2429 = vunpack.c.h.s8.bf16 %v1597
        %v2430 = vunpack.c.l.s8.bf16 %v1598
        %v2431 = vunpack.c.l.s8.bf16 %v1599
        %v2432 = vunpack.c.h.s8.bf16 %v1598
        %v2433 = vunpack.c.h.s8.bf16 %v1599
        %v2434 = vunpack.c.l.s8.bf16 %v1600
        %v2435 = vunpack.c.l.s8.bf16 %v1601
        %v2436 = vunpack.c.h.s8.bf16 %v1600
        %v2437 = vunpack.c.h.s8.bf16 %v1601
        %v2438 = vunpack.c.l.s8.bf16 %v1602
        %v2439 = vunpack.c.l.s8.bf16 %v1603
        %v2440 = vunpack.c.h.s8.bf16 %v1602
        %v2441 = vunpack.c.h.s8.bf16 %v1603
        %v2442 = vunpack.c.l.s8.bf16 %v1604
        %v2443 = vunpack.c.l.s8.bf16 %v1605
        %v2444 = vunpack.c.h.s8.bf16 %v1604
        %v2445 = vunpack.c.h.s8.bf16 %v1605
        %v2446 = vunpack.c.l.s8.bf16 %v1606
        %v2447 = vunpack.c.l.s8.bf16 %v1607
        %v2448 = vunpack.c.h.s8.bf16 %v1606
        %v2449 = vunpack.c.h.s8.bf16 %v1607
        %v2450 = vunpack.c.l.s8.bf16 %v1608
        %v2451 = vunpack.c.l.s8.bf16 %v1609
        %v2452 = vunpack.c.h.s8.bf16 %v1608
        %v2453 = vunpack.c.h.s8.bf16 %v1609
        %v2454 = vunpack.c.l.s8.bf16 %v1610
        %v2455 = vunpack.c.l.s8.bf16 %v1611
        %v2456 = vunpack.c.h.s8.bf16 %v1610
        %v2457 = vunpack.c.h.s8.bf16 %v1611
        %v2458 = vunpack.c.l.s8.bf16 %v1612
        %v2459 = vunpack.c.l.s8.bf16 %v1613
        %v2460 = vunpack.c.h.s8.bf16 %v1612
        %v2461 = vunpack.c.h.s8.bf16 %v1613
        %v2462 = vunpack.c.l.s8.bf16 %v1614
        %v2463 = vunpack.c.l.s8.bf16 %v1615
        %v2464 = vunpack.c.h.s8.bf16 %v1614
        %v2465 = vunpack.c.h.s8.bf16 %v1615
        %v2466 = vunpack.c.l.s8.bf16 %v1616
        %v2467 = vunpack.c.l.s8.bf16 %v1617
        %v2468 = vunpack.c.h.s8.bf16 %v1616
        %v2469 = vunpack.c.h.s8.bf16 %v1617
        %v2470 = vunpack.c.l.s8.bf16 %v1618
        %v2471 = vunpack.c.l.s8.bf16 %v1619
        %v2472 = vunpack.c.h.s8.bf16 %v1618
        %v2473 = vunpack.c.h.s8.bf16 %v1619
        %v2474 = vunpack.c.l.s8.bf16 %v1620
        %v2475 = vunpack.c.l.s8.bf16 %v1621
        %v2476 = vunpack.c.h.s8.bf16 %v1620
        %v2477 = vunpack.c.h.s8.bf16 %v1621
        %v2478 = vunpack.c.l.s8.bf16 %v1622
        %v2479 = vunpack.c.l.s8.bf16 %v1623
        %v2480 = vunpack.c.h.s8.bf16 %v1622
        %v2481 = vunpack.c.h.s8.bf16 %v1623
        %v2482 = vunpack.c.l.s8.bf16 %v1624
        %v2483 = vunpack.c.l.s8.bf16 %v1625
        %v2484 = vunpack.c.h.s8.bf16 %v1624
        %v2485 = vunpack.c.h.s8.bf16 %v1625
        %v2486 = vunpack.c.l.s8.bf16 %v1626
        %v2487 = vunpack.c.l.s8.bf16 %v1627
        %v2488 = vunpack.c.h.s8.bf16 %v1626
        %v2489 = vunpack.c.h.s8.bf16 %v1627
        %v2490 = vunpack.c.l.s8.bf16 %v1628
        %v2491 = vunpack.c.l.s8.bf16 %v1629
        %v2492 = vunpack.c.h.s8.bf16 %v1628
        %v2493 = vunpack.c.h.s8.bf16 %v1629
        %v2494 = vunpack.c.l.s8.bf16 %v1630
        %v2495 = vunpack.c.l.s8.bf16 %v1631
        %v2496 = vunpack.c.h.s8.bf16 %v1630
        %v2497 = vunpack.c.h.s8.bf16 %v1631
        %v2498 = vunpack.c.l.s8.bf16 %v1632
        %v2499 = vunpack.c.l.s8.bf16 %v1633
        %v2500 = vunpack.c.h.s8.bf16 %v1632
        %v2501 = vunpack.c.h.s8.bf16 %v1633
        %v2502 = vunpack.c.l.s8.bf16 %v1634
        %v2503 = vunpack.c.l.s8.bf16 %v1635
        %v2504 = vunpack.c.h.s8.bf16 %v1634
        %v2505 = vunpack.c.h.s8.bf16 %v1635
        %v2506 = vunpack.c.l.s8.bf16 %v1636
        %v2507 = vunpack.c.l.s8.bf16 %v1637
        %v2508 = vunpack.c.h.s8.bf16 %v1636
        %v2509 = vunpack.c.h.s8.bf16 %v1637
        %v2510 = vunpack.c.l.s8.bf16 %v1638
        %v2511 = vunpack.c.l.s8.bf16 %v1639
        %v2512 = vunpack.c.h.s8.bf16 %v1638
        %v2513 = vunpack.c.h.s8.bf16 %v1639
        %v2514 = vunpack.c.l.s8.bf16 %v1640
        %v2515 = vunpack.c.l.s8.bf16 %v1641
        %v2516 = vunpack.c.h.s8.bf16 %v1640
        %v2517 = vunpack.c.h.s8.bf16 %v1641
        %v2518 = vunpack.c.l.s8.bf16 %v1642
        %v2519 = vunpack.c.l.s8.bf16 %v1643
        %v2520 = vunpack.c.h.s8.bf16 %v1642
        %v2521 = vunpack.c.h.s8.bf16 %v1643
        %v2522 = vunpack.c.l.s8.bf16 %v1644
        %v2523 = vunpack.c.l.s8.bf16 %v1645
        %v2524 = vunpack.c.h.s8.bf16 %v1644
        %v2525 = vunpack.c.h.s8.bf16 %v1645
        %v2526 = vunpack.c.l.s8.bf16 %v1646
        %v2527 = vunpack.c.l.s8.bf16 %v1647
        %v2528 = vunpack.c.h.s8.bf16 %v1646
        %v2529 = vunpack.c.h.s8.bf16 %v1647
        %v2530 = vunpack.c.l.s8.bf16 %v1648
        %v2531 = vunpack.c.l.s8.bf16 %v1649
        %v2532 = vunpack.c.h.s8.bf16 %v1648
        %v2533 = vunpack.c.h.s8.bf16 %v1649
        %v2534 = vunpack.c.l.s8.bf16 %v1650
        %v2535 = vunpack.c.l.s8.bf16 %v1651
        %v2536 = vunpack.c.h.s8.bf16 %v1650
        %v2537 = vunpack.c.h.s8.bf16 %v1651
        %v2538 = vunpack.c.l.s8.bf16 %v1652
        %v2539 = vunpack.c.l.s8.bf16 %v1653
        %v2540 = vunpack.c.h.s8.bf16 %v1652
        %v2541 = vunpack.c.h.s8.bf16 %v1653
        %v2542 = vunpack.c.l.s8.bf16 %v1654
        %v2543 = vunpack.c.l.s8.bf16 %v1655
        %v2544 = vunpack.c.h.s8.bf16 %v1654
        %v2545 = vunpack.c.h.s8.bf16 %v1655
        %v2546 = vunpack.c.l.s8.bf16 %v1656
        %v2547 = vunpack.c.l.s8.bf16 %v1657
        %v2548 = vunpack.c.h.s8.bf16 %v1656
        %v2549 = vunpack.c.h.s8.bf16 %v1657
        %v2550 = vunpack.c.l.s8.bf16 %v1658
        %v2551 = vunpack.c.l.s8.bf16 %v1659
        %v2552 = vunpack.c.h.s8.bf16 %v1658
        %v2553 = vunpack.c.h.s8.bf16 %v1659
        %v2554 = vunpack.c.l.s8.bf16 %v1660
        %v2555 = vunpack.c.l.s8.bf16 %v1661
        %v2556 = vunpack.c.h.s8.bf16 %v1660
        %v2557 = vunpack.c.h.s8.bf16 %v1661
        %v2558 = vunpack.c.l.s8.bf16 %v1662
        %v2559 = vunpack.c.l.s8.bf16 %v1663
        %v2560 = vunpack.c.h.s8.bf16 %v1662
        %v2561 = vunpack.c.h.s8.bf16 %v1663
        %v2562 = vunpack.c.l.s8.bf16 %v1664
        %v2563 = vunpack.c.l.s8.bf16 %v1665
        %v2564 = vunpack.c.h.s8.bf16 %v1664
        %v2565 = vunpack.c.h.s8.bf16 %v1665
        %v2566 = vunpack.c.l.s8.bf16 %v1666
        %v2567 = vunpack.c.l.s8.bf16 %v1667
        %v2568 = vunpack.c.h.s8.bf16 %v1666
        %v2569 = vunpack.c.h.s8.bf16 %v1667
        %v2570 = vunpack.c.l.s8.bf16 %v1668
        %v2571 = vunpack.c.l.s8.bf16 %v1669
        %v2572 = vunpack.c.h.s8.bf16 %v1668
        %v2573 = vunpack.c.h.s8.bf16 %v1669
        %v2574 = vunpack.c.l.s8.bf16 %v1670
        %v2575 = vunpack.c.l.s8.bf16 %v1671
        %v2576 = vunpack.c.h.s8.bf16 %v1670
        %v2577 = vunpack.c.h.s8.bf16 %v1671
        %v2578 = vunpack.c.l.s8.bf16 %v1672
        %v2579 = vunpack.c.l.s8.bf16 %v1673
        %v2580 = vunpack.c.h.s8.bf16 %v1672
        %v2581 = vunpack.c.h.s8.bf16 %v1673
        %v2582 = vunpack.c.l.s8.bf16 %v1674
        %v2583 = vunpack.c.l.s8.bf16 %v1675
        %v2584 = vunpack.c.h.s8.bf16 %v1674
        %v2585 = vunpack.c.h.s8.bf16 %v1675
        %v2586 = vunpack.c.l.s8.bf16 %v1676
        %v2587 = vunpack.c.l.s8.bf16 %v1677
        %v2588 = vunpack.c.h.s8.bf16 %v1676
        %v2589 = vunpack.c.h.s8.bf16 %v1677
        %v2590 = vunpack.c.l.s8.bf16 %v1678
        %v2591 = vunpack.c.l.s8.bf16 %v1679
        %v2592 = vunpack.c.h.s8.bf16 %v1678
        %v2593 = vunpack.c.h.s8.bf16 %v1679
        %v2594 = vunpack.c.l.s8.bf16 %v1680
        %v2595 = vunpack.c.l.s8.bf16 %v1681
        %v2596 = vunpack.c.h.s8.bf16 %v1680
        %v2597 = vunpack.c.h.s8.bf16 %v1681
        %v2598 = vunpack.c.l.s8.bf16 %v1682
        %v2599 = vunpack.c.l.s8.bf16 %v1683
        %v2600 = vunpack.c.h.s8.bf16 %v1682
        %v2601 = vunpack.c.h.s8.bf16 %v1683
        %v2602 = vunpack.c.l.s8.bf16 %v1684
        %v2603 = vunpack.c.l.s8.bf16 %v1685
        %v2604 = vunpack.c.h.s8.bf16 %v1684
        %v2605 = vunpack.c.h.s8.bf16 %v1685
        %v2606 = vunpack.c.l.s8.bf16 %v1686
        %v2607 = vunpack.c.l.s8.bf16 %v1687
        %v2608 = vunpack.c.h.s8.bf16 %v1686
        %v2609 = vunpack.c.h.s8.bf16 %v1687
        %v2610 = vunpack.c.l.s8.bf16 %v1688
        %v2611 = vunpack.c.l.s8.bf16 %v1689
        %v2612 = vunpack.c.h.s8.bf16 %v1688
        %v2613 = vunpack.c.h.s8.bf16 %v1689
        %v2614 = vunpack.c.l.s8.bf16 %v1690
        %v2615 = vunpack.c.l.s8.bf16 %v1691
        %v2616 = vunpack.c.h.s8.bf16 %v1690
        %v2617 = vunpack.c.h.s8.bf16 %v1691
        %v2618 = vunpack.c.l.s8.bf16 %v1692
        %v2619 = vunpack.c.l.s8.bf16 %v1693
        %v2620 = vunpack.c.h.s8.bf16 %v1692
        %v2621 = vunpack.c.h.s8.bf16 %v1693
        %v2622 = vunpack.c.l.s8.bf16 %v1694
        %v2623 = vunpack.c.l.s8.bf16 %v1695
        %v2624 = vunpack.c.h.s8.bf16 %v1694
        %v2625 = vunpack.c.h.s8.bf16 %v1695
        %v2626 = vunpack.c.l.s8.bf16 %v1696
        %v2627 = vunpack.c.l.s8.bf16 %v1697
        %v2628 = vunpack.c.h.s8.bf16 %v1696
        %v2629 = vunpack.c.h.s8.bf16 %v1697
        %v2630 = vunpack.c.l.s8.bf16 %v1698
        %v2631 = vunpack.c.l.s8.bf16 %v1699
        %v2632 = vunpack.c.h.s8.bf16 %v1698
        %v2633 = vunpack.c.h.s8.bf16 %v1699
        %v2634 = vunpack.c.l.s8.bf16 %v1700
        %v2635 = vunpack.c.l.s8.bf16 %v1701
        %v2636 = vunpack.c.h.s8.bf16 %v1700
        %v2637 = vunpack.c.h.s8.bf16 %v1701
        %v2638 = vunpack.c.l.s8.bf16 %v1702
        %v2639 = vunpack.c.l.s8.bf16 %v1703
        %v2640 = vunpack.c.h.s8.bf16 %v1702
        %v2641 = vunpack.c.h.s8.bf16 %v1703
        %v2642 = vunpack.c.l.s8.bf16 %v1704
        %v2643 = vunpack.c.l.s8.bf16 %v1705
        %v2644 = vunpack.c.h.s8.bf16 %v1704
        %v2645 = vunpack.c.h.s8.bf16 %v1705
        %v2646 = vunpack.c.l.s8.bf16 %v1706
        %v2647 = vunpack.c.l.s8.bf16 %v1707
        %v2648 = vunpack.c.h.s8.bf16 %v1706
        %v2649 = vunpack.c.h.s8.bf16 %v1707
        %v2650 = vunpack.c.l.s8.bf16 %v1708
        %v2651 = vunpack.c.l.s8.bf16 %v1709
        %v2652 = vunpack.c.h.s8.bf16 %v1708
        %v2653 = vunpack.c.h.s8.bf16 %v1709
        %v2654 = vunpack.c.l.s8.bf16 %v1710
        %v2655 = vunpack.c.l.s8.bf16 %v1711
        %v2656 = vunpack.c.h.s8.bf16 %v1710
        %v2657 = vunpack.c.h.s8.bf16 %v1711
        %v2658 = vunpack.c.l.s8.bf16 %v1712
        %v2659 = vunpack.c.l.s8.bf16 %v1713
        %v2660 = vunpack.c.h.s8.bf16 %v1712
        %v2661 = vunpack.c.h.s8.bf16 %v1713
        %v2662 = vunpack.c.l.s8.bf16 %v1714
        %v2663 = vunpack.c.l.s8.bf16 %v1715
        %v2664 = vunpack.c.h.s8.bf16 %v1714
        %v2665 = vunpack.c.h.s8.bf16 %v1715
        %v2666 = vunpack.c.l.s8.bf16 %v1716
        %v2667 = vunpack.c.l.s8.bf16 %v1717
        %v2668 = vunpack.c.h.s8.bf16 %v1716
        %v2669 = vunpack.c.h.s8.bf16 %v1717
        %v2670 = vunpack.c.l.s8.bf16 %v1718
        %v2671 = vunpack.c.l.s8.bf16 %v1719
        %v2672 = vunpack.c.h.s8.bf16 %v1718
        %v2673 = vunpack.c.h.s8.bf16 %v1719
        %v2674 = vunpack.c.l.s8.bf16 %v1720
        %v2675 = vunpack.c.l.s8.bf16 %v1721
        %v2676 = vunpack.c.h.s8.bf16 %v1720
        %v2677 = vunpack.c.h.s8.bf16 %v1721
        %v2678 = vunpack.c.l.s8.bf16 %v1722
        %v2679 = vunpack.c.l.s8.bf16 %v1723
        %v2680 = vunpack.c.h.s8.bf16 %v1722
        %v2681 = vunpack.c.h.s8.bf16 %v1723
        %v2682 = vunpack.c.l.s8.bf16 %v1724
        %v2683 = vunpack.c.l.s8.bf16 %v1725
        %v2684 = vunpack.c.h.s8.bf16 %v1724
        %v2685 = vunpack.c.h.s8.bf16 %v1725
        %v2686 = vunpack.c.l.s8.bf16 %v1726
        %v2687 = vunpack.c.l.s8.bf16 %v1727
        %v2688 = vunpack.c.h.s8.bf16 %v1726
        %v2689 = vunpack.c.h.s8.bf16 %v1727
        %v2690 = vunpack.c.l.s8.bf16 %v1728
        %v2691 = vunpack.c.l.s8.bf16 %v1729
        %v2692 = vunpack.c.h.s8.bf16 %v1728
        %v2693 = vunpack.c.h.s8.bf16 %v1729
        %v2694 = vunpack.c.l.s8.bf16 %v1730
        %v2695 = vunpack.c.l.s8.bf16 %v1731
        %v2696 = vunpack.c.h.s8.bf16 %v1730
        %v2697 = vunpack.c.h.s8.bf16 %v1731
        %v2698 = vunpack.c.l.s8.bf16 %v1732
        %v2699 = vunpack.c.l.s8.bf16 %v1733
        %v2700 = vunpack.c.h.s8.bf16 %v1732
        %v2701 = vunpack.c.h.s8.bf16 %v1733
        %v2702 = vunpack.c.l.s8.bf16 %v1734
        %v2703 = vunpack.c.l.s8.bf16 %v1735
        %v2704 = vunpack.c.h.s8.bf16 %v1734
        %v2705 = vunpack.c.h.s8.bf16 %v1735
        %v2706 = vunpack.c.l.s8.bf16 %v1736
        %v2707 = vunpack.c.l.s8.bf16 %v1737
        %v2708 = vunpack.c.h.s8.bf16 %v1736
        %v2709 = vunpack.c.h.s8.bf16 %v1737
        %v2710 = vunpack.c.l.s8.bf16 %v1738
        %v2711 = vunpack.c.l.s8.bf16 %v1739
        %v2712 = vunpack.c.h.s8.bf16 %v1738
        %v2713 = vunpack.c.h.s8.bf16 %v1739
        %v2714 = vunpack.c.l.s8.bf16 %v1740
        %v2715 = vunpack.c.l.s8.bf16 %v1741
        %v2716 = vunpack.c.h.s8.bf16 %v1740
        %v2717 = vunpack.c.h.s8.bf16 %v1741
        %v2718 = vunpack.c.l.s8.bf16 %v1742
        %v2719 = vunpack.c.l.s8.bf16 %v1743
        %v2720 = vunpack.c.h.s8.bf16 %v1742
        %v2721 = vunpack.c.h.s8.bf16 %v1743
        %v2722 = vunpack.c.l.s8.bf16 %v1744
        %v2723 = vunpack.c.l.s8.bf16 %v1745
        %v2724 = vunpack.c.h.s8.bf16 %v1744
        %v2725 = vunpack.c.h.s8.bf16 %v1745
        %v2726 = vunpack.c.l.s8.bf16 %v1746
        %v2727 = vunpack.c.l.s8.bf16 %v1747
        %v2728 = vunpack.c.h.s8.bf16 %v1746
        %v2729 = vunpack.c.h.s8.bf16 %v1747
        %v2730 = vunpack.c.l.s8.bf16 %v1748
        %v2731 = vunpack.c.l.s8.bf16 %v1749
        %v2732 = vunpack.c.h.s8.bf16 %v1748
        %v2733 = vunpack.c.h.s8.bf16 %v1749
        %v2734 = vunpack.c.l.s8.bf16 %v1750
        %v2735 = vunpack.c.l.s8.bf16 %v1751
        %v2736 = vunpack.c.h.s8.bf16 %v1750
        %v2737 = vunpack.c.h.s8.bf16 %v1751
        %v2738 = vunpack.c.l.s8.bf16 %v1752
        %v2739 = vunpack.c.l.s8.bf16 %v1753
        %v2740 = vunpack.c.h.s8.bf16 %v1752
        %v2741 = vunpack.c.h.s8.bf16 %v1753
        %v2742 = vunpack.c.l.s8.bf16 %v1754
        %v2743 = vunpack.c.l.s8.bf16 %v1755
        %v2744 = vunpack.c.h.s8.bf16 %v1754
        %v2745 = vunpack.c.h.s8.bf16 %v1755
        %v2746 = vunpack.c.l.s8.bf16 %v1756
        %v2747 = vunpack.c.l.s8.bf16 %v1757
        %v2748 = vunpack.c.h.s8.bf16 %v1756
        %v2749 = vunpack.c.h.s8.bf16 %v1757
        %v2750 = vunpack.c.l.s8.bf16 %v1758
        %v2751 = vunpack.c.l.s8.bf16 %v1759
        %v2752 = vunpack.c.h.s8.bf16 %v1758
        %v2753 = vunpack.c.h.s8.bf16 %v1759
        %v2754 = vunpack.c.l.s8.bf16 %v1760
        %v2755 = vunpack.c.l.s8.bf16 %v1761
        %v2756 = vunpack.c.h.s8.bf16 %v1760
        %v2757 = vunpack.c.h.s8.bf16 %v1761
        %v2758 = vunpack.c.l.s8.bf16 %v1762
        %v2759 = vunpack.c.l.s8.bf16 %v1763
        %v2760 = vunpack.c.h.s8.bf16 %v1762
        %v2761 = vunpack.c.h.s8.bf16 %v1763
        %v2762 = vunpack.c.l.s8.bf16 %v1764
        %v2763 = vunpack.c.l.s8.bf16 %v1765
        %v2764 = vunpack.c.h.s8.bf16 %v1764
        %v2765 = vunpack.c.h.s8.bf16 %v1765
        %v2766 = vunpack.c.l.s8.bf16 %v1766
        %v2767 = vunpack.c.l.s8.bf16 %v1767
        %v2768 = vunpack.c.h.s8.bf16 %v1766
        %v2769 = vunpack.c.h.s8.bf16 %v1767
        %v2770 = vunpack.c.l.s8.bf16 %v1768
        %v2771 = vunpack.c.l.s8.bf16 %v1769
        %v2772 = vunpack.c.h.s8.bf16 %v1768
        %v2773 = vunpack.c.h.s8.bf16 %v1769
        %v2774 = vunpack.c.l.s8.bf16 %v1770
        %v2775 = vunpack.c.l.s8.bf16 %v1771
        %v2776 = vunpack.c.h.s8.bf16 %v1770
        %v2777 = vunpack.c.h.s8.bf16 %v1771
        %v2778 = vunpack.c.l.s8.bf16 %v1772
        %v2779 = vunpack.c.l.s8.bf16 %v1773
        %v2780 = vunpack.c.h.s8.bf16 %v1772
        %v2781 = vunpack.c.h.s8.bf16 %v1773
        %v2782 = vunpack.c.l.s8.bf16 %v1774
        %v2783 = vunpack.c.l.s8.bf16 %v1775
        %v2784 = vunpack.c.h.s8.bf16 %v1774
        %v2785 = vunpack.c.h.s8.bf16 %v1775
        %v2786 = vunpack.c.l.s8.bf16 %v1776
        %v2787 = vunpack.c.l.s8.bf16 %v1777
        %v2788 = vunpack.c.h.s8.bf16 %v1776
        %v2789 = vunpack.c.h.s8.bf16 %v1777
        %v2790 = vunpack.c.l.s8.bf16 %v1778
        %v2791 = vunpack.c.l.s8.bf16 %v1779
        %v2792 = vunpack.c.h.s8.bf16 %v1778
        %v2793 = vunpack.c.h.s8.bf16 %v1779
        %v2794 = vunpack.c.l.s8.bf16 %v1780
        %v2795 = vunpack.c.l.s8.bf16 %v1781
        %v2796 = vunpack.c.h.s8.bf16 %v1780
        %v2797 = vunpack.c.h.s8.bf16 %v1781
        %v2798 = vunpack.c.l.s8.bf16 %v1782
        %v2799 = vunpack.c.l.s8.bf16 %v1783
        %v2800 = vunpack.c.h.s8.bf16 %v1782
        %v2801 = vunpack.c.h.s8.bf16 %v1783
        %v2802 = vunpack.c.l.s8.bf16 %v1784
        %v2803 = vunpack.c.l.s8.bf16 %v1785
        %v2804 = vunpack.c.h.s8.bf16 %v1784
        %v2805 = vunpack.c.h.s8.bf16 %v1785
        %v2806 = vunpack.c.l.s8.bf16 %v1786
        %v2807 = vunpack.c.l.s8.bf16 %v1787
        %v2808 = vunpack.c.h.s8.bf16 %v1786
        %v2809 = vunpack.c.h.s8.bf16 %v1787
        %v2810 = vunpack.c.l.s8.bf16 %v1788
        %v2811 = vunpack.c.l.s8.bf16 %v1789
        %v2812 = vunpack.c.h.s8.bf16 %v1788
        %v2813 = vunpack.c.h.s8.bf16 %v1789
        %v2814 = vld [vmem:[%s0] sm:$0xff]
        %v2815 = vld [vmem:[%s0 + $0x8] sm:$0xff]
        %v2816 = vld [vmem:[%s0 + $0x10] sm:$0xff]
        %v2817 = vld [vmem:[%s0 + $0x18] sm:$0xff]
        %v2818 = vld [vmem:[%s0 + $0x20] sm:$0xff]
        %v2819 = vld [vmem:[%s0 + $0x28] sm:$0xff]
        %v2820 = vld [vmem:[%s0 + $0x30] sm:$0xff]
        %v2821 = vld [vmem:[%s0 + $0x38] sm:$0xff]
        %v2830 = vcombine.high %v2814, %v2814
        %v2832 = vunpack.c.l.s4 1966171168
        %v2833 = vunpack.c.0.s8 %v2832
        %v2834 = vlaneseq
        %v2835 = vshrl.u32 %v2834, 7
        %v2836 = vsub.s32 %v2833, %v2835
        %v2837 = vrot.slane %v2814, %v2836
        %v2839 = vunpack.c.l.s4 1966171168
        %v2840 = vunpack.c.0.s8 %v2839
        %v2841 = vlaneseq
        %v2842 = vshrl.u32 %v2841, 7
        %v2843 = vsub.s32 %v2840, %v2842
        %v2844 = vrot.slane %v2830, %v2843
        %v2845 = vcombine.high %v2837, %v2837
        %v2846 = vcombine.high %v2844, %v2844
        %v2848 = vunpack.c.l.s4 1966171168
        %v2849 = vunpack.c.0.s8 %v2848
        %v2850 = vlaneseq
        %v2851 = vshrl.u32 %v2850, 7
        %v2852 = vsub.s32 %v2849, %v2851
        %v2853 = vrot.slane %v2837, %v2852
        %v2855 = vunpack.c.l.s4 1966171168
        %v2856 = vunpack.c.0.s8 %v2855
        %v2857 = vlaneseq
        %v2858 = vshrl.u32 %v2857, 7
        %v2859 = vsub.s32 %v2856, %v2858
        %v2860 = vrot.slane %v2844, %v2859
        %v2862 = vunpack.c.l.s4 1966171168
        %v2863 = vunpack.c.0.s8 %v2862
        %v2864 = vlaneseq
        %v2865 = vshrl.u32 %v2864, 7
        %v2866 = vsub.s32 %v2863, %v2865
        %v2867 = vrot.slane %v2845, %v2866
        %v2869 = vunpack.c.l.s4 1966171168
        %v2870 = vunpack.c.0.s8 %v2869
        %v2871 = vlaneseq
        %v2872 = vshrl.u32 %v2871, 7
        %v2873 = vsub.s32 %v2870, %v2872
        %v2874 = vrot.slane %v2846, %v2873
        %v2875 = vcombine.high %v2853, %v2853
        %v2876 = vcombine.high %v2860, %v2860
        %v2877 = vcombine.high %v2867, %v2867
        %v2878 = vcombine.high %v2874, %v2874
        %v2879 = vcombine.high %v2815, %v2815
        %v2881 = vunpack.c.l.s4 1966171168
        %v2882 = vunpack.c.0.s8 %v2881
        %v2883 = vlaneseq
        %v2884 = vshrl.u32 %v2883, 7
        %v2885 = vsub.s32 %v2882, %v2884
        %v2886 = vrot.slane %v2815, %v2885
        %v2888 = vunpack.c.l.s4 1966171168
        %v2889 = vunpack.c.0.s8 %v2888
        %v2890 = vlaneseq
        %v2891 = vshrl.u32 %v2890, 7
        %v2892 = vsub.s32 %v2889, %v2891
        %v2893 = vrot.slane %v2879, %v2892
        %v2894 = vcombine.high %v2886, %v2886
        %v2895 = vcombine.high %v2893, %v2893
        %v2897 = vunpack.c.l.s4 1966171168
        %v2898 = vunpack.c.0.s8 %v2897
        %v2899 = vlaneseq
        %v2900 = vshrl.u32 %v2899, 7
        %v2901 = vsub.s32 %v2898, %v2900
        %v2902 = vrot.slane %v2886, %v2901
        %v2904 = vunpack.c.l.s4 1966171168
        %v2905 = vunpack.c.0.s8 %v2904
        %v2906 = vlaneseq
        %v2907 = vshrl.u32 %v2906, 7
        %v2908 = vsub.s32 %v2905, %v2907
        %v2909 = vrot.slane %v2893, %v2908
        %v2911 = vunpack.c.l.s4 1966171168
        %v2912 = vunpack.c.0.s8 %v2911
        %v2913 = vlaneseq
        %v2914 = vshrl.u32 %v2913, 7
        %v2915 = vsub.s32 %v2912, %v2914
        %v2916 = vrot.slane %v2894, %v2915
        %v2918 = vunpack.c.l.s4 1966171168
        %v2919 = vunpack.c.0.s8 %v2918
        %v2920 = vlaneseq
        %v2921 = vshrl.u32 %v2920, 7
        %v2922 = vsub.s32 %v2919, %v2921
        %v2923 = vrot.slane %v2895, %v2922
        %v2924 = vcombine.high %v2902, %v2902
        %v2925 = vcombine.high %v2909, %v2909
        %v2926 = vcombine.high %v2916, %v2916
        %v2927 = vcombine.high %v2923, %v2923
        %v2928 = vcombine.high %v2816, %v2816
        %v2930 = vunpack.c.l.s4 1966171168
        %v2931 = vunpack.c.0.s8 %v2930
        %v2932 = vlaneseq
        %v2933 = vshrl.u32 %v2932, 7
        %v2934 = vsub.s32 %v2931, %v2933
        %v2935 = vrot.slane %v2816, %v2934
        %v2937 = vunpack.c.l.s4 1966171168
        %v2938 = vunpack.c.0.s8 %v2937
        %v2939 = vlaneseq
        %v2940 = vshrl.u32 %v2939, 7
        %v2941 = vsub.s32 %v2938, %v2940
        %v2942 = vrot.slane %v2928, %v2941
        %v2943 = vcombine.high %v2935, %v2935
        %v2944 = vcombine.high %v2942, %v2942
        %v2946 = vunpack.c.l.s4 1966171168
        %v2947 = vunpack.c.0.s8 %v2946
        %v2948 = vlaneseq
        %v2949 = vshrl.u32 %v2948, 7
        %v2950 = vsub.s32 %v2947, %v2949
        %v2951 = vrot.slane %v2935, %v2950
        %v2953 = vunpack.c.l.s4 1966171168
        %v2954 = vunpack.c.0.s8 %v2953
        %v2955 = vlaneseq
        %v2956 = vshrl.u32 %v2955, 7
        %v2957 = vsub.s32 %v2954, %v2956
        %v2958 = vrot.slane %v2942, %v2957
        %v2960 = vunpack.c.l.s4 1966171168
        %v2961 = vunpack.c.0.s8 %v2960
        %v2962 = vlaneseq
        %v2963 = vshrl.u32 %v2962, 7
        %v2964 = vsub.s32 %v2961, %v2963
        %v2965 = vrot.slane %v2943, %v2964
        %v2967 = vunpack.c.l.s4 1966171168
        %v2968 = vunpack.c.0.s8 %v2967
        %v2969 = vlaneseq
        %v2970 = vshrl.u32 %v2969, 7
        %v2971 = vsub.s32 %v2968, %v2970
        %v2972 = vrot.slane %v2944, %v2971
        %v2973 = vcombine.high %v2951, %v2951
        %v2974 = vcombine.high %v2958, %v2958
        %v2975 = vcombine.high %v2965, %v2965
        %v2976 = vcombine.high %v2972, %v2972
        %v2977 = vcombine.high %v2817, %v2817
        %v2979 = vunpack.c.l.s4 1966171168
        %v2980 = vunpack.c.0.s8 %v2979
        %v2981 = vlaneseq
        %v2982 = vshrl.u32 %v2981, 7
        %v2983 = vsub.s32 %v2980, %v2982
        %v2984 = vrot.slane %v2817, %v2983
        %v2986 = vunpack.c.l.s4 1966171168
        %v2987 = vunpack.c.0.s8 %v2986
        %v2988 = vlaneseq
        %v2989 = vshrl.u32 %v2988, 7
        %v2990 = vsub.s32 %v2987, %v2989
        %v2991 = vrot.slane %v2977, %v2990
        %v2992 = vcombine.high %v2984, %v2984
        %v2993 = vcombine.high %v2991, %v2991
        %v2995 = vunpack.c.l.s4 1966171168
        %v2996 = vunpack.c.0.s8 %v2995
        %v2997 = vlaneseq
        %v2998 = vshrl.u32 %v2997, 7
        %v2999 = vsub.s32 %v2996, %v2998
        %v3000 = vrot.slane %v2984, %v2999
        %v3002 = vunpack.c.l.s4 1966171168
        %v3003 = vunpack.c.0.s8 %v3002
        %v3004 = vlaneseq
        %v3005 = vshrl.u32 %v3004, 7
        %v3006 = vsub.s32 %v3003, %v3005
        %v3007 = vrot.slane %v2991, %v3006
        %v3009 = vunpack.c.l.s4 1966171168
        %v3010 = vunpack.c.0.s8 %v3009
        %v3011 = vlaneseq
        %v3012 = vshrl.u32 %v3011, 7
        %v3013 = vsub.s32 %v3010, %v3012
        %v3014 = vrot.slane %v2992, %v3013
        %v3016 = vunpack.c.l.s4 1966171168
        %v3017 = vunpack.c.0.s8 %v3016
        %v3018 = vlaneseq
        %v3019 = vshrl.u32 %v3018, 7
        %v3020 = vsub.s32 %v3017, %v3019
        %v3021 = vrot.slane %v2993, %v3020
        %v3022 = vcombine.high %v3000, %v3000
        %v3023 = vcombine.high %v3007, %v3007
        %v3024 = vcombine.high %v3014, %v3014
        %v3025 = vcombine.high %v3021, %v3021
        %v3026 = vcombine.high %v2818, %v2818
        %v3028 = vunpack.c.l.s4 1966171168
        %v3029 = vunpack.c.0.s8 %v3028
        %v3030 = vlaneseq
        %v3031 = vshrl.u32 %v3030, 7
        %v3032 = vsub.s32 %v3029, %v3031
        %v3033 = vrot.slane %v2818, %v3032
        %v3035 = vunpack.c.l.s4 1966171168
        %v3036 = vunpack.c.0.s8 %v3035
        %v3037 = vlaneseq
        %v3038 = vshrl.u32 %v3037, 7
        %v3039 = vsub.s32 %v3036, %v3038
        %v3040 = vrot.slane %v3026, %v3039
        %v3041 = vcombine.high %v3033, %v3033
        %v3042 = vcombine.high %v3040, %v3040
        %v3044 = vunpack.c.l.s4 1966171168
        %v3045 = vunpack.c.0.s8 %v3044
        %v3046 = vlaneseq
        %v3047 = vshrl.u32 %v3046, 7
        %v3048 = vsub.s32 %v3045, %v3047
        %v3049 = vrot.slane %v3033, %v3048
        %v3051 = vunpack.c.l.s4 1966171168
        %v3052 = vunpack.c.0.s8 %v3051
        %v3053 = vlaneseq
        %v3054 = vshrl.u32 %v3053, 7
        %v3055 = vsub.s32 %v3052, %v3054
        %v3056 = vrot.slane %v3040, %v3055
        %v3058 = vunpack.c.l.s4 1966171168
        %v3059 = vunpack.c.0.s8 %v3058
        %v3060 = vlaneseq
        %v3061 = vshrl.u32 %v3060, 7
        %v3062 = vsub.s32 %v3059, %v3061
        %v3063 = vrot.slane %v3041, %v3062
        %v3065 = vunpack.c.l.s4 1966171168
        %v3066 = vunpack.c.0.s8 %v3065
        %v3067 = vlaneseq
        %v3068 = vshrl.u32 %v3067, 7
        %v3069 = vsub.s32 %v3066, %v3068
        %v3070 = vrot.slane %v3042, %v3069
        %v3071 = vcombine.high %v3049, %v3049
        %v3072 = vcombine.high %v3056, %v3056
        %v3073 = vcombine.high %v3063, %v3063
        %v3074 = vcombine.high %v3070, %v3070
        %v3075 = vcombine.high %v2819, %v2819
        %v3077 = vunpack.c.l.s4 1966171168
        %v3078 = vunpack.c.0.s8 %v3077
        %v3079 = vlaneseq
        %v3080 = vshrl.u32 %v3079, 7
        %v3081 = vsub.s32 %v3078, %v3080
        %v3082 = vrot.slane %v2819, %v3081
        %v3084 = vunpack.c.l.s4 1966171168
        %v3085 = vunpack.c.0.s8 %v3084
        %v3086 = vlaneseq
        %v3087 = vshrl.u32 %v3086, 7
        %v3088 = vsub.s32 %v3085, %v3087
        %v3089 = vrot.slane %v3075, %v3088
        %v3090 = vcombine.high %v3082, %v3082
        %v3091 = vcombine.high %v3089, %v3089
        %v3093 = vunpack.c.l.s4 1966171168
        %v3094 = vunpack.c.0.s8 %v3093
        %v3095 = vlaneseq
        %v3096 = vshrl.u32 %v3095, 7
        %v3097 = vsub.s32 %v3094, %v3096
        %v3098 = vrot.slane %v3082, %v3097
        %v3100 = vunpack.c.l.s4 1966171168
        %v3101 = vunpack.c.0.s8 %v3100
        %v3102 = vlaneseq
        %v3103 = vshrl.u32 %v3102, 7
        %v3104 = vsub.s32 %v3101, %v3103
        %v3105 = vrot.slane %v3089, %v3104
        %v3107 = vunpack.c.l.s4 1966171168
        %v3108 = vunpack.c.0.s8 %v3107
        %v3109 = vlaneseq
        %v3110 = vshrl.u32 %v3109, 7
        %v3111 = vsub.s32 %v3108, %v3110
        %v3112 = vrot.slane %v3090, %v3111
        %v3114 = vunpack.c.l.s4 1966171168
        %v3115 = vunpack.c.0.s8 %v3114
        %v3116 = vlaneseq
        %v3117 = vshrl.u32 %v3116, 7
        %v3118 = vsub.s32 %v3115, %v3117
        %v3119 = vrot.slane %v3091, %v3118
        %v3120 = vcombine.high %v3098, %v3098
        %v3121 = vcombine.high %v3105, %v3105
        %v3122 = vcombine.high %v3112, %v3112
        %v3123 = vcombine.high %v3119, %v3119
        %v3124 = vcombine.high %v2820, %v2820
        %v3126 = vunpack.c.l.s4 1966171168
        %v3127 = vunpack.c.0.s8 %v3126
        %v3128 = vlaneseq
        %v3129 = vshrl.u32 %v3128, 7
        %v3130 = vsub.s32 %v3127, %v3129
        %v3131 = vrot.slane %v2820, %v3130
        %v3133 = vunpack.c.l.s4 1966171168
        %v3134 = vunpack.c.0.s8 %v3133
        %v3135 = vlaneseq
        %v3136 = vshrl.u32 %v3135, 7
        %v3137 = vsub.s32 %v3134, %v3136
        %v3138 = vrot.slane %v3124, %v3137
        %v3139 = vcombine.high %v3131, %v3131
        %v3140 = vcombine.high %v3138, %v3138
        %v3142 = vunpack.c.l.s4 1966171168
        %v3143 = vunpack.c.0.s8 %v3142
        %v3144 = vlaneseq
        %v3145 = vshrl.u32 %v3144, 7
        %v3146 = vsub.s32 %v3143, %v3145
        %v3147 = vrot.slane %v3131, %v3146
        %v3149 = vunpack.c.l.s4 1966171168
        %v3150 = vunpack.c.0.s8 %v3149
        %v3151 = vlaneseq
        %v3152 = vshrl.u32 %v3151, 7
        %v3153 = vsub.s32 %v3150, %v3152
        %v3154 = vrot.slane %v3138, %v3153
        %v3156 = vunpack.c.l.s4 1966171168
        %v3157 = vunpack.c.0.s8 %v3156
        %v3158 = vlaneseq
        %v3159 = vshrl.u32 %v3158, 7
        %v3160 = vsub.s32 %v3157, %v3159
        %v3161 = vrot.slane %v3139, %v3160
        %v3163 = vunpack.c.l.s4 1966171168
        %v3164 = vunpack.c.0.s8 %v3163
        %v3165 = vlaneseq
        %v3166 = vshrl.u32 %v3165, 7
        %v3167 = vsub.s32 %v3164, %v3166
        %v3168 = vrot.slane %v3140, %v3167
        %v3169 = vcombine.high %v3147, %v3147
        %v3170 = vcombine.high %v3154, %v3154
        %v3171 = vcombine.high %v3161, %v3161
        %v3172 = vcombine.high %v3168, %v3168
        %v3173 = vcombine.high %v2821, %v2821
        %v3175 = vunpack.c.l.s4 1966171168
        %v3176 = vunpack.c.0.s8 %v3175
        %v3177 = vlaneseq
        %v3178 = vshrl.u32 %v3177, 7
        %v3179 = vsub.s32 %v3176, %v3178
        %v3180 = vrot.slane %v2821, %v3179
        %v3182 = vunpack.c.l.s4 1966171168
        %v3183 = vunpack.c.0.s8 %v3182
        %v3184 = vlaneseq
        %v3185 = vshrl.u32 %v3184, 7
        %v3186 = vsub.s32 %v3183, %v3185
        %v3187 = vrot.slane %v3173, %v3186
        %v3188 = vcombine.high %v3180, %v3180
        %v3189 = vcombine.high %v3187, %v3187
        %v3191 = vunpack.c.l.s4 1966171168
        %v3192 = vunpack.c.0.s8 %v3191
        %v3193 = vlaneseq
        %v3194 = vshrl.u32 %v3193, 7
        %v3195 = vsub.s32 %v3192, %v3194
        %v3196 = vrot.slane %v3180, %v3195
        %v3198 = vunpack.c.l.s4 1966171168
        %v3199 = vunpack.c.0.s8 %v3198
        %v3200 = vlaneseq
        %v3201 = vshrl.u32 %v3200, 7
        %v3202 = vsub.s32 %v3199, %v3201
        %v3203 = vrot.slane %v3187, %v3202
        %v3205 = vunpack.c.l.s4 1966171168
        %v3206 = vunpack.c.0.s8 %v3205
        %v3207 = vlaneseq
        %v3208 = vshrl.u32 %v3207, 7
        %v3209 = vsub.s32 %v3206, %v3208
        %v3210 = vrot.slane %v3188, %v3209
        %v3212 = vunpack.c.l.s4 1966171168
        %v3213 = vunpack.c.0.s8 %v3212
        %v3214 = vlaneseq
        %v3215 = vshrl.u32 %v3214, 7
        %v3216 = vsub.s32 %v3213, %v3215
        %v3217 = vrot.slane %v3189, %v3216
        %v3218 = vcombine.high %v3196, %v3196
        %v3219 = vcombine.high %v3203, %v3203
        %v3220 = vcombine.high %v3210, %v3210
        %v3221 = vcombine.high %v3217, %v3217
        %3286 = vmatprep.subr.bf16.mxu0 %v1791
        %3287 = vmatpush1.bf16.msra.mxu0 %v1790
        %3288 = vmatprep.subr.bf16.mxu0 %v1793
        %3289 = vmatpush1.bf16.msra.mxu0 %v1792
        %3290 = vmatprep.subr.bf16.mxu0 %v1795
        %3291 = vmatpush1.bf16.msra.mxu0 %v1794
        %3292 = vmatprep.subr.bf16.mxu0 %v1797
        %3293 = vmatpush1.bf16.msra.mxu0 %v1796
        %3294 = vmatprep.subr.bf16.mxu0 %v1799
        %3295 = vmatpush1.bf16.msra.mxu0 %v1798
        %3296 = vmatprep.subr.bf16.mxu0 %v1801
        %3297 = vmatpush1.bf16.msra.mxu0 %v1800
        %3298 = vmatprep.subr.bf16.mxu0 %v1803
        %3299 = vmatpush1.bf16.msra.mxu0 %v1802
        %3300 = vmatprep.subr.bf16.mxu0 %v1805
        %3301 = vmatpush1.bf16.msra.mxu0 %v1804
        %3302 = vmatprep.subr.bf16.mxu0 %v1807
        %3303 = vmatpush1.bf16.msra.mxu0 %v1806
        %3304 = vmatprep.subr.bf16.mxu0 %v1809
        %3305 = vmatpush1.bf16.msra.mxu0 %v1808
        %3306 = vmatprep.subr.bf16.mxu0 %v1811
        %3307 = vmatpush1.bf16.msra.mxu0 %v1810
        %3308 = vmatprep.subr.bf16.mxu0 %v1813
        %3309 = vmatpush1.bf16.msra.mxu0 %v1812
        %3310 = vmatprep.subr.bf16.mxu0 %v1815
        %3311 = vmatpush1.bf16.msra.mxu0 %v1814
        %3312 = vmatprep.subr.bf16.mxu0 %v1817
        %3313 = vmatpush1.bf16.msra.mxu0 %v1816
        %3314 = vmatprep.subr.bf16.mxu0 %v1819
        %3315 = vmatpush1.bf16.msra.mxu0 %v1818
        %3316 = vmatprep.subr.bf16.mxu0 %v1821
        %3317 = vmatpush1.bf16.msra.mxu0 %v1820
        %3318 = vmatprep.mubr.bf16.mxu0 %v2867
        %3319 = vmatmul.mubr.bf16.gmra.mrb[0].mxu0 %v2853
        %v3320 = vpop.f32.mrb[0].mxu0
        %v3321 = vadd.f32 0.0, %v3320
        %v3322 = vpop.f32.mrb[0].mxu0
        %v3323 = vadd.f32 0.0, %v3322
        %v3324 = vpop.f32.mrb[0].mxu0
        %v3325 = vpop.f32.mrb[0].mxu0
        %3326 = vdwg.mxu0
        %3327 = vmatprep.subr.bf16.mxu0 %v1823
        %3328 = vmatpush1.bf16.msra.mxu0 %v1822
        %3329 = vmatprep.subr.bf16.mxu0 %v1825
        %3330 = vmatpush1.bf16.msra.mxu0 %v1824
        %3331 = vmatprep.subr.bf16.mxu0 %v1827
        %3332 = vmatpush1.bf16.msra.mxu0 %v1826
        %3333 = vmatprep.subr.bf16.mxu0 %v1829
        %3334 = vmatpush1.bf16.msra.mxu0 %v1828
        %3335 = vmatprep.subr.bf16.mxu0 %v1831
        %3336 = vmatpush1.bf16.msra.mxu0 %v1830
        %3337 = vmatprep.subr.bf16.mxu0 %v1833
        %3338 = vmatpush1.bf16.msra.mxu0 %v1832
        %3339 = vmatprep.subr.bf16.mxu0 %v1835
        %3340 = vmatpush1.bf16.msra.mxu0 %v1834
        %3341 = vmatprep.subr.bf16.mxu0 %v1837
        %3342 = vmatpush1.bf16.msra.mxu0 %v1836
        %3343 = vmatprep.subr.bf16.mxu0 %v1839
        %3344 = vmatpush1.bf16.msra.mxu0 %v1838
        %3345 = vmatprep.subr.bf16.mxu0 %v1841
        %3346 = vmatpush1.bf16.msra.mxu0 %v1840
        %3347 = vmatprep.subr.bf16.mxu0 %v1843
        %3348 = vmatpush1.bf16.msra.mxu0 %v1842
        %3349 = vmatprep.subr.bf16.mxu0 %v1845
        %3350 = vmatpush1.bf16.msra.mxu0 %v1844
        %3351 = vmatprep.subr.bf16.mxu0 %v1847
        %3352 = vmatpush1.bf16.msra.mxu0 %v1846
        %3353 = vmatprep.subr.bf16.mxu0 %v1849
        %3354 = vmatpush1.bf16.msra.mxu0 %v1848
        %3355 = vmatprep.subr.bf16.mxu0 %v1851
        %3356 = vmatpush1.bf16.msra.mxu0 %v1850
        %3357 = vmatprep.subr.bf16.mxu0 %v1853
        %3358 = vmatpush1.bf16.msra.mxu0 %v1852
        %3359 = vmatprep.mubr.bf16.mxu0 %v2877
        %3360 = vmatmul.mubr.bf16.gmra.mrb[0].mxu0 %v2875
        %v3361 = vpop.f32.mrb[0].mxu0
        %v3362 = vadd.f32 %v3321, %v3361
        %v3363 = vpop.f32.mrb[0].mxu0
        %v3364 = vadd.f32 %v3323, %v3363
        %v3365 = vpop.f32.mrb[0].mxu0
        %v3366 = vpop.f32.mrb[0].mxu0
        %3367 = vdwg.mxu0
        %3368 = vmatprep.subr.bf16.mxu0 %v1855
        %3369 = vmatpush1.bf16.msra.mxu0 %v1854
        %3370 = vmatprep.subr.bf16.mxu0 %v1857
        %3371 = vmatpush1.bf16.msra.mxu0 %v1856
        %3372 = vmatprep.subr.bf16.mxu0 %v1859
        %3373 = vmatpush1.bf16.msra.mxu0 %v1858
        %3374 = vmatprep.subr.bf16.mxu0 %v1861
        %3375 = vmatpush1.bf16.msra.mxu0 %v1860
        %3376 = vmatprep.subr.bf16.mxu0 %v1863
        %3377 = vmatpush1.bf16.msra.mxu0 %v1862
        %3378 = vmatprep.subr.bf16.mxu0 %v1865
        %3379 = vmatpush1.bf16.msra.mxu0 %v1864
        %3380 = vmatprep.subr.bf16.mxu0 %v1867
        %3381 = vmatpush1.bf16.msra.mxu0 %v1866
        %3382 = vmatprep.subr.bf16.mxu0 %v1869
        %3383 = vmatpush1.bf16.msra.mxu0 %v1868
        %3384 = vmatprep.subr.bf16.mxu0 %v1871
        %3385 = vmatpush1.bf16.msra.mxu0 %v1870
        %3386 = vmatprep.subr.bf16.mxu0 %v1873
        %3387 = vmatpush1.bf16.msra.mxu0 %v1872
        %3388 = vmatprep.subr.bf16.mxu0 %v1875
        %3389 = vmatpush1.bf16.msra.mxu0 %v1874
        %3390 = vmatprep.subr.bf16.mxu0 %v1877
        %3391 = vmatpush1.bf16.msra.mxu0 %v1876
        %3392 = vmatprep.subr.bf16.mxu0 %v1879
        %3393 = vmatpush1.bf16.msra.mxu0 %v1878
        %3394 = vmatprep.subr.bf16.mxu0 %v1881
        %3395 = vmatpush1.bf16.msra.mxu0 %v1880
        %3396 = vmatprep.subr.bf16.mxu0 %v1883
        %3397 = vmatpush1.bf16.msra.mxu0 %v1882
        %3398 = vmatprep.subr.bf16.mxu0 %v1885
        %3399 = vmatpush1.bf16.msra.mxu0 %v1884
        %3400 = vmatprep.mubr.bf16.mxu0 %v2874
        %3401 = vmatmul.mubr.bf16.gmra.mrb[0].mxu0 %v2860
        %v3402 = vpop.f32.mrb[0].mxu0
        %v3403 = vadd.f32 %v3362, %v3402
        %v3404 = vpop.f32.mrb[0].mxu0
        %v3405 = vadd.f32 %v3364, %v3404
        %v3406 = vpop.f32.mrb[0].mxu0
        %v3407 = vpop.f32.mrb[0].mxu0
        %3408 = vdwg.mxu0
        %3409 = vmatprep.subr.bf16.mxu0 %v1887
        %3410 = vmatpush1.bf16.msra.mxu0 %v1886
        %3411 = vmatprep.subr.bf16.mxu0 %v1889
        %3412 = vmatpush1.bf16.msra.mxu0 %v1888
        %3413 = vmatprep.subr.bf16.mxu0 %v1891
        %3414 = vmatpush1.bf16.msra.mxu0 %v1890
        %3415 = vmatprep.subr.bf16.mxu0 %v1893
        %3416 = vmatpush1.bf16.msra.mxu0 %v1892
        %3417 = vmatprep.subr.bf16.mxu0 %v1895
        %3418 = vmatpush1.bf16.msra.mxu0 %v1894
        %3419 = vmatprep.subr.bf16.mxu0 %v1897
        %3420 = vmatpush1.bf16.msra.mxu0 %v1896
        %3421 = vmatprep.subr.bf16.mxu0 %v1899
        %3422 = vmatpush1.bf16.msra.mxu0 %v1898
        %3423 = vmatprep.subr.bf16.mxu0 %v1901
        %3424 = vmatpush1.bf16.msra.mxu0 %v1900
        %3425 = vmatprep.subr.bf16.mxu0 %v1903
        %3426 = vmatpush1.bf16.msra.mxu0 %v1902
        %3427 = vmatprep.subr.bf16.mxu0 %v1905
        %3428 = vmatpush1.bf16.msra.mxu0 %v1904
        %3429 = vmatprep.subr.bf16.mxu0 %v1907
        %3430 = vmatpush1.bf16.msra.mxu0 %v1906
        %3431 = vmatprep.subr.bf16.mxu0 %v1909
        %3432 = vmatpush1.bf16.msra.mxu0 %v1908
        %3433 = vmatprep.subr.bf16.mxu0 %v1911
        %3434 = vmatpush1.bf16.msra.mxu0 %v1910
        %3435 = vmatprep.subr.bf16.mxu0 %v1913
        %3436 = vmatpush1.bf16.msra.mxu0 %v1912
        %3437 = vmatprep.subr.bf16.mxu0 %v1915
        %3438 = vmatpush1.bf16.msra.mxu0 %v1914
        %3439 = vmatprep.subr.bf16.mxu0 %v1917
        %3440 = vmatpush1.bf16.msra.mxu0 %v1916
        %3441 = vmatprep.mubr.bf16.mxu0 %v2878
        %3442 = vmatmul.mubr.bf16.gmra.mrb[0].mxu0 %v2876
        %v3443 = vpop.f32.mrb[0].mxu0
        %v3444 = vadd.f32 %v3403, %v3443
        %v3445 = vpop.f32.mrb[0].mxu0
        %v3446 = vadd.f32 %v3405, %v3445
        %v3447 = vpop.f32.mrb[0].mxu0
        %v3448 = vpop.f32.mrb[0].mxu0
        %3449 = vdwg.mxu0
        %3450 = vmatprep.subr.bf16.mxu0 %v1919
        %3451 = vmatpush1.bf16.msra.mxu0 %v1918
        %3452 = vmatprep.subr.bf16.mxu0 %v1921
        %3453 = vmatpush1.bf16.msra.mxu0 %v1920
        %3454 = vmatprep.subr.bf16.mxu0 %v1923
        %3455 = vmatpush1.bf16.msra.mxu0 %v1922
        %3456 = vmatprep.subr.bf16.mxu0 %v1925
        %3457 = vmatpush1.bf16.msra.mxu0 %v1924
        %3458 = vmatprep.subr.bf16.mxu0 %v1927
        %3459 = vmatpush1.bf16.msra.mxu0 %v1926
        %3460 = vmatprep.subr.bf16.mxu0 %v1929
        %3461 = vmatpush1.bf16.msra.mxu0 %v1928
        %3462 = vmatprep.subr.bf16.mxu0 %v1931
        %3463 = vmatpush1.bf16.msra.mxu0 %v1930
        %3464 = vmatprep.subr.bf16.mxu0 %v1933
        %3465 = vmatpush1.bf16.msra.mxu0 %v1932
        %3466 = vmatprep.subr.bf16.mxu0 %v1935
        %3467 = vmatpush1.bf16.msra.mxu0 %v1934
        %3468 = vmatprep.subr.bf16.mxu0 %v1937
        %3469 = vmatpush1.bf16.msra.mxu0 %v1936
        %3470 = vmatprep.subr.bf16.mxu0 %v1939
        %3471 = vmatpush1.bf16.msra.mxu0 %v1938
        %3472 = vmatprep.subr.bf16.mxu0 %v1941
        %3473 = vmatpush1.bf16.msra.mxu0 %v1940
        %3474 = vmatprep.subr.bf16.mxu0 %v1943
        %3475 = vmatpush1.bf16.msra.mxu0 %v1942
        %3476 = vmatprep.subr.bf16.mxu0 %v1945
        %3477 = vmatpush1.bf16.msra.mxu0 %v1944
        %3478 = vmatprep.subr.bf16.mxu0 %v1947
        %3479 = vmatpush1.bf16.msra.mxu0 %v1946
        %3480 = vmatprep.subr.bf16.mxu0 %v1949
        %3481 = vmatpush1.bf16.msra.mxu0 %v1948
        %3482 = vmatprep.mubr.bf16.mxu0 %v2916
        %3483 = vmatmul.mubr.bf16.gmra.mrb[0].mxu0 %v2902
        %v3484 = vpop.f32.mrb[0].mxu0
        %v3485 = vadd.f32 %v3444, %v3484
        %v3486 = vpop.f32.mrb[0].mxu0
        %v3487 = vadd.f32 %v3446, %v3486
        %v3488 = vpop.f32.mrb[0].mxu0
        %v3489 = vpop.f32.mrb[0].mxu0
        %3490 = vdwg.mxu0
        %3491 = vmatprep.subr.bf16.mxu0 %v1951
        %3492 = vmatpush1.bf16.msra.mxu0 %v1950
        %3493 = vmatprep.subr.bf16.mxu0 %v1953
        %3494 = vmatpush1.bf16.msra.mxu0 %v1952
        %3495 = vmatprep.subr.bf16.mxu0 %v1955
        %3496 = vmatpush1.bf16.msra.mxu0 %v1954
        %3497 = vmatprep.subr.bf16.mxu0 %v1957
        %3498 = vmatpush1.bf16.msra.mxu0 %v1956
        %3499 = vmatprep.subr.bf16.mxu0 %v1959
        %3500 = vmatpush1.bf16.msra.mxu0 %v1958
        %3501 = vmatprep.subr.bf16.mxu0 %v1961
        %3502 = vmatpush1.bf16.msra.mxu0 %v1960
        %3503 = vmatprep.subr.bf16.mxu0 %v1963
        %3504 = vmatpush1.bf16.msra.mxu0 %v1962
        %3505 = vmatprep.subr.bf16.mxu0 %v1965
        %3506 = vmatpush1.bf16.msra.mxu0 %v1964
        %3507 = vmatprep.subr.bf16.mxu0 %v1967
        %3508 = vmatpush1.bf16.msra.mxu0 %v1966
        %3509 = vmatprep.subr.bf16.mxu0 %v1969
        %3510 = vmatpush1.bf16.msra.mxu0 %v1968
        %3511 = vmatprep.subr.bf16.mxu0 %v1971
        %3512 = vmatpush1.bf16.msra.mxu0 %v1970
        %3513 = vmatprep.subr.bf16.mxu0 %v1973
        %3514 = vmatpush1.bf16.msra.mxu0 %v1972
        %3515 = vmatprep.subr.bf16.mxu0 %v1975
        %3516 = vmatpush1.bf16.msra.mxu0 %v1974
        %3517 = vmatprep.subr.bf16.mxu0 %v1977
        %3518 = vmatpush1.bf16.msra.mxu0 %v1976
        %3519 = vmatprep.subr.bf16.mxu0 %v1979
        %3520 = vmatpush1.bf16.msra.mxu0 %v1978
        %3521 = vmatprep.subr.bf16.mxu0 %v1981
        %3522 = vmatpush1.bf16.msra.mxu0 %v1980
        %3523 = vmatprep.mubr.bf16.mxu0 %v2926
        %3524 = vmatmul.mubr.bf16.gmra.mrb[0].mxu0 %v2924
        %v3525 = vpop.f32.mrb[0].mxu0
        %v3526 = vadd.f32 %v3485, %v3525
        %v3527 = vpop.f32.mrb[0].mxu0
        %v3528 = vadd.f32 %v3487, %v3527
        %v3529 = vpop.f32.mrb[0].mxu0
        %v3530 = vpop.f32.mrb[0].mxu0
        %3531 = vdwg.mxu0
        %3532 = vmatprep.subr.bf16.mxu0 %v1983
        %3533 = vmatpush1.bf16.msra.mxu0 %v1982
        %3534 = vmatprep.subr.bf16.mxu0 %v1985
        %3535 = vmatpush1.bf16.msra.mxu0 %v1984
        %3536 = vmatprep.subr.bf16.mxu0 %v1987
        %3537 = vmatpush1.bf16.msra.mxu0 %v1986
        %3538 = vmatprep.subr.bf16.mxu0 %v1989
        %3539 = vmatpush1.bf16.msra.mxu0 %v1988
        %3540 = vmatprep.subr.bf16.mxu0 %v1991
        %3541 = vmatpush1.bf16.msra.mxu0 %v1990
        %3542 = vmatprep.subr.bf16.mxu0 %v1993
        %3543 = vmatpush1.bf16.msra.mxu0 %v1992
        %3544 = vmatprep.subr.bf16.mxu0 %v1995
        %3545 = vmatpush1.bf16.msra.mxu0 %v1994
        %3546 = vmatprep.subr.bf16.mxu0 %v1997
        %3547 = vmatpush1.bf16.msra.mxu0 %v1996
        %3548 = vmatprep.subr.bf16.mxu0 %v1999
        %3549 = vmatpush1.bf16.msra.mxu0 %v1998
        %3550 = vmatprep.subr.bf16.mxu0 %v2001
        %3551 = vmatpush1.bf16.msra.mxu0 %v2000
        %3552 = vmatprep.subr.bf16.mxu0 %v2003
        %3553 = vmatpush1.bf16.msra.mxu0 %v2002
        %3554 = vmatprep.subr.bf16.mxu0 %v2005
        %3555 = vmatpush1.bf16.msra.mxu0 %v2004
        %3556 = vmatprep.subr.bf16.mxu0 %v2007
        %3557 = vmatpush1.bf16.msra.mxu0 %v2006
        %3558 = vmatprep.subr.bf16.mxu0 %v2009
        %3559 = vmatpush1.bf16.msra.mxu0 %v2008
        %3560 = vmatprep.subr.bf16.mxu0 %v2011
        %3561 = vmatpush1.bf16.msra.mxu0 %v2010
        %3562 = vmatprep.subr.bf16.mxu0 %v2013
        %3563 = vmatpush1.bf16.msra.mxu0 %v2012
        %3564 = vmatprep.mubr.bf16.mxu0 %v2923
        %3565 = vmatmul.mubr.bf16.gmra.mrb[0].mxu0 %v2909
        %v3566 = vpop.f32.mrb[0].mxu0
        %v3567 = vadd.f32 %v3526, %v3566
        %v3568 = vpop.f32.mrb[0].mxu0
        %v3569 = vadd.f32 %v3528, %v3568
        %v3570 = vpop.f32.mrb[0].mxu0
        %v3571 = vpop.f32.mrb[0].mxu0
        %3572 = vdwg.mxu0
        %3573 = vmatprep.subr.bf16.mxu0 %v2015
        %3574 = vmatpush1.bf16.msra.mxu0 %v2014
        %3575 = vmatprep.subr.bf16.mxu0 %v2017
        %3576 = vmatpush1.bf16.msra.mxu0 %v2016
        %3577 = vmatprep.subr.bf16.mxu0 %v2019
        %3578 = vmatpush1.bf16.msra.mxu0 %v2018
        %3579 = vmatprep.subr.bf16.mxu0 %v2021
        %3580 = vmatpush1.bf16.msra.mxu0 %v2020
        %3581 = vmatprep.subr.bf16.mxu0 %v2023
        %3582 = vmatpush1.bf16.msra.mxu0 %v2022
        %3583 = vmatprep.subr.bf16.mxu0 %v2025
        %3584 = vmatpush1.bf16.msra.mxu0 %v2024
        %3585 = vmatprep.subr.bf16.mxu0 %v2027
        %3586 = vmatpush1.bf16.msra.mxu0 %v2026
        %3587 = vmatprep.subr.bf16.mxu0 %v2029
        %3588 = vmatpush1.bf16.msra.mxu0 %v2028
        %3589 = vmatprep.subr.bf16.mxu0 %v2031
        %3590 = vmatpush1.bf16.msra.mxu0 %v2030
        %3591 = vmatprep.subr.bf16.mxu0 %v2033
        %3592 = vmatpush1.bf16.msra.mxu0 %v2032
        %3593 = vmatprep.subr.bf16.mxu0 %v2035
        %3594 = vmatpush1.bf16.msra.mxu0 %v2034
        %3595 = vmatprep.subr.bf16.mxu0 %v2037
        %3596 = vmatpush1.bf16.msra.mxu0 %v2036
        %3597 = vmatprep.subr.bf16.mxu0 %v2039
        %3598 = vmatpush1.bf16.msra.mxu0 %v2038
        %3599 = vmatprep.subr.bf16.mxu0 %v2041
        %3600 = vmatpush1.bf16.msra.mxu0 %v2040
        %3601 = vmatprep.subr.bf16.mxu0 %v2043
        %3602 = vmatpush1.bf16.msra.mxu0 %v2042
        %3603 = vmatprep.subr.bf16.mxu0 %v2045
        %3604 = vmatpush1.bf16.msra.mxu0 %v2044
        %3605 = vmatprep.mubr.bf16.mxu0 %v2927
        %3606 = vmatmul.mubr.bf16.gmra.mrb[0].mxu0 %v2925
        %v3607 = vpop.f32.mrb[0].mxu0
        %v3608 = vadd.f32 %v3567, %v3607
        %v3609 = vpop.f32.mrb[0].mxu0
        %v3610 = vadd.f32 %v3569, %v3609
        %v3611 = vpop.f32.mrb[0].mxu0
        %v3612 = vpop.f32.mrb[0].mxu0
        %3613 = vdwg.mxu0
        %3614 = vmatprep.subr.bf16.mxu0 %v2047
        %3615 = vmatpush1.bf16.msra.mxu0 %v2046
        %3616 = vmatprep.subr.bf16.mxu0 %v2049
        %3617 = vmatpush1.bf16.msra.mxu0 %v2048
        %3618 = vmatprep.subr.bf16.mxu0 %v2051
        %3619 = vmatpush1.bf16.msra.mxu0 %v2050
        %3620 = vmatprep.subr.bf16.mxu0 %v2053
        %3621 = vmatpush1.bf16.msra.mxu0 %v2052
        %3622 = vmatprep.subr.bf16.mxu0 %v2055
        %3623 = vmatpush1.bf16.msra.mxu0 %v2054
        %3624 = vmatprep.subr.bf16.mxu0 %v2057
        %3625 = vmatpush1.bf16.msra.mxu0 %v2056
        %3626 = vmatprep.subr.bf16.mxu0 %v2059
        %3627 = vmatpush1.bf16.msra.mxu0 %v2058
        %3628 = vmatprep.subr.bf16.mxu0 %v2061
        %3629 = vmatpush1.bf16.msra.mxu0 %v2060
        %3630 = vmatprep.subr.bf16.mxu0 %v2063
        %3631 = vmatpush1.bf16.msra.mxu0 %v2062
        %3632 = vmatprep.subr.bf16.mxu0 %v2065
        %3633 = vmatpush1.bf16.msra.mxu0 %v2064
        %3634 = vmatprep.subr.bf16.mxu0 %v2067
        %3635 = vmatpush1.bf16.msra.mxu0 %v2066
        %3636 = vmatprep.subr.bf16.mxu0 %v2069
        %3637 = vmatpush1.bf16.msra.mxu0 %v2068
        %3638 = vmatprep.subr.bf16.mxu0 %v2071
        %3639 = vmatpush1.bf16.msra.mxu0 %v2070
        %3640 = vmatprep.subr.bf16.mxu0 %v2073
        %3641 = vmatpush1.bf16.msra.mxu0 %v2072
        %3642 = vmatprep.subr.bf16.mxu0 %v2075
        %3643 = vmatpush1.bf16.msra.mxu0 %v2074
        %3644 = vmatprep.subr.bf16.mxu0 %v2077
        %3645 = vmatpush1.bf16.msra.mxu0 %v2076
        %3646 = vmatprep.mubr.bf16.mxu0 %v2965
        %3647 = vmatmul.mubr.bf16.gmra.mrb[0].mxu0 %v2951
        %v3648 = vpop.f32.mrb[0].mxu0
        %v3649 = vadd.f32 %v3608, %v3648
        %v3650 = vpop.f32.mrb[0].mxu0
        %v3651 = vadd.f32 %v3610, %v3650
        %v3652 = vpop.f32.mrb[0].mxu0
        %v3653 = vpop.f32.mrb[0].mxu0
        %3654 = vdwg.mxu0
        %3655 = vmatprep.subr.bf16.mxu0 %v2079
        %3656 = vmatpush1.bf16.msra.mxu0 %v2078
        %3657 = vmatprep.subr.bf16.mxu0 %v2081
        %3658 = vmatpush1.bf16.msra.mxu0 %v2080
        %3659 = vmatprep.subr.bf16.mxu0 %v2083
        %3660 = vmatpush1.bf16.msra.mxu0 %v2082
        %3661 = vmatprep.subr.bf16.mxu0 %v2085
        %3662 = vmatpush1.bf16.msra.mxu0 %v2084
        %3663 = vmatprep.subr.bf16.mxu0 %v2087
        %3664 = vmatpush1.bf16.msra.mxu0 %v2086
        %3665 = vmatprep.subr.bf16.mxu0 %v2089
        %3666 = vmatpush1.bf16.msra.mxu0 %v2088
        %3667 = vmatprep.subr.bf16.mxu0 %v2091
        %3668 = vmatpush1.bf16.msra.mxu0 %v2090
        %3669 = vmatprep.subr.bf16.mxu0 %v2093
        %3670 = vmatpush1.bf16.msra.mxu0 %v2092
        %3671 = vmatprep.subr.bf16.mxu0 %v2095
        %3672 = vmatpush1.bf16.msra.mxu0 %v2094
        %3673 = vmatprep.subr.bf16.mxu0 %v2097
        %3674 = vmatpush1.bf16.msra.mxu0 %v2096
        %3675 = vmatprep.subr.bf16.mxu0 %v2099
        %3676 = vmatpush1.bf16.msra.mxu0 %v2098
        %3677 = vmatprep.subr.bf16.mxu0 %v2101
        %3678 = vmatpush1.bf16.msra.mxu0 %v2100
        %3679 = vmatprep.subr.bf16.mxu0 %v2103
        %3680 = vmatpush1.bf16.msra.mxu0 %v2102
        %3681 = vmatprep.subr.bf16.mxu0 %v2105
        %3682 = vmatpush1.bf16.msra.mxu0 %v2104
        %3683 = vmatprep.subr.bf16.mxu0 %v2107
        %3684 = vmatpush1.bf16.msra.mxu0 %v2106
        %3685 = vmatprep.subr.bf16.mxu0 %v2109
        %3686 = vmatpush1.bf16.msra.mxu0 %v2108
        %3687 = vmatprep.mubr.bf16.mxu0 %v2975
        %3688 = vmatmul.mubr.bf16.gmra.mrb[0].mxu0 %v2973
        %v3689 = vpop.f32.mrb[0].mxu0
        %v3690 = vadd.f32 %v3649, %v3689
        %v3691 = vpop.f32.mrb[0].mxu0
        %v3692 = vadd.f32 %v3651, %v3691
        %v3693 = vpop.f32.mrb[0].mxu0
        %v3694 = vpop.f32.mrb[0].mxu0
        %3695 = vdwg.mxu0
        %3696 = vmatprep.subr.bf16.mxu0 %v2111
        %3697 = vmatpush1.bf16.msra.mxu0 %v2110
        %3698 = vmatprep.subr.bf16.mxu0 %v2113
        %3699 = vmatpush1.bf16.msra.mxu0 %v2112
        %3700 = vmatprep.subr.bf16.mxu0 %v2115
        %3701 = vmatpush1.bf16.msra.mxu0 %v2114
        %3702 = vmatprep.subr.bf16.mxu0 %v2117
        %3703 = vmatpush1.bf16.msra.mxu0 %v2116
        %3704 = vmatprep.subr.bf16.mxu0 %v2119
        %3705 = vmatpush1.bf16.msra.mxu0 %v2118
        %3706 = vmatprep.subr.bf16.mxu0 %v2121
        %3707 = vmatpush1.bf16.msra.mxu0 %v2120
        %3708 = vmatprep.subr.bf16.mxu0 %v2123
        %3709 = vmatpush1.bf16.msra.mxu0 %v2122
        %3710 = vmatprep.subr.bf16.mxu0 %v2125
        %3711 = vmatpush1.bf16.msra.mxu0 %v2124
        %3712 = vmatprep.subr.bf16.mxu0 %v2127
        %3713 = vmatpush1.bf16.msra.mxu0 %v2126
        %3714 = vmatprep.subr.bf16.mxu0 %v2129
        %3715 = vmatpush1.bf16.msra.mxu0 %v2128
        %3716 = vmatprep.subr.bf16.mxu0 %v2131
        %3717 = vmatpush1.bf16.msra.mxu0 %v2130
        %3718 = vmatprep.subr.bf16.mxu0 %v2133
        %3719 = vmatpush1.bf16.msra.mxu0 %v2132
        %3720 = vmatprep.subr.bf16.mxu0 %v2135
        %3721 = vmatpush1.bf16.msra.mxu0 %v2134
        %3722 = vmatprep.subr.bf16.mxu0 %v2137
        %3723 = vmatpush1.bf16.msra.mxu0 %v2136
        %3724 = vmatprep.subr.bf16.mxu0 %v2139
        %3725 = vmatpush1.bf16.msra.mxu0 %v2138
        %3726 = vmatprep.subr.bf16.mxu0 %v2141
        %3727 = vmatpush1.bf16.msra.mxu0 %v2140
        %3728 = vmatprep.mubr.bf16.mxu0 %v2972
        %3729 = vmatmul.mubr.bf16.gmra.mrb[0].mxu0 %v2958
        %v3730 = vpop.f32.mrb[0].mxu0
        %v3731 = vadd.f32 %v3690, %v3730
        %v3732 = vpop.f32.mrb[0].mxu0
        %v3733 = vadd.f32 %v3692, %v3732
        %v3734 = vpop.f32.mrb[0].mxu0
        %v3735 = vpop.f32.mrb[0].mxu0
        %3736 = vdwg.mxu0
        %3737 = vmatprep.subr.bf16.mxu0 %v2143
        %3738 = vmatpush1.bf16.msra.mxu0 %v2142
        %3739 = vmatprep.subr.bf16.mxu0 %v2145
        %3740 = vmatpush1.bf16.msra.mxu0 %v2144
        %3741 = vmatprep.subr.bf16.mxu0 %v2147
        %3742 = vmatpush1.bf16.msra.mxu0 %v2146
        %3743 = vmatprep.subr.bf16.mxu0 %v2149
        %3744 = vmatpush1.bf16.msra.mxu0 %v2148
        %3745 = vmatprep.subr.bf16.mxu0 %v2151
        %3746 = vmatpush1.bf16.msra.mxu0 %v2150
        %3747 = vmatprep.subr.bf16.mxu0 %v2153
        %3748 = vmatpush1.bf16.msra.mxu0 %v2152
        %3749 = vmatprep.subr.bf16.mxu0 %v2155
        %3750 = vmatpush1.bf16.msra.mxu0 %v2154
        %3751 = vmatprep.subr.bf16.mxu0 %v2157
        %3752 = vmatpush1.bf16.msra.mxu0 %v2156
        %3753 = vmatprep.subr.bf16.mxu0 %v2159
        %3754 = vmatpush1.bf16.msra.mxu0 %v2158
        %3755 = vmatprep.subr.bf16.mxu0 %v2161
        %3756 = vmatpush1.bf16.msra.mxu0 %v2160
        %3757 = vmatprep.subr.bf16.mxu0 %v2163
        %3758 = vmatpush1.bf16.msra.mxu0 %v2162
        %3759 = vmatprep.subr.bf16.mxu0 %v2165
        %3760 = vmatpush1.bf16.msra.mxu0 %v2164
        %3761 = vmatprep.subr.bf16.mxu0 %v2167
        %3762 = vmatpush1.bf16.msra.mxu0 %v2166
        %3763 = vmatprep.subr.bf16.mxu0 %v2169
        %3764 = vmatpush1.bf16.msra.mxu0 %v2168
        %3765 = vmatprep.subr.bf16.mxu0 %v2171
        %3766 = vmatpush1.bf16.msra.mxu0 %v2170
        %3767 = vmatprep.subr.bf16.mxu0 %v2173
        %3768 = vmatpush1.bf16.msra.mxu0 %v2172
        %3769 = vmatprep.mubr.bf16.mxu0 %v2976
        %3770 = vmatmul.mubr.bf16.gmra.mrb[0].mxu0 %v2974
        %v3771 = vpop.f32.mrb[0].mxu0
        %v3772 = vadd.f32 %v3731, %v3771
        %v3773 = vpop.f32.mrb[0].mxu0
        %v3774 = vadd.f32 %v3733, %v3773
        %v3775 = vpop.f32.mrb[0].mxu0
        %v3776 = vpop.f32.mrb[0].mxu0
        %3777 = vdwg.mxu0
        %3778 = vmatprep.subr.bf16.mxu0 %v2175
        %3779 = vmatpush1.bf16.msra.mxu0 %v2174
        %3780 = vmatprep.subr.bf16.mxu0 %v2177
        %3781 = vmatpush1.bf16.msra.mxu0 %v2176
        %3782 = vmatprep.subr.bf16.mxu0 %v2179
        %3783 = vmatpush1.bf16.msra.mxu0 %v2178
        %3784 = vmatprep.subr.bf16.mxu0 %v2181
        %3785 = vmatpush1.bf16.msra.mxu0 %v2180
        %3786 = vmatprep.subr.bf16.mxu0 %v2183
        %3787 = vmatpush1.bf16.msra.mxu0 %v2182
        %3788 = vmatprep.subr.bf16.mxu0 %v2185
        %3789 = vmatpush1.bf16.msra.mxu0 %v2184
        %3790 = vmatprep.subr.bf16.mxu0 %v2187
        %3791 = vmatpush1.bf16.msra.mxu0 %v2186
        %3792 = vmatprep.subr.bf16.mxu0 %v2189
        %3793 = vmatpush1.bf16.msra.mxu0 %v2188
        %3794 = vmatprep.subr.bf16.mxu0 %v2191
        %3795 = vmatpush1.bf16.msra.mxu0 %v2190
        %3796 = vmatprep.subr.bf16.mxu0 %v2193
        %3797 = vmatpush1.bf16.msra.mxu0 %v2192
        %3798 = vmatprep.subr.bf16.mxu0 %v2195
        %3799 = vmatpush1.bf16.msra.mxu0 %v2194
        %3800 = vmatprep.subr.bf16.mxu0 %v2197
        %3801 = vmatpush1.bf16.msra.mxu0 %v2196
        %3802 = vmatprep.subr.bf16.mxu0 %v2199
        %3803 = vmatpush1.bf16.msra.mxu0 %v2198
        %3804 = vmatprep.subr.bf16.mxu0 %v2201
        %3805 = vmatpush1.bf16.msra.mxu0 %v2200
        %3806 = vmatprep.subr.bf16.mxu0 %v2203
        %3807 = vmatpush1.bf16.msra.mxu0 %v2202
        %3808 = vmatprep.subr.bf16.mxu0 %v2205
        %3809 = vmatpush1.bf16.msra.mxu0 %v2204
        %3810 = vmatprep.mubr.bf16.mxu0 %v3014
        %3811 = vmatmul.mubr.bf16.gmra.mrb[0].mxu0 %v3000
        %v3812 = vpop.f32.mrb[0].mxu0
        %v3813 = vadd.f32 %v3772, %v3812
        %v3814 = vpop.f32.mrb[0].mxu0
        %v3815 = vadd.f32 %v3774, %v3814
        %v3816 = vpop.f32.mrb[0].mxu0
        %v3817 = vpop.f32.mrb[0].mxu0
        %3818 = vdwg.mxu0
        %3819 = vmatprep.subr.bf16.mxu0 %v2207
        %3820 = vmatpush1.bf16.msra.mxu0 %v2206
        %3821 = vmatprep.subr.bf16.mxu0 %v2209
        %3822 = vmatpush1.bf16.msra.mxu0 %v2208
        %3823 = vmatprep.subr.bf16.mxu0 %v2211
        %3824 = vmatpush1.bf16.msra.mxu0 %v2210
        %3825 = vmatprep.subr.bf16.mxu0 %v2213
        %3826 = vmatpush1.bf16.msra.mxu0 %v2212
        %3827 = vmatprep.subr.bf16.mxu0 %v2215
        %3828 = vmatpush1.bf16.msra.mxu0 %v2214
        %3829 = vmatprep.subr.bf16.mxu0 %v2217
        %3830 = vmatpush1.bf16.msra.mxu0 %v2216
        %3831 = vmatprep.subr.bf16.mxu0 %v2219
        %3832 = vmatpush1.bf16.msra.mxu0 %v2218
        %3833 = vmatprep.subr.bf16.mxu0 %v2221
        %3834 = vmatpush1.bf16.msra.mxu0 %v2220
        %3835 = vmatprep.subr.bf16.mxu0 %v2223
        %3836 = vmatpush1.bf16.msra.mxu0 %v2222
        %3837 = vmatprep.subr.bf16.mxu0 %v2225
        %3838 = vmatpush1.bf16.msra.mxu0 %v2224
        %3839 = vmatprep.subr.bf16.mxu0 %v2227
        %3840 = vmatpush1.bf16.msra.mxu0 %v2226
        %3841 = vmatprep.subr.bf16.mxu0 %v2229
        %3842 = vmatpush1.bf16.msra.mxu0 %v2228
        %3843 = vmatprep.subr.bf16.mxu0 %v2231
        %3844 = vmatpush1.bf16.msra.mxu0 %v2230
        %3845 = vmatprep.subr.bf16.mxu0 %v2233
        %3846 = vmatpush1.bf16.msra.mxu0 %v2232
        %3847 = vmatprep.subr.bf16.mxu0 %v2235
        %3848 = vmatpush1.bf16.msra.mxu0 %v2234
        %3849 = vmatprep.subr.bf16.mxu0 %v2237
        %3850 = vmatpush1.bf16.msra.mxu0 %v2236
        %3851 = vmatprep.mubr.bf16.mxu0 %v3024
        %3852 = vmatmul.mubr.bf16.gmra.mrb[0].mxu0 %v3022
        %v3853 = vpop.f32.mrb[0].mxu0
        %v3854 = vadd.f32 %v3813, %v3853
        %v3855 = vpop.f32.mrb[0].mxu0
        %v3856 = vadd.f32 %v3815, %v3855
        %v3857 = vpop.f32.mrb[0].mxu0
        %v3858 = vpop.f32.mrb[0].mxu0
        %3859 = vdwg.mxu0
        %3860 = vmatprep.subr.bf16.mxu0 %v2239
        %3861 = vmatpush1.bf16.msra.mxu0 %v2238
        %3862 = vmatprep.subr.bf16.mxu0 %v2241
        %3863 = vmatpush1.bf16.msra.mxu0 %v2240
        %3864 = vmatprep.subr.bf16.mxu0 %v2243
        %3865 = vmatpush1.bf16.msra.mxu0 %v2242
        %3866 = vmatprep.subr.bf16.mxu0 %v2245
        %3867 = vmatpush1.bf16.msra.mxu0 %v2244
        %3868 = vmatprep.subr.bf16.mxu0 %v2247
        %3869 = vmatpush1.bf16.msra.mxu0 %v2246
        %3870 = vmatprep.subr.bf16.mxu0 %v2249
        %3871 = vmatpush1.bf16.msra.mxu0 %v2248
        %3872 = vmatprep.subr.bf16.mxu0 %v2251
        %3873 = vmatpush1.bf16.msra.mxu0 %v2250
        %3874 = vmatprep.subr.bf16.mxu0 %v2253
        %3875 = vmatpush1.bf16.msra.mxu0 %v2252
        %3876 = vmatprep.subr.bf16.mxu0 %v2255
        %3877 = vmatpush1.bf16.msra.mxu0 %v2254
        %3878 = vmatprep.subr.bf16.mxu0 %v2257
        %3879 = vmatpush1.bf16.msra.mxu0 %v2256
        %3880 = vmatprep.subr.bf16.mxu0 %v2259
        %3881 = vmatpush1.bf16.msra.mxu0 %v2258
        %3882 = vmatprep.subr.bf16.mxu0 %v2261
        %3883 = vmatpush1.bf16.msra.mxu0 %v2260
        %3884 = vmatprep.subr.bf16.mxu0 %v2263
        %3885 = vmatpush1.bf16.msra.mxu0 %v2262
        %3886 = vmatprep.subr.bf16.mxu0 %v2265
        %3887 = vmatpush1.bf16.msra.mxu0 %v2264
        %3888 = vmatprep.subr.bf16.mxu0 %v2267
        %3889 = vmatpush1.bf16.msra.mxu0 %v2266
        %3890 = vmatprep.subr.bf16.mxu0 %v2269
        %3891 = vmatpush1.bf16.msra.mxu0 %v2268
        %3892 = vmatprep.mubr.bf16.mxu0 %v3021
        %3893 = vmatmul.mubr.bf16.gmra.mrb[0].mxu0 %v3007
        %v3894 = vpop.f32.mrb[0].mxu0
        %v3895 = vadd.f32 %v3854, %v3894
        %v3896 = vpop.f32.mrb[0].mxu0
        %v3897 = vadd.f32 %v3856, %v3896
        %v3898 = vpop.f32.mrb[0].mxu0
        %v3899 = vpop.f32.mrb[0].mxu0
        %3900 = vdwg.mxu0
        %3901 = vmatprep.subr.bf16.mxu0 %v2271
        %3902 = vmatpush1.bf16.msra.mxu0 %v2270
        %3903 = vmatprep.subr.bf16.mxu0 %v2273
        %3904 = vmatpush1.bf16.msra.mxu0 %v2272
        %3905 = vmatprep.subr.bf16.mxu0 %v2275
        %3906 = vmatpush1.bf16.msra.mxu0 %v2274
        %3907 = vmatprep.subr.bf16.mxu0 %v2277
        %3908 = vmatpush1.bf16.msra.mxu0 %v2276
        %3909 = vmatprep.subr.bf16.mxu0 %v2279
        %3910 = vmatpush1.bf16.msra.mxu0 %v2278
        %3911 = vmatprep.subr.bf16.mxu0 %v2281
        %3912 = vmatpush1.bf16.msra.mxu0 %v2280
        %3913 = vmatprep.subr.bf16.mxu0 %v2283
        %3914 = vmatpush1.bf16.msra.mxu0 %v2282
        %3915 = vmatprep.subr.bf16.mxu0 %v2285
        %3916 = vmatpush1.bf16.msra.mxu0 %v2284
        %3917 = vmatprep.subr.bf16.mxu0 %v2287
        %3918 = vmatpush1.bf16.msra.mxu0 %v2286
        %3919 = vmatprep.subr.bf16.mxu0 %v2289
        %3920 = vmatpush1.bf16.msra.mxu0 %v2288
        %3921 = vmatprep.subr.bf16.mxu0 %v2291
        %3922 = vmatpush1.bf16.msra.mxu0 %v2290
        %3923 = vmatprep.subr.bf16.mxu0 %v2293
        %3924 = vmatpush1.bf16.msra.mxu0 %v2292
        %3925 = vmatprep.subr.bf16.mxu0 %v2295
        %3926 = vmatpush1.bf16.msra.mxu0 %v2294
        %3927 = vmatprep.subr.bf16.mxu0 %v2297
        %3928 = vmatpush1.bf16.msra.mxu0 %v2296
        %3929 = vmatprep.subr.bf16.mxu0 %v2299
        %3930 = vmatpush1.bf16.msra.mxu0 %v2298
        %3931 = vmatprep.subr.bf16.mxu0 %v2301
        %3932 = vmatpush1.bf16.msra.mxu0 %v2300
        %3933 = vmatprep.mubr.bf16.mxu0 %v3025
        %3934 = vmatmul.mubr.bf16.gmra.mrb[0].mxu0 %v3023
        %v3935 = vpop.f32.mrb[0].mxu0
        %v3936 = vadd.f32 %v3895, %v3935
        %v3937 = vpop.f32.mrb[0].mxu0
        %v3938 = vadd.f32 %v3897, %v3937
        %v3939 = vpop.f32.mrb[0].mxu0
        %v3940 = vpop.f32.mrb[0].mxu0
        %3941 = vdwg.mxu0
        %3942 = vmatprep.subr.bf16.mxu0 %v2303
        %3943 = vmatpush1.bf16.msra.mxu0 %v2302
        %3944 = vmatprep.subr.bf16.mxu0 %v2305
        %3945 = vmatpush1.bf16.msra.mxu0 %v2304
        %3946 = vmatprep.subr.bf16.mxu0 %v2307
        %3947 = vmatpush1.bf16.msra.mxu0 %v2306
        %3948 = vmatprep.subr.bf16.mxu0 %v2309
        %3949 = vmatpush1.bf16.msra.mxu0 %v2308
        %3950 = vmatprep.subr.bf16.mxu0 %v2311
        %3951 = vmatpush1.bf16.msra.mxu0 %v2310
        %3952 = vmatprep.subr.bf16.mxu0 %v2313
        %3953 = vmatpush1.bf16.msra.mxu0 %v2312
        %3954 = vmatprep.subr.bf16.mxu0 %v2315
        %3955 = vmatpush1.bf16.msra.mxu0 %v2314
        %3956 = vmatprep.subr.bf16.mxu0 %v2317
        %3957 = vmatpush1.bf16.msra.mxu0 %v2316
        %3958 = vmatprep.subr.bf16.mxu0 %v2319
        %3959 = vmatpush1.bf16.msra.mxu0 %v2318
        %3960 = vmatprep.subr.bf16.mxu0 %v2321
        %3961 = vmatpush1.bf16.msra.mxu0 %v2320
        %3962 = vmatprep.subr.bf16.mxu0 %v2323
        %3963 = vmatpush1.bf16.msra.mxu0 %v2322
        %3964 = vmatprep.subr.bf16.mxu0 %v2325
        %3965 = vmatpush1.bf16.msra.mxu0 %v2324
        %3966 = vmatprep.subr.bf16.mxu0 %v2327
        %3967 = vmatpush1.bf16.msra.mxu0 %v2326
        %3968 = vmatprep.subr.bf16.mxu0 %v2329
        %3969 = vmatpush1.bf16.msra.mxu0 %v2328
        %3970 = vmatprep.subr.bf16.mxu0 %v2331
        %3971 = vmatpush1.bf16.msra.mxu0 %v2330
        %3972 = vmatprep.subr.bf16.mxu0 %v2333
        %3973 = vmatpush1.bf16.msra.mxu0 %v2332
        %3974 = vmatprep.mubr.bf16.mxu0 %v3063
        %3975 = vmatmul.mubr.bf16.gmra.mrb[0].mxu0 %v3049
        %v3976 = vpop.f32.mrb[0].mxu0
        %v3977 = vadd.f32 %v3936, %v3976
        %v3978 = vpop.f32.mrb[0].mxu0
        %v3979 = vadd.f32 %v3938, %v3978
        %v3980 = vpop.f32.mrb[0].mxu0
        %v3981 = vpop.f32.mrb[0].mxu0
        %3982 = vdwg.mxu0
        %3983 = vmatprep.subr.bf16.mxu0 %v2335
        %3984 = vmatpush1.bf16.msra.mxu0 %v2334
        %3985 = vmatprep.subr.bf16.mxu0 %v2337
        %3986 = vmatpush1.bf16.msra.mxu0 %v2336
        %3987 = vmatprep.subr.bf16.mxu0 %v2339
        %3988 = vmatpush1.bf16.msra.mxu0 %v2338
        %3989 = vmatprep.subr.bf16.mxu0 %v2341
        %3990 = vmatpush1.bf16.msra.mxu0 %v2340
        %3991 = vmatprep.subr.bf16.mxu0 %v2343
        %3992 = vmatpush1.bf16.msra.mxu0 %v2342
        %3993 = vmatprep.subr.bf16.mxu0 %v2345
        %3994 = vmatpush1.bf16.msra.mxu0 %v2344
        %3995 = vmatprep.subr.bf16.mxu0 %v2347
        %3996 = vmatpush1.bf16.msra.mxu0 %v2346
        %3997 = vmatprep.subr.bf16.mxu0 %v2349
        %3998 = vmatpush1.bf16.msra.mxu0 %v2348
        %3999 = vmatprep.subr.bf16.mxu0 %v2351
        %4000 = vmatpush1.bf16.msra.mxu0 %v2350
        %4001 = vmatprep.subr.bf16.mxu0 %v2353
        %4002 = vmatpush1.bf16.msra.mxu0 %v2352
        %4003 = vmatprep.subr.bf16.mxu0 %v2355
        %4004 = vmatpush1.bf16.msra.mxu0 %v2354
        %4005 = vmatprep.subr.bf16.mxu0 %v2357
        %4006 = vmatpush1.bf16.msra.mxu0 %v2356
        %4007 = vmatprep.subr.bf16.mxu0 %v2359
        %4008 = vmatpush1.bf16.msra.mxu0 %v2358
        %4009 = vmatprep.subr.bf16.mxu0 %v2361
        %4010 = vmatpush1.bf16.msra.mxu0 %v2360
        %4011 = vmatprep.subr.bf16.mxu0 %v2363
        %4012 = vmatpush1.bf16.msra.mxu0 %v2362
        %4013 = vmatprep.subr.bf16.mxu0 %v2365
        %4014 = vmatpush1.bf16.msra.mxu0 %v2364
        %4015 = vmatprep.mubr.bf16.mxu0 %v3073
        %4016 = vmatmul.mubr.bf16.gmra.mrb[0].mxu0 %v3071
        %v4017 = vpop.f32.mrb[0].mxu0
        %v4018 = vadd.f32 %v3977, %v4017
        %v4019 = vpop.f32.mrb[0].mxu0
        %v4020 = vadd.f32 %v3979, %v4019
        %v4021 = vpop.f32.mrb[0].mxu0
        %v4022 = vpop.f32.mrb[0].mxu0
        %4023 = vdwg.mxu0
        %4024 = vmatprep.subr.bf16.mxu0 %v2367
        %4025 = vmatpush1.bf16.msra.mxu0 %v2366
        %4026 = vmatprep.subr.bf16.mxu0 %v2369
        %4027 = vmatpush1.bf16.msra.mxu0 %v2368
        %4028 = vmatprep.subr.bf16.mxu0 %v2371
        %4029 = vmatpush1.bf16.msra.mxu0 %v2370
        %4030 = vmatprep.subr.bf16.mxu0 %v2373
        %4031 = vmatpush1.bf16.msra.mxu0 %v2372
        %4032 = vmatprep.subr.bf16.mxu0 %v2375
        %4033 = vmatpush1.bf16.msra.mxu0 %v2374
        %4034 = vmatprep.subr.bf16.mxu0 %v2377
        %4035 = vmatpush1.bf16.msra.mxu0 %v2376
        %4036 = vmatprep.subr.bf16.mxu0 %v2379
        %4037 = vmatpush1.bf16.msra.mxu0 %v2378
        %4038 = vmatprep.subr.bf16.mxu0 %v2381
        %4039 = vmatpush1.bf16.msra.mxu0 %v2380
        %4040 = vmatprep.subr.bf16.mxu0 %v2383
        %4041 = vmatpush1.bf16.msra.mxu0 %v2382
        %4042 = vmatprep.subr.bf16.mxu0 %v2385
        %4043 = vmatpush1.bf16.msra.mxu0 %v2384
        %4044 = vmatprep.subr.bf16.mxu0 %v2387
        %4045 = vmatpush1.bf16.msra.mxu0 %v2386
        %4046 = vmatprep.subr.bf16.mxu0 %v2389
        %4047 = vmatpush1.bf16.msra.mxu0 %v2388
        %4048 = vmatprep.subr.bf16.mxu0 %v2391
        %4049 = vmatpush1.bf16.msra.mxu0 %v2390
        %4050 = vmatprep.subr.bf16.mxu0 %v2393
        %4051 = vmatpush1.bf16.msra.mxu0 %v2392
        %4052 = vmatprep.subr.bf16.mxu0 %v2395
        %4053 = vmatpush1.bf16.msra.mxu0 %v2394
        %4054 = vmatprep.subr.bf16.mxu0 %v2397
        %4055 = vmatpush1.bf16.msra.mxu0 %v2396
        %4056 = vmatprep.mubr.bf16.mxu0 %v3070
        %4057 = vmatmul.mubr.bf16.gmra.mrb[0].mxu0 %v3056
        %v4058 = vpop.f32.mrb[0].mxu0
        %v4059 = vadd.f32 %v4018, %v4058
        %v4060 = vpop.f32.mrb[0].mxu0
        %v4061 = vadd.f32 %v4020, %v4060
        %v4062 = vpop.f32.mrb[0].mxu0
        %v4063 = vpop.f32.mrb[0].mxu0
        %4064 = vdwg.mxu0
        %4065 = vmatprep.subr.bf16.mxu0 %v2399
        %4066 = vmatpush1.bf16.msra.mxu0 %v2398
        %4067 = vmatprep.subr.bf16.mxu0 %v2401
        %4068 = vmatpush1.bf16.msra.mxu0 %v2400
        %4069 = vmatprep.subr.bf16.mxu0 %v2403
        %4070 = vmatpush1.bf16.msra.mxu0 %v2402
        %4071 = vmatprep.subr.bf16.mxu0 %v2405
        %4072 = vmatpush1.bf16.msra.mxu0 %v2404
        %4073 = vmatprep.subr.bf16.mxu0 %v2407
        %4074 = vmatpush1.bf16.msra.mxu0 %v2406
        %4075 = vmatprep.subr.bf16.mxu0 %v2409
        %4076 = vmatpush1.bf16.msra.mxu0 %v2408
        %4077 = vmatprep.subr.bf16.mxu0 %v2411
        %4078 = vmatpush1.bf16.msra.mxu0 %v2410
        %4079 = vmatprep.subr.bf16.mxu0 %v2413
        %4080 = vmatpush1.bf16.msra.mxu0 %v2412
        %4081 = vmatprep.subr.bf16.mxu0 %v2415
        %4082 = vmatpush1.bf16.msra.mxu0 %v2414
        %4083 = vmatprep.subr.bf16.mxu0 %v2417
        %4084 = vmatpush1.bf16.msra.mxu0 %v2416
        %4085 = vmatprep.subr.bf16.mxu0 %v2419
        %4086 = vmatpush1.bf16.msra.mxu0 %v2418
        %4087 = vmatprep.subr.bf16.mxu0 %v2421
        %4088 = vmatpush1.bf16.msra.mxu0 %v2420
        %4089 = vmatprep.subr.bf16.mxu0 %v2423
        %4090 = vmatpush1.bf16.msra.mxu0 %v2422
        %4091 = vmatprep.subr.bf16.mxu0 %v2425
        %4092 = vmatpush1.bf16.msra.mxu0 %v2424
        %4093 = vmatprep.subr.bf16.mxu0 %v2427
        %4094 = vmatpush1.bf16.msra.mxu0 %v2426
        %4095 = vmatprep.subr.bf16.mxu0 %v2429
        %4096 = vmatpush1.bf16.msra.mxu0 %v2428
        %4097 = vmatprep.mubr.bf16.mxu0 %v3074
        %4098 = vmatmul.mubr.bf16.gmra.mrb[0].mxu0 %v3072
        %v4099 = vpop.f32.mrb[0].mxu0
        %v4100 = vadd.f32 %v4059, %v4099
        %v4101 = vpop.f32.mrb[0].mxu0
        %v4102 = vadd.f32 %v4061, %v4101
        %v4103 = vpop.f32.mrb[0].mxu0
        %v4104 = vpop.f32.mrb[0].mxu0
        %4105 = vdwg.mxu0
        %4106 = vmatprep.subr.bf16.mxu0 %v2431
        %4107 = vmatpush1.bf16.msra.mxu0 %v2430
        %4108 = vmatprep.subr.bf16.mxu0 %v2433
        %4109 = vmatpush1.bf16.msra.mxu0 %v2432
        %4110 = vmatprep.subr.bf16.mxu0 %v2435
        %4111 = vmatpush1.bf16.msra.mxu0 %v2434
        %4112 = vmatprep.subr.bf16.mxu0 %v2437
        %4113 = vmatpush1.bf16.msra.mxu0 %v2436
        %4114 = vmatprep.subr.bf16.mxu0 %v2439
        %4115 = vmatpush1.bf16.msra.mxu0 %v2438
        %4116 = vmatprep.subr.bf16.mxu0 %v2441
        %4117 = vmatpush1.bf16.msra.mxu0 %v2440
        %4118 = vmatprep.subr.bf16.mxu0 %v2443
        %4119 = vmatpush1.bf16.msra.mxu0 %v2442
        %4120 = vmatprep.subr.bf16.mxu0 %v2445
        %4121 = vmatpush1.bf16.msra.mxu0 %v2444
        %4122 = vmatprep.subr.bf16.mxu0 %v2447
        %4123 = vmatpush1.bf16.msra.mxu0 %v2446
        %4124 = vmatprep.subr.bf16.mxu0 %v2449
        %4125 = vmatpush1.bf16.msra.mxu0 %v2448
        %4126 = vmatprep.subr.bf16.mxu0 %v2451
        %4127 = vmatpush1.bf16.msra.mxu0 %v2450
        %4128 = vmatprep.subr.bf16.mxu0 %v2453
        %4129 = vmatpush1.bf16.msra.mxu0 %v2452
        %4130 = vmatprep.subr.bf16.mxu0 %v2455
        %4131 = vmatpush1.bf16.msra.mxu0 %v2454
        %4132 = vmatprep.subr.bf16.mxu0 %v2457
        %4133 = vmatpush1.bf16.msra.mxu0 %v2456
        %4134 = vmatprep.subr.bf16.mxu0 %v2459
        %4135 = vmatpush1.bf16.msra.mxu0 %v2458
        %4136 = vmatprep.subr.bf16.mxu0 %v2461
        %4137 = vmatpush1.bf16.msra.mxu0 %v2460
        %4138 = vmatprep.mubr.bf16.mxu0 %v3112
        %4139 = vmatmul.mubr.bf16.gmra.mrb[0].mxu0 %v3098
        %v4140 = vpop.f32.mrb[0].mxu0
        %v4141 = vadd.f32 %v4100, %v4140
        %v4142 = vpop.f32.mrb[0].mxu0
        %v4143 = vadd.f32 %v4102, %v4142
        %v4144 = vpop.f32.mrb[0].mxu0
        %v4145 = vpop.f32.mrb[0].mxu0
        %4146 = vdwg.mxu0
        %4147 = vmatprep.subr.bf16.mxu0 %v2463
        %4148 = vmatpush1.bf16.msra.mxu0 %v2462
        %4149 = vmatprep.subr.bf16.mxu0 %v2465
        %4150 = vmatpush1.bf16.msra.mxu0 %v2464
        %4151 = vmatprep.subr.bf16.mxu0 %v2467
        %4152 = vmatpush1.bf16.msra.mxu0 %v2466
        %4153 = vmatprep.subr.bf16.mxu0 %v2469
        %4154 = vmatpush1.bf16.msra.mxu0 %v2468
        %4155 = vmatprep.subr.bf16.mxu0 %v2471
        %4156 = vmatpush1.bf16.msra.mxu0 %v2470
        %4157 = vmatprep.subr.bf16.mxu0 %v2473
        %4158 = vmatpush1.bf16.msra.mxu0 %v2472
        %4159 = vmatprep.subr.bf16.mxu0 %v2475
        %4160 = vmatpush1.bf16.msra.mxu0 %v2474
        %4161 = vmatprep.subr.bf16.mxu0 %v2477
        %4162 = vmatpush1.bf16.msra.mxu0 %v2476
        %4163 = vmatprep.subr.bf16.mxu0 %v2479
        %4164 = vmatpush1.bf16.msra.mxu0 %v2478
        %4165 = vmatprep.subr.bf16.mxu0 %v2481
        %4166 = vmatpush1.bf16.msra.mxu0 %v2480
        %4167 = vmatprep.subr.bf16.mxu0 %v2483
        %4168 = vmatpush1.bf16.msra.mxu0 %v2482
        %4169 = vmatprep.subr.bf16.mxu0 %v2485
        %4170 = vmatpush1.bf16.msra.mxu0 %v2484
        %4171 = vmatprep.subr.bf16.mxu0 %v2487
        %4172 = vmatpush1.bf16.msra.mxu0 %v2486
        %4173 = vmatprep.subr.bf16.mxu0 %v2489
        %4174 = vmatpush1.bf16.msra.mxu0 %v2488
        %4175 = vmatprep.subr.bf16.mxu0 %v2491
        %4176 = vmatpush1.bf16.msra.mxu0 %v2490
        %4177 = vmatprep.subr.bf16.mxu0 %v2493
        %4178 = vmatpush1.bf16.msra.mxu0 %v2492
        %4179 = vmatprep.mubr.bf16.mxu0 %v3122
        %4180 = vmatmul.mubr.bf16.gmra.mrb[0].mxu0 %v3120
        %v4181 = vpop.f32.mrb[0].mxu0
        %v4182 = vadd.f32 %v4141, %v4181
        %v4183 = vpop.f32.mrb[0].mxu0
        %v4184 = vadd.f32 %v4143, %v4183
        %v4185 = vpop.f32.mrb[0].mxu0
        %v4186 = vpop.f32.mrb[0].mxu0
        %4187 = vdwg.mxu0
        %4188 = vmatprep.subr.bf16.mxu0 %v2495
        %4189 = vmatpush1.bf16.msra.mxu0 %v2494
        %4190 = vmatprep.subr.bf16.mxu0 %v2497
        %4191 = vmatpush1.bf16.msra.mxu0 %v2496
        %4192 = vmatprep.subr.bf16.mxu0 %v2499
        %4193 = vmatpush1.bf16.msra.mxu0 %v2498
        %4194 = vmatprep.subr.bf16.mxu0 %v2501
        %4195 = vmatpush1.bf16.msra.mxu0 %v2500
        %4196 = vmatprep.subr.bf16.mxu0 %v2503
        %4197 = vmatpush1.bf16.msra.mxu0 %v2502
        %4198 = vmatprep.subr.bf16.mxu0 %v2505
        %4199 = vmatpush1.bf16.msra.mxu0 %v2504
        %4200 = vmatprep.subr.bf16.mxu0 %v2507
        %4201 = vmatpush1.bf16.msra.mxu0 %v2506
        %4202 = vmatprep.subr.bf16.mxu0 %v2509
        %4203 = vmatpush1.bf16.msra.mxu0 %v2508
        %4204 = vmatprep.subr.bf16.mxu0 %v2511
        %4205 = vmatpush1.bf16.msra.mxu0 %v2510
        %4206 = vmatprep.subr.bf16.mxu0 %v2513
        %4207 = vmatpush1.bf16.msra.mxu0 %v2512
        %4208 = vmatprep.subr.bf16.mxu0 %v2515
        %4209 = vmatpush1.bf16.msra.mxu0 %v2514
        %4210 = vmatprep.subr.bf16.mxu0 %v2517
        %4211 = vmatpush1.bf16.msra.mxu0 %v2516
        %4212 = vmatprep.subr.bf16.mxu0 %v2519
        %4213 = vmatpush1.bf16.msra.mxu0 %v2518
        %4214 = vmatprep.subr.bf16.mxu0 %v2521
        %4215 = vmatpush1.bf16.msra.mxu0 %v2520
        %4216 = vmatprep.subr.bf16.mxu0 %v2523
        %4217 = vmatpush1.bf16.msra.mxu0 %v2522
        %4218 = vmatprep.subr.bf16.mxu0 %v2525
        %4219 = vmatpush1.bf16.msra.mxu0 %v2524
        %4220 = vmatprep.mubr.bf16.mxu0 %v3119
        %4221 = vmatmul.mubr.bf16.gmra.mrb[0].mxu0 %v3105
        %v4222 = vpop.f32.mrb[0].mxu0
        %v4223 = vadd.f32 %v4182, %v4222
        %v4224 = vpop.f32.mrb[0].mxu0
        %v4225 = vadd.f32 %v4184, %v4224
        %v4226 = vpop.f32.mrb[0].mxu0
        %v4227 = vpop.f32.mrb[0].mxu0
        %4228 = vdwg.mxu0
        %4229 = vmatprep.subr.bf16.mxu0 %v2527
        %4230 = vmatpush1.bf16.msra.mxu0 %v2526
        %4231 = vmatprep.subr.bf16.mxu0 %v2529
        %4232 = vmatpush1.bf16.msra.mxu0 %v2528
        %4233 = vmatprep.subr.bf16.mxu0 %v2531
        %4234 = vmatpush1.bf16.msra.mxu0 %v2530
        %4235 = vmatprep.subr.bf16.mxu0 %v2533
        %4236 = vmatpush1.bf16.msra.mxu0 %v2532
        %4237 = vmatprep.subr.bf16.mxu0 %v2535
        %4238 = vmatpush1.bf16.msra.mxu0 %v2534
        %4239 = vmatprep.subr.bf16.mxu0 %v2537
        %4240 = vmatpush1.bf16.msra.mxu0 %v2536
        %4241 = vmatprep.subr.bf16.mxu0 %v2539
        %4242 = vmatpush1.bf16.msra.mxu0 %v2538
        %4243 = vmatprep.subr.bf16.mxu0 %v2541
        %4244 = vmatpush1.bf16.msra.mxu0 %v2540
        %4245 = vmatprep.subr.bf16.mxu0 %v2543
        %4246 = vmatpush1.bf16.msra.mxu0 %v2542
        %4247 = vmatprep.subr.bf16.mxu0 %v2545
        %4248 = vmatpush1.bf16.msra.mxu0 %v2544
        %4249 = vmatprep.subr.bf16.mxu0 %v2547
        %4250 = vmatpush1.bf16.msra.mxu0 %v2546
        %4251 = vmatprep.subr.bf16.mxu0 %v2549
        %4252 = vmatpush1.bf16.msra.mxu0 %v2548
        %4253 = vmatprep.subr.bf16.mxu0 %v2551
        %4254 = vmatpush1.bf16.msra.mxu0 %v2550
        %4255 = vmatprep.subr.bf16.mxu0 %v2553
        %4256 = vmatpush1.bf16.msra.mxu0 %v2552
        %4257 = vmatprep.subr.bf16.mxu0 %v2555
        %4258 = vmatpush1.bf16.msra.mxu0 %v2554
        %4259 = vmatprep.subr.bf16.mxu0 %v2557
        %4260 = vmatpush1.bf16.msra.mxu0 %v2556
        %4261 = vmatprep.mubr.bf16.mxu0 %v3123
        %4262 = vmatmul.mubr.bf16.gmra.mrb[0].mxu0 %v3121
        %v4263 = vpop.f32.mrb[0].mxu0
        %v4264 = vadd.f32 %v4223, %v4263
        %v4265 = vpop.f32.mrb[0].mxu0
        %v4266 = vadd.f32 %v4225, %v4265
        %v4267 = vpop.f32.mrb[0].mxu0
        %v4268 = vpop.f32.mrb[0].mxu0
        %4269 = vdwg.mxu0
        %4270 = vmatprep.subr.bf16.mxu0 %v2559
        %4271 = vmatpush1.bf16.msra.mxu0 %v2558
        %4272 = vmatprep.subr.bf16.mxu0 %v2561
        %4273 = vmatpush1.bf16.msra.mxu0 %v2560
        %4274 = vmatprep.subr.bf16.mxu0 %v2563
        %4275 = vmatpush1.bf16.msra.mxu0 %v2562
        %4276 = vmatprep.subr.bf16.mxu0 %v2565
        %4277 = vmatpush1.bf16.msra.mxu0 %v2564
        %4278 = vmatprep.subr.bf16.mxu0 %v2567
        %4279 = vmatpush1.bf16.msra.mxu0 %v2566
        %4280 = vmatprep.subr.bf16.mxu0 %v2569
        %4281 = vmatpush1.bf16.msra.mxu0 %v2568
        %4282 = vmatprep.subr.bf16.mxu0 %v2571
        %4283 = vmatpush1.bf16.msra.mxu0 %v2570
        %4284 = vmatprep.subr.bf16.mxu0 %v2573
        %4285 = vmatpush1.bf16.msra.mxu0 %v2572
        %4286 = vmatprep.subr.bf16.mxu0 %v2575
        %4287 = vmatpush1.bf16.msra.mxu0 %v2574
        %4288 = vmatprep.subr.bf16.mxu0 %v2577
        %4289 = vmatpush1.bf16.msra.mxu0 %v2576
        %4290 = vmatprep.subr.bf16.mxu0 %v2579
        %4291 = vmatpush1.bf16.msra.mxu0 %v2578
        %4292 = vmatprep.subr.bf16.mxu0 %v2581
        %4293 = vmatpush1.bf16.msra.mxu0 %v2580
        %4294 = vmatprep.subr.bf16.mxu0 %v2583
        %4295 = vmatpush1.bf16.msra.mxu0 %v2582
        %4296 = vmatprep.subr.bf16.mxu0 %v2585
        %4297 = vmatpush1.bf16.msra.mxu0 %v2584
        %4298 = vmatprep.subr.bf16.mxu0 %v2587
        %4299 = vmatpush1.bf16.msra.mxu0 %v2586
        %4300 = vmatprep.subr.bf16.mxu0 %v2589
        %4301 = vmatpush1.bf16.msra.mxu0 %v2588
        %4302 = vmatprep.mubr.bf16.mxu0 %v3161
        %4303 = vmatmul.mubr.bf16.gmra.mrb[0].mxu0 %v3147
        %v4304 = vpop.f32.mrb[0].mxu0
        %v4305 = vadd.f32 %v4264, %v4304
        %v4306 = vpop.f32.mrb[0].mxu0
        %v4307 = vadd.f32 %v4266, %v4306
        %v4308 = vpop.f32.mrb[0].mxu0
        %v4309 = vpop.f32.mrb[0].mxu0
        %4310 = vdwg.mxu0
        %4311 = vmatprep.subr.bf16.mxu0 %v2591
        %4312 = vmatpush1.bf16.msra.mxu0 %v2590
        %4313 = vmatprep.subr.bf16.mxu0 %v2593
        %4314 = vmatpush1.bf16.msra.mxu0 %v2592
        %4315 = vmatprep.subr.bf16.mxu0 %v2595
        %4316 = vmatpush1.bf16.msra.mxu0 %v2594
        %4317 = vmatprep.subr.bf16.mxu0 %v2597
        %4318 = vmatpush1.bf16.msra.mxu0 %v2596
        %4319 = vmatprep.subr.bf16.mxu0 %v2599
        %4320 = vmatpush1.bf16.msra.mxu0 %v2598
        %4321 = vmatprep.subr.bf16.mxu0 %v2601
        %4322 = vmatpush1.bf16.msra.mxu0 %v2600
        %4323 = vmatprep.subr.bf16.mxu0 %v2603
        %4324 = vmatpush1.bf16.msra.mxu0 %v2602
        %4325 = vmatprep.subr.bf16.mxu0 %v2605
        %4326 = vmatpush1.bf16.msra.mxu0 %v2604
        %4327 = vmatprep.subr.bf16.mxu0 %v2607
        %4328 = vmatpush1.bf16.msra.mxu0 %v2606
        %4329 = vmatprep.subr.bf16.mxu0 %v2609
        %4330 = vmatpush1.bf16.msra.mxu0 %v2608
        %4331 = vmatprep.subr.bf16.mxu0 %v2611
        %4332 = vmatpush1.bf16.msra.mxu0 %v2610
        %4333 = vmatprep.subr.bf16.mxu0 %v2613
        %4334 = vmatpush1.bf16.msra.mxu0 %v2612
        %4335 = vmatprep.subr.bf16.mxu0 %v2615
        %4336 = vmatpush1.bf16.msra.mxu0 %v2614
        %4337 = vmatprep.subr.bf16.mxu0 %v2617
        %4338 = vmatpush1.bf16.msra.mxu0 %v2616
        %4339 = vmatprep.subr.bf16.mxu0 %v2619
        %4340 = vmatpush1.bf16.msra.mxu0 %v2618
        %4341 = vmatprep.subr.bf16.mxu0 %v2621
        %4342 = vmatpush1.bf16.msra.mxu0 %v2620
        %4343 = vmatprep.mubr.bf16.mxu0 %v3171
        %4344 = vmatmul.mubr.bf16.gmra.mrb[0].mxu0 %v3169
        %v4345 = vpop.f32.mrb[0].mxu0
        %v4346 = vadd.f32 %v4305, %v4345
        %v4347 = vpop.f32.mrb[0].mxu0
        %v4348 = vadd.f32 %v4307, %v4347
        %v4349 = vpop.f32.mrb[0].mxu0
        %v4350 = vpop.f32.mrb[0].mxu0
        %4351 = vdwg.mxu0
        %4352 = vmatprep.subr.bf16.mxu0 %v2623
        %4353 = vmatpush1.bf16.msra.mxu0 %v2622
        %4354 = vmatprep.subr.bf16.mxu0 %v2625
        %4355 = vmatpush1.bf16.msra.mxu0 %v2624
        %4356 = vmatprep.subr.bf16.mxu0 %v2627
        %4357 = vmatpush1.bf16.msra.mxu0 %v2626
        %4358 = vmatprep.subr.bf16.mxu0 %v2629
        %4359 = vmatpush1.bf16.msra.mxu0 %v2628
        %4360 = vmatprep.subr.bf16.mxu0 %v2631
        %4361 = vmatpush1.bf16.msra.mxu0 %v2630
        %4362 = vmatprep.subr.bf16.mxu0 %v2633
        %4363 = vmatpush1.bf16.msra.mxu0 %v2632
        %4364 = vmatprep.subr.bf16.mxu0 %v2635
        %4365 = vmatpush1.bf16.msra.mxu0 %v2634
        %4366 = vmatprep.subr.bf16.mxu0 %v2637
        %4367 = vmatpush1.bf16.msra.mxu0 %v2636
        %4368 = vmatprep.subr.bf16.mxu0 %v2639
        %4369 = vmatpush1.bf16.msra.mxu0 %v2638
        %4370 = vmatprep.subr.bf16.mxu0 %v2641
        %4371 = vmatpush1.bf16.msra.mxu0 %v2640
        %4372 = vmatprep.subr.bf16.mxu0 %v2643
        %4373 = vmatpush1.bf16.msra.mxu0 %v2642
        %4374 = vmatprep.subr.bf16.mxu0 %v2645
        %4375 = vmatpush1.bf16.msra.mxu0 %v2644
        %4376 = vmatprep.subr.bf16.mxu0 %v2647
        %4377 = vmatpush1.bf16.msra.mxu0 %v2646
        %4378 = vmatprep.subr.bf16.mxu0 %v2649
        %4379 = vmatpush1.bf16.msra.mxu0 %v2648
        %4380 = vmatprep.subr.bf16.mxu0 %v2651
        %4381 = vmatpush1.bf16.msra.mxu0 %v2650
        %4382 = vmatprep.subr.bf16.mxu0 %v2653
        %4383 = vmatpush1.bf16.msra.mxu0 %v2652
        %4384 = vmatprep.mubr.bf16.mxu0 %v3168
        %4385 = vmatmul.mubr.bf16.gmra.mrb[0].mxu0 %v3154
        %v4386 = vpop.f32.mrb[0].mxu0
        %v4387 = vadd.f32 %v4346, %v4386
        %v4388 = vpop.f32.mrb[0].mxu0
        %v4389 = vadd.f32 %v4348, %v4388
        %v4390 = vpop.f32.mrb[0].mxu0
        %v4391 = vpop.f32.mrb[0].mxu0
        %4392 = vdwg.mxu0
        %4393 = vmatprep.subr.bf16.mxu0 %v2655
        %4394 = vmatpush1.bf16.msra.mxu0 %v2654
        %4395 = vmatprep.subr.bf16.mxu0 %v2657
        %4396 = vmatpush1.bf16.msra.mxu0 %v2656
        %4397 = vmatprep.subr.bf16.mxu0 %v2659
        %4398 = vmatpush1.bf16.msra.mxu0 %v2658
        %4399 = vmatprep.subr.bf16.mxu0 %v2661
        %4400 = vmatpush1.bf16.msra.mxu0 %v2660
        %4401 = vmatprep.subr.bf16.mxu0 %v2663
        %4402 = vmatpush1.bf16.msra.mxu0 %v2662
        %4403 = vmatprep.subr.bf16.mxu0 %v2665
        %4404 = vmatpush1.bf16.msra.mxu0 %v2664
        %4405 = vmatprep.subr.bf16.mxu0 %v2667
        %4406 = vmatpush1.bf16.msra.mxu0 %v2666
        %4407 = vmatprep.subr.bf16.mxu0 %v2669
        %4408 = vmatpush1.bf16.msra.mxu0 %v2668
        %4409 = vmatprep.subr.bf16.mxu0 %v2671
        %4410 = vmatpush1.bf16.msra.mxu0 %v2670
        %4411 = vmatprep.subr.bf16.mxu0 %v2673
        %4412 = vmatpush1.bf16.msra.mxu0 %v2672
        %4413 = vmatprep.subr.bf16.mxu0 %v2675
        %4414 = vmatpush1.bf16.msra.mxu0 %v2674
        %4415 = vmatprep.subr.bf16.mxu0 %v2677
        %4416 = vmatpush1.bf16.msra.mxu0 %v2676
        %4417 = vmatprep.subr.bf16.mxu0 %v2679
        %4418 = vmatpush1.bf16.msra.mxu0 %v2678
        %4419 = vmatprep.subr.bf16.mxu0 %v2681
        %4420 = vmatpush1.bf16.msra.mxu0 %v2680
        %4421 = vmatprep.subr.bf16.mxu0 %v2683
        %4422 = vmatpush1.bf16.msra.mxu0 %v2682
        %4423 = vmatprep.subr.bf16.mxu0 %v2685
        %4424 = vmatpush1.bf16.msra.mxu0 %v2684
        %4425 = vmatprep.mubr.bf16.mxu0 %v3172
        %4426 = vmatmul.mubr.bf16.gmra.mrb[0].mxu0 %v3170
        %v4427 = vpop.f32.mrb[0].mxu0
        %v4428 = vadd.f32 %v4387, %v4427
        %v4429 = vpop.f32.mrb[0].mxu0
        %v4430 = vadd.f32 %v4389, %v4429
        %v4431 = vpop.f32.mrb[0].mxu0
        %v4432 = vpop.f32.mrb[0].mxu0
        %4433 = vdwg.mxu0
        %4434 = vmatprep.subr.bf16.mxu0 %v2687
        %4435 = vmatpush1.bf16.msra.mxu0 %v2686
        %4436 = vmatprep.subr.bf16.mxu0 %v2689
        %4437 = vmatpush1.bf16.msra.mxu0 %v2688
        %4438 = vmatprep.subr.bf16.mxu0 %v2691
        %4439 = vmatpush1.bf16.msra.mxu0 %v2690
        %4440 = vmatprep.subr.bf16.mxu0 %v2693
        %4441 = vmatpush1.bf16.msra.mxu0 %v2692
        %4442 = vmatprep.subr.bf16.mxu0 %v2695
        %4443 = vmatpush1.bf16.msra.mxu0 %v2694
        %4444 = vmatprep.subr.bf16.mxu0 %v2697
        %4445 = vmatpush1.bf16.msra.mxu0 %v2696
        %4446 = vmatprep.subr.bf16.mxu0 %v2699
        %4447 = vmatpush1.bf16.msra.mxu0 %v2698
        %4448 = vmatprep.subr.bf16.mxu0 %v2701
        %4449 = vmatpush1.bf16.msra.mxu0 %v2700
        %4450 = vmatprep.subr.bf16.mxu0 %v2703
        %4451 = vmatpush1.bf16.msra.mxu0 %v2702
        %4452 = vmatprep.subr.bf16.mxu0 %v2705
        %4453 = vmatpush1.bf16.msra.mxu0 %v2704
        %4454 = vmatprep.subr.bf16.mxu0 %v2707
        %4455 = vmatpush1.bf16.msra.mxu0 %v2706
        %4456 = vmatprep.subr.bf16.mxu0 %v2709
        %4457 = vmatpush1.bf16.msra.mxu0 %v2708
        %4458 = vmatprep.subr.bf16.mxu0 %v2711
        %4459 = vmatpush1.bf16.msra.mxu0 %v2710
        %4460 = vmatprep.subr.bf16.mxu0 %v2713
        %4461 = vmatpush1.bf16.msra.mxu0 %v2712
        %4462 = vmatprep.subr.bf16.mxu0 %v2715
        %4463 = vmatpush1.bf16.msra.mxu0 %v2714
        %4464 = vmatprep.subr.bf16.mxu0 %v2717
        %4465 = vmatpush1.bf16.msra.mxu0 %v2716
        %4466 = vmatprep.mubr.bf16.mxu0 %v3210
        %4467 = vmatmul.mubr.bf16.gmra.mrb[0].mxu0 %v3196
        %v4468 = vpop.f32.mrb[0].mxu0
        %v4469 = vadd.f32 %v4428, %v4468
        %v4470 = vpop.f32.mrb[0].mxu0
        %v4471 = vadd.f32 %v4430, %v4470
        %v4472 = vpop.f32.mrb[0].mxu0
        %v4473 = vpop.f32.mrb[0].mxu0
        %4474 = vdwg.mxu0
        %4475 = vmatprep.subr.bf16.mxu0 %v2719
        %4476 = vmatpush1.bf16.msra.mxu0 %v2718
        %4477 = vmatprep.subr.bf16.mxu0 %v2721
        %4478 = vmatpush1.bf16.msra.mxu0 %v2720
        %4479 = vmatprep.subr.bf16.mxu0 %v2723
        %4480 = vmatpush1.bf16.msra.mxu0 %v2722
        %4481 = vmatprep.subr.bf16.mxu0 %v2725
        %4482 = vmatpush1.bf16.msra.mxu0 %v2724
        %4483 = vmatprep.subr.bf16.mxu0 %v2727
        %4484 = vmatpush1.bf16.msra.mxu0 %v2726
        %4485 = vmatprep.subr.bf16.mxu0 %v2729
        %4486 = vmatpush1.bf16.msra.mxu0 %v2728
        %4487 = vmatprep.subr.bf16.mxu0 %v2731
        %4488 = vmatpush1.bf16.msra.mxu0 %v2730
        %4489 = vmatprep.subr.bf16.mxu0 %v2733
        %4490 = vmatpush1.bf16.msra.mxu0 %v2732
        %4491 = vmatprep.subr.bf16.mxu0 %v2735
        %4492 = vmatpush1.bf16.msra.mxu0 %v2734
        %4493 = vmatprep.subr.bf16.mxu0 %v2737
        %4494 = vmatpush1.bf16.msra.mxu0 %v2736
        %4495 = vmatprep.subr.bf16.mxu0 %v2739
        %4496 = vmatpush1.bf16.msra.mxu0 %v2738
        %4497 = vmatprep.subr.bf16.mxu0 %v2741
        %4498 = vmatpush1.bf16.msra.mxu0 %v2740
        %4499 = vmatprep.subr.bf16.mxu0 %v2743
        %4500 = vmatpush1.bf16.msra.mxu0 %v2742
        %4501 = vmatprep.subr.bf16.mxu0 %v2745
        %4502 = vmatpush1.bf16.msra.mxu0 %v2744
        %4503 = vmatprep.subr.bf16.mxu0 %v2747
        %4504 = vmatpush1.bf16.msra.mxu0 %v2746
        %4505 = vmatprep.subr.bf16.mxu0 %v2749
        %4506 = vmatpush1.bf16.msra.mxu0 %v2748
        %4507 = vmatprep.mubr.bf16.mxu0 %v3220
        %4508 = vmatmul.mubr.bf16.gmra.mrb[0].mxu0 %v3218
        %v4509 = vpop.f32.mrb[0].mxu0
        %v4510 = vadd.f32 %v4469, %v4509
        %v4511 = vpop.f32.mrb[0].mxu0
        %v4512 = vadd.f32 %v4471, %v4511
        %v4513 = vpop.f32.mrb[0].mxu0
        %v4514 = vpop.f32.mrb[0].mxu0
        %4515 = vdwg.mxu0
        %4516 = vmatprep.subr.bf16.mxu0 %v2751
        %4517 = vmatpush1.bf16.msra.mxu0 %v2750
        %4518 = vmatprep.subr.bf16.mxu0 %v2753
        %4519 = vmatpush1.bf16.msra.mxu0 %v2752
        %4520 = vmatprep.subr.bf16.mxu0 %v2755
        %4521 = vmatpush1.bf16.msra.mxu0 %v2754
        %4522 = vmatprep.subr.bf16.mxu0 %v2757
        %4523 = vmatpush1.bf16.msra.mxu0 %v2756
        %4524 = vmatprep.subr.bf16.mxu0 %v2759
        %4525 = vmatpush1.bf16.msra.mxu0 %v2758
        %4526 = vmatprep.subr.bf16.mxu0 %v2761
        %4527 = vmatpush1.bf16.msra.mxu0 %v2760
        %4528 = vmatprep.subr.bf16.mxu0 %v2763
        %4529 = vmatpush1.bf16.msra.mxu0 %v2762
        %4530 = vmatprep.subr.bf16.mxu0 %v2765
        %4531 = vmatpush1.bf16.msra.mxu0 %v2764
        %4532 = vmatprep.subr.bf16.mxu0 %v2767
        %4533 = vmatpush1.bf16.msra.mxu0 %v2766
        %4534 = vmatprep.subr.bf16.mxu0 %v2769
        %4535 = vmatpush1.bf16.msra.mxu0 %v2768
        %4536 = vmatprep.subr.bf16.mxu0 %v2771
        %4537 = vmatpush1.bf16.msra.mxu0 %v2770
        %4538 = vmatprep.subr.bf16.mxu0 %v2773
        %4539 = vmatpush1.bf16.msra.mxu0 %v2772
        %4540 = vmatprep.subr.bf16.mxu0 %v2775
        %4541 = vmatpush1.bf16.msra.mxu0 %v2774
        %4542 = vmatprep.subr.bf16.mxu0 %v2777
        %4543 = vmatpush1.bf16.msra.mxu0 %v2776
        %4544 = vmatprep.subr.bf16.mxu0 %v2779
        %4545 = vmatpush1.bf16.msra.mxu0 %v2778
        %4546 = vmatprep.subr.bf16.mxu0 %v2781
        %4547 = vmatpush1.bf16.msra.mxu0 %v2780
        %4548 = vmatprep.mubr.bf16.mxu0 %v3217
        %4549 = vmatmul.mubr.bf16.gmra.mrb[0].mxu0 %v3203
        %v4550 = vpop.f32.mrb[0].mxu0
        %v4551 = vadd.f32 %v4510, %v4550
        %v4552 = vpop.f32.mrb[0].mxu0
        %v4553 = vadd.f32 %v4512, %v4552
        %v4554 = vpop.f32.mrb[0].mxu0
        %v4555 = vpop.f32.mrb[0].mxu0
        %4556 = vdwg.mxu0
        %4557 = vmatprep.subr.bf16.mxu0 %v2783
        %4558 = vmatpush1.bf16.msra.mxu0 %v2782
        %4559 = vmatprep.subr.bf16.mxu0 %v2785
        %4560 = vmatpush1.bf16.msra.mxu0 %v2784
        %4561 = vmatprep.subr.bf16.mxu0 %v2787
        %4562 = vmatpush1.bf16.msra.mxu0 %v2786
        %4563 = vmatprep.subr.bf16.mxu0 %v2789
        %4564 = vmatpush1.bf16.msra.mxu0 %v2788
        %4565 = vmatprep.subr.bf16.mxu0 %v2791
        %4566 = vmatpush1.bf16.msra.mxu0 %v2790
        %4567 = vmatprep.subr.bf16.mxu0 %v2793
        %4568 = vmatpush1.bf16.msra.mxu0 %v2792
        %4569 = vmatprep.subr.bf16.mxu0 %v2795
        %4570 = vmatpush1.bf16.msra.mxu0 %v2794
        %4571 = vmatprep.subr.bf16.mxu0 %v2797
        %4572 = vmatpush1.bf16.msra.mxu0 %v2796
        %4573 = vmatprep.subr.bf16.mxu0 %v2799
        %4574 = vmatpush1.bf16.msra.mxu0 %v2798
        %4575 = vmatprep.subr.bf16.mxu0 %v2801
        %4576 = vmatpush1.bf16.msra.mxu0 %v2800
        %4577 = vmatprep.subr.bf16.mxu0 %v2803
        %4578 = vmatpush1.bf16.msra.mxu0 %v2802
        %4579 = vmatprep.subr.bf16.mxu0 %v2805
        %4580 = vmatpush1.bf16.msra.mxu0 %v2804
        %4581 = vmatprep.subr.bf16.mxu0 %v2807
        %4582 = vmatpush1.bf16.msra.mxu0 %v2806
        %4583 = vmatprep.subr.bf16.mxu0 %v2809
        %4584 = vmatpush1.bf16.msra.mxu0 %v2808
        %4585 = vmatprep.subr.bf16.mxu0 %v2811
        %4586 = vmatpush1.bf16.msra.mxu0 %v2810
        %4587 = vmatprep.subr.bf16.mxu0 %v2813
        %4588 = vmatpush1.bf16.msra.mxu0 %v2812
        %4589 = vmatprep.mubr.bf16.mxu0 %v3221
        %4590 = vmatmul.mubr.bf16.gmra.mrb[0].mxu0 %v3219
        %v4591 = vpop.f32.mrb[0].mxu0
        %v4592 = vadd.f32 %v4551, %v4591
        %v4593 = vpop.f32.mrb[0].mxu0
        %v4594 = vadd.f32 %v4553, %v4593
        %v4595 = vpop.f32.mrb[0].mxu0
        %v4596 = vpop.f32.mrb[0].mxu0
        %4597 = vdwg.mxu0
        %v4598 = vld [vmem:[%s1266] sm:$0x3]
        %v4600 = vlaneseq
        %v4601 = vshrl.u32 %v4600, 7
        %v4602 = vsub.s32 0, %v4601
        %v4603 = vrot.slane %v4598, %v4602
        %v4604 = vlaneseq
        %v4605 = vshrl.u32 %v4604, 7
        %v4606 = vsub.s32 1, %v4605
        %v4607 = vrot.slane %v4598, %v4606
        %v4610 = vmul.f32 %v4592, %v4603
        %v4611 = vmul.f32 %v4594, %v4607
        %v4612 = vld [vmem:[%s1271] sm:$0x3]
        %v4614 = vlaneseq
        %v4615 = vshrl.u32 %v4614, 7
        %v4616 = vsub.s32 0, %v4615
        %v4617 = vrot.slane %v4612, %v4616
        %v4618 = vlaneseq
        %v4619 = vshrl.u32 %v4618, 7
        %v4620 = vsub.s32 1, %v4619
        %v4621 = vrot.slane %v4612, %v4620
        %v4624 = vadd.f32 %v4610, %v4617
        %v4625 = vadd.f32 %v4611, %v4621
        %v4626 = vmax.f32 %v4624, 0.0
        %v4627 = vmax.f32 %v4625, 0.0
        %v4628 = vpack.c.bf16 %v4626, %v4626
        %v4629 = vpack.c.bf16 %v4627, %v4627
        %v4632 = vcombine.low %v4628, %v4629
        %v4634 = vunpack.c.l.s4 1966171168
        %v4635 = vunpack.c.0.s8 %v4634
        %v4636 = vlaneseq
        %v4637 = vshrl.u32 %v4636, 7
        %v4638 = vsub.s32 %v4635, %v4637
        %v4639 = vrot.slane %v4632, %v4638
        %v4641 = vunpack.c.l.s4 1966171168
        %v4642 = vunpack.c.0.s8 %v4641
        %v4643 = vlaneseq
        %v4644 = vshrl.u32 %v4643, 7
        %v4645 = vsub.s32 %v4642, %v4644
        %v4646 = vrot.slane %v4639, %v4645
        %4648 = vst [vmem:[%s1276] sm:$0x3] %v4646
        %s4649 = smul.u32 2, %s15
        %p4650 = scmp.lt.s32.totalorder %s4649, 3
        %s4651 = scalar_select %p4650, %s4649, 3
        %s4652 = scalar_lea.vmem %s4, %s4651
        // Predicated region
        $region60: #{vgg_forward.7} parent=54 // pred_check
          %p4653 = pneg %p132
        $region61: #{vgg_forward.7} parent=54 // pred_check_branch
          %4655 = sbr.rel (%p4653) target = $region63
        $region62: #{vgg_forward.7} parent=54 // pred_region
          %s4656 = smul.u32 2, %s15
        $region63: #{vgg_forward.7} parent=54 // pred_fallthru
          _
      $region55: #{vgg_forward.7} parent=5 // pred_fallthru
        _
      %p4657 = scmp.le.s32.totalorder 2, %s10
      // Predicated region
      $region64: #{vgg_forward.7} parent=5 // pred_check
        %p4658 = pneg %p4657
      $region65: #{vgg_forward.7} parent=5 // pred_check_branch
        %4660 = sbr.rel (%p4658) target = $region67
      $region66: #{vgg_forward.7} parent=5 // pred_region
        %s4661 = ssub.s32 %s10, 2
        // Predicated region
        $region68: #{vgg_forward.7} parent=66 // pred_check
          %p4662 = pneg %p138
        $region69: #{vgg_forward.7} parent=66 // pred_check_branch
          %4664 = sbr.rel (%p4662) target = $region71
        $region70: #{vgg_forward.7} parent=66 // pred_region
          %s4665 = smul.u32 2, %s16
          %p4666 = scmp.lt.s32.totalorder %s4665, 3
          %s4667 = scalar_select %p4666, %s4665, 3
          %s4668 = scalar_lea.vmem %s4, %s4667
        $region71: #{vgg_forward.7} parent=66 // pred_fallthru
          _
      $region67: #{vgg_forward.7} parent=5 // pred_fallthru
        _
    $region6: #{vgg_forward.7} parent=1 // loop_footer
      %s14 = sadd.s32 1, %s10
    $region7: #{vgg_forward.7} parent=1 // loop_footer_branch
      %9 = sbr.rel target = $region3
    $region8: #{vgg_forward.7} parent=1 // loop_exit
      _

// kernel: vgg_forward.9
$region0: #{vgg_forward.9}
  #allocation0 [shape = 'u32[]', space=smem, size = 0x4, offset = 0x4, fixed_abs, tag = 'smem constant byte address 0x4 - core index']
  #allocation1 [shape = 'u32[144,128]{1,0:T(1,128)}', space=vmem, size = 0x12000, scoped, tag = 'internal scratch']
  %s0 = inlined_call_operand.vmem [shape: bf16[2,512], index: 0, kind: input, shape index: {}]
  %s1 = inlined_call_operand.vmem [shape: bf16[512,10], index: 1, kind: input, shape index: {}]
  %s2 = inlined_call_operand.vmem [shape: f32[1,10], index: 2, kind: input, shape index: {}]
  %s3 = inlined_call_operand.vmem [shape: f32[1,10], index: 3, kind: input, shape index: {}]
  %s4 = inlined_call_operand.hbm [shape: f32[2,10], index: 4, kind: output, shape index: {}]
  %s5 = sld [smem:[#allocation0]]
  $region26: #{vgg_forward.9} parent=0
    _
  %s7 = ssub.s32 1, %s5
  %s8 = scalar_select 0, %s7, %s5
  $region1: #{vgg_forward.9} parent=0
    #allocation2 [shape = 'u8[1024]{0}', space=vmem, size = 0x400, scoped, tag = 'output window, operand 0, single buffered']
    #allocation3 [shape = 's32[1]{0}', space=sflag, size = 0x4, scoped, tag = 'scoped memory for vgg_forward.9']
    %9 = vsyncpa [#allocation3], 0
    // Predicated region
    $region2: #{vgg_forward.9} parent=1 // pred_check
      _
    $region3: #{vgg_forward.9} parent=1 // pred_check_branch
      %11 = sbr.rel (0) target = $region5
    $region4: #{vgg_forward.9} parent=1 // pred_region
      _
    $region5: #{vgg_forward.9} parent=1 // pred_fallthru
      _
    // Predicated region
    $region6: #{vgg_forward.9} parent=1 // pred_check
      _
    $region7: #{vgg_forward.9} parent=1 // pred_check_branch
      %13 = sbr.rel (0) target = $region9
    $region8: #{vgg_forward.9} parent=1 // pred_region
      _
    $region9: #{vgg_forward.9} parent=1 // pred_fallthru
      _
    // Predicated region
    $region10: #{vgg_forward.9} parent=1 // pred_check
      _
    $region11: #{vgg_forward.9} parent=1 // pred_check_branch
      %15 = sbr.rel (0) target = $region13
    $region12: #{vgg_forward.9} parent=1 // pred_region
      _
    $region13: #{vgg_forward.9} parent=1 // pred_fallthru
      _
    // Predicated region
    $region14: #{vgg_forward.9} parent=1 // pred_check
      _
    $region15: #{vgg_forward.9} parent=1 // pred_check_branch
      %17 = sbr.rel (0) target = $region17
    $region16: #{vgg_forward.9} parent=1 // pred_region
      _
    $region17: #{vgg_forward.9} parent=1 // pred_fallthru
      _
    %v19 = vld [vmem:[%s1] sm:$0xf]
    %v20 = vld [vmem:[%s1 + $0x4] sm:$0xf]
    %v21 = vld [vmem:[%s1 + $0x8] sm:$0xf]
    %v22 = vld [vmem:[%s1 + $0xc] sm:$0xf]
    %v23 = vld [vmem:[%s1 + $0x10] sm:$0xf]
    %v24 = vld [vmem:[%s1 + $0x14] sm:$0xf]
    %v25 = vld [vmem:[%s1 + $0x18] sm:$0xf]
    %v26 = vld [vmem:[%s1 + $0x1c] sm:$0xf]
    %v27 = vld [vmem:[%s1 + $0x20] sm:$0xf]
    %v28 = vld [vmem:[%s1 + $0x24] sm:$0xf]
    %v29 = vld [vmem:[%s1 + $0x28] sm:$0xf]
    %v30 = vld [vmem:[%s1 + $0x2c] sm:$0xf]
    %v31 = vld [vmem:[%s1 + $0x30] sm:$0xf]
    %v32 = vld [vmem:[%s1 + $0x34] sm:$0xf]
    %v33 = vld [vmem:[%s1 + $0x38] sm:$0xf]
    %v34 = vld [vmem:[%s1 + $0x3c] sm:$0xf]
    %v35 = vld [vmem:[%s1 + $0x40] sm:$0xf]
    %v36 = vld [vmem:[%s1 + $0x44] sm:$0xf]
    %v37 = vld [vmem:[%s1 + $0x48] sm:$0xf]
    %v38 = vld [vmem:[%s1 + $0x4c] sm:$0xf]
    %v39 = vld [vmem:[%s1 + $0x50] sm:$0xf]
    %v40 = vld [vmem:[%s1 + $0x54] sm:$0xf]
    %v41 = vld [vmem:[%s1 + $0x58] sm:$0xf]
    %v42 = vld [vmem:[%s1 + $0x5c] sm:$0xf]
    %v43 = vld [vmem:[%s1 + $0x60] sm:$0xf]
    %v44 = vld [vmem:[%s1 + $0x64] sm:$0xf]
    %v45 = vld [vmem:[%s1 + $0x68] sm:$0xf]
    %v46 = vld [vmem:[%s1 + $0x6c] sm:$0xf]
    %v47 = vld [vmem:[%s1 + $0x70] sm:$0xf]
    %v48 = vld [vmem:[%s1 + $0x74] sm:$0xf]
    %v49 = vld [vmem:[%s1 + $0x78] sm:$0xf]
    %v50 = vld [vmem:[%s1 + $0x7c] sm:$0xf]
    %v51 = vld [vmem:[%s1 + $0x80] sm:$0xf]
    %v52 = vld [vmem:[%s1 + $0x84] sm:$0xf]
    %v53 = vld [vmem:[%s1 + $0x88] sm:$0xf]
    %v54 = vld [vmem:[%s1 + $0x8c] sm:$0xf]
    %v55 = vld [vmem:[%s1 + $0x90] sm:$0xf]
    %v56 = vld [vmem:[%s1 + $0x94] sm:$0xf]
    %v57 = vld [vmem:[%s1 + $0x98] sm:$0xf]
    %v58 = vld [vmem:[%s1 + $0x9c] sm:$0xf]
    %v59 = vld [vmem:[%s1 + $0xa0] sm:$0xf]
    %v60 = vld [vmem:[%s1 + $0xa4] sm:$0xf]
    %v61 = vld [vmem:[%s1 + $0xa8] sm:$0xf]
    %v62 = vld [vmem:[%s1 + $0xac] sm:$0xf]
    %v63 = vld [vmem:[%s1 + $0xb0] sm:$0xf]
    %v64 = vld [vmem:[%s1 + $0xb4] sm:$0xf]
    %v65 = vld [vmem:[%s1 + $0xb8] sm:$0xf]
    %v66 = vld [vmem:[%s1 + $0xbc] sm:$0xf]
    %v67 = vld [vmem:[%s1 + $0xc0] sm:$0xf]
    %v68 = vld [vmem:[%s1 + $0xc4] sm:$0xf]
    %v69 = vld [vmem:[%s1 + $0xc8] sm:$0xf]
    %v70 = vld [vmem:[%s1 + $0xcc] sm:$0xf]
    %v71 = vld [vmem:[%s1 + $0xd0] sm:$0xf]
    %v72 = vld [vmem:[%s1 + $0xd4] sm:$0xf]
    %v73 = vld [vmem:[%s1 + $0xd8] sm:$0xf]
    %v74 = vld [vmem:[%s1 + $0xdc] sm:$0xf]
    %v75 = vld [vmem:[%s1 + $0xe0] sm:$0xf]
    %v76 = vld [vmem:[%s1 + $0xe4] sm:$0xf]
    %v77 = vld [vmem:[%s1 + $0xe8] sm:$0xf]
    %v78 = vld [vmem:[%s1 + $0xec] sm:$0xf]
    %v79 = vld [vmem:[%s1 + $0xf0] sm:$0xf]
    %v80 = vld [vmem:[%s1 + $0xf4] sm:$0xf]
    %v81 = vld [vmem:[%s1 + $0xf8] sm:$0xf]
    %v82 = vld [vmem:[%s1 + $0xfc] sm:$0xf]
    %v83 = vld [vmem:[%s0] sm:$0xf]
    %v86 = vunpack.c.l.s4 1966171168
    %v87 = vunpack.c.0.s8 %v86
    %v88 = vlaneseq
    %v89 = vshrl.u32 %v88, 7
    %v90 = vsub.s32 %v87, %v89
    %v91 = vrot.slane %v83, %v90
    %v92 = vcombine.high %v91, %v91
    %v94 = vunpack.c.l.s4 1966171168
    %v95 = vunpack.c.0.s8 %v94
    %v96 = vlaneseq
    %v97 = vshrl.u32 %v96, 7
    %v98 = vsub.s32 %v95, %v97
    %v99 = vrot.slane %v91, %v98
    %v101 = vunpack.c.l.s4 1966171168
    %v102 = vunpack.c.0.s8 %v101
    %v103 = vlaneseq
    %v104 = vshrl.u32 %v103, 7
    %v105 = vsub.s32 %v102, %v104
    %v106 = vrot.slane %v92, %v105
    %v107 = vcombine.high %v99, %v99
    %v108 = vcombine.high %v106, %v106
    %v177 = vunpack.c.l.b16 %v19
    %v178 = vunpack.c.l.b16 %v20
    %v179 = vunpack.c.l.b16 %v21
    %v180 = vunpack.c.l.b16 %v22
    %v181 = vunpack.c.l.b16 %v23
    %v182 = vunpack.c.l.b16 %v24
    %v183 = vunpack.c.l.b16 %v25
    %v184 = vunpack.c.l.b16 %v26
    %v185 = vunpack.c.l.b16 %v27
    %v186 = vunpack.c.l.b16 %v28
    %v187 = vunpack.c.l.b16 %v29
    %v188 = vunpack.c.l.b16 %v30
    %v189 = vunpack.c.l.b16 %v31
    %v190 = vunpack.c.l.b16 %v32
    %v191 = vunpack.c.l.b16 %v33
    %v192 = vunpack.c.l.b16 %v34
    %v193 = vunpack.c.l.b16 %v35
    %v194 = vunpack.c.l.b16 %v36
    %v195 = vunpack.c.l.b16 %v37
    %v196 = vunpack.c.l.b16 %v38
    %v197 = vunpack.c.l.b16 %v39
    %v198 = vunpack.c.l.b16 %v40
    %v199 = vunpack.c.l.b16 %v41
    %v200 = vunpack.c.l.b16 %v42
    %v201 = vunpack.c.l.b16 %v43
    %v202 = vunpack.c.l.b16 %v44
    %v203 = vunpack.c.l.b16 %v45
    %v204 = vunpack.c.l.b16 %v46
    %v205 = vunpack.c.l.b16 %v47
    %v206 = vunpack.c.l.b16 %v48
    %v207 = vunpack.c.l.b16 %v49
    %v208 = vunpack.c.l.b16 %v50
    %v209 = vunpack.c.l.b16 %v51
    %v210 = vunpack.c.l.b16 %v52
    %v211 = vunpack.c.l.b16 %v53
    %v212 = vunpack.c.l.b16 %v54
    %v213 = vunpack.c.l.b16 %v55
    %v214 = vunpack.c.l.b16 %v56
    %v215 = vunpack.c.l.b16 %v57
    %v216 = vunpack.c.l.b16 %v58
    %v217 = vunpack.c.l.b16 %v59
    %v218 = vunpack.c.l.b16 %v60
    %v219 = vunpack.c.l.b16 %v61
    %v220 = vunpack.c.l.b16 %v62
    %v221 = vunpack.c.l.b16 %v63
    %v222 = vunpack.c.l.b16 %v64
    %v223 = vunpack.c.l.b16 %v65
    %v224 = vunpack.c.l.b16 %v66
    %v225 = vunpack.c.l.b16 %v67
    %v226 = vunpack.c.l.b16 %v68
    %v227 = vunpack.c.l.b16 %v69
    %v228 = vunpack.c.l.b16 %v70
    %v229 = vunpack.c.l.b16 %v71
    %v230 = vunpack.c.l.b16 %v72
    %v231 = vunpack.c.l.b16 %v73
    %v232 = vunpack.c.l.b16 %v74
    %v233 = vunpack.c.l.b16 %v75
    %v234 = vunpack.c.l.b16 %v76
    %v235 = vunpack.c.l.b16 %v77
    %v236 = vunpack.c.l.b16 %v78
    %v237 = vunpack.c.l.b16 %v79
    %v238 = vunpack.c.l.b16 %v80
    %v239 = vunpack.c.l.b16 %v81
    %v240 = vunpack.c.l.b16 %v82
    %v241 = vpack.c.b16 %v178, %v177
    %v242 = vpack.c.b16 %v180, %v179
    %v243 = vpack.c.b16 %v182, %v181
    %v244 = vpack.c.b16 %v184, %v183
    %v245 = vpack.c.b16 %v186, %v185
    %v246 = vpack.c.b16 %v188, %v187
    %v247 = vpack.c.b16 %v190, %v189
    %v248 = vpack.c.b16 %v192, %v191
    %v249 = vpack.c.b16 %v194, %v193
    %v250 = vpack.c.b16 %v196, %v195
    %v251 = vpack.c.b16 %v198, %v197
    %v252 = vpack.c.b16 %v200, %v199
    %v253 = vpack.c.b16 %v202, %v201
    %v254 = vpack.c.b16 %v204, %v203
    %v255 = vpack.c.b16 %v206, %v205
    %v256 = vpack.c.b16 %v208, %v207
    %v257 = vpack.c.b16 %v210, %v209
    %v258 = vpack.c.b16 %v212, %v211
    %v259 = vpack.c.b16 %v214, %v213
    %v260 = vpack.c.b16 %v216, %v215
    %v261 = vpack.c.b16 %v218, %v217
    %v262 = vpack.c.b16 %v220, %v219
    %v263 = vpack.c.b16 %v222, %v221
    %v264 = vpack.c.b16 %v224, %v223
    %v265 = vpack.c.b16 %v226, %v225
    %v266 = vpack.c.b16 %v228, %v227
    %v267 = vpack.c.b16 %v230, %v229
    %v268 = vpack.c.b16 %v232, %v231
    %v269 = vpack.c.b16 %v234, %v233
    %v270 = vpack.c.b16 %v236, %v235
    %v271 = vpack.c.b16 %v238, %v237
    %v272 = vpack.c.b16 %v240, %v239
    %305 = vmatprep.subr.bf16.mxu0 0
    %306 = vmatpush1.bf16.msra.mxu0 %v241
    %307 = vmatprep.subr.bf16.mxu0 0
    %308 = vmatpush1.bf16.msra.mxu0 %v242
    %309 = vmatprep.subr.bf16.mxu0 0
    %310 = vmatpush1.bf16.msra.mxu0 %v243
    %311 = vmatprep.subr.bf16.mxu0 0
    %312 = vmatpush1.bf16.msra.mxu0 %v244
    %313 = vmatprep.subr.bf16.mxu0 0
    %314 = vmatpush1.bf16.msra.mxu0 %v245
    %315 = vmatprep.subr.bf16.mxu0 0
    %316 = vmatpush1.bf16.msra.mxu0 %v246
    %317 = vmatprep.subr.bf16.mxu0 0
    %318 = vmatpush1.bf16.msra.mxu0 %v247
    %319 = vmatprep.subr.bf16.mxu0 0
    %320 = vmatpush1.bf16.msra.mxu0 %v248
    %321 = vmatprep.subr.bf16.mxu0 0
    %322 = vmatpush1.bf16.msra.mxu0 %v249
    %323 = vmatprep.subr.bf16.mxu0 0
    %324 = vmatpush1.bf16.msra.mxu0 %v250
    %325 = vmatprep.subr.bf16.mxu0 0
    %326 = vmatpush1.bf16.msra.mxu0 %v251
    %327 = vmatprep.subr.bf16.mxu0 0
    %328 = vmatpush1.bf16.msra.mxu0 %v252
    %329 = vmatprep.subr.bf16.mxu0 0
    %330 = vmatpush1.bf16.msra.mxu0 %v253
    %331 = vmatprep.subr.bf16.mxu0 0
    %332 = vmatpush1.bf16.msra.mxu0 %v254
    %333 = vmatprep.subr.bf16.mxu0 0
    %334 = vmatpush1.bf16.msra.mxu0 %v255
    %335 = vmatprep.subr.bf16.mxu0 0
    %336 = vmatpush1.bf16.msra.mxu0 %v256
    %337 = vmatprep.mubr.bf16.mxu0 %v106
    %338 = vmatmul.mubr.bf16.gmra.mrb[0].mxu0 %v99
    %v339 = vpop.f32.mrb[0].mxu0
    %v340 = vadd.f32 0.0, %v339
    %v341 = vpop.f32.mrb[0].mxu0
    %v342 = vpop.f32.mrb[0].mxu0
    %v343 = vpop.f32.mrb[0].mxu0
    %344 = vdwg.mxu0
    %345 = vmatprep.subr.bf16.mxu0 0
    %346 = vmatpush1.bf16.msra.mxu0 %v257
    %347 = vmatprep.subr.bf16.mxu0 0
    %348 = vmatpush1.bf16.msra.mxu0 %v258
    %349 = vmatprep.subr.bf16.mxu0 0
    %350 = vmatpush1.bf16.msra.mxu0 %v259
    %351 = vmatprep.subr.bf16.mxu0 0
    %352 = vmatpush1.bf16.msra.mxu0 %v260
    %353 = vmatprep.subr.bf16.mxu0 0
    %354 = vmatpush1.bf16.msra.mxu0 %v261
    %355 = vmatprep.subr.bf16.mxu0 0
    %356 = vmatpush1.bf16.msra.mxu0 %v262
    %357 = vmatprep.subr.bf16.mxu0 0
    %358 = vmatpush1.bf16.msra.mxu0 %v263
    %359 = vmatprep.subr.bf16.mxu0 0
    %360 = vmatpush1.bf16.msra.mxu0 %v264
    %361 = vmatprep.subr.bf16.mxu0 0
    %362 = vmatpush1.bf16.msra.mxu0 %v265
    %363 = vmatprep.subr.bf16.mxu0 0
    %364 = vmatpush1.bf16.msra.mxu0 %v266
    %365 = vmatprep.subr.bf16.mxu0 0
    %366 = vmatpush1.bf16.msra.mxu0 %v267
    %367 = vmatprep.subr.bf16.mxu0 0
    %368 = vmatpush1.bf16.msra.mxu0 %v268
    %369 = vmatprep.subr.bf16.mxu0 0
    %370 = vmatpush1.bf16.msra.mxu0 %v269
    %371 = vmatprep.subr.bf16.mxu0 0
    %372 = vmatpush1.bf16.msra.mxu0 %v270
    %373 = vmatprep.subr.bf16.mxu0 0
    %374 = vmatpush1.bf16.msra.mxu0 %v271
    %375 = vmatprep.subr.bf16.mxu0 0
    %376 = vmatpush1.bf16.msra.mxu0 %v272
    %377 = vmatprep.mubr.bf16.mxu0 %v108
    %378 = vmatmul.mubr.bf16.gmra.mrb[0].mxu0 %v107
    %v379 = vpop.f32.mrb[0].mxu0
    %v380 = vadd.f32 %v340, %v379
    %v381 = vpop.f32.mrb[0].mxu0
    %v382 = vpop.f32.mrb[0].mxu0
    %v383 = vpop.f32.mrb[0].mxu0
    %384 = vdwg.mxu0
    %v385 = vld [vmem:[%s2] sm:$0x1]
    %v387 = vlaneseq
    %v388 = vshrl.u32 %v387, 7
    %v389 = vsub.s32 0, %v388
    %v390 = vrot.slane %v385, %v389
    %v392 = vmul.f32 %v380, %v390
    %v393 = vld [vmem:[%s3] sm:$0x1]
    %v395 = vlaneseq
    %v396 = vshrl.u32 %v395, 7
    %v397 = vsub.s32 0, %v396
    %v398 = vrot.slane %v393, %v397
    %v400 = vadd.f32 %v392, %v398
    %vm401 = vcmask 74752
    %402 = vst.msk [vmem:[#allocation2] sm:$0x3] %vm401, %v400
    // Predicated region
    $region18: #{vgg_forward.9} parent=1 // pred_check
      _
    $region19: #{vgg_forward.9} parent=1 // pred_check_branch
      %404 = sbr.rel (0) target = $region21
    $region20: #{vgg_forward.9} parent=1 // pred_region
      %s406 = ssub.s32 32, 32
      %407 = vsyncadd [#allocation3], %s406
      %s409 = sshll.u32 [#allocation2], 4
      %s410 = int_to_ptr.vmem [resolvable:$true] %s409
      %412 = dma.vmem_to_hbm [thread:$0]  %s410, 32, %s4, [#allocation3]
    $region21: #{vgg_forward.9} parent=1 // pred_fallthru
      _
    // Predicated region
    $region22: #{vgg_forward.9} parent=1 // pred_check
      _
    $region23: #{vgg_forward.9} parent=1 // pred_check_branch
      %414 = sbr.rel (0) target = $region25
    $region24: #{vgg_forward.9} parent=1 // pred_region
      %415 = dma.done [#allocation3], 32
    $region25: #{vgg_forward.9} parent=1 // pred_fallthru
      _
    %416 = vsyncpa [#allocation3], 1

</llo_original>
